<compile_context>
chip_gen: v7x
topology: tpu7x:2x2x1
jax: 0.10.0
libtpu: 0.0.40
codegen_flags: <defaults>
</compile_context>

<pallas_src>
from math import gcd, log2

import jax
import jax.numpy as jnp
from jax.experimental import pallas as pl
from jax.experimental.pallas import tpu as pltpu


def _round_up(x, m):
    return (x + m - 1) // m * m


# ----------------------------- Pallas kernels ------------------------------

def _conv_stats_kernel(p_ref, w_ref, o_ref, st_ref):
    """Tiled matmul: accumulate bf16 x bf16 -> f32 directly into o_ref.

    On the last K step also emit per-M-tile partial BN statistics:
    st row 0 = per-channel sum, row 1 = per-channel sum of squares.
    """
    k = pl.program_id(1)

    @pl.when(k == 0)
    def _():
        o_ref[...] = jnp.zeros_like(o_ref)

    o_ref[...] += jnp.dot(p_ref[...], w_ref[...],
                          preferred_element_type=jnp.float32)

    @pl.when(k == pl.num_programs(1) - 1)
    def _():
        acc = o_ref[...]
        s = jnp.sum(acc, axis=0, keepdims=True)            # (1, Cout_p)
        ss = jnp.sum(acc * acc, axis=0, keepdims=True)      # (1, Cout_p)
        rows = jax.lax.broadcasted_iota(jnp.int32, st_ref.shape, 0)
        st_ref[...] = jnp.where(rows == 0, s, jnp.where(rows == 1, ss, 0.0))


def conv_matmul_stats(patches, w2d, *, tm, tk):
    M_p, K_p = patches.shape
    _, Cout_p = w2d.shape
    n_m = M_p // tm
    n_k = K_p // tk
    return pl.pallas_call(
        _conv_stats_kernel,
        out_shape=(
            jax.ShapeDtypeStruct((M_p, Cout_p), jnp.float32),
            jax.ShapeDtypeStruct((n_m * 8, Cout_p), jnp.float32),
        ),
        grid_spec=pltpu.PrefetchScalarGridSpec(
            num_scalar_prefetch=0,
            grid=(n_m, n_k),
            in_specs=[
                pl.BlockSpec((tm, tk), lambda m, k: (m, k)),
                pl.BlockSpec((tk, Cout_p), lambda m, k: (k, 0)),
            ],
            out_specs=(
                pl.BlockSpec((tm, Cout_p), lambda m, k: (m, 0)),
                pl.BlockSpec((8, Cout_p), lambda m, k: (m, 0)),
            ),
        ),
        compiler_params=pltpu.CompilerParams(
            dimension_semantics=("parallel", "arbitrary"),
            vmem_limit_bytes=48 << 20,    # headroom below v7x's 64 MiB VMEM
        ),
    )(patches, w2d)


def _bn_lrelu_kernel(x_ref, scale_ref, shift_ref, o_ref):
    # y = (x - mean) * rsqrt(var + eps) * gamma + beta, folded to x*scale+shift
    y = x_ref[...] * scale_ref[...] + shift_ref[...]
    o_ref[...] = jnp.where(y > 0, y, 0.2 * y).astype(o_ref.dtype)


def bn_lrelu(x, scale, shift, *, tm, out_dtype=jnp.bfloat16):
    M_p, Cout_p = x.shape
    return pl.pallas_call(
        _bn_lrelu_kernel,
        out_shape=jax.ShapeDtypeStruct((M_p, Cout_p), out_dtype),
        grid_spec=pltpu.PrefetchScalarGridSpec(
            num_scalar_prefetch=0,
            grid=(M_p // tm,),
            in_specs=[
                pl.BlockSpec((tm, Cout_p), lambda m: (m, 0)),
                pl.BlockSpec((1, Cout_p), lambda m: (0, 0)),
                pl.BlockSpec((1, Cout_p), lambda m: (0, 0)),
            ],
            out_specs=pl.BlockSpec((tm, Cout_p), lambda m: (m, 0)),
        ),
        compiler_params=pltpu.CompilerParams(
            dimension_semantics=("parallel",),
            vmem_limit_bytes=48 << 20,
        ),
    )(x, scale, shift)


def _linear_kernel(x_ref, w_ref, b_ref, o_ref):
    o_ref[...] = (jnp.dot(x_ref[...], w_ref[...],
                          preferred_element_type=jnp.float32) + b_ref[...])


def linear(x, w, b):
    M, K = x.shape
    _, N = w.shape
    return pl.pallas_call(
        _linear_kernel,
        out_shape=jax.ShapeDtypeStruct((M, N), jnp.float32),
        grid_spec=pltpu.PrefetchScalarGridSpec(
            num_scalar_prefetch=0,
            grid=(1,),
            in_specs=[
                pl.BlockSpec((M, K), lambda i: (0, 0)),
                pl.BlockSpec((K, N), lambda i: (0, 0)),
                pl.BlockSpec((1, N), lambda i: (0, 0)),
            ],
            out_specs=pl.BlockSpec((M, N), lambda i: (0, 0)),
        ),
        compiler_params=pltpu.CompilerParams(vmem_limit_bytes=48 << 20),
    )(x, w, b)


# ------------------------------ JAX glue -----------------------------------

def im2col_nhwc(x_nhwc, k=4, s=2, p=1):
    # Patch rows ordered (n, ho, wo); patch columns ordered (kh, kw, cin) so
    # the weight is presented as weight.transpose(2,3,1,0).reshape(-1, Cout).
    # TODO(synk): fold this gather into the Pallas kernel (strided index_map /
    # manual DMA) to avoid materializing the 16x-inflated patch matrix in HBM.
    N, H, W, C = x_nhwc.shape
    Ho = (H + 2 * p - k) // s + 1
    Wo = (W + 2 * p - k) // s + 1
    xp = jnp.pad(x_nhwc, ((0, 0), (p, p), (p, p), (0, 0)))
    cols = [xp[:, i:i + s * Ho:s, j:j + s * Wo:s, :]
            for i in range(k) for j in range(k)]         # each [N, Ho, Wo, C]
    patches = jnp.stack(cols, axis=3)                    # [N, Ho, Wo, k*k, C]
    return patches.reshape(N * Ho * Wo, k * k * C), (N, Ho, Wo)


def block_d(x_nhwc, w_oihw, gamma, beta):
    """Conv2d(4,4,stride=2,pad=1,bias=False) + BatchNorm2d + LeakyReLU(0.2)."""
    Cout, Cin = w_oihw.shape[:2]
    patches, (N, Ho, Wo) = im2col_nhwc(x_nhwc)           # bf16 [M, 16*Cin]
    M, K = patches.shape

    # Pad K and Cout to lane multiples; tile M.
    K_p = _round_up(K, 128)
    Cout_p = _round_up(Cout, 128)
    tm = 256 if M >= 256 else _round_up(M, 8)
    M_p = _round_up(M, tm)
    tk = gcd(K_p, 512)                                   # 128/256/512

    patches = jnp.pad(patches, ((0, M_p - M), (0, K_p - K)))
    w2d = w_oihw.transpose(2, 3, 1, 0).reshape(K, Cout)  # rows = (kh, kw, cin)
    w2d = jnp.pad(w2d, ((0, K_p - K), (0, Cout_p - Cout))).astype(jnp.bfloat16)

    conv, stats = conv_matmul_stats(patches, w2d, tm=tm, tk=tk)

    # BatchNorm2d (training mode): biased batch stats over the real M rows.
    # Padded rows/channels are exact zeros so they contribute nothing.
    tot = stats.reshape(-1, 8, Cout_p).sum(axis=0)       # (8, Cout_p)
    mean = tot[0] / M
    var = jnp.maximum(tot[1] / M - mean * mean, 0.0)
    gamma_p = jnp.pad(gamma, (0, Cout_p - Cout))
    beta_p = jnp.pad(beta, (0, Cout_p - Cout))
    scale = gamma_p * jax.lax.rsqrt(var + 1e-5)
    shift = beta_p - mean * scale

    y = bn_lrelu(conv, scale.reshape(1, -1), shift.reshape(1, -1), tm=tm)
    y = y[:M, :Cout].reshape(N, Ho, Wo, Cout)            # NHWC, bf16
    return y


OUT_CHANNELS = {4: 512, 8: 512, 16: 512, 32: 512, 64: 256,
                128: 128, 256: 64, 512: 32, 1024: 16}


def init_discriminator(key, max_resolution):
    end = int(log2(max_resolution)) - 2
    channels = [3] + [OUT_CHANNELS[max_resolution // 2 ** (i + 1)]
                      for i in range(end)]
    keys = jax.random.split(key, end + 1)
    blocks = []
    for i in range(end):
        cin, cout = channels[i], channels[i + 1]
        fan_in = cin * 4 * 4
        w = jax.random.normal(keys[i], (cout, cin, 4, 4),
                              jnp.float32) / jnp.sqrt(fan_in)
        blocks.append({"w": w,
                       "gamma": jnp.ones((cout,), jnp.float32),
                       "beta": jnp.zeros((cout,), jnp.float32)})
    feat = channels[-1] * 4 * 4
    lw = jax.random.normal(keys[end], (feat, 1), jnp.float32) / jnp.sqrt(feat)
    lb = jnp.zeros((1, 1), jnp.float32)
    # TODO(synk): the PyTorch module also builds an Adam optimizer; it is
    # training state only and has no forward-pass equivalent.
    return {"blocks": blocks, "linear_w": lw, "linear_b": lb}


def discriminator_forward(params, x_nchw):
    # Input follows the PyTorch NCHW convention; convert once to NHWC/bf16.
    x = jnp.transpose(x_nchw, (0, 2, 3, 1)).astype(jnp.bfloat16)
    for blk in params["blocks"]:
        x = block_d(x, blk["w"], blk["gamma"], blk["beta"])
    N = x.shape[0]
    # nn.Flatten in the PyTorch module flattens NCHW — replicate that ordering.
    x = jnp.transpose(x, (0, 3, 1, 2)).reshape(N, -1).astype(jnp.float32)
    return linear(x, params["linear_w"], params["linear_b"])


if __name__ == "__main__":
    max_resolution = 16                                  # 2 BlockD stages + Linear
    key = jax.random.PRNGKey(0)
    kp, kx = jax.random.split(key)
    params = init_discriminator(kp, max_resolution)
    x = jax.random.normal(kx, (2, 3, max_resolution, max_resolution),
                          jnp.float32)
    out = jax.jit(discriminator_forward)(params, x)
    jax.block_until_ready(out)
    assert out.shape == (2, 1) and out.dtype == jnp.float32
    print("KERNEL_OK")
</pallas_src>

<mosaic_0001>
module attributes {stable_mosaic.version = 11 : i64} {
  func.func @_conv_stats_kernel(%arg0: i32, %arg1: i32, %arg2: memref<128x128xbf16, #tpu.memory_space<vmem>>, %arg3: memref<128x512xbf16, #tpu.memory_space<vmem>>, %arg4: memref<128x512xf32, #tpu.memory_space<vmem>>, %arg5: memref<8x512xf32, #tpu.memory_space<vmem>>) attributes {dimension_semantics = [#tpu.dimension_semantics<parallel>, #tpu.dimension_semantics<arbitrary>], iteration_bounds = array<i64: 1, 1>, scalar_prefetch = 0 : i64, scratch_operands = 0 : i64, tpu.core_type = #tpu.core_type<tc>, window_params = [{transform_indices = @transform_0, window_bounds = array<i64: 128, 128>}, {transform_indices = @transform_1, window_bounds = array<i64: 128, 512>}, {transform_indices = @transform_2, window_bounds = array<i64: 128, 512>}, {transform_indices = @transform_3, window_bounds = array<i64: 8, 512>}]} {
    %c0_i32 = arith.constant 0 : i32
    %0 = arith.cmpi eq, %arg1, %c0_i32 : i32
    %1 = arith.extui %0 : i1 to i32
    %c0_i32_0 = arith.constant 0 : i32
    %2 = arith.cmpi ne, %1, %c0_i32_0 : i32
    scf.if %2 {
      %cst_10 = arith.constant 0.000000e+00 : f32
      %12 = vector.broadcast %cst_10 : f32 to vector<128x512xf32>
      %c0_11 = arith.constant 0 : index
      %c0_12 = arith.constant 0 : index
      %13 = vector.load %arg4[%c0_11, %c0_12] : memref<128x512xf32, #tpu.memory_space<vmem>>, vector<128x512xf32>
      tpu.vector_store %arg4[%c0_11, %c0_12], %12 {strides = array<i32>} : memref<128x512xf32, #tpu.memory_space<vmem>>, vector<128x512xf32>,
    } else {
    }
    %c0 = arith.constant 0 : index
    %c0_1 = arith.constant 0 : index
    %3 = vector.load %arg4[%c0, %c0_1] : memref<128x512xf32, #tpu.memory_space<vmem>>, vector<128x512xf32>
    %c0_2 = arith.constant 0 : index
    %c0_3 = arith.constant 0 : index
    %4 = vector.load %arg2[%c0_2, %c0_3] : memref<128x128xbf16, #tpu.memory_space<vmem>>, vector<128x128xbf16>
    %c0_4 = arith.constant 0 : index
    %c0_5 = arith.constant 0 : index
    %5 = vector.load %arg3[%c0_4, %c0_5] : memref<128x512xbf16, #tpu.memory_space<vmem>>, vector<128x512xbf16>
    %cst = arith.constant dense<0.000000e+00> : vector<128x512xf32>
    %6 = tpu.matmul %4, %5, %cst {dimension_numbers = #tpu.dot_dimension_numbers<[1], [0], [0], [1], [0, 0, 1, 1], [], []>} : vector<128x128xbf16>, vector<128x512xbf16>, vector<128x512xf32> -> vector<128x512xf32>
    %7 = arith.addf %3, %6 : vector<128x512xf32>
    %c0_6 = arith.constant 0 : index
    %c0_7 = arith.constant 0 : index
    %8 = vector.load %arg4[%c0_6, %c0_7] : memref<128x512xf32, #tpu.memory_space<vmem>>, vector<128x512xf32>
    tpu.vector_store %arg4[%c0_6, %c0_7], %7 {strides = array<i32>} : memref<128x512xf32, #tpu.memory_space<vmem>>, vector<128x512xf32>,
    %c0_i32_8 = arith.constant 0 : i32
    %9 = arith.cmpi eq, %arg1, %c0_i32_8 : i32
    %10 = arith.extui %9 : i1 to i32
    %c0_i32_9 = arith.constant 0 : i32
    %11 = arith.cmpi ne, %10, %c0_i32_9 : i32
    scf.if %11 {
      %c0_10 = arith.constant 0 : index
      %c0_11 = arith.constant 0 : index
      %12 = vector.load %arg4[%c0_10, %c0_11] : memref<128x512xf32, #tpu.memory_space<vmem>>, vector<128x512xf32>
      %cst_12 = arith.constant dense<0.000000e+00> : vector<512xf32>
      %13 = vector.multi_reduction <add>, %12, %cst_12 [0] : vector<128x512xf32> to vector<512xf32>
      %14 = vector.shape_cast %13 : vector<512xf32> to vector<1x512xf32>
      %15 = arith.mulf %12, %12 : vector<128x512xf32>
      %cst_13 = arith.constant dense<0.000000e+00> : vector<512xf32>
      %16 = vector.multi_reduction <add>, %15, %cst_13 [0] : vector<128x512xf32> to vector<512xf32>
      %17 = vector.shape_cast %16 : vector<512xf32> to vector<1x512xf32>
      %18 = tpu.iota {dimensions = array<i32: 0>} : vector<8x512xi32>
      %c0_i32_14 = arith.constant 0 : i32
      %19 = vector.broadcast %c0_i32_14 : i32 to vector<8x512xi32>
      %20 = arith.cmpi eq, %18, %19 : vector<8x512xi32>
      %c1_i32 = arith.constant 1 : i32
      %21 = vector.broadcast %c1_i32 : i32 to vector<8x512xi32>
      %22 = arith.cmpi eq, %18, %21 : vector<8x512xi32>
      %cst_15 = arith.constant 0.000000e+00 : f32
      %23 = vector.shape_cast %17 : vector<1x512xf32> to vector<1x512xf32>
      %24 = vector.broadcast %23 : vector<1x512xf32> to vector<8x512xf32>
      %25 = vector.broadcast %cst_15 : f32 to vector<8x512xf32>
      %26 = arith.select %22, %24, %25 : vector<8x512xi1>, vector<8x512xf32>
      %27 = vector.shape_cast %14 : vector<1x512xf32> to vector<1x512xf32>
      %28 = vector.broadcast %27 : vector<1x512xf32> to vector<8x512xf32>
      %29 = arith.select %20, %28, %26 : vector<8x512xi1>, vector<8x512xf32>
      %c0_16 = arith.constant 0 : index
      %c0_17 = arith.constant 0 : index
      %30 = vector.load %arg5[%c0_16, %c0_17] : memref<8x512xf32, #tpu.memory_space<vmem>>, vector<8x512xf32>
      tpu.vector_store %arg5[%c0_16, %c0_17], %29 {strides = array<i32>} : memref<8x512xf32, #tpu.memory_space<vmem>>, vector<8x512xf32>,
    } else {
    }
    return
  }
  func.func @transform_0(%arg0: i32, %arg1: i32) -> (i32, i32) {
    %c0_i32 = arith.constant 0 : i32
    return %arg0, %arg1 : i32, i32
  }
  func.func @transform_1(%arg0: i32, %arg1: i32) -> (i32, i32) {
    %c0_i32 = arith.constant 0 : i32
    %c0_i32_0 = arith.constant 0 : i32
    return %arg1, %c0_i32 : i32, i32
  }
  func.func @transform_2(%arg0: i32, %arg1: i32) -> (i32, i32) {
    %c0_i32 = arith.constant 0 : i32
    %c0_i32_0 = arith.constant 0 : i32
    return %arg0, %c0_i32 : i32, i32
  }
  func.func @transform_3(%arg0: i32, %arg1: i32) -> (i32, i32) {
    %c0_i32 = arith.constant 0 : i32
    %c0_i32_0 = arith.constant 0 : i32
    return %arg0, %c0_i32 : i32, i32
  }
}

module attributes {stable_mosaic.version = 11 : i64} {
  func.func @_bn_lrelu_kernel(%arg0: i32, %arg1: memref<128x512xf32, #tpu.memory_space<vmem>>, %arg2: memref<1x512xf32, #tpu.memory_space<vmem>>, %arg3: memref<1x512xf32, #tpu.memory_space<vmem>>, %arg4: memref<128x512xbf16, #tpu.memory_space<vmem>>) attributes {dimension_semantics = [#tpu.dimension_semantics<parallel>], iteration_bounds = array<i64: 1>, scalar_prefetch = 0 : i64, scratch_operands = 0 : i64, tpu.core_type = #tpu.core_type<tc>, window_params = [{transform_indices = @transform_0, window_bounds = array<i64: 128, 512>}, {pipeline_mode = #tpu.pipeline_mode<synchronous>, transform_indices = @transform_1, window_bounds = array<i64: 1, 512>}, {pipeline_mode = #tpu.pipeline_mode<synchronous>, transform_indices = @transform_2, window_bounds = array<i64: 1, 512>}, {transform_indices = @transform_3, window_bounds = array<i64: 128, 512>}]} {
    %c0 = arith.constant 0 : index
    %c0_0 = arith.constant 0 : index
    %0 = vector.load %arg1[%c0, %c0_0] : memref<128x512xf32, #tpu.memory_space<vmem>>, vector<128x512xf32>
    %c0_1 = arith.constant 0 : index
    %c0_2 = arith.constant 0 : index
    %1 = vector.load %arg2[%c0_1, %c0_2] : memref<1x512xf32, #tpu.memory_space<vmem>>, vector<1x512xf32>
    %2 = vector.broadcast %1 : vector<1x512xf32> to vector<128x512xf32>
    %3 = arith.mulf %0, %2 : vector<128x512xf32>
    %c0_3 = arith.constant 0 : index
    %c0_4 = arith.constant 0 : index
    %4 = vector.load %arg3[%c0_3, %c0_4] : memref<1x512xf32, #tpu.memory_space<vmem>>, vector<1x512xf32>
    %5 = vector.broadcast %4 : vector<1x512xf32> to vector<128x512xf32>
    %6 = arith.addf %3, %5 : vector<128x512xf32>
    %cst = arith.constant 0.000000e+00 : f32
    %7 = vector.broadcast %cst : f32 to vector<128x512xf32>
    %8 = arith.cmpf ogt, %6, %7 : vector<128x512xf32>
    %cst_5 = arith.constant 2.000000e-01 : f32
    %9 = vector.broadcast %cst_5 : f32 to vector<128x512xf32>
    %10 = arith.mulf %9, %6 : vector<128x512xf32>
    %11 = arith.select %8, %6, %10 : vector<128x512xi1>, vector<128x512xf32>
    %12 = arith.truncf %11 : vector<128x512xf32> to vector<128x512xbf16>
    %c0_6 = arith.constant 0 : index
    %c0_7 = arith.constant 0 : index
    %13 = vector.load %arg4[%c0_6, %c0_7] : memref<128x512xbf16, #tpu.memory_space<vmem>>, vector<128x512xbf16>
    tpu.vector_store %arg4[%c0_6, %c0_7], %12 {strides = array<i32>} : memref<128x512xbf16, #tpu.memory_space<vmem>>, vector<128x512xbf16>,
    return
  }
  func.func @transform_0(%arg0: i32) -> (i32, i32) {
    %c0_i32 = arith.constant 0 : i32
    %c0_i32_0 = arith.constant 0 : i32
    return %arg0, %c0_i32 : i32, i32
  }
  func.func @transform_1(%arg0: i32) -> (i32, i32) {
    %c0_i32 = arith.constant 0 : i32
    %c0_i32_0 = arith.constant 0 : i32
    %c0_i32_1 = arith.constant 0 : i32
    return %c0_i32, %c0_i32_0 : i32, i32
  }
  func.func @transform_2(%arg0: i32) -> (i32, i32) {
    %c0_i32 = arith.constant 0 : i32
    %c0_i32_0 = arith.constant 0 : i32
    %c0_i32_1 = arith.constant 0 : i32
    return %c0_i32, %c0_i32_0 : i32, i32
  }
  func.func @transform_3(%arg0: i32) -> (i32, i32) {
    %c0_i32 = arith.constant 0 : i32
    %c0_i32_0 = arith.constant 0 : i32
    return %arg0, %c0_i32 : i32, i32
  }
}

module attributes {stable_mosaic.version = 11 : i64} {
  func.func @_conv_stats_kernel(%arg0: i32, %arg1: i32, %arg2: memref<32x512xbf16, #tpu.memory_space<vmem>>, %arg3: memref<512x512xbf16, #tpu.memory_space<vmem>>, %arg4: memref<32x512xf32, #tpu.memory_space<vmem>>, %arg5: memref<8x512xf32, #tpu.memory_space<vmem>>) attributes {dimension_semantics = [#tpu.dimension_semantics<parallel>, #tpu.dimension_semantics<arbitrary>], iteration_bounds = array<i64: 1, 16>, scalar_prefetch = 0 : i64, scratch_operands = 0 : i64, tpu.core_type = #tpu.core_type<tc>, window_params = [{transform_indices = @transform_0, window_bounds = array<i64: 32, 512>}, {transform_indices = @transform_1, window_bounds = array<i64: 512, 512>}, {transform_indices = @transform_2, window_bounds = array<i64: 32, 512>}, {transform_indices = @transform_3, window_bounds = array<i64: 8, 512>}]} {
    %c0_i32 = arith.constant 0 : i32
    %0 = arith.cmpi eq, %arg1, %c0_i32 : i32
    %1 = arith.extui %0 : i1 to i32
    %c0_i32_0 = arith.constant 0 : i32
    %2 = arith.cmpi ne, %1, %c0_i32_0 : i32
    scf.if %2 {
      %cst_9 = arith.constant 0.000000e+00 : f32
      %12 = vector.broadcast %cst_9 : f32 to vector<32x512xf32>
      %c0_10 = arith.constant 0 : index
      %c0_11 = arith.constant 0 : index
      %13 = vector.load %arg4[%c0_10, %c0_11] : memref<32x512xf32, #tpu.memory_space<vmem>>, vector<32x512xf32>
      tpu.vector_store %arg4[%c0_10, %c0_11], %12 {strides = array<i32>} : memref<32x512xf32, #tpu.memory_space<vmem>>, vector<32x512xf32>,
    } else {
    }
    %c0 = arith.constant 0 : index
    %c0_1 = arith.constant 0 : index
    %3 = vector.load %arg4[%c0, %c0_1] : memref<32x512xf32, #tpu.memory_space<vmem>>, vector<32x512xf32>
    %c0_2 = arith.constant 0 : index
    %c0_3 = arith.constant 0 : index
    %4 = vector.load %arg2[%c0_2, %c0_3] : memref<32x512xbf16, #tpu.memory_space<vmem>>, vector<32x512xbf16>
    %c0_4 = arith.constant 0 : index
    %c0_5 = arith.constant 0 : index
    %5 = vector.load %arg3[%c0_4, %c0_5] : memref<512x512xbf16, #tpu.memory_space<vmem>>, vector<512x512xbf16>
    %cst = arith.constant dense<0.000000e+00> : vector<32x512xf32>
    %6 = tpu.matmul %4, %5, %cst {dimension_numbers = #tpu.dot_dimension_numbers<[1], [0], [0], [1], [0, 0, 1, 1], [], []>} : vector<32x512xbf16>, vector<512x512xbf16>, vector<32x512xf32> -> vector<32x512xf32>
    %7 = arith.addf %3, %6 : vector<32x512xf32>
    %c0_6 = arith.constant 0 : index
    %c0_7 = arith.constant 0 : index
    %8 = vector.load %arg4[%c0_6, %c0_7] : memref<32x512xf32, #tpu.memory_space<vmem>>, vector<32x512xf32>
    tpu.vector_store %arg4[%c0_6, %c0_7], %7 {strides = array<i32>} : memref<32x512xf32, #tpu.memory_space<vmem>>, vector<32x512xf32>,
    %c15_i32 = arith.constant 15 : i32
    %9 = arith.cmpi eq, %arg1, %c15_i32 : i32
    %10 = arith.extui %9 : i1 to i32
    %c0_i32_8 = arith.constant 0 : i32
    %11 = arith.cmpi ne, %10, %c0_i32_8 : i32
    scf.if %11 {
      %c0_9 = arith.constant 0 : index
      %c0_10 = arith.constant 0 : index
      %12 = vector.load %arg4[%c0_9, %c0_10] : memref<32x512xf32, #tpu.memory_space<vmem>>, vector<32x512xf32>
      %cst_11 = arith.constant dense<0.000000e+00> : vector<512xf32>
      %13 = vector.multi_reduction <add>, %12, %cst_11 [0] : vector<32x512xf32> to vector<512xf32>
      %14 = vector.shape_cast %13 : vector<512xf32> to vector<1x512xf32>
      %15 = arith.mulf %12, %12 : vector<32x512xf32>
      %cst_12 = arith.constant dense<0.000000e+00> : vector<512xf32>
      %16 = vector.multi_reduction <add>, %15, %cst_12 [0] : vector<32x512xf32> to vector<512xf32>
      %17 = vector.shape_cast %16 : vector<512xf32> to vector<1x512xf32>
      %18 = tpu.iota {dimensions = array<i32: 0>} : vector<8x512xi32>
      %c0_i32_13 = arith.constant 0 : i32
      %19 = vector.broadcast %c0_i32_13 : i32 to vector<8x512xi32>
      %20 = arith.cmpi eq, %18, %19 : vector<8x512xi32>
      %c1_i32 = arith.constant 1 : i32
      %21 = vector.broadcast %c1_i32 : i32 to vector<8x512xi32>
      %22 = arith.cmpi eq, %18, %21 : vector<8x512xi32>
      %cst_14 = arith.constant 0.000000e+00 : f32
      %23 = vector.shape_cast %17 : vector<1x512xf32> to vector<1x512xf32>
      %24 = vector.broadcast %23 : vector<1x512xf32> to vector<8x512xf32>
      %25 = vector.broadcast %cst_14 : f32 to vector<8x512xf32>
      %26 = arith.select %22, %24, %25 : vector<8x512xi1>, vector<8x512xf32>
      %27 = vector.shape_cast %14 : vector<1x512xf32> to vector<1x512xf32>
      %28 = vector.broadcast %27 : vector<1x512xf32> to vector<8x512xf32>
      %29 = arith.select %20, %28, %26 : vector<8x512xi1>, vector<8x512xf32>
      %c0_15 = arith.constant 0 : index
      %c0_16 = arith.constant 0 : index
      %30 = vector.load %arg5[%c0_15, %c0_16] : memref<8x512xf32, #tpu.memory_space<vmem>>, vector<8x512xf32>
      tpu.vector_store %arg5[%c0_15, %c0_16], %29 {strides = array<i32>} : memref<8x512xf32, #tpu.memory_space<vmem>>, vector<8x512xf32>,
    } else {
    }
    return
  }
  func.func @transform_0(%arg0: i32, %arg1: i32) -> (i32, i32) {
    %c0_i32 = arith.constant 0 : i32
    return %arg0, %arg1 : i32, i32
  }
  func.func @transform_1(%arg0: i32, %arg1: i32) -> (i32, i32) {
    %c0_i32 = arith.constant 0 : i32
    %c0_i32_0 = arith.constant 0 : i32
    return %arg1, %c0_i32 : i32, i32
  }
  func.func @transform_2(%arg0: i32, %arg1: i32) -> (i32, i32) {
    %c0_i32 = arith.constant 0 : i32
    %c0_i32_0 = arith.constant 0 : i32
    return %arg0, %c0_i32 : i32, i32
  }
  func.func @transform_3(%arg0: i32, %arg1: i32) -> (i32, i32) {
    %c0_i32 = arith.constant 0 : i32
    %c0_i32_0 = arith.constant 0 : i32
    return %arg0, %c0_i32 : i32, i32
  }
}

module attributes {stable_mosaic.version = 11 : i64} {
  func.func @_bn_lrelu_kernel(%arg0: i32, %arg1: memref<32x512xf32, #tpu.memory_space<vmem>>, %arg2: memref<1x512xf32, #tpu.memory_space<vmem>>, %arg3: memref<1x512xf32, #tpu.memory_space<vmem>>, %arg4: memref<32x512xbf16, #tpu.memory_space<vmem>>) attributes {dimension_semantics = [#tpu.dimension_semantics<parallel>], iteration_bounds = array<i64: 1>, scalar_prefetch = 0 : i64, scratch_operands = 0 : i64, tpu.core_type = #tpu.core_type<tc>, window_params = [{transform_indices = @transform_0, window_bounds = array<i64: 32, 512>}, {pipeline_mode = #tpu.pipeline_mode<synchronous>, transform_indices = @transform_1, window_bounds = array<i64: 1, 512>}, {pipeline_mode = #tpu.pipeline_mode<synchronous>, transform_indices = @transform_2, window_bounds = array<i64: 1, 512>}, {transform_indices = @transform_3, window_bounds = array<i64: 32, 512>}]} {
    %c0 = arith.constant 0 : index
    %c0_0 = arith.constant 0 : index
    %0 = vector.load %arg1[%c0, %c0_0] : memref<32x512xf32, #tpu.memory_space<vmem>>, vector<32x512xf32>
    %c0_1 = arith.constant 0 : index
    %c0_2 = arith.constant 0 : index
    %1 = vector.load %arg2[%c0_1, %c0_2] : memref<1x512xf32, #tpu.memory_space<vmem>>, vector<1x512xf32>
    %2 = vector.broadcast %1 : vector<1x512xf32> to vector<32x512xf32>
    %3 = arith.mulf %0, %2 : vector<32x512xf32>
    %c0_3 = arith.constant 0 : index
    %c0_4 = arith.constant 0 : index
    %4 = vector.load %arg3[%c0_3, %c0_4] : memref<1x512xf32, #tpu.memory_space<vmem>>, vector<1x512xf32>
    %5 = vector.broadcast %4 : vector<1x512xf32> to vector<32x512xf32>
    %6 = arith.addf %3, %5 : vector<32x512xf32>
    %cst = arith.constant 0.000000e+00 : f32
    %7 = vector.broadcast %cst : f32 to vector<32x512xf32>
    %8 = arith.cmpf ogt, %6, %7 : vector<32x512xf32>
    %cst_5 = arith.constant 2.000000e-01 : f32
    %9 = vector.broadcast %cst_5 : f32 to vector<32x512xf32>
    %10 = arith.mulf %9, %6 : vector<32x512xf32>
    %11 = arith.select %8, %6, %10 : vector<32x512xi1>, vector<32x512xf32>
    %12 = arith.truncf %11 : vector<32x512xf32> to vector<32x512xbf16>
    %c0_6 = arith.constant 0 : index
    %c0_7 = arith.constant 0 : index
    %13 = vector.load %arg4[%c0_6, %c0_7] : memref<32x512xbf16, #tpu.memory_space<vmem>>, vector<32x512xbf16>
    tpu.vector_store %arg4[%c0_6, %c0_7], %12 {strides = array<i32>} : memref<32x512xbf16, #tpu.memory_space<vmem>>, vector<32x512xbf16>,
    return
  }
  func.func @transform_0(%arg0: i32) -> (i32, i32) {
    %c0_i32 = arith.constant 0 : i32
    %c0_i32_0 = arith.constant 0 : i32
    return %arg0, %c0_i32 : i32, i32
  }
  func.func @transform_1(%arg0: i32) -> (i32, i32) {
    %c0_i32 = arith.constant 0 : i32
    %c0_i32_0 = arith.constant 0 : i32
    %c0_i32_1 = arith.constant 0 : i32
    return %c0_i32, %c0_i32_0 : i32, i32
  }
  func.func @transform_2(%arg0: i32) -> (i32, i32) {
    %c0_i32 = arith.constant 0 : i32
    %c0_i32_0 = arith.constant 0 : i32
    %c0_i32_1 = arith.constant 0 : i32
    return %c0_i32, %c0_i32_0 : i32, i32
  }
  func.func @transform_3(%arg0: i32) -> (i32, i32) {
    %c0_i32 = arith.constant 0 : i32
    %c0_i32_0 = arith.constant 0 : i32
    return %arg0, %c0_i32 : i32, i32
  }
}

module attributes {stable_mosaic.version = 11 : i64} {
  func.func @_linear_kernel(%arg0: i32, %arg1: memref<2x8192xf32, #tpu.memory_space<vmem>>, %arg2: memref<8192x1xf32, #tpu.memory_space<vmem>>, %arg3: memref<1x1xf32, #tpu.memory_space<vmem>>, %arg4: memref<2x1xf32, #tpu.memory_space<vmem>>) attributes {dimension_semantics = [#tpu.dimension_semantics<arbitrary>], iteration_bounds = array<i64: 1>, scalar_prefetch = 0 : i64, scratch_operands = 0 : i64, tpu.core_type = #tpu.core_type<tc>, window_params = [{pipeline_mode = #tpu.pipeline_mode<synchronous>, transform_indices = @transform_0, window_bounds = array<i64: 2, 8192>}, {pipeline_mode = #tpu.pipeline_mode<synchronous>, transform_indices = @transform_1, window_bounds = array<i64: 8192, 1>}, {pipeline_mode = #tpu.pipeline_mode<synchronous>, transform_indices = @transform_2, window_bounds = array<i64: 1, 1>}, {pipeline_mode = #tpu.pipeline_mode<synchronous>, transform_indices = @transform_3, window_bounds = array<i64: 2, 1>}]} {
    %c0 = arith.constant 0 : index
    %c0_0 = arith.constant 0 : index
    %0 = vector.load %arg1[%c0, %c0_0] : memref<2x8192xf32, #tpu.memory_space<vmem>>, vector<2x8192xf32>
    %c0_1 = arith.constant 0 : index
    %c0_2 = arith.constant 0 : index
    %1 = vector.load %arg2[%c0_1, %c0_2] : memref<8192x1xf32, #tpu.memory_space<vmem>>, vector<8192x1xf32>
    %cst = arith.constant dense<0.000000e+00> : vector<2x1xf32>
    %2 = tpu.matmul %0, %1, %cst {dimension_numbers = #tpu.dot_dimension_numbers<[1], [0], [0], [1], [0, 0, 1, 1], [], []>} : vector<2x8192xf32>, vector<8192x1xf32>, vector<2x1xf32> -> vector<2x1xf32>
    %c0_3 = arith.constant 0 : index
    %c0_4 = arith.constant 0 : index
    %3 = vector.load %arg3[%c0_3, %c0_4] : memref<1x1xf32, #tpu.memory_space<vmem>>, vector<1x1xf32>
    %4 = vector.broadcast %3 : vector<1x1xf32> to vector<2x1xf32>
    %5 = arith.addf %2, %4 : vector<2x1xf32>
    %c0_5 = arith.constant 0 : index
    %c0_6 = arith.constant 0 : index
    %6 = vector.load %arg4[%c0_5, %c0_6] : memref<2x1xf32, #tpu.memory_space<vmem>>, vector<2x1xf32>
    tpu.vector_store %arg4[%c0_5, %c0_6], %5 {strides = array<i32>} : memref<2x1xf32, #tpu.memory_space<vmem>>, vector<2x1xf32>,
    return
  }
  func.func @transform_0(%arg0: i32) -> (i32, i32) {
    %c0_i32 = arith.constant 0 : i32
    %c0_i32_0 = arith.constant 0 : i32
    %c0_i32_1 = arith.constant 0 : i32
    return %c0_i32, %c0_i32_0 : i32, i32
  }
  func.func @transform_1(%arg0: i32) -> (i32, i32) {
    %c0_i32 = arith.constant 0 : i32
    %c0_i32_0 = arith.constant 0 : i32
    %c0_i32_1 = arith.constant 0 : i32
    return %c0_i32, %c0_i32_0 : i32, i32
  }
  func.func @transform_2(%arg0: i32) -> (i32, i32) {
    %c0_i32 = arith.constant 0 : i32
    %c0_i32_0 = arith.constant 0 : i32
    %c0_i32_1 = arith.constant 0 : i32
    return %c0_i32, %c0_i32_0 : i32, i32
  }
  func.func @transform_3(%arg0: i32) -> (i32, i32) {
    %c0_i32 = arith.constant 0 : i32
    %c0_i32_0 = arith.constant 0 : i32
    %c0_i32_1 = arith.constant 0 : i32
    return %c0_i32, %c0_i32_0 : i32, i32
  }
}

</mosaic_0001>

<llo_original>
// kernel: discriminator_forward.6
$region0: #{discriminator_forward.6}
  #allocation0 [shape = 'u32[]', space=smem, size = 0x4, offset = 0x4, fixed_abs, tag = 'smem constant byte address 0x4 - core index']
  #allocation1 [shape = 'u32[144,128]{1,0:T(1,128)}', space=vmem, size = 0x12000, scoped, tag = 'internal scratch']
  %s0 = inlined_call_operand.vmem [shape: f32[128,512], index: 0, kind: input, shape index: {}]
  %s1 = inlined_call_operand.vmem [shape: f32[1,512], index: 1, kind: input, shape index: {}]
  %s2 = inlined_call_operand.vmem [shape: f32[1,512], index: 2, kind: input, shape index: {}]
  %s3 = inlined_call_operand.vmem [shape: bf16[128,512], index: 3, kind: output, shape index: {}]
  %s4 = sld [smem:[#allocation0]]
  $region22: #{discriminator_forward.6} parent=0
    _
  %s6 = ssub.s32 1, %s4
  %s7 = scalar_select 0, %s6, %s4
  // Predicated region
  $region2: #{discriminator_forward.6} parent=0 // pred_check
    _
  $region3: #{discriminator_forward.6} parent=0 // pred_check_branch
    %9 = sbr.rel (0) target = $region5
  $region4: #{discriminator_forward.6} parent=0 // pred_region
    _
  $region5: #{discriminator_forward.6} parent=0 // pred_fallthru
    _
  // Predicated region
  $region6: #{discriminator_forward.6} parent=0 // pred_check
    _
  $region7: #{discriminator_forward.6} parent=0 // pred_check_branch
    %11 = sbr.rel (0) target = $region9
  $region8: #{discriminator_forward.6} parent=0 // pred_region
    _
  $region9: #{discriminator_forward.6} parent=0 // pred_fallthru
    _
  // Predicated region
  $region10: #{discriminator_forward.6} parent=0 // pred_check
    _
  $region11: #{discriminator_forward.6} parent=0 // pred_check_branch
    %13 = sbr.rel (0) target = $region13
  $region12: #{discriminator_forward.6} parent=0 // pred_region
    _
  $region13: #{discriminator_forward.6} parent=0 // pred_fallthru
    _
  %v14 = vld [vmem:[%s0] sm:$0xff]
  %v15 = vld [vmem:[%s0 + $0x8] sm:$0xff]
  %v16 = vld [vmem:[%s0 + $0x10] sm:$0xff]
  %v17 = vld [vmem:[%s0 + $0x18] sm:$0xff]
  %v18 = vld [vmem:[%s0 + $0x20] sm:$0xff]
  %v19 = vld [vmem:[%s0 + $0x28] sm:$0xff]
  %v20 = vld [vmem:[%s0 + $0x30] sm:$0xff]
  %v21 = vld [vmem:[%s0 + $0x38] sm:$0xff]
  %v22 = vld [vmem:[%s0 + $0x40] sm:$0xff]
  %v23 = vld [vmem:[%s0 + $0x48] sm:$0xff]
  %v24 = vld [vmem:[%s0 + $0x50] sm:$0xff]
  %v25 = vld [vmem:[%s0 + $0x58] sm:$0xff]
  %v26 = vld [vmem:[%s0 + $0x60] sm:$0xff]
  %v27 = vld [vmem:[%s0 + $0x68] sm:$0xff]
  %v28 = vld [vmem:[%s0 + $0x70] sm:$0xff]
  %v29 = vld [vmem:[%s0 + $0x78] sm:$0xff]
  %v30 = vld [vmem:[%s0 + $0x80] sm:$0xff]
  %v31 = vld [vmem:[%s0 + $0x88] sm:$0xff]
  %v32 = vld [vmem:[%s0 + $0x90] sm:$0xff]
  %v33 = vld [vmem:[%s0 + $0x98] sm:$0xff]
  %v34 = vld [vmem:[%s0 + $0xa0] sm:$0xff]
  %v35 = vld [vmem:[%s0 + $0xa8] sm:$0xff]
  %v36 = vld [vmem:[%s0 + $0xb0] sm:$0xff]
  %v37 = vld [vmem:[%s0 + $0xb8] sm:$0xff]
  %v38 = vld [vmem:[%s0 + $0xc0] sm:$0xff]
  %v39 = vld [vmem:[%s0 + $0xc8] sm:$0xff]
  %v40 = vld [vmem:[%s0 + $0xd0] sm:$0xff]
  %v41 = vld [vmem:[%s0 + $0xd8] sm:$0xff]
  %v42 = vld [vmem:[%s0 + $0xe0] sm:$0xff]
  %v43 = vld [vmem:[%s0 + $0xe8] sm:$0xff]
  %v44 = vld [vmem:[%s0 + $0xf0] sm:$0xff]
  %v45 = vld [vmem:[%s0 + $0xf8] sm:$0xff]
  %v46 = vld [vmem:[%s0 + $0x100] sm:$0xff]
  %v47 = vld [vmem:[%s0 + $0x108] sm:$0xff]
  %v48 = vld [vmem:[%s0 + $0x110] sm:$0xff]
  %v49 = vld [vmem:[%s0 + $0x118] sm:$0xff]
  %v50 = vld [vmem:[%s0 + $0x120] sm:$0xff]
  %v51 = vld [vmem:[%s0 + $0x128] sm:$0xff]
  %v52 = vld [vmem:[%s0 + $0x130] sm:$0xff]
  %v53 = vld [vmem:[%s0 + $0x138] sm:$0xff]
  %v54 = vld [vmem:[%s0 + $0x140] sm:$0xff]
  %v55 = vld [vmem:[%s0 + $0x148] sm:$0xff]
  %v56 = vld [vmem:[%s0 + $0x150] sm:$0xff]
  %v57 = vld [vmem:[%s0 + $0x158] sm:$0xff]
  %v58 = vld [vmem:[%s0 + $0x160] sm:$0xff]
  %v59 = vld [vmem:[%s0 + $0x168] sm:$0xff]
  %v60 = vld [vmem:[%s0 + $0x170] sm:$0xff]
  %v61 = vld [vmem:[%s0 + $0x178] sm:$0xff]
  %v62 = vld [vmem:[%s0 + $0x180] sm:$0xff]
  %v63 = vld [vmem:[%s0 + $0x188] sm:$0xff]
  %v64 = vld [vmem:[%s0 + $0x190] sm:$0xff]
  %v65 = vld [vmem:[%s0 + $0x198] sm:$0xff]
  %v66 = vld [vmem:[%s0 + $0x1a0] sm:$0xff]
  %v67 = vld [vmem:[%s0 + $0x1a8] sm:$0xff]
  %v68 = vld [vmem:[%s0 + $0x1b0] sm:$0xff]
  %v69 = vld [vmem:[%s0 + $0x1b8] sm:$0xff]
  %v70 = vld [vmem:[%s0 + $0x1c0] sm:$0xff]
  %v71 = vld [vmem:[%s0 + $0x1c8] sm:$0xff]
  %v72 = vld [vmem:[%s0 + $0x1d0] sm:$0xff]
  %v73 = vld [vmem:[%s0 + $0x1d8] sm:$0xff]
  %v74 = vld [vmem:[%s0 + $0x1e0] sm:$0xff]
  %v75 = vld [vmem:[%s0 + $0x1e8] sm:$0xff]
  %v76 = vld [vmem:[%s0 + $0x1f0] sm:$0xff]
  %v77 = vld [vmem:[%s0 + $0x1f8] sm:$0xff]
  %v78 = vld [vmem:[%s1] sm:$0xf]
  %v80 = vlaneseq
  %v81 = vshrl.u32 %v80, 7
  %v82 = vsub.s32 0, %v81
  %v83 = vrot.slane %v78, %v82
  %v84 = vlaneseq
  %v85 = vshrl.u32 %v84, 7
  %v86 = vsub.s32 1, %v85
  %v87 = vrot.slane %v78, %v86
  %v88 = vlaneseq
  %v89 = vshrl.u32 %v88, 7
  %v90 = vsub.s32 2, %v89
  %v91 = vrot.slane %v78, %v90
  %v92 = vlaneseq
  %v93 = vshrl.u32 %v92, 7
  %v94 = vsub.s32 3, %v93
  %v95 = vrot.slane %v78, %v94
  %v100 = vmul.f32 %v14, %v83
  %v101 = vmul.f32 %v15, %v87
  %v102 = vmul.f32 %v16, %v91
  %v103 = vmul.f32 %v17, %v95
  %v104 = vmul.f32 %v18, %v83
  %v105 = vmul.f32 %v19, %v87
  %v106 = vmul.f32 %v20, %v91
  %v107 = vmul.f32 %v21, %v95
  %v108 = vmul.f32 %v22, %v83
  %v109 = vmul.f32 %v23, %v87
  %v110 = vmul.f32 %v24, %v91
  %v111 = vmul.f32 %v25, %v95
  %v112 = vmul.f32 %v26, %v83
  %v113 = vmul.f32 %v27, %v87
  %v114 = vmul.f32 %v28, %v91
  %v115 = vmul.f32 %v29, %v95
  %v116 = vmul.f32 %v30, %v83
  %v117 = vmul.f32 %v31, %v87
  %v118 = vmul.f32 %v32, %v91
  %v119 = vmul.f32 %v33, %v95
  %v120 = vmul.f32 %v34, %v83
  %v121 = vmul.f32 %v35, %v87
  %v122 = vmul.f32 %v36, %v91
  %v123 = vmul.f32 %v37, %v95
  %v124 = vmul.f32 %v38, %v83
  %v125 = vmul.f32 %v39, %v87
  %v126 = vmul.f32 %v40, %v91
  %v127 = vmul.f32 %v41, %v95
  %v128 = vmul.f32 %v42, %v83
  %v129 = vmul.f32 %v43, %v87
  %v130 = vmul.f32 %v44, %v91
  %v131 = vmul.f32 %v45, %v95
  %v132 = vmul.f32 %v46, %v83
  %v133 = vmul.f32 %v47, %v87
  %v134 = vmul.f32 %v48, %v91
  %v135 = vmul.f32 %v49, %v95
  %v136 = vmul.f32 %v50, %v83
  %v137 = vmul.f32 %v51, %v87
  %v138 = vmul.f32 %v52, %v91
  %v139 = vmul.f32 %v53, %v95
  %v140 = vmul.f32 %v54, %v83
  %v141 = vmul.f32 %v55, %v87
  %v142 = vmul.f32 %v56, %v91
  %v143 = vmul.f32 %v57, %v95
  %v144 = vmul.f32 %v58, %v83
  %v145 = vmul.f32 %v59, %v87
  %v146 = vmul.f32 %v60, %v91
  %v147 = vmul.f32 %v61, %v95
  %v148 = vmul.f32 %v62, %v83
  %v149 = vmul.f32 %v63, %v87
  %v150 = vmul.f32 %v64, %v91
  %v151 = vmul.f32 %v65, %v95
  %v152 = vmul.f32 %v66, %v83
  %v153 = vmul.f32 %v67, %v87
  %v154 = vmul.f32 %v68, %v91
  %v155 = vmul.f32 %v69, %v95
  %v156 = vmul.f32 %v70, %v83
  %v157 = vmul.f32 %v71, %v87
  %v158 = vmul.f32 %v72, %v91
  %v159 = vmul.f32 %v73, %v95
  %v160 = vmul.f32 %v74, %v83
  %v161 = vmul.f32 %v75, %v87
  %v162 = vmul.f32 %v76, %v91
  %v163 = vmul.f32 %v77, %v95
  %v164 = vld [vmem:[%s2] sm:$0xf]
  %v166 = vlaneseq
  %v167 = vshrl.u32 %v166, 7
  %v168 = vsub.s32 0, %v167
  %v169 = vrot.slane %v164, %v168
  %v170 = vlaneseq
  %v171 = vshrl.u32 %v170, 7
  %v172 = vsub.s32 1, %v171
  %v173 = vrot.slane %v164, %v172
  %v174 = vlaneseq
  %v175 = vshrl.u32 %v174, 7
  %v176 = vsub.s32 2, %v175
  %v177 = vrot.slane %v164, %v176
  %v178 = vlaneseq
  %v179 = vshrl.u32 %v178, 7
  %v180 = vsub.s32 3, %v179
  %v181 = vrot.slane %v164, %v180
  %v186 = vadd.f32 %v100, %v169
  %v187 = vadd.f32 %v101, %v173
  %v188 = vadd.f32 %v102, %v177
  %v189 = vadd.f32 %v103, %v181
  %v190 = vadd.f32 %v104, %v169
  %v191 = vadd.f32 %v105, %v173
  %v192 = vadd.f32 %v106, %v177
  %v193 = vadd.f32 %v107, %v181
  %v194 = vadd.f32 %v108, %v169
  %v195 = vadd.f32 %v109, %v173
  %v196 = vadd.f32 %v110, %v177
  %v197 = vadd.f32 %v111, %v181
  %v198 = vadd.f32 %v112, %v169
  %v199 = vadd.f32 %v113, %v173
  %v200 = vadd.f32 %v114, %v177
  %v201 = vadd.f32 %v115, %v181
  %v202 = vadd.f32 %v116, %v169
  %v203 = vadd.f32 %v117, %v173
  %v204 = vadd.f32 %v118, %v177
  %v205 = vadd.f32 %v119, %v181
  %v206 = vadd.f32 %v120, %v169
  %v207 = vadd.f32 %v121, %v173
  %v208 = vadd.f32 %v122, %v177
  %v209 = vadd.f32 %v123, %v181
  %v210 = vadd.f32 %v124, %v169
  %v211 = vadd.f32 %v125, %v173
  %v212 = vadd.f32 %v126, %v177
  %v213 = vadd.f32 %v127, %v181
  %v214 = vadd.f32 %v128, %v169
  %v215 = vadd.f32 %v129, %v173
  %v216 = vadd.f32 %v130, %v177
  %v217 = vadd.f32 %v131, %v181
  %v218 = vadd.f32 %v132, %v169
  %v219 = vadd.f32 %v133, %v173
  %v220 = vadd.f32 %v134, %v177
  %v221 = vadd.f32 %v135, %v181
  %v222 = vadd.f32 %v136, %v169
  %v223 = vadd.f32 %v137, %v173
  %v224 = vadd.f32 %v138, %v177
  %v225 = vadd.f32 %v139, %v181
  %v226 = vadd.f32 %v140, %v169
  %v227 = vadd.f32 %v141, %v173
  %v228 = vadd.f32 %v142, %v177
  %v229 = vadd.f32 %v143, %v181
  %v230 = vadd.f32 %v144, %v169
  %v231 = vadd.f32 %v145, %v173
  %v232 = vadd.f32 %v146, %v177
  %v233 = vadd.f32 %v147, %v181
  %v234 = vadd.f32 %v148, %v169
  %v235 = vadd.f32 %v149, %v173
  %v236 = vadd.f32 %v150, %v177
  %v237 = vadd.f32 %v151, %v181
  %v238 = vadd.f32 %v152, %v169
  %v239 = vadd.f32 %v153, %v173
  %v240 = vadd.f32 %v154, %v177
  %v241 = vadd.f32 %v155, %v181
  %v242 = vadd.f32 %v156, %v169
  %v243 = vadd.f32 %v157, %v173
  %v244 = vadd.f32 %v158, %v177
  %v245 = vadd.f32 %v159, %v181
  %v246 = vadd.f32 %v160, %v169
  %v247 = vadd.f32 %v161, %v173
  %v248 = vadd.f32 %v162, %v177
  %v249 = vadd.f32 %v163, %v181
  %vm250 = vcmp.gt.f32.partialorder %v186, 0.0
  %vm251 = vcmp.gt.f32.partialorder %v187, 0.0
  %vm252 = vcmp.gt.f32.partialorder %v188, 0.0
  %vm253 = vcmp.gt.f32.partialorder %v189, 0.0
  %vm254 = vcmp.gt.f32.partialorder %v190, 0.0
  %vm255 = vcmp.gt.f32.partialorder %v191, 0.0
  %vm256 = vcmp.gt.f32.partialorder %v192, 0.0
  %vm257 = vcmp.gt.f32.partialorder %v193, 0.0
  %vm258 = vcmp.gt.f32.partialorder %v194, 0.0
  %vm259 = vcmp.gt.f32.partialorder %v195, 0.0
  %vm260 = vcmp.gt.f32.partialorder %v196, 0.0
  %vm261 = vcmp.gt.f32.partialorder %v197, 0.0
  %vm262 = vcmp.gt.f32.partialorder %v198, 0.0
  %vm263 = vcmp.gt.f32.partialorder %v199, 0.0
  %vm264 = vcmp.gt.f32.partialorder %v200, 0.0
  %vm265 = vcmp.gt.f32.partialorder %v201, 0.0
  %vm266 = vcmp.gt.f32.partialorder %v202, 0.0
  %vm267 = vcmp.gt.f32.partialorder %v203, 0.0
  %vm268 = vcmp.gt.f32.partialorder %v204, 0.0
  %vm269 = vcmp.gt.f32.partialorder %v205, 0.0
  %vm270 = vcmp.gt.f32.partialorder %v206, 0.0
  %vm271 = vcmp.gt.f32.partialorder %v207, 0.0
  %vm272 = vcmp.gt.f32.partialorder %v208, 0.0
  %vm273 = vcmp.gt.f32.partialorder %v209, 0.0
  %vm274 = vcmp.gt.f32.partialorder %v210, 0.0
  %vm275 = vcmp.gt.f32.partialorder %v211, 0.0
  %vm276 = vcmp.gt.f32.partialorder %v212, 0.0
  %vm277 = vcmp.gt.f32.partialorder %v213, 0.0
  %vm278 = vcmp.gt.f32.partialorder %v214, 0.0
  %vm279 = vcmp.gt.f32.partialorder %v215, 0.0
  %vm280 = vcmp.gt.f32.partialorder %v216, 0.0
  %vm281 = vcmp.gt.f32.partialorder %v217, 0.0
  %vm282 = vcmp.gt.f32.partialorder %v218, 0.0
  %vm283 = vcmp.gt.f32.partialorder %v219, 0.0
  %vm284 = vcmp.gt.f32.partialorder %v220, 0.0
  %vm285 = vcmp.gt.f32.partialorder %v221, 0.0
  %vm286 = vcmp.gt.f32.partialorder %v222, 0.0
  %vm287 = vcmp.gt.f32.partialorder %v223, 0.0
  %vm288 = vcmp.gt.f32.partialorder %v224, 0.0
  %vm289 = vcmp.gt.f32.partialorder %v225, 0.0
  %vm290 = vcmp.gt.f32.partialorder %v226, 0.0
  %vm291 = vcmp.gt.f32.partialorder %v227, 0.0
  %vm292 = vcmp.gt.f32.partialorder %v228, 0.0
  %vm293 = vcmp.gt.f32.partialorder %v229, 0.0
  %vm294 = vcmp.gt.f32.partialorder %v230, 0.0
  %vm295 = vcmp.gt.f32.partialorder %v231, 0.0
  %vm296 = vcmp.gt.f32.partialorder %v232, 0.0
  %vm297 = vcmp.gt.f32.partialorder %v233, 0.0
  %vm298 = vcmp.gt.f32.partialorder %v234, 0.0
  %vm299 = vcmp.gt.f32.partialorder %v235, 0.0
  %vm300 = vcmp.gt.f32.partialorder %v236, 0.0
  %vm301 = vcmp.gt.f32.partialorder %v237, 0.0
  %vm302 = vcmp.gt.f32.partialorder %v238, 0.0
  %vm303 = vcmp.gt.f32.partialorder %v239, 0.0
  %vm304 = vcmp.gt.f32.partialorder %v240, 0.0
  %vm305 = vcmp.gt.f32.partialorder %v241, 0.0
  %vm306 = vcmp.gt.f32.partialorder %v242, 0.0
  %vm307 = vcmp.gt.f32.partialorder %v243, 0.0
  %vm308 = vcmp.gt.f32.partialorder %v244, 0.0
  %vm309 = vcmp.gt.f32.partialorder %v245, 0.0
  %vm310 = vcmp.gt.f32.partialorder %v246, 0.0
  %vm311 = vcmp.gt.f32.partialorder %v247, 0.0
  %vm312 = vcmp.gt.f32.partialorder %v248, 0.0
  %vm313 = vcmp.gt.f32.partialorder %v249, 0.0
  %v314 = vmul.f32 %v186, 0.2
  %v315 = vmul.f32 %v187, 0.2
  %v316 = vmul.f32 %v188, 0.2
  %v317 = vmul.f32 %v189, 0.2
  %v318 = vmul.f32 %v190, 0.2
  %v319 = vmul.f32 %v191, 0.2
  %v320 = vmul.f32 %v192, 0.2
  %v321 = vmul.f32 %v193, 0.2
  %v322 = vmul.f32 %v194, 0.2
  %v323 = vmul.f32 %v195, 0.2
  %v324 = vmul.f32 %v196, 0.2
  %v325 = vmul.f32 %v197, 0.2
  %v326 = vmul.f32 %v198, 0.2
  %v327 = vmul.f32 %v199, 0.2
  %v328 = vmul.f32 %v200, 0.2
  %v329 = vmul.f32 %v201, 0.2
  %v330 = vmul.f32 %v202, 0.2
  %v331 = vmul.f32 %v203, 0.2
  %v332 = vmul.f32 %v204, 0.2
  %v333 = vmul.f32 %v205, 0.2
  %v334 = vmul.f32 %v206, 0.2
  %v335 = vmul.f32 %v207, 0.2
  %v336 = vmul.f32 %v208, 0.2
  %v337 = vmul.f32 %v209, 0.2
  %v338 = vmul.f32 %v210, 0.2
  %v339 = vmul.f32 %v211, 0.2
  %v340 = vmul.f32 %v212, 0.2
  %v341 = vmul.f32 %v213, 0.2
  %v342 = vmul.f32 %v214, 0.2
  %v343 = vmul.f32 %v215, 0.2
  %v344 = vmul.f32 %v216, 0.2
  %v345 = vmul.f32 %v217, 0.2
  %v346 = vmul.f32 %v218, 0.2
  %v347 = vmul.f32 %v219, 0.2
  %v348 = vmul.f32 %v220, 0.2
  %v349 = vmul.f32 %v221, 0.2
  %v350 = vmul.f32 %v222, 0.2
  %v351 = vmul.f32 %v223, 0.2
  %v352 = vmul.f32 %v224, 0.2
  %v353 = vmul.f32 %v225, 0.2
  %v354 = vmul.f32 %v226, 0.2
  %v355 = vmul.f32 %v227, 0.2
  %v356 = vmul.f32 %v228, 0.2
  %v357 = vmul.f32 %v229, 0.2
  %v358 = vmul.f32 %v230, 0.2
  %v359 = vmul.f32 %v231, 0.2
  %v360 = vmul.f32 %v232, 0.2
  %v361 = vmul.f32 %v233, 0.2
  %v362 = vmul.f32 %v234, 0.2
  %v363 = vmul.f32 %v235, 0.2
  %v364 = vmul.f32 %v236, 0.2
  %v365 = vmul.f32 %v237, 0.2
  %v366 = vmul.f32 %v238, 0.2
  %v367 = vmul.f32 %v239, 0.2
  %v368 = vmul.f32 %v240, 0.2
  %v369 = vmul.f32 %v241, 0.2
  %v370 = vmul.f32 %v242, 0.2
  %v371 = vmul.f32 %v243, 0.2
  %v372 = vmul.f32 %v244, 0.2
  %v373 = vmul.f32 %v245, 0.2
  %v374 = vmul.f32 %v246, 0.2
  %v375 = vmul.f32 %v247, 0.2
  %v376 = vmul.f32 %v248, 0.2
  %v377 = vmul.f32 %v249, 0.2
  %v378 = vsel %vm250, %v186, %v314
  %v379 = vsel %vm251, %v187, %v315
  %v380 = vsel %vm252, %v188, %v316
  %v381 = vsel %vm253, %v189, %v317
  %v382 = vsel %vm254, %v190, %v318
  %v383 = vsel %vm255, %v191, %v319
  %v384 = vsel %vm256, %v192, %v320
  %v385 = vsel %vm257, %v193, %v321
  %v386 = vsel %vm258, %v194, %v322
  %v387 = vsel %vm259, %v195, %v323
  %v388 = vsel %vm260, %v196, %v324
  %v389 = vsel %vm261, %v197, %v325
  %v390 = vsel %vm262, %v198, %v326
  %v391 = vsel %vm263, %v199, %v327
  %v392 = vsel %vm264, %v200, %v328
  %v393 = vsel %vm265, %v201, %v329
  %v394 = vsel %vm266, %v202, %v330
  %v395 = vsel %vm267, %v203, %v331
  %v396 = vsel %vm268, %v204, %v332
  %v397 = vsel %vm269, %v205, %v333
  %v398 = vsel %vm270, %v206, %v334
  %v399 = vsel %vm271, %v207, %v335
  %v400 = vsel %vm272, %v208, %v336
  %v401 = vsel %vm273, %v209, %v337
  %v402 = vsel %vm274, %v210, %v338
  %v403 = vsel %vm275, %v211, %v339
  %v404 = vsel %vm276, %v212, %v340
  %v405 = vsel %vm277, %v213, %v341
  %v406 = vsel %vm278, %v214, %v342
  %v407 = vsel %vm279, %v215, %v343
  %v408 = vsel %vm280, %v216, %v344
  %v409 = vsel %vm281, %v217, %v345
  %v410 = vsel %vm282, %v218, %v346
  %v411 = vsel %vm283, %v219, %v347
  %v412 = vsel %vm284, %v220, %v348
  %v413 = vsel %vm285, %v221, %v349
  %v414 = vsel %vm286, %v222, %v350
  %v415 = vsel %vm287, %v223, %v351
  %v416 = vsel %vm288, %v224, %v352
  %v417 = vsel %vm289, %v225, %v353
  %v418 = vsel %vm290, %v226, %v354
  %v419 = vsel %vm291, %v227, %v355
  %v420 = vsel %vm292, %v228, %v356
  %v421 = vsel %vm293, %v229, %v357
  %v422 = vsel %vm294, %v230, %v358
  %v423 = vsel %vm295, %v231, %v359
  %v424 = vsel %vm296, %v232, %v360
  %v425 = vsel %vm297, %v233, %v361
  %v426 = vsel %vm298, %v234, %v362
  %v427 = vsel %vm299, %v235, %v363
  %v428 = vsel %vm300, %v236, %v364
  %v429 = vsel %vm301, %v237, %v365
  %v430 = vsel %vm302, %v238, %v366
  %v431 = vsel %vm303, %v239, %v367
  %v432 = vsel %vm304, %v240, %v368
  %v433 = vsel %vm305, %v241, %v369
  %v434 = vsel %vm306, %v242, %v370
  %v435 = vsel %vm307, %v243, %v371
  %v436 = vsel %vm308, %v244, %v372
  %v437 = vsel %vm309, %v245, %v373
  %v438 = vsel %vm310, %v246, %v374
  %v439 = vsel %vm311, %v247, %v375
  %v440 = vsel %vm312, %v248, %v376
  %v441 = vsel %vm313, %v249, %v377
  %v442 = vpack.c.bf16 %v382, %v378
  %v443 = vpack.c.bf16 %v383, %v379
  %v444 = vpack.c.bf16 %v384, %v380
  %v445 = vpack.c.bf16 %v385, %v381
  %v446 = vpack.c.bf16 %v390, %v386
  %v447 = vpack.c.bf16 %v391, %v387
  %v448 = vpack.c.bf16 %v392, %v388
  %v449 = vpack.c.bf16 %v393, %v389
  %v450 = vpack.c.bf16 %v398, %v394
  %v451 = vpack.c.bf16 %v399, %v395
  %v452 = vpack.c.bf16 %v400, %v396
  %v453 = vpack.c.bf16 %v401, %v397
  %v454 = vpack.c.bf16 %v406, %v402
  %v455 = vpack.c.bf16 %v407, %v403
  %v456 = vpack.c.bf16 %v408, %v404
  %v457 = vpack.c.bf16 %v409, %v405
  %v458 = vpack.c.bf16 %v414, %v410
  %v459 = vpack.c.bf16 %v415, %v411
  %v460 = vpack.c.bf16 %v416, %v412
  %v461 = vpack.c.bf16 %v417, %v413
  %v462 = vpack.c.bf16 %v422, %v418
  %v463 = vpack.c.bf16 %v423, %v419
  %v464 = vpack.c.bf16 %v424, %v420
  %v465 = vpack.c.bf16 %v425, %v421
  %v466 = vpack.c.bf16 %v430, %v426
  %v467 = vpack.c.bf16 %v431, %v427
  %v468 = vpack.c.bf16 %v432, %v428
  %v469 = vpack.c.bf16 %v433, %v429
  %v470 = vpack.c.bf16 %v438, %v434
  %v471 = vpack.c.bf16 %v439, %v435
  %v472 = vpack.c.bf16 %v440, %v436
  %v473 = vpack.c.bf16 %v441, %v437
  %v506 = vunpack.c.l.b16 %v442
  %v507 = vunpack.c.l.b16 %v443
  %v508 = vunpack.c.l.b16 %v444
  %v509 = vunpack.c.l.b16 %v445
  %v510 = vunpack.c.h.b16 %v442
  %v511 = vunpack.c.h.b16 %v443
  %v512 = vunpack.c.h.b16 %v444
  %v513 = vunpack.c.h.b16 %v445
  %v514 = vunpack.c.l.b16 %v446
  %v515 = vunpack.c.l.b16 %v447
  %v516 = vunpack.c.l.b16 %v448
  %v517 = vunpack.c.l.b16 %v449
  %v518 = vunpack.c.h.b16 %v446
  %v519 = vunpack.c.h.b16 %v447
  %v520 = vunpack.c.h.b16 %v448
  %v521 = vunpack.c.h.b16 %v449
  %v522 = vunpack.c.l.b16 %v450
  %v523 = vunpack.c.l.b16 %v451
  %v524 = vunpack.c.l.b16 %v452
  %v525 = vunpack.c.l.b16 %v453
  %v526 = vunpack.c.h.b16 %v450
  %v527 = vunpack.c.h.b16 %v451
  %v528 = vunpack.c.h.b16 %v452
  %v529 = vunpack.c.h.b16 %v453
  %v530 = vunpack.c.l.b16 %v454
  %v531 = vunpack.c.l.b16 %v455
  %v532 = vunpack.c.l.b16 %v456
  %v533 = vunpack.c.l.b16 %v457
  %v534 = vunpack.c.h.b16 %v454
  %v535 = vunpack.c.h.b16 %v455
  %v536 = vunpack.c.h.b16 %v456
  %v537 = vunpack.c.h.b16 %v457
  %v538 = vunpack.c.l.b16 %v458
  %v539 = vunpack.c.l.b16 %v459
  %v540 = vunpack.c.l.b16 %v460
  %v541 = vunpack.c.l.b16 %v461
  %v542 = vunpack.c.h.b16 %v458
  %v543 = vunpack.c.h.b16 %v459
  %v544 = vunpack.c.h.b16 %v460
  %v545 = vunpack.c.h.b16 %v461
  %v546 = vunpack.c.l.b16 %v462
  %v547 = vunpack.c.l.b16 %v463
  %v548 = vunpack.c.l.b16 %v464
  %v549 = vunpack.c.l.b16 %v465
  %v550 = vunpack.c.h.b16 %v462
  %v551 = vunpack.c.h.b16 %v463
  %v552 = vunpack.c.h.b16 %v464
  %v553 = vunpack.c.h.b16 %v465
  %v554 = vunpack.c.l.b16 %v466
  %v555 = vunpack.c.l.b16 %v467
  %v556 = vunpack.c.l.b16 %v468
  %v557 = vunpack.c.l.b16 %v469
  %v558 = vunpack.c.h.b16 %v466
  %v559 = vunpack.c.h.b16 %v467
  %v560 = vunpack.c.h.b16 %v468
  %v561 = vunpack.c.h.b16 %v469
  %v562 = vunpack.c.l.b16 %v470
  %v563 = vunpack.c.l.b16 %v471
  %v564 = vunpack.c.l.b16 %v472
  %v565 = vunpack.c.l.b16 %v473
  %v566 = vunpack.c.h.b16 %v470
  %v567 = vunpack.c.h.b16 %v471
  %v568 = vunpack.c.h.b16 %v472
  %v569 = vunpack.c.h.b16 %v473
  %v570 = vpack.c.b16 %v507, %v506
  %v571 = vpack.c.b16 %v509, %v508
  %v572 = vpack.c.b16 %v511, %v510
  %v573 = vpack.c.b16 %v513, %v512
  %v574 = vpack.c.b16 %v515, %v514
  %v575 = vpack.c.b16 %v517, %v516
  %v576 = vpack.c.b16 %v519, %v518
  %v577 = vpack.c.b16 %v521, %v520
  %v578 = vpack.c.b16 %v523, %v522
  %v579 = vpack.c.b16 %v525, %v524
  %v580 = vpack.c.b16 %v527, %v526
  %v581 = vpack.c.b16 %v529, %v528
  %v582 = vpack.c.b16 %v531, %v530
  %v583 = vpack.c.b16 %v533, %v532
  %v584 = vpack.c.b16 %v535, %v534
  %v585 = vpack.c.b16 %v537, %v536
  %v586 = vpack.c.b16 %v539, %v538
  %v587 = vpack.c.b16 %v541, %v540
  %v588 = vpack.c.b16 %v543, %v542
  %v589 = vpack.c.b16 %v545, %v544
  %v590 = vpack.c.b16 %v547, %v546
  %v591 = vpack.c.b16 %v549, %v548
  %v592 = vpack.c.b16 %v551, %v550
  %v593 = vpack.c.b16 %v553, %v552
  %v594 = vpack.c.b16 %v555, %v554
  %v595 = vpack.c.b16 %v557, %v556
  %v596 = vpack.c.b16 %v559, %v558
  %v597 = vpack.c.b16 %v561, %v560
  %v598 = vpack.c.b16 %v563, %v562
  %v599 = vpack.c.b16 %v565, %v564
  %v600 = vpack.c.b16 %v567, %v566
  %v601 = vpack.c.b16 %v569, %v568
  %634 = vst [vmem:[%s3] sm:$0xff] %v570
  %635 = vst [vmem:[%s3 + $0x8] sm:$0xff] %v571
  %636 = vst [vmem:[%s3 + $0x10] sm:$0xff] %v572
  %637 = vst [vmem:[%s3 + $0x18] sm:$0xff] %v573
  %638 = vst [vmem:[%s3 + $0x20] sm:$0xff] %v574
  %639 = vst [vmem:[%s3 + $0x28] sm:$0xff] %v575
  %640 = vst [vmem:[%s3 + $0x30] sm:$0xff] %v576
  %641 = vst [vmem:[%s3 + $0x38] sm:$0xff] %v577
  %642 = vst [vmem:[%s3 + $0x40] sm:$0xff] %v578
  %643 = vst [vmem:[%s3 + $0x48] sm:$0xff] %v579
  %644 = vst [vmem:[%s3 + $0x50] sm:$0xff] %v580
  %645 = vst [vmem:[%s3 + $0x58] sm:$0xff] %v581
  %646 = vst [vmem:[%s3 + $0x60] sm:$0xff] %v582
  %647 = vst [vmem:[%s3 + $0x68] sm:$0xff] %v583
  %648 = vst [vmem:[%s3 + $0x70] sm:$0xff] %v584
  %649 = vst [vmem:[%s3 + $0x78] sm:$0xff] %v585
  %650 = vst [vmem:[%s3 + $0x80] sm:$0xff] %v586
  %651 = vst [vmem:[%s3 + $0x88] sm:$0xff] %v587
  %652 = vst [vmem:[%s3 + $0x90] sm:$0xff] %v588
  %653 = vst [vmem:[%s3 + $0x98] sm:$0xff] %v589
  %654 = vst [vmem:[%s3 + $0xa0] sm:$0xff] %v590
  %655 = vst [vmem:[%s3 + $0xa8] sm:$0xff] %v591
  %656 = vst [vmem:[%s3 + $0xb0] sm:$0xff] %v592
  %657 = vst [vmem:[%s3 + $0xb8] sm:$0xff] %v593
  %658 = vst [vmem:[%s3 + $0xc0] sm:$0xff] %v594
  %659 = vst [vmem:[%s3 + $0xc8] sm:$0xff] %v595
  %660 = vst [vmem:[%s3 + $0xd0] sm:$0xff] %v596
  %661 = vst [vmem:[%s3 + $0xd8] sm:$0xff] %v597
  %662 = vst [vmem:[%s3 + $0xe0] sm:$0xff] %v598
  %663 = vst [vmem:[%s3 + $0xe8] sm:$0xff] %v599
  %664 = vst [vmem:[%s3 + $0xf0] sm:$0xff] %v600
  %665 = vst [vmem:[%s3 + $0xf8] sm:$0xff] %v601
  // Predicated region
  $region14: #{discriminator_forward.6} parent=0 // pred_check
    _
  $region15: #{discriminator_forward.6} parent=0 // pred_check_branch
    %667 = sbr.rel (0) target = $region17
  $region16: #{discriminator_forward.6} parent=0 // pred_region
    _
  $region17: #{discriminator_forward.6} parent=0 // pred_fallthru
    _
  // Predicated region
  $region18: #{discriminator_forward.6} parent=0 // pred_check
    _
  $region19: #{discriminator_forward.6} parent=0 // pred_check_branch
    %669 = sbr.rel (0) target = $region21
  $region20: #{discriminator_forward.6} parent=0 // pred_region
    _
  $region21: #{discriminator_forward.6} parent=0 // pred_fallthru
    _

// kernel: discriminator_forward.5
$region0: #{discriminator_forward.5}
  #allocation0 [shape = 'u32[]', space=smem, size = 0x4, offset = 0x4, fixed_abs, tag = 'smem constant byte address 0x4 - core index']
  #allocation1 [shape = 'u32[144,128]{1,0:T(1,128)}', space=vmem, size = 0x12000, scoped, tag = 'internal scratch']
  %s0 = inlined_call_operand.vmem [shape: bf16[128,128], index: 0, kind: input, shape index: {}]
  %s1 = inlined_call_operand.vmem [shape: bf16[128,512], index: 1, kind: input, shape index: {}]
  %s2 = inlined_call_operand.vmem [shape: f32[128,512], index: 2, kind: output, shape index: {0}]
  %s3 = inlined_call_operand.vmem [shape: f32[8,512], index: 3, kind: output, shape index: {1}]
  %4 = xla_tuple %s2, %s3
  %s5 = sld [smem:[#allocation0]]
  $region34: #{discriminator_forward.5} parent=0
    _
  %s7 = ssub.s32 1, %s5
  %s8 = scalar_select 0, %s7, %s5
  // Predicated region
  $region2: #{discriminator_forward.5} parent=0 // pred_check
    _
  $region3: #{discriminator_forward.5} parent=0 // pred_check_branch
    %10 = sbr.rel (0) target = $region5
  $region4: #{discriminator_forward.5} parent=0 // pred_region
    _
  $region5: #{discriminator_forward.5} parent=0 // pred_fallthru
    _
  // Predicated region
  $region6: #{discriminator_forward.5} parent=0 // pred_check
    _
  $region7: #{discriminator_forward.5} parent=0 // pred_check_branch
    %12 = sbr.rel (0) target = $region9
  $region8: #{discriminator_forward.5} parent=0 // pred_region
    _
  $region9: #{discriminator_forward.5} parent=0 // pred_fallthru
    _
  %p14 = scmp.eq.s32.totalorder 0, 0
  // Predicated region
  $region10: #{discriminator_forward.5} parent=0 // pred_check
    %p15 = pneg %p14
  $region11: #{discriminator_forward.5} parent=0 // pred_check_branch
    %17 = sbr.rel (%p15) target = $region13
  $region12: #{discriminator_forward.5} parent=0 // pred_region
    %18 = vst [vmem:[%s2] sm:$0xff] 0.0
    %19 = vst [vmem:[%s2 + $0x8] sm:$0xff] 0.0
    %20 = vst [vmem:[%s2 + $0x10] sm:$0xff] 0.0
    %21 = vst [vmem:[%s2 + $0x18] sm:$0xff] 0.0
    %22 = vst [vmem:[%s2 + $0x20] sm:$0xff] 0.0
    %23 = vst [vmem:[%s2 + $0x28] sm:$0xff] 0.0
    %24 = vst [vmem:[%s2 + $0x30] sm:$0xff] 0.0
    %25 = vst [vmem:[%s2 + $0x38] sm:$0xff] 0.0
    %26 = vst [vmem:[%s2 + $0x40] sm:$0xff] 0.0
    %27 = vst [vmem:[%s2 + $0x48] sm:$0xff] 0.0
    %28 = vst [vmem:[%s2 + $0x50] sm:$0xff] 0.0
    %29 = vst [vmem:[%s2 + $0x58] sm:$0xff] 0.0
    %30 = vst [vmem:[%s2 + $0x60] sm:$0xff] 0.0
    %31 = vst [vmem:[%s2 + $0x68] sm:$0xff] 0.0
    %32 = vst [vmem:[%s2 + $0x70] sm:$0xff] 0.0
    %33 = vst [vmem:[%s2 + $0x78] sm:$0xff] 0.0
    %34 = vst [vmem:[%s2 + $0x80] sm:$0xff] 0.0
    %35 = vst [vmem:[%s2 + $0x88] sm:$0xff] 0.0
    %36 = vst [vmem:[%s2 + $0x90] sm:$0xff] 0.0
    %37 = vst [vmem:[%s2 + $0x98] sm:$0xff] 0.0
    %38 = vst [vmem:[%s2 + $0xa0] sm:$0xff] 0.0
    %39 = vst [vmem:[%s2 + $0xa8] sm:$0xff] 0.0
    %40 = vst [vmem:[%s2 + $0xb0] sm:$0xff] 0.0
    %41 = vst [vmem:[%s2 + $0xb8] sm:$0xff] 0.0
    %42 = vst [vmem:[%s2 + $0xc0] sm:$0xff] 0.0
    %43 = vst [vmem:[%s2 + $0xc8] sm:$0xff] 0.0
    %44 = vst [vmem:[%s2 + $0xd0] sm:$0xff] 0.0
    %45 = vst [vmem:[%s2 + $0xd8] sm:$0xff] 0.0
    %46 = vst [vmem:[%s2 + $0xe0] sm:$0xff] 0.0
    %47 = vst [vmem:[%s2 + $0xe8] sm:$0xff] 0.0
    %48 = vst [vmem:[%s2 + $0xf0] sm:$0xff] 0.0
    %49 = vst [vmem:[%s2 + $0xf8] sm:$0xff] 0.0
    %50 = vst [vmem:[%s2 + $0x100] sm:$0xff] 0.0
    %51 = vst [vmem:[%s2 + $0x108] sm:$0xff] 0.0
    %52 = vst [vmem:[%s2 + $0x110] sm:$0xff] 0.0
    %53 = vst [vmem:[%s2 + $0x118] sm:$0xff] 0.0
    %54 = vst [vmem:[%s2 + $0x120] sm:$0xff] 0.0
    %55 = vst [vmem:[%s2 + $0x128] sm:$0xff] 0.0
    %56 = vst [vmem:[%s2 + $0x130] sm:$0xff] 0.0
    %57 = vst [vmem:[%s2 + $0x138] sm:$0xff] 0.0
    %58 = vst [vmem:[%s2 + $0x140] sm:$0xff] 0.0
    %59 = vst [vmem:[%s2 + $0x148] sm:$0xff] 0.0
    %60 = vst [vmem:[%s2 + $0x150] sm:$0xff] 0.0
    %61 = vst [vmem:[%s2 + $0x158] sm:$0xff] 0.0
    %62 = vst [vmem:[%s2 + $0x160] sm:$0xff] 0.0
    %63 = vst [vmem:[%s2 + $0x168] sm:$0xff] 0.0
    %64 = vst [vmem:[%s2 + $0x170] sm:$0xff] 0.0
    %65 = vst [vmem:[%s2 + $0x178] sm:$0xff] 0.0
    %66 = vst [vmem:[%s2 + $0x180] sm:$0xff] 0.0
    %67 = vst [vmem:[%s2 + $0x188] sm:$0xff] 0.0
    %68 = vst [vmem:[%s2 + $0x190] sm:$0xff] 0.0
    %69 = vst [vmem:[%s2 + $0x198] sm:$0xff] 0.0
    %70 = vst [vmem:[%s2 + $0x1a0] sm:$0xff] 0.0
    %71 = vst [vmem:[%s2 + $0x1a8] sm:$0xff] 0.0
    %72 = vst [vmem:[%s2 + $0x1b0] sm:$0xff] 0.0
    %73 = vst [vmem:[%s2 + $0x1b8] sm:$0xff] 0.0
    %74 = vst [vmem:[%s2 + $0x1c0] sm:$0xff] 0.0
    %75 = vst [vmem:[%s2 + $0x1c8] sm:$0xff] 0.0
    %76 = vst [vmem:[%s2 + $0x1d0] sm:$0xff] 0.0
    %77 = vst [vmem:[%s2 + $0x1d8] sm:$0xff] 0.0
    %78 = vst [vmem:[%s2 + $0x1e0] sm:$0xff] 0.0
    %79 = vst [vmem:[%s2 + $0x1e8] sm:$0xff] 0.0
    %80 = vst [vmem:[%s2 + $0x1f0] sm:$0xff] 0.0
    %81 = vst [vmem:[%s2 + $0x1f8] sm:$0xff] 0.0
  $region13: #{discriminator_forward.5} parent=0 // pred_fallthru
    _
  %v82 = vld [vmem:[%s2] sm:$0xff]
  %v83 = vld [vmem:[%s2 + $0x8] sm:$0xff]
  %v84 = vld [vmem:[%s2 + $0x10] sm:$0xff]
  %v85 = vld [vmem:[%s2 + $0x18] sm:$0xff]
  %v86 = vld [vmem:[%s2 + $0x20] sm:$0xff]
  %v87 = vld [vmem:[%s2 + $0x28] sm:$0xff]
  %v88 = vld [vmem:[%s2 + $0x30] sm:$0xff]
  %v89 = vld [vmem:[%s2 + $0x38] sm:$0xff]
  %v90 = vld [vmem:[%s2 + $0x40] sm:$0xff]
  %v91 = vld [vmem:[%s2 + $0x48] sm:$0xff]
  %v92 = vld [vmem:[%s2 + $0x50] sm:$0xff]
  %v93 = vld [vmem:[%s2 + $0x58] sm:$0xff]
  %v94 = vld [vmem:[%s2 + $0x60] sm:$0xff]
  %v95 = vld [vmem:[%s2 + $0x68] sm:$0xff]
  %v96 = vld [vmem:[%s2 + $0x70] sm:$0xff]
  %v97 = vld [vmem:[%s2 + $0x78] sm:$0xff]
  %v98 = vld [vmem:[%s2 + $0x80] sm:$0xff]
  %v99 = vld [vmem:[%s2 + $0x88] sm:$0xff]
  %v100 = vld [vmem:[%s2 + $0x90] sm:$0xff]
  %v101 = vld [vmem:[%s2 + $0x98] sm:$0xff]
  %v102 = vld [vmem:[%s2 + $0xa0] sm:$0xff]
  %v103 = vld [vmem:[%s2 + $0xa8] sm:$0xff]
  %v104 = vld [vmem:[%s2 + $0xb0] sm:$0xff]
  %v105 = vld [vmem:[%s2 + $0xb8] sm:$0xff]
  %v106 = vld [vmem:[%s2 + $0xc0] sm:$0xff]
  %v107 = vld [vmem:[%s2 + $0xc8] sm:$0xff]
  %v108 = vld [vmem:[%s2 + $0xd0] sm:$0xff]
  %v109 = vld [vmem:[%s2 + $0xd8] sm:$0xff]
  %v110 = vld [vmem:[%s2 + $0xe0] sm:$0xff]
  %v111 = vld [vmem:[%s2 + $0xe8] sm:$0xff]
  %v112 = vld [vmem:[%s2 + $0xf0] sm:$0xff]
  %v113 = vld [vmem:[%s2 + $0xf8] sm:$0xff]
  %v114 = vld [vmem:[%s2 + $0x100] sm:$0xff]
  %v115 = vld [vmem:[%s2 + $0x108] sm:$0xff]
  %v116 = vld [vmem:[%s2 + $0x110] sm:$0xff]
  %v117 = vld [vmem:[%s2 + $0x118] sm:$0xff]
  %v118 = vld [vmem:[%s2 + $0x120] sm:$0xff]
  %v119 = vld [vmem:[%s2 + $0x128] sm:$0xff]
  %v120 = vld [vmem:[%s2 + $0x130] sm:$0xff]
  %v121 = vld [vmem:[%s2 + $0x138] sm:$0xff]
  %v122 = vld [vmem:[%s2 + $0x140] sm:$0xff]
  %v123 = vld [vmem:[%s2 + $0x148] sm:$0xff]
  %v124 = vld [vmem:[%s2 + $0x150] sm:$0xff]
  %v125 = vld [vmem:[%s2 + $0x158] sm:$0xff]
  %v126 = vld [vmem:[%s2 + $0x160] sm:$0xff]
  %v127 = vld [vmem:[%s2 + $0x168] sm:$0xff]
  %v128 = vld [vmem:[%s2 + $0x170] sm:$0xff]
  %v129 = vld [vmem:[%s2 + $0x178] sm:$0xff]
  %v130 = vld [vmem:[%s2 + $0x180] sm:$0xff]
  %v131 = vld [vmem:[%s2 + $0x188] sm:$0xff]
  %v132 = vld [vmem:[%s2 + $0x190] sm:$0xff]
  %v133 = vld [vmem:[%s2 + $0x198] sm:$0xff]
  %v134 = vld [vmem:[%s2 + $0x1a0] sm:$0xff]
  %v135 = vld [vmem:[%s2 + $0x1a8] sm:$0xff]
  %v136 = vld [vmem:[%s2 + $0x1b0] sm:$0xff]
  %v137 = vld [vmem:[%s2 + $0x1b8] sm:$0xff]
  %v138 = vld [vmem:[%s2 + $0x1c0] sm:$0xff]
  %v139 = vld [vmem:[%s2 + $0x1c8] sm:$0xff]
  %v140 = vld [vmem:[%s2 + $0x1d0] sm:$0xff]
  %v141 = vld [vmem:[%s2 + $0x1d8] sm:$0xff]
  %v142 = vld [vmem:[%s2 + $0x1e0] sm:$0xff]
  %v143 = vld [vmem:[%s2 + $0x1e8] sm:$0xff]
  %v144 = vld [vmem:[%s2 + $0x1f0] sm:$0xff]
  %v145 = vld [vmem:[%s2 + $0x1f8] sm:$0xff]
  %v146 = vld [vmem:[%s0] sm:$0xf]
  %v147 = vld [vmem:[%s0 + $0x4] sm:$0xf]
  %v148 = vld [vmem:[%s0 + $0x8] sm:$0xf]
  %v149 = vld [vmem:[%s0 + $0xc] sm:$0xf]
  %v150 = vld [vmem:[%s0 + $0x10] sm:$0xf]
  %v151 = vld [vmem:[%s0 + $0x14] sm:$0xf]
  %v152 = vld [vmem:[%s0 + $0x18] sm:$0xf]
  %v153 = vld [vmem:[%s0 + $0x1c] sm:$0xf]
  %v154 = vld [vmem:[%s0 + $0x20] sm:$0xf]
  %v155 = vld [vmem:[%s0 + $0x24] sm:$0xf]
  %v156 = vld [vmem:[%s0 + $0x28] sm:$0xf]
  %v157 = vld [vmem:[%s0 + $0x2c] sm:$0xf]
  %v158 = vld [vmem:[%s0 + $0x30] sm:$0xf]
  %v159 = vld [vmem:[%s0 + $0x34] sm:$0xf]
  %v160 = vld [vmem:[%s0 + $0x38] sm:$0xf]
  %v161 = vld [vmem:[%s0 + $0x3c] sm:$0xf]
  %v162 = vld [vmem:[%s1] sm:$0xff]
  %v163 = vld [vmem:[%s1 + $0x8] sm:$0xff]
  %v164 = vld [vmem:[%s1 + $0x10] sm:$0xff]
  %v165 = vld [vmem:[%s1 + $0x18] sm:$0xff]
  %v166 = vld [vmem:[%s1 + $0x20] sm:$0xff]
  %v167 = vld [vmem:[%s1 + $0x28] sm:$0xff]
  %v168 = vld [vmem:[%s1 + $0x30] sm:$0xff]
  %v169 = vld [vmem:[%s1 + $0x38] sm:$0xff]
  %v170 = vld [vmem:[%s1 + $0x40] sm:$0xff]
  %v171 = vld [vmem:[%s1 + $0x48] sm:$0xff]
  %v172 = vld [vmem:[%s1 + $0x50] sm:$0xff]
  %v173 = vld [vmem:[%s1 + $0x58] sm:$0xff]
  %v174 = vld [vmem:[%s1 + $0x60] sm:$0xff]
  %v175 = vld [vmem:[%s1 + $0x68] sm:$0xff]
  %v176 = vld [vmem:[%s1 + $0x70] sm:$0xff]
  %v177 = vld [vmem:[%s1 + $0x78] sm:$0xff]
  %v178 = vld [vmem:[%s1 + $0x80] sm:$0xff]
  %v179 = vld [vmem:[%s1 + $0x88] sm:$0xff]
  %v180 = vld [vmem:[%s1 + $0x90] sm:$0xff]
  %v181 = vld [vmem:[%s1 + $0x98] sm:$0xff]
  %v182 = vld [vmem:[%s1 + $0xa0] sm:$0xff]
  %v183 = vld [vmem:[%s1 + $0xa8] sm:$0xff]
  %v184 = vld [vmem:[%s1 + $0xb0] sm:$0xff]
  %v185 = vld [vmem:[%s1 + $0xb8] sm:$0xff]
  %v186 = vld [vmem:[%s1 + $0xc0] sm:$0xff]
  %v187 = vld [vmem:[%s1 + $0xc8] sm:$0xff]
  %v188 = vld [vmem:[%s1 + $0xd0] sm:$0xff]
  %v189 = vld [vmem:[%s1 + $0xd8] sm:$0xff]
  %v190 = vld [vmem:[%s1 + $0xe0] sm:$0xff]
  %v191 = vld [vmem:[%s1 + $0xe8] sm:$0xff]
  %v192 = vld [vmem:[%s1 + $0xf0] sm:$0xff]
  %v193 = vld [vmem:[%s1 + $0xf8] sm:$0xff]
  %v210 = vunpack.c.l.b16 %v146
  %v211 = vunpack.c.l.b16 %v147
  %v212 = vunpack.c.l.b16 %v148
  %v213 = vunpack.c.l.b16 %v149
  %v214 = vunpack.c.l.b16 %v150
  %v215 = vunpack.c.l.b16 %v151
  %v216 = vunpack.c.l.b16 %v152
  %v217 = vunpack.c.l.b16 %v153
  %v218 = vunpack.c.l.b16 %v154
  %v219 = vunpack.c.l.b16 %v155
  %v220 = vunpack.c.l.b16 %v156
  %v221 = vunpack.c.l.b16 %v157
  %v222 = vunpack.c.l.b16 %v158
  %v223 = vunpack.c.l.b16 %v159
  %v224 = vunpack.c.l.b16 %v160
  %v225 = vunpack.c.l.b16 %v161
  %v226 = vpack.c.b16 %v211, %v210
  %v227 = vpack.c.b16 %v213, %v212
  %v228 = vpack.c.b16 %v215, %v214
  %v229 = vpack.c.b16 %v217, %v216
  %v230 = vpack.c.b16 %v219, %v218
  %v231 = vpack.c.b16 %v221, %v220
  %v232 = vpack.c.b16 %v223, %v222
  %v233 = vpack.c.b16 %v225, %v224
  %v274 = vunpack.c.l.b16 %v162
  %v275 = vunpack.c.h.b16 %v162
  %v276 = vunpack.c.l.b16 %v163
  %v277 = vunpack.c.h.b16 %v163
  %v278 = vunpack.c.l.b16 %v164
  %v279 = vunpack.c.h.b16 %v164
  %v280 = vunpack.c.l.b16 %v165
  %v281 = vunpack.c.h.b16 %v165
  %v282 = vunpack.c.l.b16 %v166
  %v283 = vunpack.c.h.b16 %v166
  %v284 = vunpack.c.l.b16 %v167
  %v285 = vunpack.c.h.b16 %v167
  %v286 = vunpack.c.l.b16 %v168
  %v287 = vunpack.c.h.b16 %v168
  %v288 = vunpack.c.l.b16 %v169
  %v289 = vunpack.c.h.b16 %v169
  %v290 = vunpack.c.l.b16 %v170
  %v291 = vunpack.c.h.b16 %v170
  %v292 = vunpack.c.l.b16 %v171
  %v293 = vunpack.c.h.b16 %v171
  %v294 = vunpack.c.l.b16 %v172
  %v295 = vunpack.c.h.b16 %v172
  %v296 = vunpack.c.l.b16 %v173
  %v297 = vunpack.c.h.b16 %v173
  %v298 = vunpack.c.l.b16 %v174
  %v299 = vunpack.c.h.b16 %v174
  %v300 = vunpack.c.l.b16 %v175
  %v301 = vunpack.c.h.b16 %v175
  %v302 = vunpack.c.l.b16 %v176
  %v303 = vunpack.c.h.b16 %v176
  %v304 = vunpack.c.l.b16 %v177
  %v305 = vunpack.c.h.b16 %v177
  %v306 = vunpack.c.l.b16 %v178
  %v307 = vunpack.c.h.b16 %v178
  %v308 = vunpack.c.l.b16 %v179
  %v309 = vunpack.c.h.b16 %v179
  %v310 = vunpack.c.l.b16 %v180
  %v311 = vunpack.c.h.b16 %v180
  %v312 = vunpack.c.l.b16 %v181
  %v313 = vunpack.c.h.b16 %v181
  %v314 = vunpack.c.l.b16 %v182
  %v315 = vunpack.c.h.b16 %v182
  %v316 = vunpack.c.l.b16 %v183
  %v317 = vunpack.c.h.b16 %v183
  %v318 = vunpack.c.l.b16 %v184
  %v319 = vunpack.c.h.b16 %v184
  %v320 = vunpack.c.l.b16 %v185
  %v321 = vunpack.c.h.b16 %v185
  %v322 = vunpack.c.l.b16 %v186
  %v323 = vunpack.c.h.b16 %v186
  %v324 = vunpack.c.l.b16 %v187
  %v325 = vunpack.c.h.b16 %v187
  %v326 = vunpack.c.l.b16 %v188
  %v327 = vunpack.c.h.b16 %v188
  %v328 = vunpack.c.l.b16 %v189
  %v329 = vunpack.c.h.b16 %v189
  %v330 = vunpack.c.l.b16 %v190
  %v331 = vunpack.c.h.b16 %v190
  %v332 = vunpack.c.l.b16 %v191
  %v333 = vunpack.c.h.b16 %v191
  %v334 = vunpack.c.l.b16 %v192
  %v335 = vunpack.c.h.b16 %v192
  %v336 = vunpack.c.l.b16 %v193
  %v337 = vunpack.c.h.b16 %v193
  %v338 = vpack.c.b16 %v278, %v274
  %v339 = vpack.c.b16 %v279, %v275
  %v340 = vpack.c.b16 %v280, %v276
  %v341 = vpack.c.b16 %v281, %v277
  %v342 = vpack.c.b16 %v286, %v282
  %v343 = vpack.c.b16 %v287, %v283
  %v344 = vpack.c.b16 %v288, %v284
  %v345 = vpack.c.b16 %v289, %v285
  %v346 = vpack.c.b16 %v294, %v290
  %v347 = vpack.c.b16 %v295, %v291
  %v348 = vpack.c.b16 %v296, %v292
  %v349 = vpack.c.b16 %v297, %v293
  %v350 = vpack.c.b16 %v302, %v298
  %v351 = vpack.c.b16 %v303, %v299
  %v352 = vpack.c.b16 %v304, %v300
  %v353 = vpack.c.b16 %v305, %v301
  %v354 = vpack.c.b16 %v310, %v306
  %v355 = vpack.c.b16 %v311, %v307
  %v356 = vpack.c.b16 %v312, %v308
  %v357 = vpack.c.b16 %v313, %v309
  %v358 = vpack.c.b16 %v318, %v314
  %v359 = vpack.c.b16 %v319, %v315
  %v360 = vpack.c.b16 %v320, %v316
  %v361 = vpack.c.b16 %v321, %v317
  %v362 = vpack.c.b16 %v326, %v322
  %v363 = vpack.c.b16 %v327, %v323
  %v364 = vpack.c.b16 %v328, %v324
  %v365 = vpack.c.b16 %v329, %v325
  %v366 = vpack.c.b16 %v334, %v330
  %v367 = vpack.c.b16 %v335, %v331
  %v368 = vpack.c.b16 %v336, %v332
  %v369 = vpack.c.b16 %v337, %v333
  %402 = vmatprep.subr.bf16.mxu0 %v339
  %403 = vmatpush1.bf16.msra.mxu0 %v338
  %404 = vmatprep.subr.bf16.mxu0 %v343
  %405 = vmatpush1.bf16.msra.mxu0 %v342
  %406 = vmatprep.subr.bf16.mxu0 %v347
  %407 = vmatpush1.bf16.msra.mxu0 %v346
  %408 = vmatprep.subr.bf16.mxu0 %v351
  %409 = vmatpush1.bf16.msra.mxu0 %v350
  %410 = vmatprep.subr.bf16.mxu0 %v355
  %411 = vmatpush1.bf16.msra.mxu0 %v354
  %412 = vmatprep.subr.bf16.mxu0 %v359
  %413 = vmatpush1.bf16.msra.mxu0 %v358
  %414 = vmatprep.subr.bf16.mxu0 %v363
  %415 = vmatpush1.bf16.msra.mxu0 %v362
  %416 = vmatprep.subr.bf16.mxu0 %v367
  %417 = vmatpush1.bf16.msra.mxu0 %v366
  %418 = vmatprep.subr.bf16.mxu0 0
  %419 = vmatpush1.bf16.msra.mxu0 0
  %420 = vmatprep.subr.bf16.mxu0 0
  %421 = vmatpush1.bf16.msra.mxu0 0
  %422 = vmatprep.subr.bf16.mxu0 0
  %423 = vmatpush1.bf16.msra.mxu0 0
  %424 = vmatprep.subr.bf16.mxu0 0
  %425 = vmatpush1.bf16.msra.mxu0 0
  %426 = vmatprep.subr.bf16.mxu0 0
  %427 = vmatpush1.bf16.msra.mxu0 0
  %428 = vmatprep.subr.bf16.mxu0 0
  %429 = vmatpush1.bf16.msra.mxu0 0
  %430 = vmatprep.subr.bf16.mxu0 0
  %431 = vmatpush1.bf16.msra.mxu0 0
  %432 = vmatprep.subr.bf16.mxu0 0
  %433 = vmatpush1.bf16.msra.mxu0 0
  %434 = vmatprep.mubr.bf16.mxu0 0
  %435 = vmatmul.mubr.bf16.gmra.mrb[0].mxu0 %v226
  %v436 = vpop.f32.mrb[0].mxu0
  %v437 = vadd.f32 0.0, %v436
  %v438 = vpop.f32.mrb[0].mxu0
  %v439 = vadd.f32 0.0, %v438
  %v440 = vpop.f32.mrb[0].mxu0
  %v441 = vadd.f32 0.0, %v440
  %v442 = vpop.f32.mrb[0].mxu0
  %v443 = vadd.f32 0.0, %v442
  %444 = vmatprep.mubr.bf16.mxu0 0
  %445 = vmatmul.mubr.bf16.gmra.mrb[0].mxu0 %v227
  %v446 = vpop.f32.mrb[0].mxu0
  %v447 = vadd.f32 0.0, %v446
  %v448 = vpop.f32.mrb[0].mxu0
  %v449 = vadd.f32 0.0, %v448
  %v450 = vpop.f32.mrb[0].mxu0
  %v451 = vadd.f32 0.0, %v450
  %v452 = vpop.f32.mrb[0].mxu0
  %v453 = vadd.f32 0.0, %v452
  %454 = vmatprep.mubr.bf16.mxu0 0
  %455 = vmatmul.mubr.bf16.gmra.mrb[0].mxu0 %v228
  %v456 = vpop.f32.mrb[0].mxu0
  %v457 = vadd.f32 0.0, %v456
  %v458 = vpop.f32.mrb[0].mxu0
  %v459 = vadd.f32 0.0, %v458
  %v460 = vpop.f32.mrb[0].mxu0
  %v461 = vadd.f32 0.0, %v460
  %v462 = vpop.f32.mrb[0].mxu0
  %v463 = vadd.f32 0.0, %v462
  %464 = vmatprep.mubr.bf16.mxu0 0
  %465 = vmatmul.mubr.bf16.gmra.mrb[0].mxu0 %v229
  %v466 = vpop.f32.mrb[0].mxu0
  %v467 = vadd.f32 0.0, %v466
  %v468 = vpop.f32.mrb[0].mxu0
  %v469 = vadd.f32 0.0, %v468
  %v470 = vpop.f32.mrb[0].mxu0
  %v471 = vadd.f32 0.0, %v470
  %v472 = vpop.f32.mrb[0].mxu0
  %v473 = vadd.f32 0.0, %v472
  %474 = vmatprep.mubr.bf16.mxu0 0
  %475 = vmatmul.mubr.bf16.gmra.mrb[0].mxu0 %v230
  %v476 = vpop.f32.mrb[0].mxu0
  %v477 = vadd.f32 0.0, %v476
  %v478 = vpop.f32.mrb[0].mxu0
  %v479 = vadd.f32 0.0, %v478
  %v480 = vpop.f32.mrb[0].mxu0
  %v481 = vadd.f32 0.0, %v480
  %v482 = vpop.f32.mrb[0].mxu0
  %v483 = vadd.f32 0.0, %v482
  %484 = vmatprep.mubr.bf16.mxu0 0
  %485 = vmatmul.mubr.bf16.gmra.mrb[0].mxu0 %v231
  %v486 = vpop.f32.mrb[0].mxu0
  %v487 = vadd.f32 0.0, %v486
  %v488 = vpop.f32.mrb[0].mxu0
  %v489 = vadd.f32 0.0, %v488
  %v490 = vpop.f32.mrb[0].mxu0
  %v491 = vadd.f32 0.0, %v490
  %v492 = vpop.f32.mrb[0].mxu0
  %v493 = vadd.f32 0.0, %v492
  %494 = vmatprep.mubr.bf16.mxu0 0
  %495 = vmatmul.mubr.bf16.gmra.mrb[0].mxu0 %v232
  %v496 = vpop.f32.mrb[0].mxu0
  %v497 = vadd.f32 0.0, %v496
  %v498 = vpop.f32.mrb[0].mxu0
  %v499 = vadd.f32 0.0, %v498
  %v500 = vpop.f32.mrb[0].mxu0
  %v501 = vadd.f32 0.0, %v500
  %v502 = vpop.f32.mrb[0].mxu0
  %v503 = vadd.f32 0.0, %v502
  %504 = vmatprep.mubr.bf16.mxu0 0
  %505 = vmatmul.mubr.bf16.gmra.mrb[0].mxu0 %v233
  %v506 = vpop.f32.mrb[0].mxu0
  %v507 = vadd.f32 0.0, %v506
  %v508 = vpop.f32.mrb[0].mxu0
  %v509 = vadd.f32 0.0, %v508
  %v510 = vpop.f32.mrb[0].mxu0
  %v511 = vadd.f32 0.0, %v510
  %v512 = vpop.f32.mrb[0].mxu0
  %v513 = vadd.f32 0.0, %v512
  %514 = vdwg.mxu0
  %515 = vmatprep.subr.bf16.mxu0 %v341
  %516 = vmatpush1.bf16.msra.mxu0 %v340
  %517 = vmatprep.subr.bf16.mxu0 %v345
  %518 = vmatpush1.bf16.msra.mxu0 %v344
  %519 = vmatprep.subr.bf16.mxu0 %v349
  %520 = vmatpush1.bf16.msra.mxu0 %v348
  %521 = vmatprep.subr.bf16.mxu0 %v353
  %522 = vmatpush1.bf16.msra.mxu0 %v352
  %523 = vmatprep.subr.bf16.mxu0 %v357
  %524 = vmatpush1.bf16.msra.mxu0 %v356
  %525 = vmatprep.subr.bf16.mxu0 %v361
  %526 = vmatpush1.bf16.msra.mxu0 %v360
  %527 = vmatprep.subr.bf16.mxu0 %v365
  %528 = vmatpush1.bf16.msra.mxu0 %v364
  %529 = vmatprep.subr.bf16.mxu0 %v369
  %530 = vmatpush1.bf16.msra.mxu0 %v368
  %531 = vmatprep.subr.bf16.mxu0 0
  %532 = vmatpush1.bf16.msra.mxu0 0
  %533 = vmatprep.subr.bf16.mxu0 0
  %534 = vmatpush1.bf16.msra.mxu0 0
  %535 = vmatprep.subr.bf16.mxu0 0
  %536 = vmatpush1.bf16.msra.mxu0 0
  %537 = vmatprep.subr.bf16.mxu0 0
  %538 = vmatpush1.bf16.msra.mxu0 0
  %539 = vmatprep.subr.bf16.mxu0 0
  %540 = vmatpush1.bf16.msra.mxu0 0
  %541 = vmatprep.subr.bf16.mxu0 0
  %542 = vmatpush1.bf16.msra.mxu0 0
  %543 = vmatprep.subr.bf16.mxu0 0
  %544 = vmatpush1.bf16.msra.mxu0 0
  %545 = vmatprep.subr.bf16.mxu0 0
  %546 = vmatpush1.bf16.msra.mxu0 0
  %547 = vmatprep.mubr.bf16.mxu0 0
  %548 = vmatmul.mubr.bf16.gmra.mrb[0].mxu0 %v226
  %v549 = vpop.f32.mrb[0].mxu0
  %v550 = vadd.f32 0.0, %v549
  %v551 = vpop.f32.mrb[0].mxu0
  %v552 = vadd.f32 0.0, %v551
  %v553 = vpop.f32.mrb[0].mxu0
  %v554 = vadd.f32 0.0, %v553
  %v555 = vpop.f32.mrb[0].mxu0
  %v556 = vadd.f32 0.0, %v555
  %557 = vmatprep.mubr.bf16.mxu0 0
  %558 = vmatmul.mubr.bf16.gmra.mrb[0].mxu0 %v227
  %v559 = vpop.f32.mrb[0].mxu0
  %v560 = vadd.f32 0.0, %v559
  %v561 = vpop.f32.mrb[0].mxu0
  %v562 = vadd.f32 0.0, %v561
  %v563 = vpop.f32.mrb[0].mxu0
  %v564 = vadd.f32 0.0, %v563
  %v565 = vpop.f32.mrb[0].mxu0
  %v566 = vadd.f32 0.0, %v565
  %567 = vmatprep.mubr.bf16.mxu0 0
  %568 = vmatmul.mubr.bf16.gmra.mrb[0].mxu0 %v228
  %v569 = vpop.f32.mrb[0].mxu0
  %v570 = vadd.f32 0.0, %v569
  %v571 = vpop.f32.mrb[0].mxu0
  %v572 = vadd.f32 0.0, %v571
  %v573 = vpop.f32.mrb[0].mxu0
  %v574 = vadd.f32 0.0, %v573
  %v575 = vpop.f32.mrb[0].mxu0
  %v576 = vadd.f32 0.0, %v575
  %577 = vmatprep.mubr.bf16.mxu0 0
  %578 = vmatmul.mubr.bf16.gmra.mrb[0].mxu0 %v229
  %v579 = vpop.f32.mrb[0].mxu0
  %v580 = vadd.f32 0.0, %v579
  %v581 = vpop.f32.mrb[0].mxu0
  %v582 = vadd.f32 0.0, %v581
  %v583 = vpop.f32.mrb[0].mxu0
  %v584 = vadd.f32 0.0, %v583
  %v585 = vpop.f32.mrb[0].mxu0
  %v586 = vadd.f32 0.0, %v585
  %587 = vmatprep.mubr.bf16.mxu0 0
  %588 = vmatmul.mubr.bf16.gmra.mrb[0].mxu0 %v230
  %v589 = vpop.f32.mrb[0].mxu0
  %v590 = vadd.f32 0.0, %v589
  %v591 = vpop.f32.mrb[0].mxu0
  %v592 = vadd.f32 0.0, %v591
  %v593 = vpop.f32.mrb[0].mxu0
  %v594 = vadd.f32 0.0, %v593
  %v595 = vpop.f32.mrb[0].mxu0
  %v596 = vadd.f32 0.0, %v595
  %597 = vmatprep.mubr.bf16.mxu0 0
  %598 = vmatmul.mubr.bf16.gmra.mrb[0].mxu0 %v231
  %v599 = vpop.f32.mrb[0].mxu0
  %v600 = vadd.f32 0.0, %v599
  %v601 = vpop.f32.mrb[0].mxu0
  %v602 = vadd.f32 0.0, %v601
  %v603 = vpop.f32.mrb[0].mxu0
  %v604 = vadd.f32 0.0, %v603
  %v605 = vpop.f32.mrb[0].mxu0
  %v606 = vadd.f32 0.0, %v605
  %607 = vmatprep.mubr.bf16.mxu0 0
  %608 = vmatmul.mubr.bf16.gmra.mrb[0].mxu0 %v232
  %v609 = vpop.f32.mrb[0].mxu0
  %v610 = vadd.f32 0.0, %v609
  %v611 = vpop.f32.mrb[0].mxu0
  %v612 = vadd.f32 0.0, %v611
  %v613 = vpop.f32.mrb[0].mxu0
  %v614 = vadd.f32 0.0, %v613
  %v615 = vpop.f32.mrb[0].mxu0
  %v616 = vadd.f32 0.0, %v615
  %617 = vmatprep.mubr.bf16.mxu0 0
  %618 = vmatmul.mubr.bf16.gmra.mrb[0].mxu0 %v233
  %v619 = vpop.f32.mrb[0].mxu0
  %v620 = vadd.f32 0.0, %v619
  %v621 = vpop.f32.mrb[0].mxu0
  %v622 = vadd.f32 0.0, %v621
  %v623 = vpop.f32.mrb[0].mxu0
  %v624 = vadd.f32 0.0, %v623
  %v625 = vpop.f32.mrb[0].mxu0
  %v626 = vadd.f32 0.0, %v625
  %627 = vdwg.mxu0
  %v628 = vadd.f32 %v82, %v437
  %v629 = vadd.f32 %v83, %v439
  %v630 = vadd.f32 %v84, %v550
  %v631 = vadd.f32 %v85, %v552
  %v632 = vadd.f32 %v86, %v441
  %v633 = vadd.f32 %v87, %v443
  %v634 = vadd.f32 %v88, %v554
  %v635 = vadd.f32 %v89, %v556
  %v636 = vadd.f32 %v90, %v447
  %v637 = vadd.f32 %v91, %v449
  %v638 = vadd.f32 %v92, %v560
  %v639 = vadd.f32 %v93, %v562
  %v640 = vadd.f32 %v94, %v451
  %v641 = vadd.f32 %v95, %v453
  %v642 = vadd.f32 %v96, %v564
  %v643 = vadd.f32 %v97, %v566
  %v644 = vadd.f32 %v98, %v457
  %v645 = vadd.f32 %v99, %v459
  %v646 = vadd.f32 %v100, %v570
  %v647 = vadd.f32 %v101, %v572
  %v648 = vadd.f32 %v102, %v461
  %v649 = vadd.f32 %v103, %v463
  %v650 = vadd.f32 %v104, %v574
  %v651 = vadd.f32 %v105, %v576
  %v652 = vadd.f32 %v106, %v467
  %v653 = vadd.f32 %v107, %v469
  %v654 = vadd.f32 %v108, %v580
  %v655 = vadd.f32 %v109, %v582
  %v656 = vadd.f32 %v110, %v471
  %v657 = vadd.f32 %v111, %v473
  %v658 = vadd.f32 %v112, %v584
  %v659 = vadd.f32 %v113, %v586
  %v660 = vadd.f32 %v114, %v477
  %v661 = vadd.f32 %v115, %v479
  %v662 = vadd.f32 %v116, %v590
  %v663 = vadd.f32 %v117, %v592
  %v664 = vadd.f32 %v118, %v481
  %v665 = vadd.f32 %v119, %v483
  %v666 = vadd.f32 %v120, %v594
  %v667 = vadd.f32 %v121, %v596
  %v668 = vadd.f32 %v122, %v487
  %v669 = vadd.f32 %v123, %v489
  %v670 = vadd.f32 %v124, %v600
  %v671 = vadd.f32 %v125, %v602
  %v672 = vadd.f32 %v126, %v491
  %v673 = vadd.f32 %v127, %v493
  %v674 = vadd.f32 %v128, %v604
  %v675 = vadd.f32 %v129, %v606
  %v676 = vadd.f32 %v130, %v497
  %v677 = vadd.f32 %v131, %v499
  %v678 = vadd.f32 %v132, %v610
  %v679 = vadd.f32 %v133, %v612
  %v680 = vadd.f32 %v134, %v501
  %v681 = vadd.f32 %v135, %v503
  %v682 = vadd.f32 %v136, %v614
  %v683 = vadd.f32 %v137, %v616
  %v684 = vadd.f32 %v138, %v507
  %v685 = vadd.f32 %v139, %v509
  %v686 = vadd.f32 %v140, %v620
  %v687 = vadd.f32 %v141, %v622
  %v688 = vadd.f32 %v142, %v511
  %v689 = vadd.f32 %v143, %v513
  %v690 = vadd.f32 %v144, %v624
  %v691 = vadd.f32 %v145, %v626
  %692 = vst [vmem:[%s2] sm:$0xff] %v628
  %693 = vst [vmem:[%s2 + $0x8] sm:$0xff] %v629
  %694 = vst [vmem:[%s2 + $0x10] sm:$0xff] %v630
  %695 = vst [vmem:[%s2 + $0x18] sm:$0xff] %v631
  %696 = vst [vmem:[%s2 + $0x20] sm:$0xff] %v632
  %697 = vst [vmem:[%s2 + $0x28] sm:$0xff] %v633
  %698 = vst [vmem:[%s2 + $0x30] sm:$0xff] %v634
  %699 = vst [vmem:[%s2 + $0x38] sm:$0xff] %v635
  %700 = vst [vmem:[%s2 + $0x40] sm:$0xff] %v636
  %701 = vst [vmem:[%s2 + $0x48] sm:$0xff] %v637
  %702 = vst [vmem:[%s2 + $0x50] sm:$0xff] %v638
  %703 = vst [vmem:[%s2 + $0x58] sm:$0xff] %v639
  %704 = vst [vmem:[%s2 + $0x60] sm:$0xff] %v640
  %705 = vst [vmem:[%s2 + $0x68] sm:$0xff] %v641
  %706 = vst [vmem:[%s2 + $0x70] sm:$0xff] %v642
  %707 = vst [vmem:[%s2 + $0x78] sm:$0xff] %v643
  %708 = vst [vmem:[%s2 + $0x80] sm:$0xff] %v644
  %709 = vst [vmem:[%s2 + $0x88] sm:$0xff] %v645
  %710 = vst [vmem:[%s2 + $0x90] sm:$0xff] %v646
  %711 = vst [vmem:[%s2 + $0x98] sm:$0xff] %v647
  %712 = vst [vmem:[%s2 + $0xa0] sm:$0xff] %v648
  %713 = vst [vmem:[%s2 + $0xa8] sm:$0xff] %v649
  %714 = vst [vmem:[%s2 + $0xb0] sm:$0xff] %v650
  %715 = vst [vmem:[%s2 + $0xb8] sm:$0xff] %v651
  %716 = vst [vmem:[%s2 + $0xc0] sm:$0xff] %v652
  %717 = vst [vmem:[%s2 + $0xc8] sm:$0xff] %v653
  %718 = vst [vmem:[%s2 + $0xd0] sm:$0xff] %v654
  %719 = vst [vmem:[%s2 + $0xd8] sm:$0xff] %v655
  %720 = vst [vmem:[%s2 + $0xe0] sm:$0xff] %v656
  %721 = vst [vmem:[%s2 + $0xe8] sm:$0xff] %v657
  %722 = vst [vmem:[%s2 + $0xf0] sm:$0xff] %v658
  %723 = vst [vmem:[%s2 + $0xf8] sm:$0xff] %v659
  %724 = vst [vmem:[%s2 + $0x100] sm:$0xff] %v660
  %725 = vst [vmem:[%s2 + $0x108] sm:$0xff] %v661
  %726 = vst [vmem:[%s2 + $0x110] sm:$0xff] %v662
  %727 = vst [vmem:[%s2 + $0x118] sm:$0xff] %v663
  %728 = vst [vmem:[%s2 + $0x120] sm:$0xff] %v664
  %729 = vst [vmem:[%s2 + $0x128] sm:$0xff] %v665
  %730 = vst [vmem:[%s2 + $0x130] sm:$0xff] %v666
  %731 = vst [vmem:[%s2 + $0x138] sm:$0xff] %v667
  %732 = vst [vmem:[%s2 + $0x140] sm:$0xff] %v668
  %733 = vst [vmem:[%s2 + $0x148] sm:$0xff] %v669
  %734 = vst [vmem:[%s2 + $0x150] sm:$0xff] %v670
  %735 = vst [vmem:[%s2 + $0x158] sm:$0xff] %v671
  %736 = vst [vmem:[%s2 + $0x160] sm:$0xff] %v672
  %737 = vst [vmem:[%s2 + $0x168] sm:$0xff] %v673
  %738 = vst [vmem:[%s2 + $0x170] sm:$0xff] %v674
  %739 = vst [vmem:[%s2 + $0x178] sm:$0xff] %v675
  %740 = vst [vmem:[%s2 + $0x180] sm:$0xff] %v676
  %741 = vst [vmem:[%s2 + $0x188] sm:$0xff] %v677
  %742 = vst [vmem:[%s2 + $0x190] sm:$0xff] %v678
  %743 = vst [vmem:[%s2 + $0x198] sm:$0xff] %v679
  %744 = vst [vmem:[%s2 + $0x1a0] sm:$0xff] %v680
  %745 = vst [vmem:[%s2 + $0x1a8] sm:$0xff] %v681
  %746 = vst [vmem:[%s2 + $0x1b0] sm:$0xff] %v682
  %747 = vst [vmem:[%s2 + $0x1b8] sm:$0xff] %v683
  %748 = vst [vmem:[%s2 + $0x1c0] sm:$0xff] %v684
  %749 = vst [vmem:[%s2 + $0x1c8] sm:$0xff] %v685
  %750 = vst [vmem:[%s2 + $0x1d0] sm:$0xff] %v686
  %751 = vst [vmem:[%s2 + $0x1d8] sm:$0xff] %v687
  %752 = vst [vmem:[%s2 + $0x1e0] sm:$0xff] %v688
  %753 = vst [vmem:[%s2 + $0x1e8] sm:$0xff] %v689
  %754 = vst [vmem:[%s2 + $0x1f0] sm:$0xff] %v690
  %755 = vst [vmem:[%s2 + $0x1f8] sm:$0xff] %v691
  // Predicated region
  $region14: #{discriminator_forward.5} parent=0 // pred_check
    %p756 = pneg %p14
  $region15: #{discriminator_forward.5} parent=0 // pred_check_branch
    %758 = sbr.rel (%p756) target = $region17
  $region16: #{discriminator_forward.5} parent=0 // pred_region
    %v759 = vld [vmem:[%s2] sm:$0xff]
    %v760 = vld [vmem:[%s2 + $0x8] sm:$0xff]
    %v761 = vld [vmem:[%s2 + $0x10] sm:$0xff]
    %v762 = vld [vmem:[%s2 + $0x18] sm:$0xff]
    %v763 = vld [vmem:[%s2 + $0x20] sm:$0xff]
    %v764 = vld [vmem:[%s2 + $0x28] sm:$0xff]
    %v765 = vld [vmem:[%s2 + $0x30] sm:$0xff]
    %v766 = vld [vmem:[%s2 + $0x38] sm:$0xff]
    %v767 = vld [vmem:[%s2 + $0x40] sm:$0xff]
    %v768 = vld [vmem:[%s2 + $0x48] sm:$0xff]
    %v769 = vld [vmem:[%s2 + $0x50] sm:$0xff]
    %v770 = vld [vmem:[%s2 + $0x58] sm:$0xff]
    %v771 = vld [vmem:[%s2 + $0x60] sm:$0xff]
    %v772 = vld [vmem:[%s2 + $0x68] sm:$0xff]
    %v773 = vld [vmem:[%s2 + $0x70] sm:$0xff]
    %v774 = vld [vmem:[%s2 + $0x78] sm:$0xff]
    %v775 = vld [vmem:[%s2 + $0x80] sm:$0xff]
    %v776 = vld [vmem:[%s2 + $0x88] sm:$0xff]
    %v777 = vld [vmem:[%s2 + $0x90] sm:$0xff]
    %v778 = vld [vmem:[%s2 + $0x98] sm:$0xff]
    %v779 = vld [vmem:[%s2 + $0xa0] sm:$0xff]
    %v780 = vld [vmem:[%s2 + $0xa8] sm:$0xff]
    %v781 = vld [vmem:[%s2 + $0xb0] sm:$0xff]
    %v782 = vld [vmem:[%s2 + $0xb8] sm:$0xff]
    %v783 = vld [vmem:[%s2 + $0xc0] sm:$0xff]
    %v784 = vld [vmem:[%s2 + $0xc8] sm:$0xff]
    %v785 = vld [vmem:[%s2 + $0xd0] sm:$0xff]
    %v786 = vld [vmem:[%s2 + $0xd8] sm:$0xff]
    %v787 = vld [vmem:[%s2 + $0xe0] sm:$0xff]
    %v788 = vld [vmem:[%s2 + $0xe8] sm:$0xff]
    %v789 = vld [vmem:[%s2 + $0xf0] sm:$0xff]
    %v790 = vld [vmem:[%s2 + $0xf8] sm:$0xff]
    %v791 = vld [vmem:[%s2 + $0x100] sm:$0xff]
    %v792 = vld [vmem:[%s2 + $0x108] sm:$0xff]
    %v793 = vld [vmem:[%s2 + $0x110] sm:$0xff]
    %v794 = vld [vmem:[%s2 + $0x118] sm:$0xff]
    %v795 = vld [vmem:[%s2 + $0x120] sm:$0xff]
    %v796 = vld [vmem:[%s2 + $0x128] sm:$0xff]
    %v797 = vld [vmem:[%s2 + $0x130] sm:$0xff]
    %v798 = vld [vmem:[%s2 + $0x138] sm:$0xff]
    %v799 = vld [vmem:[%s2 + $0x140] sm:$0xff]
    %v800 = vld [vmem:[%s2 + $0x148] sm:$0xff]
    %v801 = vld [vmem:[%s2 + $0x150] sm:$0xff]
    %v802 = vld [vmem:[%s2 + $0x158] sm:$0xff]
    %v803 = vld [vmem:[%s2 + $0x160] sm:$0xff]
    %v804 = vld [vmem:[%s2 + $0x168] sm:$0xff]
    %v805 = vld [vmem:[%s2 + $0x170] sm:$0xff]
    %v806 = vld [vmem:[%s2 + $0x178] sm:$0xff]
    %v807 = vld [vmem:[%s2 + $0x180] sm:$0xff]
    %v808 = vld [vmem:[%s2 + $0x188] sm:$0xff]
    %v809 = vld [vmem:[%s2 + $0x190] sm:$0xff]
    %v810 = vld [vmem:[%s2 + $0x198] sm:$0xff]
    %v811 = vld [vmem:[%s2 + $0x1a0] sm:$0xff]
    %v812 = vld [vmem:[%s2 + $0x1a8] sm:$0xff]
    %v813 = vld [vmem:[%s2 + $0x1b0] sm:$0xff]
    %v814 = vld [vmem:[%s2 + $0x1b8] sm:$0xff]
    %v815 = vld [vmem:[%s2 + $0x1c0] sm:$0xff]
    %v816 = vld [vmem:[%s2 + $0x1c8] sm:$0xff]
    %v817 = vld [vmem:[%s2 + $0x1d0] sm:$0xff]
    %v818 = vld [vmem:[%s2 + $0x1d8] sm:$0xff]
    %v819 = vld [vmem:[%s2 + $0x1e0] sm:$0xff]
    %v820 = vld [vmem:[%s2 + $0x1e8] sm:$0xff]
    %v821 = vld [vmem:[%s2 + $0x1f0] sm:$0xff]
    %v822 = vld [vmem:[%s2 + $0x1f8] sm:$0xff]
    %v823 = vadd.f32 %v759, %v763
    %v824 = vadd.f32 %v823, %v767
    %v825 = vadd.f32 %v824, %v771
    %v826 = vadd.f32 %v825, %v775
    %v827 = vadd.f32 %v826, %v779
    %v828 = vadd.f32 %v827, %v783
    %v829 = vadd.f32 %v828, %v787
    %v830 = vadd.f32 %v829, %v791
    %v831 = vadd.f32 %v830, %v795
    %v832 = vadd.f32 %v831, %v799
    %v833 = vadd.f32 %v832, %v803
    %v834 = vadd.f32 %v833, %v807
    %v835 = vadd.f32 %v834, %v811
    %v836 = vadd.f32 %v835, %v815
    %v837 = vadd.f32 %v836, %v819
    %v838 = vrot.slane %v837, 4
    %v839 = vadd.f32 %v837, %v838
    %v840 = vrot.slane %v839, 2
    %v841 = vadd.f32 %v839, %v840
    %v842 = vrot.slane %v841, 1
    %v843 = vadd.f32 %v841, %v842
    %v844 = vadd.f32 %v760, %v764
    %v845 = vadd.f32 %v844, %v768
    %v846 = vadd.f32 %v845, %v772
    %v847 = vadd.f32 %v846, %v776
    %v848 = vadd.f32 %v847, %v780
    %v849 = vadd.f32 %v848, %v784
    %v850 = vadd.f32 %v849, %v788
    %v851 = vadd.f32 %v850, %v792
    %v852 = vadd.f32 %v851, %v796
    %v853 = vadd.f32 %v852, %v800
    %v854 = vadd.f32 %v853, %v804
    %v855 = vadd.f32 %v854, %v808
    %v856 = vadd.f32 %v855, %v812
    %v857 = vadd.f32 %v856, %v816
    %v858 = vadd.f32 %v857, %v820
    %v859 = vrot.slane %v858, 4
    %v860 = vadd.f32 %v858, %v859
    %v861 = vrot.slane %v860, 2
    %v862 = vadd.f32 %v860, %v861
    %v863 = vrot.slane %v862, 1
    %v864 = vadd.f32 %v862, %v863
    %v865 = vadd.f32 %v761, %v765
    %v866 = vadd.f32 %v865, %v769
    %v867 = vadd.f32 %v866, %v773
    %v868 = vadd.f32 %v867, %v777
    %v869 = vadd.f32 %v868, %v781
    %v870 = vadd.f32 %v869, %v785
    %v871 = vadd.f32 %v870, %v789
    %v872 = vadd.f32 %v871, %v793
    %v873 = vadd.f32 %v872, %v797
    %v874 = vadd.f32 %v873, %v801
    %v875 = vadd.f32 %v874, %v805
    %v876 = vadd.f32 %v875, %v809
    %v877 = vadd.f32 %v876, %v813
    %v878 = vadd.f32 %v877, %v817
    %v879 = vadd.f32 %v878, %v821
    %v880 = vrot.slane %v879, 4
    %v881 = vadd.f32 %v879, %v880
    %v882 = vrot.slane %v881, 2
    %v883 = vadd.f32 %v881, %v882
    %v884 = vrot.slane %v883, 1
    %v885 = vadd.f32 %v883, %v884
    %v886 = vadd.f32 %v762, %v766
    %v887 = vadd.f32 %v886, %v770
    %v888 = vadd.f32 %v887, %v774
    %v889 = vadd.f32 %v888, %v778
    %v890 = vadd.f32 %v889, %v782
    %v891 = vadd.f32 %v890, %v786
    %v892 = vadd.f32 %v891, %v790
    %v893 = vadd.f32 %v892, %v794
    %v894 = vadd.f32 %v893, %v798
    %v895 = vadd.f32 %v894, %v802
    %v896 = vadd.f32 %v895, %v806
    %v897 = vadd.f32 %v896, %v810
    %v898 = vadd.f32 %v897, %v814
    %v899 = vadd.f32 %v898, %v818
    %v900 = vadd.f32 %v899, %v822
    %v901 = vrot.slane %v900, 4
    %v902 = vadd.f32 %v900, %v901
    %v903 = vrot.slane %v902, 2
    %v904 = vadd.f32 %v902, %v903
    %v905 = vrot.slane %v904, 1
    %v906 = vadd.f32 %v904, %v905
    %v907 = vmul.f32 %v759, %v759
    %v908 = vmul.f32 %v760, %v760
    %v909 = vmul.f32 %v761, %v761
    %v910 = vmul.f32 %v762, %v762
    %v911 = vmul.f32 %v763, %v763
    %v912 = vmul.f32 %v764, %v764
    %v913 = vmul.f32 %v765, %v765
    %v914 = vmul.f32 %v766, %v766
    %v915 = vmul.f32 %v767, %v767
    %v916 = vmul.f32 %v768, %v768
    %v917 = vmul.f32 %v769, %v769
    %v918 = vmul.f32 %v770, %v770
    %v919 = vmul.f32 %v771, %v771
    %v920 = vmul.f32 %v772, %v772
    %v921 = vmul.f32 %v773, %v773
    %v922 = vmul.f32 %v774, %v774
    %v923 = vmul.f32 %v775, %v775
    %v924 = vmul.f32 %v776, %v776
    %v925 = vmul.f32 %v777, %v777
    %v926 = vmul.f32 %v778, %v778
    %v927 = vmul.f32 %v779, %v779
    %v928 = vmul.f32 %v780, %v780
    %v929 = vmul.f32 %v781, %v781
    %v930 = vmul.f32 %v782, %v782
    %v931 = vmul.f32 %v783, %v783
    %v932 = vmul.f32 %v784, %v784
    %v933 = vmul.f32 %v785, %v785
    %v934 = vmul.f32 %v786, %v786
    %v935 = vmul.f32 %v787, %v787
    %v936 = vmul.f32 %v788, %v788
    %v937 = vmul.f32 %v789, %v789
    %v938 = vmul.f32 %v790, %v790
    %v939 = vmul.f32 %v791, %v791
    %v940 = vmul.f32 %v792, %v792
    %v941 = vmul.f32 %v793, %v793
    %v942 = vmul.f32 %v794, %v794
    %v943 = vmul.f32 %v795, %v795
    %v944 = vmul.f32 %v796, %v796
    %v945 = vmul.f32 %v797, %v797
    %v946 = vmul.f32 %v798, %v798
    %v947 = vmul.f32 %v799, %v799
    %v948 = vmul.f32 %v800, %v800
    %v949 = vmul.f32 %v801, %v801
    %v950 = vmul.f32 %v802, %v802
    %v951 = vmul.f32 %v803, %v803
    %v952 = vmul.f32 %v804, %v804
    %v953 = vmul.f32 %v805, %v805
    %v954 = vmul.f32 %v806, %v806
    %v955 = vmul.f32 %v807, %v807
    %v956 = vmul.f32 %v808, %v808
    %v957 = vmul.f32 %v809, %v809
    %v958 = vmul.f32 %v810, %v810
    %v959 = vmul.f32 %v811, %v811
    %v960 = vmul.f32 %v812, %v812
    %v961 = vmul.f32 %v813, %v813
    %v962 = vmul.f32 %v814, %v814
    %v963 = vmul.f32 %v815, %v815
    %v964 = vmul.f32 %v816, %v816
    %v965 = vmul.f32 %v817, %v817
    %v966 = vmul.f32 %v818, %v818
    %v967 = vmul.f32 %v819, %v819
    %v968 = vmul.f32 %v820, %v820
    %v969 = vmul.f32 %v821, %v821
    %v970 = vmul.f32 %v822, %v822
    %v971 = vadd.f32 %v907, %v911
    %v972 = vadd.f32 %v971, %v915
    %v973 = vadd.f32 %v972, %v919
    %v974 = vadd.f32 %v973, %v923
    %v975 = vadd.f32 %v974, %v927
    %v976 = vadd.f32 %v975, %v931
    %v977 = vadd.f32 %v976, %v935
    %v978 = vadd.f32 %v977, %v939
    %v979 = vadd.f32 %v978, %v943
    %v980 = vadd.f32 %v979, %v947
    %v981 = vadd.f32 %v980, %v951
    %v982 = vadd.f32 %v981, %v955
    %v983 = vadd.f32 %v982, %v959
    %v984 = vadd.f32 %v983, %v963
    %v985 = vadd.f32 %v984, %v967
    %v986 = vrot.slane %v985, 4
    %v987 = vadd.f32 %v985, %v986
    %v988 = vrot.slane %v987, 2
    %v989 = vadd.f32 %v987, %v988
    %v990 = vrot.slane %v989, 1
    %v991 = vadd.f32 %v989, %v990
    %v992 = vadd.f32 %v908, %v912
    %v993 = vadd.f32 %v992, %v916
    %v994 = vadd.f32 %v993, %v920
    %v995 = vadd.f32 %v994, %v924
    %v996 = vadd.f32 %v995, %v928
    %v997 = vadd.f32 %v996, %v932
    %v998 = vadd.f32 %v997, %v936
    %v999 = vadd.f32 %v998, %v940
    %v1000 = vadd.f32 %v999, %v944
    %v1001 = vadd.f32 %v1000, %v948
    %v1002 = vadd.f32 %v1001, %v952
    %v1003 = vadd.f32 %v1002, %v956
    %v1004 = vadd.f32 %v1003, %v960
    %v1005 = vadd.f32 %v1004, %v964
    %v1006 = vadd.f32 %v1005, %v968
    %v1007 = vrot.slane %v1006, 4
    %v1008 = vadd.f32 %v1006, %v1007
    %v1009 = vrot.slane %v1008, 2
    %v1010 = vadd.f32 %v1008, %v1009
    %v1011 = vrot.slane %v1010, 1
    %v1012 = vadd.f32 %v1010, %v1011
    %v1013 = vadd.f32 %v909, %v913
    %v1014 = vadd.f32 %v1013, %v917
    %v1015 = vadd.f32 %v1014, %v921
    %v1016 = vadd.f32 %v1015, %v925
    %v1017 = vadd.f32 %v1016, %v929
    %v1018 = vadd.f32 %v1017, %v933
    %v1019 = vadd.f32 %v1018, %v937
    %v1020 = vadd.f32 %v1019, %v941
    %v1021 = vadd.f32 %v1020, %v945
    %v1022 = vadd.f32 %v1021, %v949
    %v1023 = vadd.f32 %v1022, %v953
    %v1024 = vadd.f32 %v1023, %v957
    %v1025 = vadd.f32 %v1024, %v961
    %v1026 = vadd.f32 %v1025, %v965
    %v1027 = vadd.f32 %v1026, %v969
    %v1028 = vrot.slane %v1027, 4
    %v1029 = vadd.f32 %v1027, %v1028
    %v1030 = vrot.slane %v1029, 2
    %v1031 = vadd.f32 %v1029, %v1030
    %v1032 = vrot.slane %v1031, 1
    %v1033 = vadd.f32 %v1031, %v1032
    %v1034 = vadd.f32 %v910, %v914
    %v1035 = vadd.f32 %v1034, %v918
    %v1036 = vadd.f32 %v1035, %v922
    %v1037 = vadd.f32 %v1036, %v926
    %v1038 = vadd.f32 %v1037, %v930
    %v1039 = vadd.f32 %v1038, %v934
    %v1040 = vadd.f32 %v1039, %v938
    %v1041 = vadd.f32 %v1040, %v942
    %v1042 = vadd.f32 %v1041, %v946
    %v1043 = vadd.f32 %v1042, %v950
    %v1044 = vadd.f32 %v1043, %v954
    %v1045 = vadd.f32 %v1044, %v958
    %v1046 = vadd.f32 %v1045, %v962
    %v1047 = vadd.f32 %v1046, %v966
    %v1048 = vadd.f32 %v1047, %v970
    %v1049 = vrot.slane %v1048, 4
    %v1050 = vadd.f32 %v1048, %v1049
    %v1051 = vrot.slane %v1050, 2
    %v1052 = vadd.f32 %v1050, %v1051
    %v1053 = vrot.slane %v1052, 1
    %v1054 = vadd.f32 %v1052, %v1053
    %v1055 = vlaneseq
    %v1056 = vshrl.u32 %v1055, 7
    %vm1057 = vcmp.eq.s32.totalorder %v1056, 0
    %vm1058 = vcmp.eq.s32.totalorder %v1056, 1
    %v1059 = vsel %vm1058, %v991, 0.0
    %v1060 = vsel %vm1058, %v1012, 0.0
    %v1061 = vsel %vm1058, %v1033, 0.0
    %v1062 = vsel %vm1058, %v1054, 0.0
    %v1063 = vsel %vm1057, %v843, %v1059
    %v1064 = vsel %vm1057, %v864, %v1060
    %v1065 = vsel %vm1057, %v885, %v1061
    %v1066 = vsel %vm1057, %v906, %v1062
    %1067 = vst [vmem:[%s3] sm:$0xff] %v1063
    %1068 = vst [vmem:[%s3 + $0x8] sm:$0xff] %v1064
    %1069 = vst [vmem:[%s3 + $0x10] sm:$0xff] %v1065
    %1070 = vst [vmem:[%s3 + $0x18] sm:$0xff] %v1066
  $region17: #{discriminator_forward.5} parent=0 // pred_fallthru
    _
  // Predicated region
  $region18: #{discriminator_forward.5} parent=0 // pred_check
    _
  $region19: #{discriminator_forward.5} parent=0 // pred_check_branch
    %1072 = sbr.rel (0) target = $region21
  $region20: #{discriminator_forward.5} parent=0 // pred_region
    _
  $region21: #{discriminator_forward.5} parent=0 // pred_fallthru
    _
  // Predicated region
  $region22: #{discriminator_forward.5} parent=0 // pred_check
    _
  $region23: #{discriminator_forward.5} parent=0 // pred_check_branch
    %1074 = sbr.rel (0) target = $region25
  $region24: #{discriminator_forward.5} parent=0 // pred_region
    _
  $region25: #{discriminator_forward.5} parent=0 // pred_fallthru
    _
  // Predicated region
  $region26: #{discriminator_forward.5} parent=0 // pred_check
    _
  $region27: #{discriminator_forward.5} parent=0 // pred_check_branch
    %1076 = sbr.rel (0) target = $region29
  $region28: #{discriminator_forward.5} parent=0 // pred_region
    _
  $region29: #{discriminator_forward.5} parent=0 // pred_fallthru
    _
  // Predicated region
  $region30: #{discriminator_forward.5} parent=0 // pred_check
    _
  $region31: #{discriminator_forward.5} parent=0 // pred_check_branch
    %1078 = sbr.rel (0) target = $region33
  $region32: #{discriminator_forward.5} parent=0 // pred_region
    _
  $region33: #{discriminator_forward.5} parent=0 // pred_fallthru
    _

// kernel: discriminator_forward.7
$region0: #{discriminator_forward.7}
  #allocation0 [shape = 'u32[]', space=smem, size = 0x4, offset = 0x4, fixed_abs, tag = 'smem constant byte address 0x4 - core index']
  #allocation1 [shape = 'u32[144,128]{1,0:T(1,128)}', space=vmem, size = 0x12000, scoped, tag = 'internal scratch']
  %s0 = inlined_call_operand.vmem [shape: bf16[32,8192], index: 0, kind: input, shape index: {}]
  %s1 = inlined_call_operand.vmem [shape: bf16[8192,512], index: 1, kind: input, shape index: {}]
  %s2 = inlined_call_operand.vmem [shape: f32[32,512], index: 2, kind: output, shape index: {0}]
  %s3 = inlined_call_operand.vmem [shape: f32[8,512], index: 3, kind: output, shape index: {1}]
  %4 = xla_tuple %s2, %s3
  %s5 = sld [smem:[#allocation0]]
  $region80: #{discriminator_forward.7} parent=0
    _
  %s7 = ssub.s32 1, %s5
  %s8 = scalar_select 0, %s7, %s5
  $region1: #{discriminator_forward.7} parent=0
    #allocation2 [shape = 'u8[65536]{0}', space=vmem, size = 0x10000, scoped, tag = 'input window, operand 0']
    loop: start=0, step=1, limit=18
    $region2: #{discriminator_forward.7} parent=1 // loop_pre_header
      _
    $region3: #{discriminator_forward.7} parent=1 // loop_header
      %s10 = sphi 0, %s14
      %p11 = scmp.ge.s32.totalorder %s10, 18
      %s17 = sphi 0, %s29
      %s18 = sphi 0, %s25
      %s19 = sphi 0, %s17
      %s20 = sphi 0, %s18
      %s21 = sphi 0, %s19
      %s22 = sphi 0, %s20
      %s34 = sphi 0, %s36
      %s37 = sphi 0, %s34
      %s38 = sphi 0, %s37
      %s54 = sphi 0, %s38
      %s60 = sphi 0, %s62
      %s63 = sphi 0, %s60
      %s64 = sphi 0, %s63
      %s80 = sphi 0, %s64
      %s86 = sphi 0, %s88
      %s89 = sphi 0, %s86
      %s90 = sphi 0, %s89
      %s106 = sphi 0, %s90
      %s112 = sphi 0, %s114
      %s115 = sphi 0, %s112
      %s116 = sphi 0, %s115
      %s132 = sphi 0, %s116
    $region4: #{discriminator_forward.7} parent=1 // loop_header_branch
      %13 = sbr.rel (%p11) target = $region8
    $region5: #{discriminator_forward.7} parent=1 // loop_body
      %s15 = ssub.s32 %s10, 1
      %s16 = ssub.s32 %s10, 2
      %s23 = sadd.s32 1, %s18
      %p24 = scmp.ge.s32.totalorder %s23, 16
      %s25 = scalar_select %p24, 0, %s23
      %s26 = sadd.s32 1, %s17
      %s27 = scalar_select %p24, %s26, %s17
      %p28 = scmp.ge.s32.totalorder %s27, 1
      %s29 = scalar_select %p28, 0, %s27
      %s30 = ssub.s32 %s17, %s29
      %s31 = ssub.s32 %s18, %s25
      %s32 = sor.u32 %s30, %s31
      %p33 = scmp.eq.s32.totalorder %s32, 0
      %s35 = sadd.s32 %s34, 1
      %s36 = scalar_select %p33, %s34, %s35
      %p39 = pneg %p33
      %p40 = scmp.eq.s32.totalorder %s10, 15
      %p41 = por %p39, %p40
      %p42 = scmp.ne.s32.totalorder %s34, %s37
      %p43 = scmp.eq.s32.totalorder %s10, 0
      %p44 = por %p42, %p43
      %p45 = scmp.ne.s32.totalorder %s34, %s37
      %p46 = scmp.eq.s32.totalorder %s15, 15
      %p47 = por %p45, %p46
      %p48 = scmp.ne.s32.totalorder %s37, %s38
      %p49 = scmp.eq.s32.totalorder %s15, 0
      %p50 = por %p48, %p49
      %p51 = scmp.ne.s32.totalorder %s37, %s38
      %p52 = scmp.eq.s32.totalorder %s16, 15
      %p53 = por %p51, %p52
      %p55 = scmp.ne.s32.totalorder %s38, %s54
      %p56 = scmp.eq.s32.totalorder %s16, 0
      %p57 = por %p55, %p56
      %s58 = ssub.s32 %s18, %s25
      %p59 = scmp.eq.s32.totalorder %s58, 0
      %s61 = sadd.s32 %s60, 1
      %s62 = scalar_select %p59, %s60, %s61
      %p65 = pneg %p59
      %p66 = scmp.eq.s32.totalorder %s10, 15
      %p67 = por %p65, %p66
      %p68 = scmp.ne.s32.totalorder %s60, %s63
      %p69 = scmp.eq.s32.totalorder %s10, 0
      %p70 = por %p68, %p69
      %p71 = scmp.ne.s32.totalorder %s60, %s63
      %p72 = scmp.eq.s32.totalorder %s15, 15
      %p73 = por %p71, %p72
      %p74 = scmp.ne.s32.totalorder %s63, %s64
      %p75 = scmp.eq.s32.totalorder %s15, 0
      %p76 = por %p74, %p75
      %p77 = scmp.ne.s32.totalorder %s63, %s64
      %p78 = scmp.eq.s32.totalorder %s16, 15
      %p79 = por %p77, %p78
      %p81 = scmp.ne.s32.totalorder %s64, %s80
      %p82 = scmp.eq.s32.totalorder %s16, 0
      %p83 = por %p81, %p82
      %s84 = ssub.s32 %s17, %s29
      %p85 = scmp.eq.s32.totalorder %s84, 0
      %s87 = sadd.s32 %s86, 1
      %s88 = scalar_select %p85, %s86, %s87
      %p91 = pneg %p85
      %p92 = scmp.eq.s32.totalorder %s10, 15
      %p93 = por %p91, %p92
      %p94 = scmp.ne.s32.totalorder %s86, %s89
      %p95 = scmp.eq.s32.totalorder %s10, 0
      %p96 = por %p94, %p95
      %p97 = scmp.ne.s32.totalorder %s86, %s89
      %p98 = scmp.eq.s32.totalorder %s15, 15
      %p99 = por %p97, %p98
      %p100 = scmp.ne.s32.totalorder %s89, %s90
      %p101 = scmp.eq.s32.totalorder %s15, 0
      %p102 = por %p100, %p101
      %p103 = scmp.ne.s32.totalorder %s89, %s90
      %p104 = scmp.eq.s32.totalorder %s16, 15
      %p105 = por %p103, %p104
      %p107 = scmp.ne.s32.totalorder %s90, %s106
      %p108 = scmp.eq.s32.totalorder %s16, 0
      %p109 = por %p107, %p108
      %s110 = ssub.s32 %s17, %s29
      %p111 = scmp.eq.s32.totalorder %s110, 0
      %s113 = sadd.s32 %s112, 1
      %s114 = scalar_select %p111, %s112, %s113
      %p117 = pneg %p111
      %p118 = scmp.eq.s32.totalorder %s10, 15
      %p119 = por %p117, %p118
      %p120 = scmp.ne.s32.totalorder %s112, %s115
      %p121 = scmp.eq.s32.totalorder %s10, 0
      %p122 = por %p120, %p121
      %p123 = scmp.ne.s32.totalorder %s112, %s115
      %p124 = scmp.eq.s32.totalorder %s15, 15
      %p125 = por %p123, %p124
      %p126 = scmp.ne.s32.totalorder %s115, %s116
      %p127 = scmp.eq.s32.totalorder %s15, 0
      %p128 = por %p126, %p127
      %p129 = scmp.ne.s32.totalorder %s115, %s116
      %p130 = scmp.eq.s32.totalorder %s16, 15
      %p131 = por %p129, %p130
      %p133 = scmp.ne.s32.totalorder %s116, %s132
      %p134 = scmp.eq.s32.totalorder %s16, 0
      %p135 = por %p133, %p134
      %p136 = scmp.le.s32.totalorder 1, %s10
      %p137 = scmp.lt.s32.totalorder %s10, 17
      %p138 = pnand %p136, %p137
      %p139 = pneg %p138
      // Predicated region
      $region9: #{discriminator_forward.7} parent=5 // pred_check
        _
      $region10: #{discriminator_forward.7} parent=5 // pred_check_branch
        %141 = sbr.rel (%p138) target = $region12
      $region11: #{discriminator_forward.7} parent=5 // pred_region
        %s142 = ssub.s32 %s10, 1
      $region12: #{discriminator_forward.7} parent=5 // pred_fallthru
        _
      %p143 = scmp.lt.s32.totalorder %s10, 16
      // Predicated region
      $region13: #{discriminator_forward.7} parent=5 // pred_check
        %p144 = pneg %p143
      $region14: #{discriminator_forward.7} parent=5 // pred_check_branch
        %146 = sbr.rel (%p144) target = $region16
      $region15: #{discriminator_forward.7} parent=5 // pred_region
        // Predicated region
        $region17: #{discriminator_forward.7} parent=15 // pred_check
          %p147 = pneg %p44
        $region18: #{discriminator_forward.7} parent=15 // pred_check_branch
          %149 = sbr.rel (%p147) target = $region20
        $region19: #{discriminator_forward.7} parent=15 // pred_region
          %s150 = sand.u32 %s34, 1
          %s151 = sand.u32 %s34, 1
          %s152 = smul.addr %s151, 64
          %s153 = scalar_lea.vmem [#allocation2], %s152
          %s154 = smul.u32 4, %s17
          %s155 = smul.u32 4, %s18
          %s156 = smul.addr %s154, 64
          %s157 = sadd.s32 %s155, %s156
          %s158 = smul.addr %s157, 4
          %s159 = scalar_lea.vmem %s0, %s158
          // Predicated region
          $region21: #{discriminator_forward.7} parent=19 // pred_check
            _
          $region22: #{discriminator_forward.7} parent=19 // pred_check_branch
            %161 = sbr.rel (0) target = $region24
          $region23: #{discriminator_forward.7} parent=19 // pred_region
            // Predicated region
            $region25: #{discriminator_forward.7} parent=23 // pred_check
              _
            $region26: #{discriminator_forward.7} parent=23 // pred_check_branch
              %163 = sbr.rel (0) target = $region28
            $region27: #{discriminator_forward.7} parent=23 // pred_region
              loop: start=0, step=1, limit=1
              $region29: #{discriminator_forward.7} parent=27 // loop_pre_header
                _
              $region30: #{discriminator_forward.7} parent=27 // loop_header
                %s165 = sphi 0, %s169
                %p166 = scmp.ge.s32.totalorder %s165, 1
                %s170 = sphi %s159, %s159
                %s171 = sphi %s153, %s153
              $region31: #{discriminator_forward.7} parent=27 // loop_header_branch
                %168 = sbr.rel (%p166) target = $region35
              $region32: #{discriminator_forward.7} parent=27 // loop_body
                %v172 = vld [vmem:[%s170] sm:$0xff]
                %173 = vst [vmem:[%s171] sm:$0xff] %v172
                %v174 = vld [vmem:[%s170 + $0x8] sm:$0xff]
                %175 = vst [vmem:[%s171 + $0x8] sm:$0xff] %v174
                %v176 = vld [vmem:[%s170 + $0x100] sm:$0xff]
                %177 = vst [vmem:[%s171 + $0x10] sm:$0xff] %v176
                %v178 = vld [vmem:[%s170 + $0x108] sm:$0xff]
                %179 = vst [vmem:[%s171 + $0x18] sm:$0xff] %v178
                %v180 = vld [vmem:[%s170 + $0x200] sm:$0xff]
                %181 = vst [vmem:[%s171 + $0x20] sm:$0xff] %v180
                %v182 = vld [vmem:[%s170 + $0x208] sm:$0xff]
                %183 = vst [vmem:[%s171 + $0x28] sm:$0xff] %v182
                %v184 = vld [vmem:[%s170 + $0x300] sm:$0xff]
                %185 = vst [vmem:[%s171 + $0x30] sm:$0xff] %v184
                %v186 = vld [vmem:[%s170 + $0x308] sm:$0xff]
                %187 = vst [vmem:[%s171 + $0x38] sm:$0xff] %v186
              $region33: #{discriminator_forward.7} parent=27 // loop_footer
                %s169 = sadd.s32 1, %s165
              $region34: #{discriminator_forward.7} parent=27 // loop_footer_branch
                %164 = sbr.rel target = $region30
              $region35: #{discriminator_forward.7} parent=27 // loop_exit
                _
            $region28: #{discriminator_forward.7} parent=23 // pred_fallthru
              _
            // Predicated region
            $region36: #{discriminator_forward.7} parent=23 // pred_check
              _
            $region37: #{discriminator_forward.7} parent=23 // pred_check_branch
              %189 = sbr.rel target = $region39
            $region38: #{discriminator_forward.7} parent=23 // pred_region
              _
            $region39: #{discriminator_forward.7} parent=23 // pred_fallthru
              _
          $region24: #{discriminator_forward.7} parent=19 // pred_fallthru
            _
          %190 = vnop
        $region20: #{discriminator_forward.7} parent=15 // pred_fallthru
          _
        // Predicated region
        $region40: #{discriminator_forward.7} parent=15 // pred_check
          %p191 = pneg %p70
        $region41: #{discriminator_forward.7} parent=15 // pred_check_branch
          %193 = sbr.rel (%p191) target = $region43
        $region42: #{discriminator_forward.7} parent=15 // pred_region
          %s194 = smul.u32 64, %s18
          %p195 = scmp.lt.s32.totalorder %s194, 1023
          %s196 = scalar_select %p195, %s194, 1023
          %s197 = smul.addr %s196, 4
          %s198 = smul.addr %s197, 4
          %s199 = scalar_lea.vmem %s1, %s198
          %s200 = smul.u32 64, %s18
        $region43: #{discriminator_forward.7} parent=15 // pred_fallthru
          _
      $region16: #{discriminator_forward.7} parent=5 // pred_fallthru
        _
      %p201 = scmp.le.s32.totalorder 1, %s10
      %p202 = scmp.lt.s32.totalorder %s10, 17
      %p203 = pnand %p201, %p202
      %p204 = pneg %p203
      // Predicated region
      $region44: #{discriminator_forward.7} parent=5 // pred_check
        _
      $region45: #{discriminator_forward.7} parent=5 // pred_check_branch
        %206 = sbr.rel (%p203) target = $region47
      $region46: #{discriminator_forward.7} parent=5 // pred_region
        %s207 = ssub.s32 %s10, 1
        %s208 = sand.u32 %s37, 1
        %s209 = sand.u32 %s37, 1
        %s210 = smul.addr %s209, 64
        %s211 = scalar_lea.vmem [#allocation2], %s210
        // Predicated region
        $region48: #{discriminator_forward.7} parent=46 // pred_check
          %p212 = pneg %p50
        $region49: #{discriminator_forward.7} parent=46 // pred_check_branch
          %214 = sbr.rel (%p212) target = $region51
        $region50: #{discriminator_forward.7} parent=46 // pred_region
          _
        $region51: #{discriminator_forward.7} parent=46 // pred_fallthru
          _
        %s215 = sand.u32 %s37, 1
        %s216 = sand.u32 %s37, 1
        %s217 = smul.addr %s216, 64
        %s218 = scalar_lea.vmem [#allocation2], %s217
        %p219 = pneg %p50
        %p220 = pneg %p47
        %s221 = smul.u32 64, %s20
        %p222 = scmp.lt.s32.totalorder %s221, 1023
        %s223 = scalar_select %p222, %s221, 1023
        %s224 = smul.addr %s223, 4
        %s225 = smul.addr %s224, 4
        %s226 = scalar_lea.vmem %s1, %s225
        %p227 = pneg %p76
        %p228 = pneg %p73
        %p229 = pneg %p102
        %p230 = pneg %p99
        %s231 = smul.u32 4, %s19
        %p232 = scmp.lt.s32.totalorder %s231, 3
        %s233 = scalar_select %p232, %s231, 3
        %s234 = smul.addr %s233, 4
        %s235 = smul.addr %s234, 8
        %s236 = scalar_lea.vmem %s2, %s235
        %p237 = pneg %p128
        %p238 = pneg %p125
        %p239 = scmp.lt.s32.totalorder %s19, 0
        %s240 = scalar_select %p239, %s19, 0
        %s241 = smul.addr %s240, 4
        %s242 = smul.addr %s241, 8
        %s243 = scalar_lea.vmem %s3, %s242
        %s244 = smul.u32 4, %s19
        %s245 = smul.u32 4, %s20
        %s246 = smul.u32 64, %s20
        %p247 = scmp.lt.s32.totalorder %s246, 1023
        %s248 = scalar_select %p247, %s246, 1023
        %s249 = smul.addr %s248, 4
        %s250 = smul.addr %s249, 4
        %s251 = scalar_lea.vmem %s1, %s250
        %s252 = smul.u32 64, %s20
        %s253 = smul.u32 4, %s19
        %p254 = scmp.lt.s32.totalorder %s253, 3
        %s255 = scalar_select %p254, %s253, 3
        %s256 = smul.addr %s255, 4
        %s257 = smul.addr %s256, 8
        %s258 = scalar_lea.vmem %s2, %s257
        %s259 = smul.u32 4, %s19
        %p260 = scmp.lt.s32.totalorder %s19, 0
        %s261 = scalar_select %p260, %s19, 0
        %s262 = smul.addr %s261, 4
        %s263 = smul.addr %s262, 8
        %s264 = scalar_lea.vmem %s3, %s263
        %p265 = scmp.eq.s32.totalorder %s20, 0
        // Predicated region
        $region52: #{discriminator_forward.7} parent=46 // pred_check
          %p266 = pneg %p265
        $region53: #{discriminator_forward.7} parent=46 // pred_check_branch
          %268 = sbr.rel (%p266) target = $region55
        $region54: #{discriminator_forward.7} parent=46 // pred_region
          %269 = vst [vmem:[%s258] sm:$0xff] 0.0
          %270 = vst [vmem:[%s258 + $0x8] sm:$0xff] 0.0
          %271 = vst [vmem:[%s258 + $0x10] sm:$0xff] 0.0
          %272 = vst [vmem:[%s258 + $0x18] sm:$0xff] 0.0
          %273 = vst [vmem:[%s258 + $0x20] sm:$0xff] 0.0
          %274 = vst [vmem:[%s258 + $0x28] sm:$0xff] 0.0
          %275 = vst [vmem:[%s258 + $0x30] sm:$0xff] 0.0
          %276 = vst [vmem:[%s258 + $0x38] sm:$0xff] 0.0
          %277 = vst [vmem:[%s258 + $0x40] sm:$0xff] 0.0
          %278 = vst [vmem:[%s258 + $0x48] sm:$0xff] 0.0
          %279 = vst [vmem:[%s258 + $0x50] sm:$0xff] 0.0
          %280 = vst [vmem:[%s258 + $0x58] sm:$0xff] 0.0
          %281 = vst [vmem:[%s258 + $0x60] sm:$0xff] 0.0
          %282 = vst [vmem:[%s258 + $0x68] sm:$0xff] 0.0
          %283 = vst [vmem:[%s258 + $0x70] sm:$0xff] 0.0
          %284 = vst [vmem:[%s258 + $0x78] sm:$0xff] 0.0
        $region55: #{discriminator_forward.7} parent=46 // pred_fallthru
          _
        %v285 = vld [vmem:[%s258] sm:$0xff]
        %v286 = vld [vmem:[%s258 + $0x8] sm:$0xff]
        %v287 = vld [vmem:[%s258 + $0x10] sm:$0xff]
        %v288 = vld [vmem:[%s258 + $0x18] sm:$0xff]
        %v289 = vld [vmem:[%s258 + $0x20] sm:$0xff]
        %v290 = vld [vmem:[%s258 + $0x28] sm:$0xff]
        %v291 = vld [vmem:[%s258 + $0x30] sm:$0xff]
        %v292 = vld [vmem:[%s258 + $0x38] sm:$0xff]
        %v293 = vld [vmem:[%s258 + $0x40] sm:$0xff]
        %v294 = vld [vmem:[%s258 + $0x48] sm:$0xff]
        %v295 = vld [vmem:[%s258 + $0x50] sm:$0xff]
        %v296 = vld [vmem:[%s258 + $0x58] sm:$0xff]
        %v297 = vld [vmem:[%s258 + $0x60] sm:$0xff]
        %v298 = vld [vmem:[%s258 + $0x68] sm:$0xff]
        %v299 = vld [vmem:[%s258 + $0x70] sm:$0xff]
        %v300 = vld [vmem:[%s258 + $0x78] sm:$0xff]
        %v301 = vld [vmem:[%s211] sm:$0xff]
        %v302 = vld [vmem:[%s211 + $0x8] sm:$0xff]
        %v303 = vld [vmem:[%s211 + $0x10] sm:$0xff]
        %v304 = vld [vmem:[%s211 + $0x18] sm:$0xff]
        %v305 = vld [vmem:[%s211 + $0x20] sm:$0xff]
        %v306 = vld [vmem:[%s211 + $0x28] sm:$0xff]
        %v307 = vld [vmem:[%s211 + $0x30] sm:$0xff]
        %v308 = vld [vmem:[%s211 + $0x38] sm:$0xff]
        %v309 = vld [vmem:[%s251] sm:$0xff]
        %v310 = vld [vmem:[%s251 + $0x8] sm:$0xff]
        %v311 = vld [vmem:[%s251 + $0x10] sm:$0xff]
        %v312 = vld [vmem:[%s251 + $0x18] sm:$0xff]
        %v313 = vld [vmem:[%s251 + $0x20] sm:$0xff]
        %v314 = vld [vmem:[%s251 + $0x28] sm:$0xff]
        %v315 = vld [vmem:[%s251 + $0x30] sm:$0xff]
        %v316 = vld [vmem:[%s251 + $0x38] sm:$0xff]
        %v317 = vld [vmem:[%s251 + $0x40] sm:$0xff]
        %v318 = vld [vmem:[%s251 + $0x48] sm:$0xff]
        %v319 = vld [vmem:[%s251 + $0x50] sm:$0xff]
        %v320 = vld [vmem:[%s251 + $0x58] sm:$0xff]
        %v321 = vld [vmem:[%s251 + $0x60] sm:$0xff]
        %v322 = vld [vmem:[%s251 + $0x68] sm:$0xff]
        %v323 = vld [vmem:[%s251 + $0x70] sm:$0xff]
        %v324 = vld [vmem:[%s251 + $0x78] sm:$0xff]
        %v325 = vld [vmem:[%s251 + $0x80] sm:$0xff]
        %v326 = vld [vmem:[%s251 + $0x88] sm:$0xff]
        %v327 = vld [vmem:[%s251 + $0x90] sm:$0xff]
        %v328 = vld [vmem:[%s251 + $0x98] sm:$0xff]
        %v329 = vld [vmem:[%s251 + $0xa0] sm:$0xff]
        %v330 = vld [vmem:[%s251 + $0xa8] sm:$0xff]
        %v331 = vld [vmem:[%s251 + $0xb0] sm:$0xff]
        %v332 = vld [vmem:[%s251 + $0xb8] sm:$0xff]
        %v333 = vld [vmem:[%s251 + $0xc0] sm:$0xff]
        %v334 = vld [vmem:[%s251 + $0xc8] sm:$0xff]
        %v335 = vld [vmem:[%s251 + $0xd0] sm:$0xff]
        %v336 = vld [vmem:[%s251 + $0xd8] sm:$0xff]
        %v337 = vld [vmem:[%s251 + $0xe0] sm:$0xff]
        %v338 = vld [vmem:[%s251 + $0xe8] sm:$0xff]
        %v339 = vld [vmem:[%s251 + $0xf0] sm:$0xff]
        %v340 = vld [vmem:[%s251 + $0xf8] sm:$0xff]
        %v341 = vld [vmem:[%s251 + $0x100] sm:$0xff]
        %v342 = vld [vmem:[%s251 + $0x108] sm:$0xff]
        %v343 = vld [vmem:[%s251 + $0x110] sm:$0xff]
        %v344 = vld [vmem:[%s251 + $0x118] sm:$0xff]
        %v345 = vld [vmem:[%s251 + $0x120] sm:$0xff]
        %v346 = vld [vmem:[%s251 + $0x128] sm:$0xff]
        %v347 = vld [vmem:[%s251 + $0x130] sm:$0xff]
        %v348 = vld [vmem:[%s251 + $0x138] sm:$0xff]
        %v349 = vld [vmem:[%s251 + $0x140] sm:$0xff]
        %v350 = vld [vmem:[%s251 + $0x148] sm:$0xff]
        %v351 = vld [vmem:[%s251 + $0x150] sm:$0xff]
        %v352 = vld [vmem:[%s251 + $0x158] sm:$0xff]
        %v353 = vld [vmem:[%s251 + $0x160] sm:$0xff]
        %v354 = vld [vmem:[%s251 + $0x168] sm:$0xff]
        %v355 = vld [vmem:[%s251 + $0x170] sm:$0xff]
        %v356 = vld [vmem:[%s251 + $0x178] sm:$0xff]
        %v357 = vld [vmem:[%s251 + $0x180] sm:$0xff]
        %v358 = vld [vmem:[%s251 + $0x188] sm:$0xff]
        %v359 = vld [vmem:[%s251 + $0x190] sm:$0xff]
        %v360 = vld [vmem:[%s251 + $0x198] sm:$0xff]
        %v361 = vld [vmem:[%s251 + $0x1a0] sm:$0xff]
        %v362 = vld [vmem:[%s251 + $0x1a8] sm:$0xff]
        %v363 = vld [vmem:[%s251 + $0x1b0] sm:$0xff]
        %v364 = vld [vmem:[%s251 + $0x1b8] sm:$0xff]
        %v365 = vld [vmem:[%s251 + $0x1c0] sm:$0xff]
        %v366 = vld [vmem:[%s251 + $0x1c8] sm:$0xff]
        %v367 = vld [vmem:[%s251 + $0x1d0] sm:$0xff]
        %v368 = vld [vmem:[%s251 + $0x1d8] sm:$0xff]
        %v369 = vld [vmem:[%s251 + $0x1e0] sm:$0xff]
        %v370 = vld [vmem:[%s251 + $0x1e8] sm:$0xff]
        %v371 = vld [vmem:[%s251 + $0x1f0] sm:$0xff]
        %v372 = vld [vmem:[%s251 + $0x1f8] sm:$0xff]
        %v373 = vld [vmem:[%s251 + $0x200] sm:$0xff]
        %v374 = vld [vmem:[%s251 + $0x208] sm:$0xff]
        %v375 = vld [vmem:[%s251 + $0x210] sm:$0xff]
        %v376 = vld [vmem:[%s251 + $0x218] sm:$0xff]
        %v377 = vld [vmem:[%s251 + $0x220] sm:$0xff]
        %v378 = vld [vmem:[%s251 + $0x228] sm:$0xff]
        %v379 = vld [vmem:[%s251 + $0x230] sm:$0xff]
        %v380 = vld [vmem:[%s251 + $0x238] sm:$0xff]
        %v381 = vld [vmem:[%s251 + $0x240] sm:$0xff]
        %v382 = vld [vmem:[%s251 + $0x248] sm:$0xff]
        %v383 = vld [vmem:[%s251 + $0x250] sm:$0xff]
        %v384 = vld [vmem:[%s251 + $0x258] sm:$0xff]
        %v385 = vld [vmem:[%s251 + $0x260] sm:$0xff]
        %v386 = vld [vmem:[%s251 + $0x268] sm:$0xff]
        %v387 = vld [vmem:[%s251 + $0x270] sm:$0xff]
        %v388 = vld [vmem:[%s251 + $0x278] sm:$0xff]
        %v389 = vld [vmem:[%s251 + $0x280] sm:$0xff]
        %v390 = vld [vmem:[%s251 + $0x288] sm:$0xff]
        %v391 = vld [vmem:[%s251 + $0x290] sm:$0xff]
        %v392 = vld [vmem:[%s251 + $0x298] sm:$0xff]
        %v393 = vld [vmem:[%s251 + $0x2a0] sm:$0xff]
        %v394 = vld [vmem:[%s251 + $0x2a8] sm:$0xff]
        %v395 = vld [vmem:[%s251 + $0x2b0] sm:$0xff]
        %v396 = vld [vmem:[%s251 + $0x2b8] sm:$0xff]
        %v397 = vld [vmem:[%s251 + $0x2c0] sm:$0xff]
        %v398 = vld [vmem:[%s251 + $0x2c8] sm:$0xff]
        %v399 = vld [vmem:[%s251 + $0x2d0] sm:$0xff]
        %v400 = vld [vmem:[%s251 + $0x2d8] sm:$0xff]
        %v401 = vld [vmem:[%s251 + $0x2e0] sm:$0xff]
        %v402 = vld [vmem:[%s251 + $0x2e8] sm:$0xff]
        %v403 = vld [vmem:[%s251 + $0x2f0] sm:$0xff]
        %v404 = vld [vmem:[%s251 + $0x2f8] sm:$0xff]
        %v405 = vld [vmem:[%s251 + $0x300] sm:$0xff]
        %v406 = vld [vmem:[%s251 + $0x308] sm:$0xff]
        %v407 = vld [vmem:[%s251 + $0x310] sm:$0xff]
        %v408 = vld [vmem:[%s251 + $0x318] sm:$0xff]
        %v409 = vld [vmem:[%s251 + $0x320] sm:$0xff]
        %v410 = vld [vmem:[%s251 + $0x328] sm:$0xff]
        %v411 = vld [vmem:[%s251 + $0x330] sm:$0xff]
        %v412 = vld [vmem:[%s251 + $0x338] sm:$0xff]
        %v413 = vld [vmem:[%s251 + $0x340] sm:$0xff]
        %v414 = vld [vmem:[%s251 + $0x348] sm:$0xff]
        %v415 = vld [vmem:[%s251 + $0x350] sm:$0xff]
        %v416 = vld [vmem:[%s251 + $0x358] sm:$0xff]
        %v417 = vld [vmem:[%s251 + $0x360] sm:$0xff]
        %v418 = vld [vmem:[%s251 + $0x368] sm:$0xff]
        %v419 = vld [vmem:[%s251 + $0x370] sm:$0xff]
        %v420 = vld [vmem:[%s251 + $0x378] sm:$0xff]
        %v421 = vld [vmem:[%s251 + $0x380] sm:$0xff]
        %v422 = vld [vmem:[%s251 + $0x388] sm:$0xff]
        %v423 = vld [vmem:[%s251 + $0x390] sm:$0xff]
        %v424 = vld [vmem:[%s251 + $0x398] sm:$0xff]
        %v425 = vld [vmem:[%s251 + $0x3a0] sm:$0xff]
        %v426 = vld [vmem:[%s251 + $0x3a8] sm:$0xff]
        %v427 = vld [vmem:[%s251 + $0x3b0] sm:$0xff]
        %v428 = vld [vmem:[%s251 + $0x3b8] sm:$0xff]
        %v429 = vld [vmem:[%s251 + $0x3c0] sm:$0xff]
        %v430 = vld [vmem:[%s251 + $0x3c8] sm:$0xff]
        %v431 = vld [vmem:[%s251 + $0x3d0] sm:$0xff]
        %v432 = vld [vmem:[%s251 + $0x3d8] sm:$0xff]
        %v433 = vld [vmem:[%s251 + $0x3e0] sm:$0xff]
        %v434 = vld [vmem:[%s251 + $0x3e8] sm:$0xff]
        %v435 = vld [vmem:[%s251 + $0x3f0] sm:$0xff]
        %v436 = vld [vmem:[%s251 + $0x3f8] sm:$0xff]
        %v445 = vunpack.c.l.b16 %v301
        %v446 = vunpack.c.h.b16 %v301
        %v447 = vunpack.c.l.b16 %v302
        %v448 = vunpack.c.h.b16 %v302
        %v449 = vunpack.c.l.b16 %v303
        %v450 = vunpack.c.h.b16 %v303
        %v451 = vunpack.c.l.b16 %v304
        %v452 = vunpack.c.h.b16 %v304
        %v453 = vunpack.c.l.b16 %v305
        %v454 = vunpack.c.h.b16 %v305
        %v455 = vunpack.c.l.b16 %v306
        %v456 = vunpack.c.h.b16 %v306
        %v457 = vunpack.c.l.b16 %v307
        %v458 = vunpack.c.h.b16 %v307
        %v459 = vunpack.c.l.b16 %v308
        %v460 = vunpack.c.h.b16 %v308
        %v461 = vpack.c.b16 %v449, %v445
        %v462 = vpack.c.b16 %v450, %v446
        %v463 = vpack.c.b16 %v451, %v447
        %v464 = vpack.c.b16 %v452, %v448
        %v465 = vpack.c.b16 %v457, %v453
        %v466 = vpack.c.b16 %v458, %v454
        %v467 = vpack.c.b16 %v459, %v455
        %v468 = vpack.c.b16 %v460, %v456
        %v605 = vunpack.c.l.b16 %v309
        %v606 = vunpack.c.h.b16 %v309
        %v607 = vunpack.c.l.b16 %v310
        %v608 = vunpack.c.h.b16 %v310
        %v609 = vunpack.c.l.b16 %v311
        %v610 = vunpack.c.h.b16 %v311
        %v611 = vunpack.c.l.b16 %v312
        %v612 = vunpack.c.h.b16 %v312
        %v613 = vunpack.c.l.b16 %v313
        %v614 = vunpack.c.h.b16 %v313
        %v615 = vunpack.c.l.b16 %v314
        %v616 = vunpack.c.h.b16 %v314
        %v617 = vunpack.c.l.b16 %v315
        %v618 = vunpack.c.h.b16 %v315
        %v619 = vunpack.c.l.b16 %v316
        %v620 = vunpack.c.h.b16 %v316
        %v621 = vunpack.c.l.b16 %v317
        %v622 = vunpack.c.h.b16 %v317
        %v623 = vunpack.c.l.b16 %v318
        %v624 = vunpack.c.h.b16 %v318
        %v625 = vunpack.c.l.b16 %v319
        %v626 = vunpack.c.h.b16 %v319
        %v627 = vunpack.c.l.b16 %v320
        %v628 = vunpack.c.h.b16 %v320
        %v629 = vunpack.c.l.b16 %v321
        %v630 = vunpack.c.h.b16 %v321
        %v631 = vunpack.c.l.b16 %v322
        %v632 = vunpack.c.h.b16 %v322
        %v633 = vunpack.c.l.b16 %v323
        %v634 = vunpack.c.h.b16 %v323
        %v635 = vunpack.c.l.b16 %v324
        %v636 = vunpack.c.h.b16 %v324
        %v637 = vunpack.c.l.b16 %v325
        %v638 = vunpack.c.h.b16 %v325
        %v639 = vunpack.c.l.b16 %v326
        %v640 = vunpack.c.h.b16 %v326
        %v641 = vunpack.c.l.b16 %v327
        %v642 = vunpack.c.h.b16 %v327
        %v643 = vunpack.c.l.b16 %v328
        %v644 = vunpack.c.h.b16 %v328
        %v645 = vunpack.c.l.b16 %v329
        %v646 = vunpack.c.h.b16 %v329
        %v647 = vunpack.c.l.b16 %v330
        %v648 = vunpack.c.h.b16 %v330
        %v649 = vunpack.c.l.b16 %v331
        %v650 = vunpack.c.h.b16 %v331
        %v651 = vunpack.c.l.b16 %v332
        %v652 = vunpack.c.h.b16 %v332
        %v653 = vunpack.c.l.b16 %v333
        %v654 = vunpack.c.h.b16 %v333
        %v655 = vunpack.c.l.b16 %v334
        %v656 = vunpack.c.h.b16 %v334
        %v657 = vunpack.c.l.b16 %v335
        %v658 = vunpack.c.h.b16 %v335
        %v659 = vunpack.c.l.b16 %v336
        %v660 = vunpack.c.h.b16 %v336
        %v661 = vunpack.c.l.b16 %v337
        %v662 = vunpack.c.h.b16 %v337
        %v663 = vunpack.c.l.b16 %v338
        %v664 = vunpack.c.h.b16 %v338
        %v665 = vunpack.c.l.b16 %v339
        %v666 = vunpack.c.h.b16 %v339
        %v667 = vunpack.c.l.b16 %v340
        %v668 = vunpack.c.h.b16 %v340
        %v669 = vunpack.c.l.b16 %v341
        %v670 = vunpack.c.h.b16 %v341
        %v671 = vunpack.c.l.b16 %v342
        %v672 = vunpack.c.h.b16 %v342
        %v673 = vunpack.c.l.b16 %v343
        %v674 = vunpack.c.h.b16 %v343
        %v675 = vunpack.c.l.b16 %v344
        %v676 = vunpack.c.h.b16 %v344
        %v677 = vunpack.c.l.b16 %v345
        %v678 = vunpack.c.h.b16 %v345
        %v679 = vunpack.c.l.b16 %v346
        %v680 = vunpack.c.h.b16 %v346
        %v681 = vunpack.c.l.b16 %v347
        %v682 = vunpack.c.h.b16 %v347
        %v683 = vunpack.c.l.b16 %v348
        %v684 = vunpack.c.h.b16 %v348
        %v685 = vunpack.c.l.b16 %v349
        %v686 = vunpack.c.h.b16 %v349
        %v687 = vunpack.c.l.b16 %v350
        %v688 = vunpack.c.h.b16 %v350
        %v689 = vunpack.c.l.b16 %v351
        %v690 = vunpack.c.h.b16 %v351
        %v691 = vunpack.c.l.b16 %v352
        %v692 = vunpack.c.h.b16 %v352
        %v693 = vunpack.c.l.b16 %v353
        %v694 = vunpack.c.h.b16 %v353
        %v695 = vunpack.c.l.b16 %v354
        %v696 = vunpack.c.h.b16 %v354
        %v697 = vunpack.c.l.b16 %v355
        %v698 = vunpack.c.h.b16 %v355
        %v699 = vunpack.c.l.b16 %v356
        %v700 = vunpack.c.h.b16 %v356
        %v701 = vunpack.c.l.b16 %v357
        %v702 = vunpack.c.h.b16 %v357
        %v703 = vunpack.c.l.b16 %v358
        %v704 = vunpack.c.h.b16 %v358
        %v705 = vunpack.c.l.b16 %v359
        %v706 = vunpack.c.h.b16 %v359
        %v707 = vunpack.c.l.b16 %v360
        %v708 = vunpack.c.h.b16 %v360
        %v709 = vunpack.c.l.b16 %v361
        %v710 = vunpack.c.h.b16 %v361
        %v711 = vunpack.c.l.b16 %v362
        %v712 = vunpack.c.h.b16 %v362
        %v713 = vunpack.c.l.b16 %v363
        %v714 = vunpack.c.h.b16 %v363
        %v715 = vunpack.c.l.b16 %v364
        %v716 = vunpack.c.h.b16 %v364
        %v717 = vunpack.c.l.b16 %v365
        %v718 = vunpack.c.h.b16 %v365
        %v719 = vunpack.c.l.b16 %v366
        %v720 = vunpack.c.h.b16 %v366
        %v721 = vunpack.c.l.b16 %v367
        %v722 = vunpack.c.h.b16 %v367
        %v723 = vunpack.c.l.b16 %v368
        %v724 = vunpack.c.h.b16 %v368
        %v725 = vunpack.c.l.b16 %v369
        %v726 = vunpack.c.h.b16 %v369
        %v727 = vunpack.c.l.b16 %v370
        %v728 = vunpack.c.h.b16 %v370
        %v729 = vunpack.c.l.b16 %v371
        %v730 = vunpack.c.h.b16 %v371
        %v731 = vunpack.c.l.b16 %v372
        %v732 = vunpack.c.h.b16 %v372
        %v733 = vunpack.c.l.b16 %v373
        %v734 = vunpack.c.h.b16 %v373
        %v735 = vunpack.c.l.b16 %v374
        %v736 = vunpack.c.h.b16 %v374
        %v737 = vunpack.c.l.b16 %v375
        %v738 = vunpack.c.h.b16 %v375
        %v739 = vunpack.c.l.b16 %v376
        %v740 = vunpack.c.h.b16 %v376
        %v741 = vunpack.c.l.b16 %v377
        %v742 = vunpack.c.h.b16 %v377
        %v743 = vunpack.c.l.b16 %v378
        %v744 = vunpack.c.h.b16 %v378
        %v745 = vunpack.c.l.b16 %v379
        %v746 = vunpack.c.h.b16 %v379
        %v747 = vunpack.c.l.b16 %v380
        %v748 = vunpack.c.h.b16 %v380
        %v749 = vunpack.c.l.b16 %v381
        %v750 = vunpack.c.h.b16 %v381
        %v751 = vunpack.c.l.b16 %v382
        %v752 = vunpack.c.h.b16 %v382
        %v753 = vunpack.c.l.b16 %v383
        %v754 = vunpack.c.h.b16 %v383
        %v755 = vunpack.c.l.b16 %v384
        %v756 = vunpack.c.h.b16 %v384
        %v757 = vunpack.c.l.b16 %v385
        %v758 = vunpack.c.h.b16 %v385
        %v759 = vunpack.c.l.b16 %v386
        %v760 = vunpack.c.h.b16 %v386
        %v761 = vunpack.c.l.b16 %v387
        %v762 = vunpack.c.h.b16 %v387
        %v763 = vunpack.c.l.b16 %v388
        %v764 = vunpack.c.h.b16 %v388
        %v765 = vunpack.c.l.b16 %v389
        %v766 = vunpack.c.h.b16 %v389
        %v767 = vunpack.c.l.b16 %v390
        %v768 = vunpack.c.h.b16 %v390
        %v769 = vunpack.c.l.b16 %v391
        %v770 = vunpack.c.h.b16 %v391
        %v771 = vunpack.c.l.b16 %v392
        %v772 = vunpack.c.h.b16 %v392
        %v773 = vunpack.c.l.b16 %v393
        %v774 = vunpack.c.h.b16 %v393
        %v775 = vunpack.c.l.b16 %v394
        %v776 = vunpack.c.h.b16 %v394
        %v777 = vunpack.c.l.b16 %v395
        %v778 = vunpack.c.h.b16 %v395
        %v779 = vunpack.c.l.b16 %v396
        %v780 = vunpack.c.h.b16 %v396
        %v781 = vunpack.c.l.b16 %v397
        %v782 = vunpack.c.h.b16 %v397
        %v783 = vunpack.c.l.b16 %v398
        %v784 = vunpack.c.h.b16 %v398
        %v785 = vunpack.c.l.b16 %v399
        %v786 = vunpack.c.h.b16 %v399
        %v787 = vunpack.c.l.b16 %v400
        %v788 = vunpack.c.h.b16 %v400
        %v789 = vunpack.c.l.b16 %v401
        %v790 = vunpack.c.h.b16 %v401
        %v791 = vunpack.c.l.b16 %v402
        %v792 = vunpack.c.h.b16 %v402
        %v793 = vunpack.c.l.b16 %v403
        %v794 = vunpack.c.h.b16 %v403
        %v795 = vunpack.c.l.b16 %v404
        %v796 = vunpack.c.h.b16 %v404
        %v797 = vunpack.c.l.b16 %v405
        %v798 = vunpack.c.h.b16 %v405
        %v799 = vunpack.c.l.b16 %v406
        %v800 = vunpack.c.h.b16 %v406
        %v801 = vunpack.c.l.b16 %v407
        %v802 = vunpack.c.h.b16 %v407
        %v803 = vunpack.c.l.b16 %v408
        %v804 = vunpack.c.h.b16 %v408
        %v805 = vunpack.c.l.b16 %v409
        %v806 = vunpack.c.h.b16 %v409
        %v807 = vunpack.c.l.b16 %v410
        %v808 = vunpack.c.h.b16 %v410
        %v809 = vunpack.c.l.b16 %v411
        %v810 = vunpack.c.h.b16 %v411
        %v811 = vunpack.c.l.b16 %v412
        %v812 = vunpack.c.h.b16 %v412
        %v813 = vunpack.c.l.b16 %v413
        %v814 = vunpack.c.h.b16 %v413
        %v815 = vunpack.c.l.b16 %v414
        %v816 = vunpack.c.h.b16 %v414
        %v817 = vunpack.c.l.b16 %v415
        %v818 = vunpack.c.h.b16 %v415
        %v819 = vunpack.c.l.b16 %v416
        %v820 = vunpack.c.h.b16 %v416
        %v821 = vunpack.c.l.b16 %v417
        %v822 = vunpack.c.h.b16 %v417
        %v823 = vunpack.c.l.b16 %v418
        %v824 = vunpack.c.h.b16 %v418
        %v825 = vunpack.c.l.b16 %v419
        %v826 = vunpack.c.h.b16 %v419
        %v827 = vunpack.c.l.b16 %v420
        %v828 = vunpack.c.h.b16 %v420
        %v829 = vunpack.c.l.b16 %v421
        %v830 = vunpack.c.h.b16 %v421
        %v831 = vunpack.c.l.b16 %v422
        %v832 = vunpack.c.h.b16 %v422
        %v833 = vunpack.c.l.b16 %v423
        %v834 = vunpack.c.h.b16 %v423
        %v835 = vunpack.c.l.b16 %v424
        %v836 = vunpack.c.h.b16 %v424
        %v837 = vunpack.c.l.b16 %v425
        %v838 = vunpack.c.h.b16 %v425
        %v839 = vunpack.c.l.b16 %v426
        %v840 = vunpack.c.h.b16 %v426
        %v841 = vunpack.c.l.b16 %v427
        %v842 = vunpack.c.h.b16 %v427
        %v843 = vunpack.c.l.b16 %v428
        %v844 = vunpack.c.h.b16 %v428
        %v845 = vunpack.c.l.b16 %v429
        %v846 = vunpack.c.h.b16 %v429
        %v847 = vunpack.c.l.b16 %v430
        %v848 = vunpack.c.h.b16 %v430
        %v849 = vunpack.c.l.b16 %v431
        %v850 = vunpack.c.h.b16 %v431
        %v851 = vunpack.c.l.b16 %v432
        %v852 = vunpack.c.h.b16 %v432
        %v853 = vunpack.c.l.b16 %v433
        %v854 = vunpack.c.h.b16 %v433
        %v855 = vunpack.c.l.b16 %v434
        %v856 = vunpack.c.h.b16 %v434
        %v857 = vunpack.c.l.b16 %v435
        %v858 = vunpack.c.h.b16 %v435
        %v859 = vunpack.c.l.b16 %v436
        %v860 = vunpack.c.h.b16 %v436
        %v861 = vpack.c.b16 %v609, %v605
        %v862 = vpack.c.b16 %v610, %v606
        %v863 = vpack.c.b16 %v611, %v607
        %v864 = vpack.c.b16 %v612, %v608
        %v865 = vpack.c.b16 %v617, %v613
        %v866 = vpack.c.b16 %v618, %v614
        %v867 = vpack.c.b16 %v619, %v615
        %v868 = vpack.c.b16 %v620, %v616
        %v869 = vpack.c.b16 %v625, %v621
        %v870 = vpack.c.b16 %v626, %v622
        %v871 = vpack.c.b16 %v627, %v623
        %v872 = vpack.c.b16 %v628, %v624
        %v873 = vpack.c.b16 %v633, %v629
        %v874 = vpack.c.b16 %v634, %v630
        %v875 = vpack.c.b16 %v635, %v631
        %v876 = vpack.c.b16 %v636, %v632
        %v877 = vpack.c.b16 %v641, %v637
        %v878 = vpack.c.b16 %v642, %v638
        %v879 = vpack.c.b16 %v643, %v639
        %v880 = vpack.c.b16 %v644, %v640
        %v881 = vpack.c.b16 %v649, %v645
        %v882 = vpack.c.b16 %v650, %v646
        %v883 = vpack.c.b16 %v651, %v647
        %v884 = vpack.c.b16 %v652, %v648
        %v885 = vpack.c.b16 %v657, %v653
        %v886 = vpack.c.b16 %v658, %v654
        %v887 = vpack.c.b16 %v659, %v655
        %v888 = vpack.c.b16 %v660, %v656
        %v889 = vpack.c.b16 %v665, %v661
        %v890 = vpack.c.b16 %v666, %v662
        %v891 = vpack.c.b16 %v667, %v663
        %v892 = vpack.c.b16 %v668, %v664
        %v893 = vpack.c.b16 %v673, %v669
        %v894 = vpack.c.b16 %v674, %v670
        %v895 = vpack.c.b16 %v675, %v671
        %v896 = vpack.c.b16 %v676, %v672
        %v897 = vpack.c.b16 %v681, %v677
        %v898 = vpack.c.b16 %v682, %v678
        %v899 = vpack.c.b16 %v683, %v679
        %v900 = vpack.c.b16 %v684, %v680
        %v901 = vpack.c.b16 %v689, %v685
        %v902 = vpack.c.b16 %v690, %v686
        %v903 = vpack.c.b16 %v691, %v687
        %v904 = vpack.c.b16 %v692, %v688
        %v905 = vpack.c.b16 %v697, %v693
        %v906 = vpack.c.b16 %v698, %v694
        %v907 = vpack.c.b16 %v699, %v695
        %v908 = vpack.c.b16 %v700, %v696
        %v909 = vpack.c.b16 %v705, %v701
        %v910 = vpack.c.b16 %v706, %v702
        %v911 = vpack.c.b16 %v707, %v703
        %v912 = vpack.c.b16 %v708, %v704
        %v913 = vpack.c.b16 %v713, %v709
        %v914 = vpack.c.b16 %v714, %v710
        %v915 = vpack.c.b16 %v715, %v711
        %v916 = vpack.c.b16 %v716, %v712
        %v917 = vpack.c.b16 %v721, %v717
        %v918 = vpack.c.b16 %v722, %v718
        %v919 = vpack.c.b16 %v723, %v719
        %v920 = vpack.c.b16 %v724, %v720
        %v921 = vpack.c.b16 %v729, %v725
        %v922 = vpack.c.b16 %v730, %v726
        %v923 = vpack.c.b16 %v731, %v727
        %v924 = vpack.c.b16 %v732, %v728
        %v925 = vpack.c.b16 %v737, %v733
        %v926 = vpack.c.b16 %v738, %v734
        %v927 = vpack.c.b16 %v739, %v735
        %v928 = vpack.c.b16 %v740, %v736
        %v929 = vpack.c.b16 %v745, %v741
        %v930 = vpack.c.b16 %v746, %v742
        %v931 = vpack.c.b16 %v747, %v743
        %v932 = vpack.c.b16 %v748, %v744
        %v933 = vpack.c.b16 %v753, %v749
        %v934 = vpack.c.b16 %v754, %v750
        %v935 = vpack.c.b16 %v755, %v751
        %v936 = vpack.c.b16 %v756, %v752
        %v937 = vpack.c.b16 %v761, %v757
        %v938 = vpack.c.b16 %v762, %v758
        %v939 = vpack.c.b16 %v763, %v759
        %v940 = vpack.c.b16 %v764, %v760
        %v941 = vpack.c.b16 %v769, %v765
        %v942 = vpack.c.b16 %v770, %v766
        %v943 = vpack.c.b16 %v771, %v767
        %v944 = vpack.c.b16 %v772, %v768
        %v945 = vpack.c.b16 %v777, %v773
        %v946 = vpack.c.b16 %v778, %v774
        %v947 = vpack.c.b16 %v779, %v775
        %v948 = vpack.c.b16 %v780, %v776
        %v949 = vpack.c.b16 %v785, %v781
        %v950 = vpack.c.b16 %v786, %v782
        %v951 = vpack.c.b16 %v787, %v783
        %v952 = vpack.c.b16 %v788, %v784
        %v953 = vpack.c.b16 %v793, %v789
        %v954 = vpack.c.b16 %v794, %v790
        %v955 = vpack.c.b16 %v795, %v791
        %v956 = vpack.c.b16 %v796, %v792
        %v957 = vpack.c.b16 %v801, %v797
        %v958 = vpack.c.b16 %v802, %v798
        %v959 = vpack.c.b16 %v803, %v799
        %v960 = vpack.c.b16 %v804, %v800
        %v961 = vpack.c.b16 %v809, %v805
        %v962 = vpack.c.b16 %v810, %v806
        %v963 = vpack.c.b16 %v811, %v807
        %v964 = vpack.c.b16 %v812, %v808
        %v965 = vpack.c.b16 %v817, %v813
        %v966 = vpack.c.b16 %v818, %v814
        %v967 = vpack.c.b16 %v819, %v815
        %v968 = vpack.c.b16 %v820, %v816
        %v969 = vpack.c.b16 %v825, %v821
        %v970 = vpack.c.b16 %v826, %v822
        %v971 = vpack.c.b16 %v827, %v823
        %v972 = vpack.c.b16 %v828, %v824
        %v973 = vpack.c.b16 %v833, %v829
        %v974 = vpack.c.b16 %v834, %v830
        %v975 = vpack.c.b16 %v835, %v831
        %v976 = vpack.c.b16 %v836, %v832
        %v977 = vpack.c.b16 %v841, %v837
        %v978 = vpack.c.b16 %v842, %v838
        %v979 = vpack.c.b16 %v843, %v839
        %v980 = vpack.c.b16 %v844, %v840
        %v981 = vpack.c.b16 %v849, %v845
        %v982 = vpack.c.b16 %v850, %v846
        %v983 = vpack.c.b16 %v851, %v847
        %v984 = vpack.c.b16 %v852, %v848
        %v985 = vpack.c.b16 %v857, %v853
        %v986 = vpack.c.b16 %v858, %v854
        %v987 = vpack.c.b16 %v859, %v855
        %v988 = vpack.c.b16 %v860, %v856
        %1117 = vmatprep.subr.bf16.mxu0 %v862
        %1118 = vmatpush1.bf16.msra.mxu0 %v861
        %1119 = vmatprep.subr.bf16.mxu0 %v866
        %1120 = vmatpush1.bf16.msra.mxu0 %v865
        %1121 = vmatprep.subr.bf16.mxu0 %v870
        %1122 = vmatpush1.bf16.msra.mxu0 %v869
        %1123 = vmatprep.subr.bf16.mxu0 %v874
        %1124 = vmatpush1.bf16.msra.mxu0 %v873
        %1125 = vmatprep.subr.bf16.mxu0 %v878
        %1126 = vmatpush1.bf16.msra.mxu0 %v877
        %1127 = vmatprep.subr.bf16.mxu0 %v882
        %1128 = vmatpush1.bf16.msra.mxu0 %v881
        %1129 = vmatprep.subr.bf16.mxu0 %v886
        %1130 = vmatpush1.bf16.msra.mxu0 %v885
        %1131 = vmatprep.subr.bf16.mxu0 %v890
        %1132 = vmatpush1.bf16.msra.mxu0 %v889
        %1133 = vmatprep.subr.bf16.mxu0 %v894
        %1134 = vmatpush1.bf16.msra.mxu0 %v893
        %1135 = vmatprep.subr.bf16.mxu0 %v898
        %1136 = vmatpush1.bf16.msra.mxu0 %v897
        %1137 = vmatprep.subr.bf16.mxu0 %v902
        %1138 = vmatpush1.bf16.msra.mxu0 %v901
        %1139 = vmatprep.subr.bf16.mxu0 %v906
        %1140 = vmatpush1.bf16.msra.mxu0 %v905
        %1141 = vmatprep.subr.bf16.mxu0 %v910
        %1142 = vmatpush1.bf16.msra.mxu0 %v909
        %1143 = vmatprep.subr.bf16.mxu0 %v914
        %1144 = vmatpush1.bf16.msra.mxu0 %v913
        %1145 = vmatprep.subr.bf16.mxu0 %v918
        %1146 = vmatpush1.bf16.msra.mxu0 %v917
        %1147 = vmatprep.subr.bf16.mxu0 %v922
        %1148 = vmatpush1.bf16.msra.mxu0 %v921
        %1149 = vmatprep.mubr.bf16.mxu0 %v462
        %1150 = vmatmul.mubr.bf16.gmra.mrb[0].mxu0 %v461
        %v1151 = vpop.f32.mrb[0].mxu0
        %v1152 = vadd.f32 0.0, %v1151
        %v1153 = vpop.f32.mrb[0].mxu0
        %v1154 = vadd.f32 0.0, %v1153
        %v1155 = vpop.f32.mrb[0].mxu0
        %v1156 = vadd.f32 0.0, %v1155
        %v1157 = vpop.f32.mrb[0].mxu0
        %v1158 = vadd.f32 0.0, %v1157
        %1159 = vmatprep.mubr.bf16.mxu0 %v466
        %1160 = vmatmul.mubr.bf16.gmra.mrb[0].mxu0 %v465
        %v1161 = vpop.f32.mrb[0].mxu0
        %v1162 = vadd.f32 0.0, %v1161
        %v1163 = vpop.f32.mrb[0].mxu0
        %v1164 = vadd.f32 0.0, %v1163
        %v1165 = vpop.f32.mrb[0].mxu0
        %v1166 = vadd.f32 0.0, %v1165
        %v1167 = vpop.f32.mrb[0].mxu0
        %v1168 = vadd.f32 0.0, %v1167
        %1169 = vdwg.mxu0
        %1170 = vmatprep.subr.bf16.mxu0 %v926
        %1171 = vmatpush1.bf16.msra.mxu0 %v925
        %1172 = vmatprep.subr.bf16.mxu0 %v930
        %1173 = vmatpush1.bf16.msra.mxu0 %v929
        %1174 = vmatprep.subr.bf16.mxu0 %v934
        %1175 = vmatpush1.bf16.msra.mxu0 %v933
        %1176 = vmatprep.subr.bf16.mxu0 %v938
        %1177 = vmatpush1.bf16.msra.mxu0 %v937
        %1178 = vmatprep.subr.bf16.mxu0 %v942
        %1179 = vmatpush1.bf16.msra.mxu0 %v941
        %1180 = vmatprep.subr.bf16.mxu0 %v946
        %1181 = vmatpush1.bf16.msra.mxu0 %v945
        %1182 = vmatprep.subr.bf16.mxu0 %v950
        %1183 = vmatpush1.bf16.msra.mxu0 %v949
        %1184 = vmatprep.subr.bf16.mxu0 %v954
        %1185 = vmatpush1.bf16.msra.mxu0 %v953
        %1186 = vmatprep.subr.bf16.mxu0 %v958
        %1187 = vmatpush1.bf16.msra.mxu0 %v957
        %1188 = vmatprep.subr.bf16.mxu0 %v962
        %1189 = vmatpush1.bf16.msra.mxu0 %v961
        %1190 = vmatprep.subr.bf16.mxu0 %v966
        %1191 = vmatpush1.bf16.msra.mxu0 %v965
        %1192 = vmatprep.subr.bf16.mxu0 %v970
        %1193 = vmatpush1.bf16.msra.mxu0 %v969
        %1194 = vmatprep.subr.bf16.mxu0 %v974
        %1195 = vmatpush1.bf16.msra.mxu0 %v973
        %1196 = vmatprep.subr.bf16.mxu0 %v978
        %1197 = vmatpush1.bf16.msra.mxu0 %v977
        %1198 = vmatprep.subr.bf16.mxu0 %v982
        %1199 = vmatpush1.bf16.msra.mxu0 %v981
        %1200 = vmatprep.subr.bf16.mxu0 %v986
        %1201 = vmatpush1.bf16.msra.mxu0 %v985
        %1202 = vmatprep.mubr.bf16.mxu0 %v464
        %1203 = vmatmul.mubr.bf16.gmra.mrb[0].mxu0 %v463
        %v1204 = vpop.f32.mrb[0].mxu0
        %v1205 = vadd.f32 %v1152, %v1204
        %v1206 = vpop.f32.mrb[0].mxu0
        %v1207 = vadd.f32 %v1154, %v1206
        %v1208 = vpop.f32.mrb[0].mxu0
        %v1209 = vadd.f32 %v1156, %v1208
        %v1210 = vpop.f32.mrb[0].mxu0
        %v1211 = vadd.f32 %v1158, %v1210
        %1212 = vmatprep.mubr.bf16.mxu0 %v468
        %1213 = vmatmul.mubr.bf16.gmra.mrb[0].mxu0 %v467
        %v1214 = vpop.f32.mrb[0].mxu0
        %v1215 = vadd.f32 %v1162, %v1214
        %v1216 = vpop.f32.mrb[0].mxu0
        %v1217 = vadd.f32 %v1164, %v1216
        %v1218 = vpop.f32.mrb[0].mxu0
        %v1219 = vadd.f32 %v1166, %v1218
        %v1220 = vpop.f32.mrb[0].mxu0
        %v1221 = vadd.f32 %v1168, %v1220
        %1222 = vdwg.mxu0
        %1223 = vmatprep.subr.bf16.mxu0 %v864
        %1224 = vmatpush1.bf16.msra.mxu0 %v863
        %1225 = vmatprep.subr.bf16.mxu0 %v868
        %1226 = vmatpush1.bf16.msra.mxu0 %v867
        %1227 = vmatprep.subr.bf16.mxu0 %v872
        %1228 = vmatpush1.bf16.msra.mxu0 %v871
        %1229 = vmatprep.subr.bf16.mxu0 %v876
        %1230 = vmatpush1.bf16.msra.mxu0 %v875
        %1231 = vmatprep.subr.bf16.mxu0 %v880
        %1232 = vmatpush1.bf16.msra.mxu0 %v879
        %1233 = vmatprep.subr.bf16.mxu0 %v884
        %1234 = vmatpush1.bf16.msra.mxu0 %v883
        %1235 = vmatprep.subr.bf16.mxu0 %v888
        %1236 = vmatpush1.bf16.msra.mxu0 %v887
        %1237 = vmatprep.subr.bf16.mxu0 %v892
        %1238 = vmatpush1.bf16.msra.mxu0 %v891
        %1239 = vmatprep.subr.bf16.mxu0 %v896
        %1240 = vmatpush1.bf16.msra.mxu0 %v895
        %1241 = vmatprep.subr.bf16.mxu0 %v900
        %1242 = vmatpush1.bf16.msra.mxu0 %v899
        %1243 = vmatprep.subr.bf16.mxu0 %v904
        %1244 = vmatpush1.bf16.msra.mxu0 %v903
        %1245 = vmatprep.subr.bf16.mxu0 %v908
        %1246 = vmatpush1.bf16.msra.mxu0 %v907
        %1247 = vmatprep.subr.bf16.mxu0 %v912
        %1248 = vmatpush1.bf16.msra.mxu0 %v911
        %1249 = vmatprep.subr.bf16.mxu0 %v916
        %1250 = vmatpush1.bf16.msra.mxu0 %v915
        %1251 = vmatprep.subr.bf16.mxu0 %v920
        %1252 = vmatpush1.bf16.msra.mxu0 %v919
        %1253 = vmatprep.subr.bf16.mxu0 %v924
        %1254 = vmatpush1.bf16.msra.mxu0 %v923
        %1255 = vmatprep.mubr.bf16.mxu0 %v462
        %1256 = vmatmul.mubr.bf16.gmra.mrb[0].mxu0 %v461
        %v1257 = vpop.f32.mrb[0].mxu0
        %v1258 = vadd.f32 0.0, %v1257
        %v1259 = vpop.f32.mrb[0].mxu0
        %v1260 = vadd.f32 0.0, %v1259
        %v1261 = vpop.f32.mrb[0].mxu0
        %v1262 = vadd.f32 0.0, %v1261
        %v1263 = vpop.f32.mrb[0].mxu0
        %v1264 = vadd.f32 0.0, %v1263
        %1265 = vmatprep.mubr.bf16.mxu0 %v466
        %1266 = vmatmul.mubr.bf16.gmra.mrb[0].mxu0 %v465
        %v1267 = vpop.f32.mrb[0].mxu0
        %v1268 = vadd.f32 0.0, %v1267
        %v1269 = vpop.f32.mrb[0].mxu0
        %v1270 = vadd.f32 0.0, %v1269
        %v1271 = vpop.f32.mrb[0].mxu0
        %v1272 = vadd.f32 0.0, %v1271
        %v1273 = vpop.f32.mrb[0].mxu0
        %v1274 = vadd.f32 0.0, %v1273
        %1275 = vdwg.mxu0
        %1276 = vmatprep.subr.bf16.mxu0 %v928
        %1277 = vmatpush1.bf16.msra.mxu0 %v927
        %1278 = vmatprep.subr.bf16.mxu0 %v932
        %1279 = vmatpush1.bf16.msra.mxu0 %v931
        %1280 = vmatprep.subr.bf16.mxu0 %v936
        %1281 = vmatpush1.bf16.msra.mxu0 %v935
        %1282 = vmatprep.subr.bf16.mxu0 %v940
        %1283 = vmatpush1.bf16.msra.mxu0 %v939
        %1284 = vmatprep.subr.bf16.mxu0 %v944
        %1285 = vmatpush1.bf16.msra.mxu0 %v943
        %1286 = vmatprep.subr.bf16.mxu0 %v948
        %1287 = vmatpush1.bf16.msra.mxu0 %v947
        %1288 = vmatprep.subr.bf16.mxu0 %v952
        %1289 = vmatpush1.bf16.msra.mxu0 %v951
        %1290 = vmatprep.subr.bf16.mxu0 %v956
        %1291 = vmatpush1.bf16.msra.mxu0 %v955
        %1292 = vmatprep.subr.bf16.mxu0 %v960
        %1293 = vmatpush1.bf16.msra.mxu0 %v959
        %1294 = vmatprep.subr.bf16.mxu0 %v964
        %1295 = vmatpush1.bf16.msra.mxu0 %v963
        %1296 = vmatprep.subr.bf16.mxu0 %v968
        %1297 = vmatpush1.bf16.msra.mxu0 %v967
        %1298 = vmatprep.subr.bf16.mxu0 %v972
        %1299 = vmatpush1.bf16.msra.mxu0 %v971
        %1300 = vmatprep.subr.bf16.mxu0 %v976
        %1301 = vmatpush1.bf16.msra.mxu0 %v975
        %1302 = vmatprep.subr.bf16.mxu0 %v980
        %1303 = vmatpush1.bf16.msra.mxu0 %v979
        %1304 = vmatprep.subr.bf16.mxu0 %v984
        %1305 = vmatpush1.bf16.msra.mxu0 %v983
        %1306 = vmatprep.subr.bf16.mxu0 %v988
        %1307 = vmatpush1.bf16.msra.mxu0 %v987
        %1308 = vmatprep.mubr.bf16.mxu0 %v464
        %1309 = vmatmul.mubr.bf16.gmra.mrb[0].mxu0 %v463
        %v1310 = vpop.f32.mrb[0].mxu0
        %v1311 = vadd.f32 %v1258, %v1310
        %v1312 = vpop.f32.mrb[0].mxu0
        %v1313 = vadd.f32 %v1260, %v1312
        %v1314 = vpop.f32.mrb[0].mxu0
        %v1315 = vadd.f32 %v1262, %v1314
        %v1316 = vpop.f32.mrb[0].mxu0
        %v1317 = vadd.f32 %v1264, %v1316
        %1318 = vmatprep.mubr.bf16.mxu0 %v468
        %1319 = vmatmul.mubr.bf16.gmra.mrb[0].mxu0 %v467
        %v1320 = vpop.f32.mrb[0].mxu0
        %v1321 = vadd.f32 %v1268, %v1320
        %v1322 = vpop.f32.mrb[0].mxu0
        %v1323 = vadd.f32 %v1270, %v1322
        %v1324 = vpop.f32.mrb[0].mxu0
        %v1325 = vadd.f32 %v1272, %v1324
        %v1326 = vpop.f32.mrb[0].mxu0
        %v1327 = vadd.f32 %v1274, %v1326
        %1328 = vdwg.mxu0
        %v1329 = vadd.f32 %v285, %v1205
        %v1330 = vadd.f32 %v286, %v1207
        %v1331 = vadd.f32 %v287, %v1311
        %v1332 = vadd.f32 %v288, %v1313
        %v1333 = vadd.f32 %v289, %v1209
        %v1334 = vadd.f32 %v290, %v1211
        %v1335 = vadd.f32 %v291, %v1315
        %v1336 = vadd.f32 %v292, %v1317
        %v1337 = vadd.f32 %v293, %v1215
        %v1338 = vadd.f32 %v294, %v1217
        %v1339 = vadd.f32 %v295, %v1321
        %v1340 = vadd.f32 %v296, %v1323
        %v1341 = vadd.f32 %v297, %v1219
        %v1342 = vadd.f32 %v298, %v1221
        %v1343 = vadd.f32 %v299, %v1325
        %v1344 = vadd.f32 %v300, %v1327
        %1345 = vst [vmem:[%s258] sm:$0xff] %v1329
        %1346 = vst [vmem:[%s258 + $0x8] sm:$0xff] %v1330
        %1347 = vst [vmem:[%s258 + $0x10] sm:$0xff] %v1331
        %1348 = vst [vmem:[%s258 + $0x18] sm:$0xff] %v1332
        %1349 = vst [vmem:[%s258 + $0x20] sm:$0xff] %v1333
        %1350 = vst [vmem:[%s258 + $0x28] sm:$0xff] %v1334
        %1351 = vst [vmem:[%s258 + $0x30] sm:$0xff] %v1335
        %1352 = vst [vmem:[%s258 + $0x38] sm:$0xff] %v1336
        %1353 = vst [vmem:[%s258 + $0x40] sm:$0xff] %v1337
        %1354 = vst [vmem:[%s258 + $0x48] sm:$0xff] %v1338
        %1355 = vst [vmem:[%s258 + $0x50] sm:$0xff] %v1339
        %1356 = vst [vmem:[%s258 + $0x58] sm:$0xff] %v1340
        %1357 = vst [vmem:[%s258 + $0x60] sm:$0xff] %v1341
        %1358 = vst [vmem:[%s258 + $0x68] sm:$0xff] %v1342
        %1359 = vst [vmem:[%s258 + $0x70] sm:$0xff] %v1343
        %1360 = vst [vmem:[%s258 + $0x78] sm:$0xff] %v1344
        %p1361 = scmp.eq.s32.totalorder %s20, 15
        // Predicated region
        $region56: #{discriminator_forward.7} parent=46 // pred_check
          %p1362 = pneg %p1361
        $region57: #{discriminator_forward.7} parent=46 // pred_check_branch
          %1364 = sbr.rel (%p1362) target = $region59
        $region58: #{discriminator_forward.7} parent=46 // pred_region
          %v1365 = vld [vmem:[%s258] sm:$0xff]
          %v1366 = vld [vmem:[%s258 + $0x8] sm:$0xff]
          %v1367 = vld [vmem:[%s258 + $0x10] sm:$0xff]
          %v1368 = vld [vmem:[%s258 + $0x18] sm:$0xff]
          %v1369 = vld [vmem:[%s258 + $0x20] sm:$0xff]
          %v1370 = vld [vmem:[%s258 + $0x28] sm:$0xff]
          %v1371 = vld [vmem:[%s258 + $0x30] sm:$0xff]
          %v1372 = vld [vmem:[%s258 + $0x38] sm:$0xff]
          %v1373 = vld [vmem:[%s258 + $0x40] sm:$0xff]
          %v1374 = vld [vmem:[%s258 + $0x48] sm:$0xff]
          %v1375 = vld [vmem:[%s258 + $0x50] sm:$0xff]
          %v1376 = vld [vmem:[%s258 + $0x58] sm:$0xff]
          %v1377 = vld [vmem:[%s258 + $0x60] sm:$0xff]
          %v1378 = vld [vmem:[%s258 + $0x68] sm:$0xff]
          %v1379 = vld [vmem:[%s258 + $0x70] sm:$0xff]
          %v1380 = vld [vmem:[%s258 + $0x78] sm:$0xff]
          %v1381 = vadd.f32 %v1365, %v1369
          %v1382 = vadd.f32 %v1381, %v1373
          %v1383 = vadd.f32 %v1382, %v1377
          %v1384 = vrot.slane %v1383, 4
          %v1385 = vadd.f32 %v1383, %v1384
          %v1386 = vrot.slane %v1385, 2
          %v1387 = vadd.f32 %v1385, %v1386
          %v1388 = vrot.slane %v1387, 1
          %v1389 = vadd.f32 %v1387, %v1388
          %v1390 = vadd.f32 %v1366, %v1370
          %v1391 = vadd.f32 %v1390, %v1374
          %v1392 = vadd.f32 %v1391, %v1378
          %v1393 = vrot.slane %v1392, 4
          %v1394 = vadd.f32 %v1392, %v1393
          %v1395 = vrot.slane %v1394, 2
          %v1396 = vadd.f32 %v1394, %v1395
          %v1397 = vrot.slane %v1396, 1
          %v1398 = vadd.f32 %v1396, %v1397
          %v1399 = vadd.f32 %v1367, %v1371
          %v1400 = vadd.f32 %v1399, %v1375
          %v1401 = vadd.f32 %v1400, %v1379
          %v1402 = vrot.slane %v1401, 4
          %v1403 = vadd.f32 %v1401, %v1402
          %v1404 = vrot.slane %v1403, 2
          %v1405 = vadd.f32 %v1403, %v1404
          %v1406 = vrot.slane %v1405, 1
          %v1407 = vadd.f32 %v1405, %v1406
          %v1408 = vadd.f32 %v1368, %v1372
          %v1409 = vadd.f32 %v1408, %v1376
          %v1410 = vadd.f32 %v1409, %v1380
          %v1411 = vrot.slane %v1410, 4
          %v1412 = vadd.f32 %v1410, %v1411
          %v1413 = vrot.slane %v1412, 2
          %v1414 = vadd.f32 %v1412, %v1413
          %v1415 = vrot.slane %v1414, 1
          %v1416 = vadd.f32 %v1414, %v1415
          %v1417 = vmul.f32 %v1365, %v1365
          %v1418 = vmul.f32 %v1366, %v1366
          %v1419 = vmul.f32 %v1367, %v1367
          %v1420 = vmul.f32 %v1368, %v1368
          %v1421 = vmul.f32 %v1369, %v1369
          %v1422 = vmul.f32 %v1370, %v1370
          %v1423 = vmul.f32 %v1371, %v1371
          %v1424 = vmul.f32 %v1372, %v1372
          %v1425 = vmul.f32 %v1373, %v1373
          %v1426 = vmul.f32 %v1374, %v1374
          %v1427 = vmul.f32 %v1375, %v1375
          %v1428 = vmul.f32 %v1376, %v1376
          %v1429 = vmul.f32 %v1377, %v1377
          %v1430 = vmul.f32 %v1378, %v1378
          %v1431 = vmul.f32 %v1379, %v1379
          %v1432 = vmul.f32 %v1380, %v1380
          %v1433 = vadd.f32 %v1417, %v1421
          %v1434 = vadd.f32 %v1433, %v1425
          %v1435 = vadd.f32 %v1434, %v1429
          %v1436 = vrot.slane %v1435, 4
          %v1437 = vadd.f32 %v1435, %v1436
          %v1438 = vrot.slane %v1437, 2
          %v1439 = vadd.f32 %v1437, %v1438
          %v1440 = vrot.slane %v1439, 1
          %v1441 = vadd.f32 %v1439, %v1440
          %v1442 = vadd.f32 %v1418, %v1422
          %v1443 = vadd.f32 %v1442, %v1426
          %v1444 = vadd.f32 %v1443, %v1430
          %v1445 = vrot.slane %v1444, 4
          %v1446 = vadd.f32 %v1444, %v1445
          %v1447 = vrot.slane %v1446, 2
          %v1448 = vadd.f32 %v1446, %v1447
          %v1449 = vrot.slane %v1448, 1
          %v1450 = vadd.f32 %v1448, %v1449
          %v1451 = vadd.f32 %v1419, %v1423
          %v1452 = vadd.f32 %v1451, %v1427
          %v1453 = vadd.f32 %v1452, %v1431
          %v1454 = vrot.slane %v1453, 4
          %v1455 = vadd.f32 %v1453, %v1454
          %v1456 = vrot.slane %v1455, 2
          %v1457 = vadd.f32 %v1455, %v1456
          %v1458 = vrot.slane %v1457, 1
          %v1459 = vadd.f32 %v1457, %v1458
          %v1460 = vadd.f32 %v1420, %v1424
          %v1461 = vadd.f32 %v1460, %v1428
          %v1462 = vadd.f32 %v1461, %v1432
          %v1463 = vrot.slane %v1462, 4
          %v1464 = vadd.f32 %v1462, %v1463
          %v1465 = vrot.slane %v1464, 2
          %v1466 = vadd.f32 %v1464, %v1465
          %v1467 = vrot.slane %v1466, 1
          %v1468 = vadd.f32 %v1466, %v1467
          %v1469 = vlaneseq
          %v1470 = vshrl.u32 %v1469, 7
          %vm1471 = vcmp.eq.s32.totalorder %v1470, 0
          %vm1472 = vcmp.eq.s32.totalorder %v1470, 1
          %v1473 = vsel %vm1472, %v1441, 0.0
          %v1474 = vsel %vm1472, %v1450, 0.0
          %v1475 = vsel %vm1472, %v1459, 0.0
          %v1476 = vsel %vm1472, %v1468, 0.0
          %v1477 = vsel %vm1471, %v1389, %v1473
          %v1478 = vsel %vm1471, %v1398, %v1474
          %v1479 = vsel %vm1471, %v1407, %v1475
          %v1480 = vsel %vm1471, %v1416, %v1476
          %1481 = vst [vmem:[%s264] sm:$0xff] %v1477
          %1482 = vst [vmem:[%s264 + $0x8] sm:$0xff] %v1478
          %1483 = vst [vmem:[%s264 + $0x10] sm:$0xff] %v1479
          %1484 = vst [vmem:[%s264 + $0x18] sm:$0xff] %v1480
        $region59: #{discriminator_forward.7} parent=46 // pred_fallthru
          _
        %s1485 = smul.u32 4, %s19
        %p1486 = scmp.lt.s32.totalorder %s1485, 3
        %s1487 = scalar_select %p1486, %s1485, 3
        %s1488 = smul.addr %s1487, 4
        %s1489 = smul.addr %s1488, 8
        %s1490 = scalar_lea.vmem %s2, %s1489
        %p1491 = scmp.lt.s32.totalorder %s19, 0
        %s1492 = scalar_select %p1491, %s19, 0
        %s1493 = smul.addr %s1492, 4
        %s1494 = smul.addr %s1493, 8
        %s1495 = scalar_lea.vmem %s3, %s1494
        // Predicated region
        $region60: #{discriminator_forward.7} parent=46 // pred_check
          %p1496 = pneg %p99
        $region61: #{discriminator_forward.7} parent=46 // pred_check_branch
          %1498 = sbr.rel (%p1496) target = $region63
        $region62: #{discriminator_forward.7} parent=46 // pred_region
          %s1499 = smul.u32 4, %s19
        $region63: #{discriminator_forward.7} parent=46 // pred_fallthru
          _
        // Predicated region
        $region64: #{discriminator_forward.7} parent=46 // pred_check
          %p1500 = pneg %p125
        $region65: #{discriminator_forward.7} parent=46 // pred_check_branch
          %1502 = sbr.rel (%p1500) target = $region67
        $region66: #{discriminator_forward.7} parent=46 // pred_region
          _
        $region67: #{discriminator_forward.7} parent=46 // pred_fallthru
          _
        // Predicated region
        $region68: #{discriminator_forward.7} parent=46 // pred_check
          %p1503 = pneg %p99
        $region69: #{discriminator_forward.7} parent=46 // pred_check_branch
          %1505 = sbr.rel (%p1503) target = $region71
        $region70: #{discriminator_forward.7} parent=46 // pred_region
          %s1506 = smul.u32 4, %s19
          %p1507 = scmp.lt.s32.totalorder %s1506, 3
          %s1508 = scalar_select %p1507, %s1506, 3
          %s1509 = smul.addr %s1508, 4
          %s1510 = smul.addr %s1509, 8
          %s1511 = scalar_lea.vmem %s2, %s1510
        $region71: #{discriminator_forward.7} parent=46 // pred_fallthru
          _
        // Predicated region
        $region72: #{discriminator_forward.7} parent=46 // pred_check
          %p1512 = pneg %p125
        $region73: #{discriminator_forward.7} parent=46 // pred_check_branch
          %1514 = sbr.rel (%p1512) target = $region75
        $region74: #{discriminator_forward.7} parent=46 // pred_region
          %p1515 = scmp.lt.s32.totalorder %s19, 0
          %s1516 = scalar_select %p1515, %s19, 0
          %s1517 = smul.addr %s1516, 4
          %s1518 = smul.addr %s1517, 8
          %s1519 = scalar_lea.vmem %s3, %s1518
        $region75: #{discriminator_forward.7} parent=46 // pred_fallthru
          _
      $region47: #{discriminator_forward.7} parent=5 // pred_fallthru
        _
      %p1520 = scmp.le.s32.totalorder 2, %s10
      // Predicated region
      $region76: #{discriminator_forward.7} parent=5 // pred_check
        %p1521 = pneg %p1520
      $region77: #{discriminator_forward.7} parent=5 // pred_check_branch
        %1523 = sbr.rel (%p1521) target = $region79
      $region78: #{discriminator_forward.7} parent=5 // pred_region
        %s1524 = ssub.s32 %s10, 2
      $region79: #{discriminator_forward.7} parent=5 // pred_fallthru
        _
    $region6: #{discriminator_forward.7} parent=1 // loop_footer
      %s14 = sadd.s32 1, %s10
    $region7: #{discriminator_forward.7} parent=1 // loop_footer_branch
      %9 = sbr.rel target = $region3
    $region8: #{discriminator_forward.7} parent=1 // loop_exit
      _

// kernel: discriminator_forward.8
$region0: #{discriminator_forward.8}
  #allocation0 [shape = 'u32[]', space=smem, size = 0x4, offset = 0x4, fixed_abs, tag = 'smem constant byte address 0x4 - core index']
  #allocation1 [shape = 'u32[144,128]{1,0:T(1,128)}', space=vmem, size = 0x12000, scoped, tag = 'internal scratch']
  %s0 = inlined_call_operand.vmem [shape: f32[32,512], index: 0, kind: input, shape index: {}]
  %s1 = inlined_call_operand.vmem [shape: f32[1,512], index: 1, kind: input, shape index: {}]
  %s2 = inlined_call_operand.vmem [shape: f32[1,512], index: 2, kind: input, shape index: {}]
  %s3 = inlined_call_operand.vmem [shape: bf16[32,512], index: 3, kind: output, shape index: {}]
  %s4 = sld [smem:[#allocation0]]
  $region22: #{discriminator_forward.8} parent=0
    _
  %s6 = ssub.s32 1, %s4
  %s7 = scalar_select 0, %s6, %s4
  // Predicated region
  $region2: #{discriminator_forward.8} parent=0 // pred_check
    _
  $region3: #{discriminator_forward.8} parent=0 // pred_check_branch
    %9 = sbr.rel (0) target = $region5
  $region4: #{discriminator_forward.8} parent=0 // pred_region
    _
  $region5: #{discriminator_forward.8} parent=0 // pred_fallthru
    _
  // Predicated region
  $region6: #{discriminator_forward.8} parent=0 // pred_check
    _
  $region7: #{discriminator_forward.8} parent=0 // pred_check_branch
    %11 = sbr.rel (0) target = $region9
  $region8: #{discriminator_forward.8} parent=0 // pred_region
    _
  $region9: #{discriminator_forward.8} parent=0 // pred_fallthru
    _
  // Predicated region
  $region10: #{discriminator_forward.8} parent=0 // pred_check
    _
  $region11: #{discriminator_forward.8} parent=0 // pred_check_branch
    %13 = sbr.rel (0) target = $region13
  $region12: #{discriminator_forward.8} parent=0 // pred_region
    _
  $region13: #{discriminator_forward.8} parent=0 // pred_fallthru
    _
  %v14 = vld [vmem:[%s0] sm:$0xff]
  %v15 = vld [vmem:[%s0 + $0x8] sm:$0xff]
  %v16 = vld [vmem:[%s0 + $0x10] sm:$0xff]
  %v17 = vld [vmem:[%s0 + $0x18] sm:$0xff]
  %v18 = vld [vmem:[%s0 + $0x20] sm:$0xff]
  %v19 = vld [vmem:[%s0 + $0x28] sm:$0xff]
  %v20 = vld [vmem:[%s0 + $0x30] sm:$0xff]
  %v21 = vld [vmem:[%s0 + $0x38] sm:$0xff]
  %v22 = vld [vmem:[%s0 + $0x40] sm:$0xff]
  %v23 = vld [vmem:[%s0 + $0x48] sm:$0xff]
  %v24 = vld [vmem:[%s0 + $0x50] sm:$0xff]
  %v25 = vld [vmem:[%s0 + $0x58] sm:$0xff]
  %v26 = vld [vmem:[%s0 + $0x60] sm:$0xff]
  %v27 = vld [vmem:[%s0 + $0x68] sm:$0xff]
  %v28 = vld [vmem:[%s0 + $0x70] sm:$0xff]
  %v29 = vld [vmem:[%s0 + $0x78] sm:$0xff]
  %v30 = vld [vmem:[%s1] sm:$0xf]
  %v32 = vlaneseq
  %v33 = vshrl.u32 %v32, 7
  %v34 = vsub.s32 0, %v33
  %v35 = vrot.slane %v30, %v34
  %v36 = vlaneseq
  %v37 = vshrl.u32 %v36, 7
  %v38 = vsub.s32 1, %v37
  %v39 = vrot.slane %v30, %v38
  %v40 = vlaneseq
  %v41 = vshrl.u32 %v40, 7
  %v42 = vsub.s32 2, %v41
  %v43 = vrot.slane %v30, %v42
  %v44 = vlaneseq
  %v45 = vshrl.u32 %v44, 7
  %v46 = vsub.s32 3, %v45
  %v47 = vrot.slane %v30, %v46
  %v52 = vmul.f32 %v14, %v35
  %v53 = vmul.f32 %v15, %v39
  %v54 = vmul.f32 %v16, %v43
  %v55 = vmul.f32 %v17, %v47
  %v56 = vmul.f32 %v18, %v35
  %v57 = vmul.f32 %v19, %v39
  %v58 = vmul.f32 %v20, %v43
  %v59 = vmul.f32 %v21, %v47
  %v60 = vmul.f32 %v22, %v35
  %v61 = vmul.f32 %v23, %v39
  %v62 = vmul.f32 %v24, %v43
  %v63 = vmul.f32 %v25, %v47
  %v64 = vmul.f32 %v26, %v35
  %v65 = vmul.f32 %v27, %v39
  %v66 = vmul.f32 %v28, %v43
  %v67 = vmul.f32 %v29, %v47
  %v68 = vld [vmem:[%s2] sm:$0xf]
  %v70 = vlaneseq
  %v71 = vshrl.u32 %v70, 7
  %v72 = vsub.s32 0, %v71
  %v73 = vrot.slane %v68, %v72
  %v74 = vlaneseq
  %v75 = vshrl.u32 %v74, 7
  %v76 = vsub.s32 1, %v75
  %v77 = vrot.slane %v68, %v76
  %v78 = vlaneseq
  %v79 = vshrl.u32 %v78, 7
  %v80 = vsub.s32 2, %v79
  %v81 = vrot.slane %v68, %v80
  %v82 = vlaneseq
  %v83 = vshrl.u32 %v82, 7
  %v84 = vsub.s32 3, %v83
  %v85 = vrot.slane %v68, %v84
  %v90 = vadd.f32 %v52, %v73
  %v91 = vadd.f32 %v53, %v77
  %v92 = vadd.f32 %v54, %v81
  %v93 = vadd.f32 %v55, %v85
  %v94 = vadd.f32 %v56, %v73
  %v95 = vadd.f32 %v57, %v77
  %v96 = vadd.f32 %v58, %v81
  %v97 = vadd.f32 %v59, %v85
  %v98 = vadd.f32 %v60, %v73
  %v99 = vadd.f32 %v61, %v77
  %v100 = vadd.f32 %v62, %v81
  %v101 = vadd.f32 %v63, %v85
  %v102 = vadd.f32 %v64, %v73
  %v103 = vadd.f32 %v65, %v77
  %v104 = vadd.f32 %v66, %v81
  %v105 = vadd.f32 %v67, %v85
  %vm106 = vcmp.gt.f32.partialorder %v90, 0.0
  %vm107 = vcmp.gt.f32.partialorder %v91, 0.0
  %vm108 = vcmp.gt.f32.partialorder %v92, 0.0
  %vm109 = vcmp.gt.f32.partialorder %v93, 0.0
  %vm110 = vcmp.gt.f32.partialorder %v94, 0.0
  %vm111 = vcmp.gt.f32.partialorder %v95, 0.0
  %vm112 = vcmp.gt.f32.partialorder %v96, 0.0
  %vm113 = vcmp.gt.f32.partialorder %v97, 0.0
  %vm114 = vcmp.gt.f32.partialorder %v98, 0.0
  %vm115 = vcmp.gt.f32.partialorder %v99, 0.0
  %vm116 = vcmp.gt.f32.partialorder %v100, 0.0
  %vm117 = vcmp.gt.f32.partialorder %v101, 0.0
  %vm118 = vcmp.gt.f32.partialorder %v102, 0.0
  %vm119 = vcmp.gt.f32.partialorder %v103, 0.0
  %vm120 = vcmp.gt.f32.partialorder %v104, 0.0
  %vm121 = vcmp.gt.f32.partialorder %v105, 0.0
  %v122 = vmul.f32 %v90, 0.2
  %v123 = vmul.f32 %v91, 0.2
  %v124 = vmul.f32 %v92, 0.2
  %v125 = vmul.f32 %v93, 0.2
  %v126 = vmul.f32 %v94, 0.2
  %v127 = vmul.f32 %v95, 0.2
  %v128 = vmul.f32 %v96, 0.2
  %v129 = vmul.f32 %v97, 0.2
  %v130 = vmul.f32 %v98, 0.2
  %v131 = vmul.f32 %v99, 0.2
  %v132 = vmul.f32 %v100, 0.2
  %v133 = vmul.f32 %v101, 0.2
  %v134 = vmul.f32 %v102, 0.2
  %v135 = vmul.f32 %v103, 0.2
  %v136 = vmul.f32 %v104, 0.2
  %v137 = vmul.f32 %v105, 0.2
  %v138 = vsel %vm106, %v90, %v122
  %v139 = vsel %vm107, %v91, %v123
  %v140 = vsel %vm108, %v92, %v124
  %v141 = vsel %vm109, %v93, %v125
  %v142 = vsel %vm110, %v94, %v126
  %v143 = vsel %vm111, %v95, %v127
  %v144 = vsel %vm112, %v96, %v128
  %v145 = vsel %vm113, %v97, %v129
  %v146 = vsel %vm114, %v98, %v130
  %v147 = vsel %vm115, %v99, %v131
  %v148 = vsel %vm116, %v100, %v132
  %v149 = vsel %vm117, %v101, %v133
  %v150 = vsel %vm118, %v102, %v134
  %v151 = vsel %vm119, %v103, %v135
  %v152 = vsel %vm120, %v104, %v136
  %v153 = vsel %vm121, %v105, %v137
  %v154 = vpack.c.bf16 %v142, %v138
  %v155 = vpack.c.bf16 %v143, %v139
  %v156 = vpack.c.bf16 %v144, %v140
  %v157 = vpack.c.bf16 %v145, %v141
  %v158 = vpack.c.bf16 %v150, %v146
  %v159 = vpack.c.bf16 %v151, %v147
  %v160 = vpack.c.bf16 %v152, %v148
  %v161 = vpack.c.bf16 %v153, %v149
  %v170 = vunpack.c.l.b16 %v154
  %v171 = vunpack.c.l.b16 %v155
  %v172 = vunpack.c.l.b16 %v156
  %v173 = vunpack.c.l.b16 %v157
  %v174 = vunpack.c.h.b16 %v154
  %v175 = vunpack.c.h.b16 %v155
  %v176 = vunpack.c.h.b16 %v156
  %v177 = vunpack.c.h.b16 %v157
  %v178 = vunpack.c.l.b16 %v158
  %v179 = vunpack.c.l.b16 %v159
  %v180 = vunpack.c.l.b16 %v160
  %v181 = vunpack.c.l.b16 %v161
  %v182 = vunpack.c.h.b16 %v158
  %v183 = vunpack.c.h.b16 %v159
  %v184 = vunpack.c.h.b16 %v160
  %v185 = vunpack.c.h.b16 %v161
  %v186 = vpack.c.b16 %v171, %v170
  %v187 = vpack.c.b16 %v173, %v172
  %v188 = vpack.c.b16 %v175, %v174
  %v189 = vpack.c.b16 %v177, %v176
  %v190 = vpack.c.b16 %v179, %v178
  %v191 = vpack.c.b16 %v181, %v180
  %v192 = vpack.c.b16 %v183, %v182
  %v193 = vpack.c.b16 %v185, %v184
  %202 = vst [vmem:[%s3] sm:$0xff] %v186
  %203 = vst [vmem:[%s3 + $0x8] sm:$0xff] %v187
  %204 = vst [vmem:[%s3 + $0x10] sm:$0xff] %v188
  %205 = vst [vmem:[%s3 + $0x18] sm:$0xff] %v189
  %206 = vst [vmem:[%s3 + $0x20] sm:$0xff] %v190
  %207 = vst [vmem:[%s3 + $0x28] sm:$0xff] %v191
  %208 = vst [vmem:[%s3 + $0x30] sm:$0xff] %v192
  %209 = vst [vmem:[%s3 + $0x38] sm:$0xff] %v193
  // Predicated region
  $region14: #{discriminator_forward.8} parent=0 // pred_check
    _
  $region15: #{discriminator_forward.8} parent=0 // pred_check_branch
    %211 = sbr.rel (0) target = $region17
  $region16: #{discriminator_forward.8} parent=0 // pred_region
    _
  $region17: #{discriminator_forward.8} parent=0 // pred_fallthru
    _
  // Predicated region
  $region18: #{discriminator_forward.8} parent=0 // pred_check
    _
  $region19: #{discriminator_forward.8} parent=0 // pred_check_branch
    %213 = sbr.rel (0) target = $region21
  $region20: #{discriminator_forward.8} parent=0 // pred_region
    _
  $region21: #{discriminator_forward.8} parent=0 // pred_fallthru
    _

// kernel: discriminator_forward.9
$region0: #{discriminator_forward.9}
  #allocation0 [shape = 'u32[]', space=smem, size = 0x4, offset = 0x4, fixed_abs, tag = 'smem constant byte address 0x4 - core index']
  #allocation1 [shape = 'u32[144,128]{1,0:T(1,128)}', space=vmem, size = 0x12000, scoped, tag = 'internal scratch']
  #allocation2 [shape = 'f32[1,1]{1,0:T(1,128)S(1)}', space=vmem, size = 0x200, scoped, tag = 'scoped memory for discriminator_forward.9']
  %s0 = inlined_call_operand.vmem [shape: f32[2,8192], index: 0, kind: input, shape index: {}]
  %s1 = inlined_call_operand.vmem [shape: f32[8192,1], index: 1, kind: input, shape index: {}]
  %s2 = inlined_call_operand.<no memory space> [shape: f32[1,1], index: 2, kind: input, shape index: {}]
  %s3 = inlined_call_operand.vmem [shape: f32[2,1], index: 3, kind: output, shape index: {}]
  %s4 = sld [smem:[#allocation0]]
  $region22: #{discriminator_forward.9} parent=0
    _
  %s6 = ssub.s32 1, %s4
  %s7 = scalar_select 0, %s6, %s4
  %v8 = vstv %s2
  %9 = vst [vmem:[#allocation2] sm:$0x1] %v8
  // Predicated region
  $region2: #{discriminator_forward.9} parent=0 // pred_check
    _
  $region3: #{discriminator_forward.9} parent=0 // pred_check_branch
    %11 = sbr.rel (0) target = $region5
  $region4: #{discriminator_forward.9} parent=0 // pred_region
    _
  $region5: #{discriminator_forward.9} parent=0 // pred_fallthru
    _
  // Predicated region
  $region6: #{discriminator_forward.9} parent=0 // pred_check
    _
  $region7: #{discriminator_forward.9} parent=0 // pred_check_branch
    %13 = sbr.rel (0) target = $region9
  $region8: #{discriminator_forward.9} parent=0 // pred_region
    _
  $region9: #{discriminator_forward.9} parent=0 // pred_fallthru
    _
  // Predicated region
  $region10: #{discriminator_forward.9} parent=0 // pred_check
    _
  $region11: #{discriminator_forward.9} parent=0 // pred_check_branch
    %15 = sbr.rel (0) target = $region13
  $region12: #{discriminator_forward.9} parent=0 // pred_region
    _
  $region13: #{discriminator_forward.9} parent=0 // pred_fallthru
    _
  %v16 = vld [vmem:[%s0] sm:$0xff]
  %v17 = vld [vmem:[%s0 + $0x8] sm:$0xff]
  %v18 = vld [vmem:[%s0 + $0x10] sm:$0xff]
  %v19 = vld [vmem:[%s0 + $0x18] sm:$0xff]
  %v20 = vld [vmem:[%s0 + $0x20] sm:$0xff]
  %v21 = vld [vmem:[%s0 + $0x28] sm:$0xff]
  %v22 = vld [vmem:[%s0 + $0x30] sm:$0xff]
  %v23 = vld [vmem:[%s0 + $0x38] sm:$0xff]
  %v24 = vld [vmem:[%s0 + $0x40] sm:$0xff]
  %v25 = vld [vmem:[%s0 + $0x48] sm:$0xff]
  %v26 = vld [vmem:[%s0 + $0x50] sm:$0xff]
  %v27 = vld [vmem:[%s0 + $0x58] sm:$0xff]
  %v28 = vld [vmem:[%s0 + $0x60] sm:$0xff]
  %v29 = vld [vmem:[%s0 + $0x68] sm:$0xff]
  %v30 = vld [vmem:[%s0 + $0x70] sm:$0xff]
  %v31 = vld [vmem:[%s0 + $0x78] sm:$0xff]
  %v32 = vld [vmem:[%s1] sm:$0xff]
  %v33 = vld [vmem:[%s1 + $0x8] sm:$0xff]
  %v34 = vld [vmem:[%s1 + $0x10] sm:$0xff]
  %v35 = vld [vmem:[%s1 + $0x18] sm:$0xff]
  %v36 = vld [vmem:[%s1 + $0x20] sm:$0xff]
  %v37 = vld [vmem:[%s1 + $0x28] sm:$0xff]
  %v38 = vld [vmem:[%s1 + $0x30] sm:$0xff]
  %v39 = vld [vmem:[%s1 + $0x38] sm:$0xff]
  %v40 = vld [vmem:[%s1 + $0x40] sm:$0xff]
  %v41 = vld [vmem:[%s1 + $0x48] sm:$0xff]
  %v42 = vld [vmem:[%s1 + $0x50] sm:$0xff]
  %v43 = vld [vmem:[%s1 + $0x58] sm:$0xff]
  %v44 = vld [vmem:[%s1 + $0x60] sm:$0xff]
  %v45 = vld [vmem:[%s1 + $0x68] sm:$0xff]
  %v46 = vld [vmem:[%s1 + $0x70] sm:$0xff]
  %v47 = vld [vmem:[%s1 + $0x78] sm:$0xff]
  %v48 = vld [vmem:[%s1 + $0x80] sm:$0xff]
  %v49 = vld [vmem:[%s1 + $0x88] sm:$0xff]
  %v50 = vld [vmem:[%s1 + $0x90] sm:$0xff]
  %v51 = vld [vmem:[%s1 + $0x98] sm:$0xff]
  %v52 = vld [vmem:[%s1 + $0xa0] sm:$0xff]
  %v53 = vld [vmem:[%s1 + $0xa8] sm:$0xff]
  %v54 = vld [vmem:[%s1 + $0xb0] sm:$0xff]
  %v55 = vld [vmem:[%s1 + $0xb8] sm:$0xff]
  %v56 = vld [vmem:[%s1 + $0xc0] sm:$0xff]
  %v57 = vld [vmem:[%s1 + $0xc8] sm:$0xff]
  %v58 = vld [vmem:[%s1 + $0xd0] sm:$0xff]
  %v59 = vld [vmem:[%s1 + $0xd8] sm:$0xff]
  %v60 = vld [vmem:[%s1 + $0xe0] sm:$0xff]
  %v61 = vld [vmem:[%s1 + $0xe8] sm:$0xff]
  %v62 = vld [vmem:[%s1 + $0xf0] sm:$0xff]
  %v63 = vld [vmem:[%s1 + $0xf8] sm:$0xff]
  %v64 = vld [vmem:[%s1 + $0x100] sm:$0xff]
  %v65 = vld [vmem:[%s1 + $0x108] sm:$0xff]
  %v66 = vld [vmem:[%s1 + $0x110] sm:$0xff]
  %v67 = vld [vmem:[%s1 + $0x118] sm:$0xff]
  %v68 = vld [vmem:[%s1 + $0x120] sm:$0xff]
  %v69 = vld [vmem:[%s1 + $0x128] sm:$0xff]
  %v70 = vld [vmem:[%s1 + $0x130] sm:$0xff]
  %v71 = vld [vmem:[%s1 + $0x138] sm:$0xff]
  %v72 = vld [vmem:[%s1 + $0x140] sm:$0xff]
  %v73 = vld [vmem:[%s1 + $0x148] sm:$0xff]
  %v74 = vld [vmem:[%s1 + $0x150] sm:$0xff]
  %v75 = vld [vmem:[%s1 + $0x158] sm:$0xff]
  %v76 = vld [vmem:[%s1 + $0x160] sm:$0xff]
  %v77 = vld [vmem:[%s1 + $0x168] sm:$0xff]
  %v78 = vld [vmem:[%s1 + $0x170] sm:$0xff]
  %v79 = vld [vmem:[%s1 + $0x178] sm:$0xff]
  %v80 = vld [vmem:[%s1 + $0x180] sm:$0xff]
  %v81 = vld [vmem:[%s1 + $0x188] sm:$0xff]
  %v82 = vld [vmem:[%s1 + $0x190] sm:$0xff]
  %v83 = vld [vmem:[%s1 + $0x198] sm:$0xff]
  %v84 = vld [vmem:[%s1 + $0x1a0] sm:$0xff]
  %v85 = vld [vmem:[%s1 + $0x1a8] sm:$0xff]
  %v86 = vld [vmem:[%s1 + $0x1b0] sm:$0xff]
  %v87 = vld [vmem:[%s1 + $0x1b8] sm:$0xff]
  %v88 = vld [vmem:[%s1 + $0x1c0] sm:$0xff]
  %v89 = vld [vmem:[%s1 + $0x1c8] sm:$0xff]
  %v90 = vld [vmem:[%s1 + $0x1d0] sm:$0xff]
  %v91 = vld [vmem:[%s1 + $0x1d8] sm:$0xff]
  %v92 = vld [vmem:[%s1 + $0x1e0] sm:$0xff]
  %v93 = vld [vmem:[%s1 + $0x1e8] sm:$0xff]
  %v94 = vld [vmem:[%s1 + $0x1f0] sm:$0xff]
  %v95 = vld [vmem:[%s1 + $0x1f8] sm:$0xff]
  %v96 = vld [vmem:[%s1 + $0x200] sm:$0xff]
  %v97 = vld [vmem:[%s1 + $0x208] sm:$0xff]
  %v98 = vld [vmem:[%s1 + $0x210] sm:$0xff]
  %v99 = vld [vmem:[%s1 + $0x218] sm:$0xff]
  %v100 = vld [vmem:[%s1 + $0x220] sm:$0xff]
  %v101 = vld [vmem:[%s1 + $0x228] sm:$0xff]
  %v102 = vld [vmem:[%s1 + $0x230] sm:$0xff]
  %v103 = vld [vmem:[%s1 + $0x238] sm:$0xff]
  %v104 = vld [vmem:[%s1 + $0x240] sm:$0xff]
  %v105 = vld [vmem:[%s1 + $0x248] sm:$0xff]
  %v106 = vld [vmem:[%s1 + $0x250] sm:$0xff]
  %v107 = vld [vmem:[%s1 + $0x258] sm:$0xff]
  %v108 = vld [vmem:[%s1 + $0x260] sm:$0xff]
  %v109 = vld [vmem:[%s1 + $0x268] sm:$0xff]
  %v110 = vld [vmem:[%s1 + $0x270] sm:$0xff]
  %v111 = vld [vmem:[%s1 + $0x278] sm:$0xff]
  %v112 = vld [vmem:[%s1 + $0x280] sm:$0xff]
  %v113 = vld [vmem:[%s1 + $0x288] sm:$0xff]
  %v114 = vld [vmem:[%s1 + $0x290] sm:$0xff]
  %v115 = vld [vmem:[%s1 + $0x298] sm:$0xff]
  %v116 = vld [vmem:[%s1 + $0x2a0] sm:$0xff]
  %v117 = vld [vmem:[%s1 + $0x2a8] sm:$0xff]
  %v118 = vld [vmem:[%s1 + $0x2b0] sm:$0xff]
  %v119 = vld [vmem:[%s1 + $0x2b8] sm:$0xff]
  %v120 = vld [vmem:[%s1 + $0x2c0] sm:$0xff]
  %v121 = vld [vmem:[%s1 + $0x2c8] sm:$0xff]
  %v122 = vld [vmem:[%s1 + $0x2d0] sm:$0xff]
  %v123 = vld [vmem:[%s1 + $0x2d8] sm:$0xff]
  %v124 = vld [vmem:[%s1 + $0x2e0] sm:$0xff]
  %v125 = vld [vmem:[%s1 + $0x2e8] sm:$0xff]
  %v126 = vld [vmem:[%s1 + $0x2f0] sm:$0xff]
  %v127 = vld [vmem:[%s1 + $0x2f8] sm:$0xff]
  %v128 = vld [vmem:[%s1 + $0x300] sm:$0xff]
  %v129 = vld [vmem:[%s1 + $0x308] sm:$0xff]
  %v130 = vld [vmem:[%s1 + $0x310] sm:$0xff]
  %v131 = vld [vmem:[%s1 + $0x318] sm:$0xff]
  %v132 = vld [vmem:[%s1 + $0x320] sm:$0xff]
  %v133 = vld [vmem:[%s1 + $0x328] sm:$0xff]
  %v134 = vld [vmem:[%s1 + $0x330] sm:$0xff]
  %v135 = vld [vmem:[%s1 + $0x338] sm:$0xff]
  %v136 = vld [vmem:[%s1 + $0x340] sm:$0xff]
  %v137 = vld [vmem:[%s1 + $0x348] sm:$0xff]
  %v138 = vld [vmem:[%s1 + $0x350] sm:$0xff]
  %v139 = vld [vmem:[%s1 + $0x358] sm:$0xff]
  %v140 = vld [vmem:[%s1 + $0x360] sm:$0xff]
  %v141 = vld [vmem:[%s1 + $0x368] sm:$0xff]
  %v142 = vld [vmem:[%s1 + $0x370] sm:$0xff]
  %v143 = vld [vmem:[%s1 + $0x378] sm:$0xff]
  %v144 = vld [vmem:[%s1 + $0x380] sm:$0xff]
  %v145 = vld [vmem:[%s1 + $0x388] sm:$0xff]
  %v146 = vld [vmem:[%s1 + $0x390] sm:$0xff]
  %v147 = vld [vmem:[%s1 + $0x398] sm:$0xff]
  %v148 = vld [vmem:[%s1 + $0x3a0] sm:$0xff]
  %v149 = vld [vmem:[%s1 + $0x3a8] sm:$0xff]
  %v150 = vld [vmem:[%s1 + $0x3b0] sm:$0xff]
  %v151 = vld [vmem:[%s1 + $0x3b8] sm:$0xff]
  %v152 = vld [vmem:[%s1 + $0x3c0] sm:$0xff]
  %v153 = vld [vmem:[%s1 + $0x3c8] sm:$0xff]
  %v154 = vld [vmem:[%s1 + $0x3d0] sm:$0xff]
  %v155 = vld [vmem:[%s1 + $0x3d8] sm:$0xff]
  %v156 = vld [vmem:[%s1 + $0x3e0] sm:$0xff]
  %v157 = vld [vmem:[%s1 + $0x3e8] sm:$0xff]
  %v158 = vld [vmem:[%s1 + $0x3f0] sm:$0xff]
  %v159 = vld [vmem:[%s1 + $0x3f8] sm:$0xff]
  %v160 = vld [vmem:[%s1 + $0x400] sm:$0xff]
  %v161 = vld [vmem:[%s1 + $0x408] sm:$0xff]
  %v162 = vld [vmem:[%s1 + $0x410] sm:$0xff]
  %v163 = vld [vmem:[%s1 + $0x418] sm:$0xff]
  %v164 = vld [vmem:[%s1 + $0x420] sm:$0xff]
  %v165 = vld [vmem:[%s1 + $0x428] sm:$0xff]
  %v166 = vld [vmem:[%s1 + $0x430] sm:$0xff]
  %v167 = vld [vmem:[%s1 + $0x438] sm:$0xff]
  %v168 = vld [vmem:[%s1 + $0x440] sm:$0xff]
  %v169 = vld [vmem:[%s1 + $0x448] sm:$0xff]
  %v170 = vld [vmem:[%s1 + $0x450] sm:$0xff]
  %v171 = vld [vmem:[%s1 + $0x458] sm:$0xff]
  %v172 = vld [vmem:[%s1 + $0x460] sm:$0xff]
  %v173 = vld [vmem:[%s1 + $0x468] sm:$0xff]
  %v174 = vld [vmem:[%s1 + $0x470] sm:$0xff]
  %v175 = vld [vmem:[%s1 + $0x478] sm:$0xff]
  %v176 = vld [vmem:[%s1 + $0x480] sm:$0xff]
  %v177 = vld [vmem:[%s1 + $0x488] sm:$0xff]
  %v178 = vld [vmem:[%s1 + $0x490] sm:$0xff]
  %v179 = vld [vmem:[%s1 + $0x498] sm:$0xff]
  %v180 = vld [vmem:[%s1 + $0x4a0] sm:$0xff]
  %v181 = vld [vmem:[%s1 + $0x4a8] sm:$0xff]
  %v182 = vld [vmem:[%s1 + $0x4b0] sm:$0xff]
  %v183 = vld [vmem:[%s1 + $0x4b8] sm:$0xff]
  %v184 = vld [vmem:[%s1 + $0x4c0] sm:$0xff]
  %v185 = vld [vmem:[%s1 + $0x4c8] sm:$0xff]
  %v186 = vld [vmem:[%s1 + $0x4d0] sm:$0xff]
  %v187 = vld [vmem:[%s1 + $0x4d8] sm:$0xff]
  %v188 = vld [vmem:[%s1 + $0x4e0] sm:$0xff]
  %v189 = vld [vmem:[%s1 + $0x4e8] sm:$0xff]
  %v190 = vld [vmem:[%s1 + $0x4f0] sm:$0xff]
  %v191 = vld [vmem:[%s1 + $0x4f8] sm:$0xff]
  %v192 = vld [vmem:[%s1 + $0x500] sm:$0xff]
  %v193 = vld [vmem:[%s1 + $0x508] sm:$0xff]
  %v194 = vld [vmem:[%s1 + $0x510] sm:$0xff]
  %v195 = vld [vmem:[%s1 + $0x518] sm:$0xff]
  %v196 = vld [vmem:[%s1 + $0x520] sm:$0xff]
  %v197 = vld [vmem:[%s1 + $0x528] sm:$0xff]
  %v198 = vld [vmem:[%s1 + $0x530] sm:$0xff]
  %v199 = vld [vmem:[%s1 + $0x538] sm:$0xff]
  %v200 = vld [vmem:[%s1 + $0x540] sm:$0xff]
  %v201 = vld [vmem:[%s1 + $0x548] sm:$0xff]
  %v202 = vld [vmem:[%s1 + $0x550] sm:$0xff]
  %v203 = vld [vmem:[%s1 + $0x558] sm:$0xff]
  %v204 = vld [vmem:[%s1 + $0x560] sm:$0xff]
  %v205 = vld [vmem:[%s1 + $0x568] sm:$0xff]
  %v206 = vld [vmem:[%s1 + $0x570] sm:$0xff]
  %v207 = vld [vmem:[%s1 + $0x578] sm:$0xff]
  %v208 = vld [vmem:[%s1 + $0x580] sm:$0xff]
  %v209 = vld [vmem:[%s1 + $0x588] sm:$0xff]
  %v210 = vld [vmem:[%s1 + $0x590] sm:$0xff]
  %v211 = vld [vmem:[%s1 + $0x598] sm:$0xff]
  %v212 = vld [vmem:[%s1 + $0x5a0] sm:$0xff]
  %v213 = vld [vmem:[%s1 + $0x5a8] sm:$0xff]
  %v214 = vld [vmem:[%s1 + $0x5b0] sm:$0xff]
  %v215 = vld [vmem:[%s1 + $0x5b8] sm:$0xff]
  %v216 = vld [vmem:[%s1 + $0x5c0] sm:$0xff]
  %v217 = vld [vmem:[%s1 + $0x5c8] sm:$0xff]
  %v218 = vld [vmem:[%s1 + $0x5d0] sm:$0xff]
  %v219 = vld [vmem:[%s1 + $0x5d8] sm:$0xff]
  %v220 = vld [vmem:[%s1 + $0x5e0] sm:$0xff]
  %v221 = vld [vmem:[%s1 + $0x5e8] sm:$0xff]
  %v222 = vld [vmem:[%s1 + $0x5f0] sm:$0xff]
  %v223 = vld [vmem:[%s1 + $0x5f8] sm:$0xff]
  %v224 = vld [vmem:[%s1 + $0x600] sm:$0xff]
  %v225 = vld [vmem:[%s1 + $0x608] sm:$0xff]
  %v226 = vld [vmem:[%s1 + $0x610] sm:$0xff]
  %v227 = vld [vmem:[%s1 + $0x618] sm:$0xff]
  %v228 = vld [vmem:[%s1 + $0x620] sm:$0xff]
  %v229 = vld [vmem:[%s1 + $0x628] sm:$0xff]
  %v230 = vld [vmem:[%s1 + $0x630] sm:$0xff]
  %v231 = vld [vmem:[%s1 + $0x638] sm:$0xff]
  %v232 = vld [vmem:[%s1 + $0x640] sm:$0xff]
  %v233 = vld [vmem:[%s1 + $0x648] sm:$0xff]
  %v234 = vld [vmem:[%s1 + $0x650] sm:$0xff]
  %v235 = vld [vmem:[%s1 + $0x658] sm:$0xff]
  %v236 = vld [vmem:[%s1 + $0x660] sm:$0xff]
  %v237 = vld [vmem:[%s1 + $0x668] sm:$0xff]
  %v238 = vld [vmem:[%s1 + $0x670] sm:$0xff]
  %v239 = vld [vmem:[%s1 + $0x678] sm:$0xff]
  %v240 = vld [vmem:[%s1 + $0x680] sm:$0xff]
  %v241 = vld [vmem:[%s1 + $0x688] sm:$0xff]
  %v242 = vld [vmem:[%s1 + $0x690] sm:$0xff]
  %v243 = vld [vmem:[%s1 + $0x698] sm:$0xff]
  %v244 = vld [vmem:[%s1 + $0x6a0] sm:$0xff]
  %v245 = vld [vmem:[%s1 + $0x6a8] sm:$0xff]
  %v246 = vld [vmem:[%s1 + $0x6b0] sm:$0xff]
  %v247 = vld [vmem:[%s1 + $0x6b8] sm:$0xff]
  %v248 = vld [vmem:[%s1 + $0x6c0] sm:$0xff]
  %v249 = vld [vmem:[%s1 + $0x6c8] sm:$0xff]
  %v250 = vld [vmem:[%s1 + $0x6d0] sm:$0xff]
  %v251 = vld [vmem:[%s1 + $0x6d8] sm:$0xff]
  %v252 = vld [vmem:[%s1 + $0x6e0] sm:$0xff]
  %v253 = vld [vmem:[%s1 + $0x6e8] sm:$0xff]
  %v254 = vld [vmem:[%s1 + $0x6f0] sm:$0xff]
  %v255 = vld [vmem:[%s1 + $0x6f8] sm:$0xff]
  %v256 = vld [vmem:[%s1 + $0x700] sm:$0xff]
  %v257 = vld [vmem:[%s1 + $0x708] sm:$0xff]
  %v258 = vld [vmem:[%s1 + $0x710] sm:$0xff]
  %v259 = vld [vmem:[%s1 + $0x718] sm:$0xff]
  %v260 = vld [vmem:[%s1 + $0x720] sm:$0xff]
  %v261 = vld [vmem:[%s1 + $0x728] sm:$0xff]
  %v262 = vld [vmem:[%s1 + $0x730] sm:$0xff]
  %v263 = vld [vmem:[%s1 + $0x738] sm:$0xff]
  %v264 = vld [vmem:[%s1 + $0x740] sm:$0xff]
  %v265 = vld [vmem:[%s1 + $0x748] sm:$0xff]
  %v266 = vld [vmem:[%s1 + $0x750] sm:$0xff]
  %v267 = vld [vmem:[%s1 + $0x758] sm:$0xff]
  %v268 = vld [vmem:[%s1 + $0x760] sm:$0xff]
  %v269 = vld [vmem:[%s1 + $0x768] sm:$0xff]
  %v270 = vld [vmem:[%s1 + $0x770] sm:$0xff]
  %v271 = vld [vmem:[%s1 + $0x778] sm:$0xff]
  %v272 = vld [vmem:[%s1 + $0x780] sm:$0xff]
  %v273 = vld [vmem:[%s1 + $0x788] sm:$0xff]
  %v274 = vld [vmem:[%s1 + $0x790] sm:$0xff]
  %v275 = vld [vmem:[%s1 + $0x798] sm:$0xff]
  %v276 = vld [vmem:[%s1 + $0x7a0] sm:$0xff]
  %v277 = vld [vmem:[%s1 + $0x7a8] sm:$0xff]
  %v278 = vld [vmem:[%s1 + $0x7b0] sm:$0xff]
  %v279 = vld [vmem:[%s1 + $0x7b8] sm:$0xff]
  %v280 = vld [vmem:[%s1 + $0x7c0] sm:$0xff]
  %v281 = vld [vmem:[%s1 + $0x7c8] sm:$0xff]
  %v282 = vld [vmem:[%s1 + $0x7d0] sm:$0xff]
  %v283 = vld [vmem:[%s1 + $0x7d8] sm:$0xff]
  %v284 = vld [vmem:[%s1 + $0x7e0] sm:$0xff]
  %v285 = vld [vmem:[%s1 + $0x7e8] sm:$0xff]
  %v286 = vld [vmem:[%s1 + $0x7f0] sm:$0xff]
  %v287 = vld [vmem:[%s1 + $0x7f8] sm:$0xff]
  %v288 = vld [vmem:[%s1 + $0x800] sm:$0xff]
  %v289 = vld [vmem:[%s1 + $0x808] sm:$0xff]
  %v290 = vld [vmem:[%s1 + $0x810] sm:$0xff]
  %v291 = vld [vmem:[%s1 + $0x818] sm:$0xff]
  %v292 = vld [vmem:[%s1 + $0x820] sm:$0xff]
  %v293 = vld [vmem:[%s1 + $0x828] sm:$0xff]
  %v294 = vld [vmem:[%s1 + $0x830] sm:$0xff]
  %v295 = vld [vmem:[%s1 + $0x838] sm:$0xff]
  %v296 = vld [vmem:[%s1 + $0x840] sm:$0xff]
  %v297 = vld [vmem:[%s1 + $0x848] sm:$0xff]
  %v298 = vld [vmem:[%s1 + $0x850] sm:$0xff]
  %v299 = vld [vmem:[%s1 + $0x858] sm:$0xff]
  %v300 = vld [vmem:[%s1 + $0x860] sm:$0xff]
  %v301 = vld [vmem:[%s1 + $0x868] sm:$0xff]
  %v302 = vld [vmem:[%s1 + $0x870] sm:$0xff]
  %v303 = vld [vmem:[%s1 + $0x878] sm:$0xff]
  %v304 = vld [vmem:[%s1 + $0x880] sm:$0xff]
  %v305 = vld [vmem:[%s1 + $0x888] sm:$0xff]
  %v306 = vld [vmem:[%s1 + $0x890] sm:$0xff]
  %v307 = vld [vmem:[%s1 + $0x898] sm:$0xff]
  %v308 = vld [vmem:[%s1 + $0x8a0] sm:$0xff]
  %v309 = vld [vmem:[%s1 + $0x8a8] sm:$0xff]
  %v310 = vld [vmem:[%s1 + $0x8b0] sm:$0xff]
  %v311 = vld [vmem:[%s1 + $0x8b8] sm:$0xff]
  %v312 = vld [vmem:[%s1 + $0x8c0] sm:$0xff]
  %v313 = vld [vmem:[%s1 + $0x8c8] sm:$0xff]
  %v314 = vld [vmem:[%s1 + $0x8d0] sm:$0xff]
  %v315 = vld [vmem:[%s1 + $0x8d8] sm:$0xff]
  %v316 = vld [vmem:[%s1 + $0x8e0] sm:$0xff]
  %v317 = vld [vmem:[%s1 + $0x8e8] sm:$0xff]
  %v318 = vld [vmem:[%s1 + $0x8f0] sm:$0xff]
  %v319 = vld [vmem:[%s1 + $0x8f8] sm:$0xff]
  %v320 = vld [vmem:[%s1 + $0x900] sm:$0xff]
  %v321 = vld [vmem:[%s1 + $0x908] sm:$0xff]
  %v322 = vld [vmem:[%s1 + $0x910] sm:$0xff]
  %v323 = vld [vmem:[%s1 + $0x918] sm:$0xff]
  %v324 = vld [vmem:[%s1 + $0x920] sm:$0xff]
  %v325 = vld [vmem:[%s1 + $0x928] sm:$0xff]
  %v326 = vld [vmem:[%s1 + $0x930] sm:$0xff]
  %v327 = vld [vmem:[%s1 + $0x938] sm:$0xff]
  %v328 = vld [vmem:[%s1 + $0x940] sm:$0xff]
  %v329 = vld [vmem:[%s1 + $0x948] sm:$0xff]
  %v330 = vld [vmem:[%s1 + $0x950] sm:$0xff]
  %v331 = vld [vmem:[%s1 + $0x958] sm:$0xff]
  %v332 = vld [vmem:[%s1 + $0x960] sm:$0xff]
  %v333 = vld [vmem:[%s1 + $0x968] sm:$0xff]
  %v334 = vld [vmem:[%s1 + $0x970] sm:$0xff]
  %v335 = vld [vmem:[%s1 + $0x978] sm:$0xff]
  %v336 = vld [vmem:[%s1 + $0x980] sm:$0xff]
  %v337 = vld [vmem:[%s1 + $0x988] sm:$0xff]
  %v338 = vld [vmem:[%s1 + $0x990] sm:$0xff]
  %v339 = vld [vmem:[%s1 + $0x998] sm:$0xff]
  %v340 = vld [vmem:[%s1 + $0x9a0] sm:$0xff]
  %v341 = vld [vmem:[%s1 + $0x9a8] sm:$0xff]
  %v342 = vld [vmem:[%s1 + $0x9b0] sm:$0xff]
  %v343 = vld [vmem:[%s1 + $0x9b8] sm:$0xff]
  %v344 = vld [vmem:[%s1 + $0x9c0] sm:$0xff]
  %v345 = vld [vmem:[%s1 + $0x9c8] sm:$0xff]
  %v346 = vld [vmem:[%s1 + $0x9d0] sm:$0xff]
  %v347 = vld [vmem:[%s1 + $0x9d8] sm:$0xff]
  %v348 = vld [vmem:[%s1 + $0x9e0] sm:$0xff]
  %v349 = vld [vmem:[%s1 + $0x9e8] sm:$0xff]
  %v350 = vld [vmem:[%s1 + $0x9f0] sm:$0xff]
  %v351 = vld [vmem:[%s1 + $0x9f8] sm:$0xff]
  %v352 = vld [vmem:[%s1 + $0xa00] sm:$0xff]
  %v353 = vld [vmem:[%s1 + $0xa08] sm:$0xff]
  %v354 = vld [vmem:[%s1 + $0xa10] sm:$0xff]
  %v355 = vld [vmem:[%s1 + $0xa18] sm:$0xff]
  %v356 = vld [vmem:[%s1 + $0xa20] sm:$0xff]
  %v357 = vld [vmem:[%s1 + $0xa28] sm:$0xff]
  %v358 = vld [vmem:[%s1 + $0xa30] sm:$0xff]
  %v359 = vld [vmem:[%s1 + $0xa38] sm:$0xff]
  %v360 = vld [vmem:[%s1 + $0xa40] sm:$0xff]
  %v361 = vld [vmem:[%s1 + $0xa48] sm:$0xff]
  %v362 = vld [vmem:[%s1 + $0xa50] sm:$0xff]
  %v363 = vld [vmem:[%s1 + $0xa58] sm:$0xff]
  %v364 = vld [vmem:[%s1 + $0xa60] sm:$0xff]
  %v365 = vld [vmem:[%s1 + $0xa68] sm:$0xff]
  %v366 = vld [vmem:[%s1 + $0xa70] sm:$0xff]
  %v367 = vld [vmem:[%s1 + $0xa78] sm:$0xff]
  %v368 = vld [vmem:[%s1 + $0xa80] sm:$0xff]
  %v369 = vld [vmem:[%s1 + $0xa88] sm:$0xff]
  %v370 = vld [vmem:[%s1 + $0xa90] sm:$0xff]
  %v371 = vld [vmem:[%s1 + $0xa98] sm:$0xff]
  %v372 = vld [vmem:[%s1 + $0xaa0] sm:$0xff]
  %v373 = vld [vmem:[%s1 + $0xaa8] sm:$0xff]
  %v374 = vld [vmem:[%s1 + $0xab0] sm:$0xff]
  %v375 = vld [vmem:[%s1 + $0xab8] sm:$0xff]
  %v376 = vld [vmem:[%s1 + $0xac0] sm:$0xff]
  %v377 = vld [vmem:[%s1 + $0xac8] sm:$0xff]
  %v378 = vld [vmem:[%s1 + $0xad0] sm:$0xff]
  %v379 = vld [vmem:[%s1 + $0xad8] sm:$0xff]
  %v380 = vld [vmem:[%s1 + $0xae0] sm:$0xff]
  %v381 = vld [vmem:[%s1 + $0xae8] sm:$0xff]
  %v382 = vld [vmem:[%s1 + $0xaf0] sm:$0xff]
  %v383 = vld [vmem:[%s1 + $0xaf8] sm:$0xff]
  %v384 = vld [vmem:[%s1 + $0xb00] sm:$0xff]
  %v385 = vld [vmem:[%s1 + $0xb08] sm:$0xff]
  %v386 = vld [vmem:[%s1 + $0xb10] sm:$0xff]
  %v387 = vld [vmem:[%s1 + $0xb18] sm:$0xff]
  %v388 = vld [vmem:[%s1 + $0xb20] sm:$0xff]
  %v389 = vld [vmem:[%s1 + $0xb28] sm:$0xff]
  %v390 = vld [vmem:[%s1 + $0xb30] sm:$0xff]
  %v391 = vld [vmem:[%s1 + $0xb38] sm:$0xff]
  %v392 = vld [vmem:[%s1 + $0xb40] sm:$0xff]
  %v393 = vld [vmem:[%s1 + $0xb48] sm:$0xff]
  %v394 = vld [vmem:[%s1 + $0xb50] sm:$0xff]
  %v395 = vld [vmem:[%s1 + $0xb58] sm:$0xff]
  %v396 = vld [vmem:[%s1 + $0xb60] sm:$0xff]
  %v397 = vld [vmem:[%s1 + $0xb68] sm:$0xff]
  %v398 = vld [vmem:[%s1 + $0xb70] sm:$0xff]
  %v399 = vld [vmem:[%s1 + $0xb78] sm:$0xff]
  %v400 = vld [vmem:[%s1 + $0xb80] sm:$0xff]
  %v401 = vld [vmem:[%s1 + $0xb88] sm:$0xff]
  %v402 = vld [vmem:[%s1 + $0xb90] sm:$0xff]
  %v403 = vld [vmem:[%s1 + $0xb98] sm:$0xff]
  %v404 = vld [vmem:[%s1 + $0xba0] sm:$0xff]
  %v405 = vld [vmem:[%s1 + $0xba8] sm:$0xff]
  %v406 = vld [vmem:[%s1 + $0xbb0] sm:$0xff]
  %v407 = vld [vmem:[%s1 + $0xbb8] sm:$0xff]
  %v408 = vld [vmem:[%s1 + $0xbc0] sm:$0xff]
  %v409 = vld [vmem:[%s1 + $0xbc8] sm:$0xff]
  %v410 = vld [vmem:[%s1 + $0xbd0] sm:$0xff]
  %v411 = vld [vmem:[%s1 + $0xbd8] sm:$0xff]
  %v412 = vld [vmem:[%s1 + $0xbe0] sm:$0xff]
  %v413 = vld [vmem:[%s1 + $0xbe8] sm:$0xff]
  %v414 = vld [vmem:[%s1 + $0xbf0] sm:$0xff]
  %v415 = vld [vmem:[%s1 + $0xbf8] sm:$0xff]
  %v416 = vld [vmem:[%s1 + $0xc00] sm:$0xff]
  %v417 = vld [vmem:[%s1 + $0xc08] sm:$0xff]
  %v418 = vld [vmem:[%s1 + $0xc10] sm:$0xff]
  %v419 = vld [vmem:[%s1 + $0xc18] sm:$0xff]
  %v420 = vld [vmem:[%s1 + $0xc20] sm:$0xff]
  %v421 = vld [vmem:[%s1 + $0xc28] sm:$0xff]
  %v422 = vld [vmem:[%s1 + $0xc30] sm:$0xff]
  %v423 = vld [vmem:[%s1 + $0xc38] sm:$0xff]
  %v424 = vld [vmem:[%s1 + $0xc40] sm:$0xff]
  %v425 = vld [vmem:[%s1 + $0xc48] sm:$0xff]
  %v426 = vld [vmem:[%s1 + $0xc50] sm:$0xff]
  %v427 = vld [vmem:[%s1 + $0xc58] sm:$0xff]
  %v428 = vld [vmem:[%s1 + $0xc60] sm:$0xff]
  %v429 = vld [vmem:[%s1 + $0xc68] sm:$0xff]
  %v430 = vld [vmem:[%s1 + $0xc70] sm:$0xff]
  %v431 = vld [vmem:[%s1 + $0xc78] sm:$0xff]
  %v432 = vld [vmem:[%s1 + $0xc80] sm:$0xff]
  %v433 = vld [vmem:[%s1 + $0xc88] sm:$0xff]
  %v434 = vld [vmem:[%s1 + $0xc90] sm:$0xff]
  %v435 = vld [vmem:[%s1 + $0xc98] sm:$0xff]
  %v436 = vld [vmem:[%s1 + $0xca0] sm:$0xff]
  %v437 = vld [vmem:[%s1 + $0xca8] sm:$0xff]
  %v438 = vld [vmem:[%s1 + $0xcb0] sm:$0xff]
  %v439 = vld [vmem:[%s1 + $0xcb8] sm:$0xff]
  %v440 = vld [vmem:[%s1 + $0xcc0] sm:$0xff]
  %v441 = vld [vmem:[%s1 + $0xcc8] sm:$0xff]
  %v442 = vld [vmem:[%s1 + $0xcd0] sm:$0xff]
  %v443 = vld [vmem:[%s1 + $0xcd8] sm:$0xff]
  %v444 = vld [vmem:[%s1 + $0xce0] sm:$0xff]
  %v445 = vld [vmem:[%s1 + $0xce8] sm:$0xff]
  %v446 = vld [vmem:[%s1 + $0xcf0] sm:$0xff]
  %v447 = vld [vmem:[%s1 + $0xcf8] sm:$0xff]
  %v448 = vld [vmem:[%s1 + $0xd00] sm:$0xff]
  %v449 = vld [vmem:[%s1 + $0xd08] sm:$0xff]
  %v450 = vld [vmem:[%s1 + $0xd10] sm:$0xff]
  %v451 = vld [vmem:[%s1 + $0xd18] sm:$0xff]
  %v452 = vld [vmem:[%s1 + $0xd20] sm:$0xff]
  %v453 = vld [vmem:[%s1 + $0xd28] sm:$0xff]
  %v454 = vld [vmem:[%s1 + $0xd30] sm:$0xff]
  %v455 = vld [vmem:[%s1 + $0xd38] sm:$0xff]
  %v456 = vld [vmem:[%s1 + $0xd40] sm:$0xff]
  %v457 = vld [vmem:[%s1 + $0xd48] sm:$0xff]
  %v458 = vld [vmem:[%s1 + $0xd50] sm:$0xff]
  %v459 = vld [vmem:[%s1 + $0xd58] sm:$0xff]
  %v460 = vld [vmem:[%s1 + $0xd60] sm:$0xff]
  %v461 = vld [vmem:[%s1 + $0xd68] sm:$0xff]
  %v462 = vld [vmem:[%s1 + $0xd70] sm:$0xff]
  %v463 = vld [vmem:[%s1 + $0xd78] sm:$0xff]
  %v464 = vld [vmem:[%s1 + $0xd80] sm:$0xff]
  %v465 = vld [vmem:[%s1 + $0xd88] sm:$0xff]
  %v466 = vld [vmem:[%s1 + $0xd90] sm:$0xff]
  %v467 = vld [vmem:[%s1 + $0xd98] sm:$0xff]
  %v468 = vld [vmem:[%s1 + $0xda0] sm:$0xff]
  %v469 = vld [vmem:[%s1 + $0xda8] sm:$0xff]
  %v470 = vld [vmem:[%s1 + $0xdb0] sm:$0xff]
  %v471 = vld [vmem:[%s1 + $0xdb8] sm:$0xff]
  %v472 = vld [vmem:[%s1 + $0xdc0] sm:$0xff]
  %v473 = vld [vmem:[%s1 + $0xdc8] sm:$0xff]
  %v474 = vld [vmem:[%s1 + $0xdd0] sm:$0xff]
  %v475 = vld [vmem:[%s1 + $0xdd8] sm:$0xff]
  %v476 = vld [vmem:[%s1 + $0xde0] sm:$0xff]
  %v477 = vld [vmem:[%s1 + $0xde8] sm:$0xff]
  %v478 = vld [vmem:[%s1 + $0xdf0] sm:$0xff]
  %v479 = vld [vmem:[%s1 + $0xdf8] sm:$0xff]
  %v480 = vld [vmem:[%s1 + $0xe00] sm:$0xff]
  %v481 = vld [vmem:[%s1 + $0xe08] sm:$0xff]
  %v482 = vld [vmem:[%s1 + $0xe10] sm:$0xff]
  %v483 = vld [vmem:[%s1 + $0xe18] sm:$0xff]
  %v484 = vld [vmem:[%s1 + $0xe20] sm:$0xff]
  %v485 = vld [vmem:[%s1 + $0xe28] sm:$0xff]
  %v486 = vld [vmem:[%s1 + $0xe30] sm:$0xff]
  %v487 = vld [vmem:[%s1 + $0xe38] sm:$0xff]
  %v488 = vld [vmem:[%s1 + $0xe40] sm:$0xff]
  %v489 = vld [vmem:[%s1 + $0xe48] sm:$0xff]
  %v490 = vld [vmem:[%s1 + $0xe50] sm:$0xff]
  %v491 = vld [vmem:[%s1 + $0xe58] sm:$0xff]
  %v492 = vld [vmem:[%s1 + $0xe60] sm:$0xff]
  %v493 = vld [vmem:[%s1 + $0xe68] sm:$0xff]
  %v494 = vld [vmem:[%s1 + $0xe70] sm:$0xff]
  %v495 = vld [vmem:[%s1 + $0xe78] sm:$0xff]
  %v496 = vld [vmem:[%s1 + $0xe80] sm:$0xff]
  %v497 = vld [vmem:[%s1 + $0xe88] sm:$0xff]
  %v498 = vld [vmem:[%s1 + $0xe90] sm:$0xff]
  %v499 = vld [vmem:[%s1 + $0xe98] sm:$0xff]
  %v500 = vld [vmem:[%s1 + $0xea0] sm:$0xff]
  %v501 = vld [vmem:[%s1 + $0xea8] sm:$0xff]
  %v502 = vld [vmem:[%s1 + $0xeb0] sm:$0xff]
  %v503 = vld [vmem:[%s1 + $0xeb8] sm:$0xff]
  %v504 = vld [vmem:[%s1 + $0xec0] sm:$0xff]
  %v505 = vld [vmem:[%s1 + $0xec8] sm:$0xff]
  %v506 = vld [vmem:[%s1 + $0xed0] sm:$0xff]
  %v507 = vld [vmem:[%s1 + $0xed8] sm:$0xff]
  %v508 = vld [vmem:[%s1 + $0xee0] sm:$0xff]
  %v509 = vld [vmem:[%s1 + $0xee8] sm:$0xff]
  %v510 = vld [vmem:[%s1 + $0xef0] sm:$0xff]
  %v511 = vld [vmem:[%s1 + $0xef8] sm:$0xff]
  %v512 = vld [vmem:[%s1 + $0xf00] sm:$0xff]
  %v513 = vld [vmem:[%s1 + $0xf08] sm:$0xff]
  %v514 = vld [vmem:[%s1 + $0xf10] sm:$0xff]
  %v515 = vld [vmem:[%s1 + $0xf18] sm:$0xff]
  %v516 = vld [vmem:[%s1 + $0xf20] sm:$0xff]
  %v517 = vld [vmem:[%s1 + $0xf28] sm:$0xff]
  %v518 = vld [vmem:[%s1 + $0xf30] sm:$0xff]
  %v519 = vld [vmem:[%s1 + $0xf38] sm:$0xff]
  %v520 = vld [vmem:[%s1 + $0xf40] sm:$0xff]
  %v521 = vld [vmem:[%s1 + $0xf48] sm:$0xff]
  %v522 = vld [vmem:[%s1 + $0xf50] sm:$0xff]
  %v523 = vld [vmem:[%s1 + $0xf58] sm:$0xff]
  %v524 = vld [vmem:[%s1 + $0xf60] sm:$0xff]
  %v525 = vld [vmem:[%s1 + $0xf68] sm:$0xff]
  %v526 = vld [vmem:[%s1 + $0xf70] sm:$0xff]
  %v527 = vld [vmem:[%s1 + $0xf78] sm:$0xff]
  %v528 = vld [vmem:[%s1 + $0xf80] sm:$0xff]
  %v529 = vld [vmem:[%s1 + $0xf88] sm:$0xff]
  %v530 = vld [vmem:[%s1 + $0xf90] sm:$0xff]
  %v531 = vld [vmem:[%s1 + $0xf98] sm:$0xff]
  %v532 = vld [vmem:[%s1 + $0xfa0] sm:$0xff]
  %v533 = vld [vmem:[%s1 + $0xfa8] sm:$0xff]
  %v534 = vld [vmem:[%s1 + $0xfb0] sm:$0xff]
  %v535 = vld [vmem:[%s1 + $0xfb8] sm:$0xff]
  %v536 = vld [vmem:[%s1 + $0xfc0] sm:$0xff]
  %v537 = vld [vmem:[%s1 + $0xfc8] sm:$0xff]
  %v538 = vld [vmem:[%s1 + $0xfd0] sm:$0xff]
  %v539 = vld [vmem:[%s1 + $0xfd8] sm:$0xff]
  %v540 = vld [vmem:[%s1 + $0xfe0] sm:$0xff]
  %v541 = vld [vmem:[%s1 + $0xfe8] sm:$0xff]
  %v542 = vld [vmem:[%s1 + $0xff0] sm:$0xff]
  %v543 = vld [vmem:[%s1 + $0xff8] sm:$0xff]
  %v544 = vld [vmem:[%s1 + $0x1000] sm:$0xff]
  %v545 = vld [vmem:[%s1 + $0x1008] sm:$0xff]
  %v546 = vld [vmem:[%s1 + $0x1010] sm:$0xff]
  %v547 = vld [vmem:[%s1 + $0x1018] sm:$0xff]
  %v548 = vld [vmem:[%s1 + $0x1020] sm:$0xff]
  %v549 = vld [vmem:[%s1 + $0x1028] sm:$0xff]
  %v550 = vld [vmem:[%s1 + $0x1030] sm:$0xff]
  %v551 = vld [vmem:[%s1 + $0x1038] sm:$0xff]
  %v552 = vld [vmem:[%s1 + $0x1040] sm:$0xff]
  %v553 = vld [vmem:[%s1 + $0x1048] sm:$0xff]
  %v554 = vld [vmem:[%s1 + $0x1050] sm:$0xff]
  %v555 = vld [vmem:[%s1 + $0x1058] sm:$0xff]
  %v556 = vld [vmem:[%s1 + $0x1060] sm:$0xff]
  %v557 = vld [vmem:[%s1 + $0x1068] sm:$0xff]
  %v558 = vld [vmem:[%s1 + $0x1070] sm:$0xff]
  %v559 = vld [vmem:[%s1 + $0x1078] sm:$0xff]
  %v560 = vld [vmem:[%s1 + $0x1080] sm:$0xff]
  %v561 = vld [vmem:[%s1 + $0x1088] sm:$0xff]
  %v562 = vld [vmem:[%s1 + $0x1090] sm:$0xff]
  %v563 = vld [vmem:[%s1 + $0x1098] sm:$0xff]
  %v564 = vld [vmem:[%s1 + $0x10a0] sm:$0xff]
  %v565 = vld [vmem:[%s1 + $0x10a8] sm:$0xff]
  %v566 = vld [vmem:[%s1 + $0x10b0] sm:$0xff]
  %v567 = vld [vmem:[%s1 + $0x10b8] sm:$0xff]
  %v568 = vld [vmem:[%s1 + $0x10c0] sm:$0xff]
  %v569 = vld [vmem:[%s1 + $0x10c8] sm:$0xff]
  %v570 = vld [vmem:[%s1 + $0x10d0] sm:$0xff]
  %v571 = vld [vmem:[%s1 + $0x10d8] sm:$0xff]
  %v572 = vld [vmem:[%s1 + $0x10e0] sm:$0xff]
  %v573 = vld [vmem:[%s1 + $0x10e8] sm:$0xff]
  %v574 = vld [vmem:[%s1 + $0x10f0] sm:$0xff]
  %v575 = vld [vmem:[%s1 + $0x10f8] sm:$0xff]
  %v576 = vld [vmem:[%s1 + $0x1100] sm:$0xff]
  %v577 = vld [vmem:[%s1 + $0x1108] sm:$0xff]
  %v578 = vld [vmem:[%s1 + $0x1110] sm:$0xff]
  %v579 = vld [vmem:[%s1 + $0x1118] sm:$0xff]
  %v580 = vld [vmem:[%s1 + $0x1120] sm:$0xff]
  %v581 = vld [vmem:[%s1 + $0x1128] sm:$0xff]
  %v582 = vld [vmem:[%s1 + $0x1130] sm:$0xff]
  %v583 = vld [vmem:[%s1 + $0x1138] sm:$0xff]
  %v584 = vld [vmem:[%s1 + $0x1140] sm:$0xff]
  %v585 = vld [vmem:[%s1 + $0x1148] sm:$0xff]
  %v586 = vld [vmem:[%s1 + $0x1150] sm:$0xff]
  %v587 = vld [vmem:[%s1 + $0x1158] sm:$0xff]
  %v588 = vld [vmem:[%s1 + $0x1160] sm:$0xff]
  %v589 = vld [vmem:[%s1 + $0x1168] sm:$0xff]
  %v590 = vld [vmem:[%s1 + $0x1170] sm:$0xff]
  %v591 = vld [vmem:[%s1 + $0x1178] sm:$0xff]
  %v592 = vld [vmem:[%s1 + $0x1180] sm:$0xff]
  %v593 = vld [vmem:[%s1 + $0x1188] sm:$0xff]
  %v594 = vld [vmem:[%s1 + $0x1190] sm:$0xff]
  %v595 = vld [vmem:[%s1 + $0x1198] sm:$0xff]
  %v596 = vld [vmem:[%s1 + $0x11a0] sm:$0xff]
  %v597 = vld [vmem:[%s1 + $0x11a8] sm:$0xff]
  %v598 = vld [vmem:[%s1 + $0x11b0] sm:$0xff]
  %v599 = vld [vmem:[%s1 + $0x11b8] sm:$0xff]
  %v600 = vld [vmem:[%s1 + $0x11c0] sm:$0xff]
  %v601 = vld [vmem:[%s1 + $0x11c8] sm:$0xff]
  %v602 = vld [vmem:[%s1 + $0x11d0] sm:$0xff]
  %v603 = vld [vmem:[%s1 + $0x11d8] sm:$0xff]
  %v604 = vld [vmem:[%s1 + $0x11e0] sm:$0xff]
  %v605 = vld [vmem:[%s1 + $0x11e8] sm:$0xff]
  %v606 = vld [vmem:[%s1 + $0x11f0] sm:$0xff]
  %v607 = vld [vmem:[%s1 + $0x11f8] sm:$0xff]
  %v608 = vld [vmem:[%s1 + $0x1200] sm:$0xff]
  %v609 = vld [vmem:[%s1 + $0x1208] sm:$0xff]
  %v610 = vld [vmem:[%s1 + $0x1210] sm:$0xff]
  %v611 = vld [vmem:[%s1 + $0x1218] sm:$0xff]
  %v612 = vld [vmem:[%s1 + $0x1220] sm:$0xff]
  %v613 = vld [vmem:[%s1 + $0x1228] sm:$0xff]
  %v614 = vld [vmem:[%s1 + $0x1230] sm:$0xff]
  %v615 = vld [vmem:[%s1 + $0x1238] sm:$0xff]
  %v616 = vld [vmem:[%s1 + $0x1240] sm:$0xff]
  %v617 = vld [vmem:[%s1 + $0x1248] sm:$0xff]
  %v618 = vld [vmem:[%s1 + $0x1250] sm:$0xff]
  %v619 = vld [vmem:[%s1 + $0x1258] sm:$0xff]
  %v620 = vld [vmem:[%s1 + $0x1260] sm:$0xff]
  %v621 = vld [vmem:[%s1 + $0x1268] sm:$0xff]
  %v622 = vld [vmem:[%s1 + $0x1270] sm:$0xff]
  %v623 = vld [vmem:[%s1 + $0x1278] sm:$0xff]
  %v624 = vld [vmem:[%s1 + $0x1280] sm:$0xff]
  %v625 = vld [vmem:[%s1 + $0x1288] sm:$0xff]
  %v626 = vld [vmem:[%s1 + $0x1290] sm:$0xff]
  %v627 = vld [vmem:[%s1 + $0x1298] sm:$0xff]
  %v628 = vld [vmem:[%s1 + $0x12a0] sm:$0xff]
  %v629 = vld [vmem:[%s1 + $0x12a8] sm:$0xff]
  %v630 = vld [vmem:[%s1 + $0x12b0] sm:$0xff]
  %v631 = vld [vmem:[%s1 + $0x12b8] sm:$0xff]
  %v632 = vld [vmem:[%s1 + $0x12c0] sm:$0xff]
  %v633 = vld [vmem:[%s1 + $0x12c8] sm:$0xff]
  %v634 = vld [vmem:[%s1 + $0x12d0] sm:$0xff]
  %v635 = vld [vmem:[%s1 + $0x12d8] sm:$0xff]
  %v636 = vld [vmem:[%s1 + $0x12e0] sm:$0xff]
  %v637 = vld [vmem:[%s1 + $0x12e8] sm:$0xff]
  %v638 = vld [vmem:[%s1 + $0x12f0] sm:$0xff]
  %v639 = vld [vmem:[%s1 + $0x12f8] sm:$0xff]
  %v640 = vld [vmem:[%s1 + $0x1300] sm:$0xff]
  %v641 = vld [vmem:[%s1 + $0x1308] sm:$0xff]
  %v642 = vld [vmem:[%s1 + $0x1310] sm:$0xff]
  %v643 = vld [vmem:[%s1 + $0x1318] sm:$0xff]
  %v644 = vld [vmem:[%s1 + $0x1320] sm:$0xff]
  %v645 = vld [vmem:[%s1 + $0x1328] sm:$0xff]
  %v646 = vld [vmem:[%s1 + $0x1330] sm:$0xff]
  %v647 = vld [vmem:[%s1 + $0x1338] sm:$0xff]
  %v648 = vld [vmem:[%s1 + $0x1340] sm:$0xff]
  %v649 = vld [vmem:[%s1 + $0x1348] sm:$0xff]
  %v650 = vld [vmem:[%s1 + $0x1350] sm:$0xff]
  %v651 = vld [vmem:[%s1 + $0x1358] sm:$0xff]
  %v652 = vld [vmem:[%s1 + $0x1360] sm:$0xff]
  %v653 = vld [vmem:[%s1 + $0x1368] sm:$0xff]
  %v654 = vld [vmem:[%s1 + $0x1370] sm:$0xff]
  %v655 = vld [vmem:[%s1 + $0x1378] sm:$0xff]
  %v656 = vld [vmem:[%s1 + $0x1380] sm:$0xff]
  %v657 = vld [vmem:[%s1 + $0x1388] sm:$0xff]
  %v658 = vld [vmem:[%s1 + $0x1390] sm:$0xff]
  %v659 = vld [vmem:[%s1 + $0x1398] sm:$0xff]
  %v660 = vld [vmem:[%s1 + $0x13a0] sm:$0xff]
  %v661 = vld [vmem:[%s1 + $0x13a8] sm:$0xff]
  %v662 = vld [vmem:[%s1 + $0x13b0] sm:$0xff]
  %v663 = vld [vmem:[%s1 + $0x13b8] sm:$0xff]
  %v664 = vld [vmem:[%s1 + $0x13c0] sm:$0xff]
  %v665 = vld [vmem:[%s1 + $0x13c8] sm:$0xff]
  %v666 = vld [vmem:[%s1 + $0x13d0] sm:$0xff]
  %v667 = vld [vmem:[%s1 + $0x13d8] sm:$0xff]
  %v668 = vld [vmem:[%s1 + $0x13e0] sm:$0xff]
  %v669 = vld [vmem:[%s1 + $0x13e8] sm:$0xff]
  %v670 = vld [vmem:[%s1 + $0x13f0] sm:$0xff]
  %v671 = vld [vmem:[%s1 + $0x13f8] sm:$0xff]
  %v672 = vld [vmem:[%s1 + $0x1400] sm:$0xff]
  %v673 = vld [vmem:[%s1 + $0x1408] sm:$0xff]
  %v674 = vld [vmem:[%s1 + $0x1410] sm:$0xff]
  %v675 = vld [vmem:[%s1 + $0x1418] sm:$0xff]
  %v676 = vld [vmem:[%s1 + $0x1420] sm:$0xff]
  %v677 = vld [vmem:[%s1 + $0x1428] sm:$0xff]
  %v678 = vld [vmem:[%s1 + $0x1430] sm:$0xff]
  %v679 = vld [vmem:[%s1 + $0x1438] sm:$0xff]
  %v680 = vld [vmem:[%s1 + $0x1440] sm:$0xff]
  %v681 = vld [vmem:[%s1 + $0x1448] sm:$0xff]
  %v682 = vld [vmem:[%s1 + $0x1450] sm:$0xff]
  %v683 = vld [vmem:[%s1 + $0x1458] sm:$0xff]
  %v684 = vld [vmem:[%s1 + $0x1460] sm:$0xff]
  %v685 = vld [vmem:[%s1 + $0x1468] sm:$0xff]
  %v686 = vld [vmem:[%s1 + $0x1470] sm:$0xff]
  %v687 = vld [vmem:[%s1 + $0x1478] sm:$0xff]
  %v688 = vld [vmem:[%s1 + $0x1480] sm:$0xff]
  %v689 = vld [vmem:[%s1 + $0x1488] sm:$0xff]
  %v690 = vld [vmem:[%s1 + $0x1490] sm:$0xff]
  %v691 = vld [vmem:[%s1 + $0x1498] sm:$0xff]
  %v692 = vld [vmem:[%s1 + $0x14a0] sm:$0xff]
  %v693 = vld [vmem:[%s1 + $0x14a8] sm:$0xff]
  %v694 = vld [vmem:[%s1 + $0x14b0] sm:$0xff]
  %v695 = vld [vmem:[%s1 + $0x14b8] sm:$0xff]
  %v696 = vld [vmem:[%s1 + $0x14c0] sm:$0xff]
  %v697 = vld [vmem:[%s1 + $0x14c8] sm:$0xff]
  %v698 = vld [vmem:[%s1 + $0x14d0] sm:$0xff]
  %v699 = vld [vmem:[%s1 + $0x14d8] sm:$0xff]
  %v700 = vld [vmem:[%s1 + $0x14e0] sm:$0xff]
  %v701 = vld [vmem:[%s1 + $0x14e8] sm:$0xff]
  %v702 = vld [vmem:[%s1 + $0x14f0] sm:$0xff]
  %v703 = vld [vmem:[%s1 + $0x14f8] sm:$0xff]
  %v704 = vld [vmem:[%s1 + $0x1500] sm:$0xff]
  %v705 = vld [vmem:[%s1 + $0x1508] sm:$0xff]
  %v706 = vld [vmem:[%s1 + $0x1510] sm:$0xff]
  %v707 = vld [vmem:[%s1 + $0x1518] sm:$0xff]
  %v708 = vld [vmem:[%s1 + $0x1520] sm:$0xff]
  %v709 = vld [vmem:[%s1 + $0x1528] sm:$0xff]
  %v710 = vld [vmem:[%s1 + $0x1530] sm:$0xff]
  %v711 = vld [vmem:[%s1 + $0x1538] sm:$0xff]
  %v712 = vld [vmem:[%s1 + $0x1540] sm:$0xff]
  %v713 = vld [vmem:[%s1 + $0x1548] sm:$0xff]
  %v714 = vld [vmem:[%s1 + $0x1550] sm:$0xff]
  %v715 = vld [vmem:[%s1 + $0x1558] sm:$0xff]
  %v716 = vld [vmem:[%s1 + $0x1560] sm:$0xff]
  %v717 = vld [vmem:[%s1 + $0x1568] sm:$0xff]
  %v718 = vld [vmem:[%s1 + $0x1570] sm:$0xff]
  %v719 = vld [vmem:[%s1 + $0x1578] sm:$0xff]
  %v720 = vld [vmem:[%s1 + $0x1580] sm:$0xff]
  %v721 = vld [vmem:[%s1 + $0x1588] sm:$0xff]
  %v722 = vld [vmem:[%s1 + $0x1590] sm:$0xff]
  %v723 = vld [vmem:[%s1 + $0x1598] sm:$0xff]
  %v724 = vld [vmem:[%s1 + $0x15a0] sm:$0xff]
  %v725 = vld [vmem:[%s1 + $0x15a8] sm:$0xff]
  %v726 = vld [vmem:[%s1 + $0x15b0] sm:$0xff]
  %v727 = vld [vmem:[%s1 + $0x15b8] sm:$0xff]
  %v728 = vld [vmem:[%s1 + $0x15c0] sm:$0xff]
  %v729 = vld [vmem:[%s1 + $0x15c8] sm:$0xff]
  %v730 = vld [vmem:[%s1 + $0x15d0] sm:$0xff]
  %v731 = vld [vmem:[%s1 + $0x15d8] sm:$0xff]
  %v732 = vld [vmem:[%s1 + $0x15e0] sm:$0xff]
  %v733 = vld [vmem:[%s1 + $0x15e8] sm:$0xff]
  %v734 = vld [vmem:[%s1 + $0x15f0] sm:$0xff]
  %v735 = vld [vmem:[%s1 + $0x15f8] sm:$0xff]
  %v736 = vld [vmem:[%s1 + $0x1600] sm:$0xff]
  %v737 = vld [vmem:[%s1 + $0x1608] sm:$0xff]
  %v738 = vld [vmem:[%s1 + $0x1610] sm:$0xff]
  %v739 = vld [vmem:[%s1 + $0x1618] sm:$0xff]
  %v740 = vld [vmem:[%s1 + $0x1620] sm:$0xff]
  %v741 = vld [vmem:[%s1 + $0x1628] sm:$0xff]
  %v742 = vld [vmem:[%s1 + $0x1630] sm:$0xff]
  %v743 = vld [vmem:[%s1 + $0x1638] sm:$0xff]
  %v744 = vld [vmem:[%s1 + $0x1640] sm:$0xff]
  %v745 = vld [vmem:[%s1 + $0x1648] sm:$0xff]
  %v746 = vld [vmem:[%s1 + $0x1650] sm:$0xff]
  %v747 = vld [vmem:[%s1 + $0x1658] sm:$0xff]
  %v748 = vld [vmem:[%s1 + $0x1660] sm:$0xff]
  %v749 = vld [vmem:[%s1 + $0x1668] sm:$0xff]
  %v750 = vld [vmem:[%s1 + $0x1670] sm:$0xff]
  %v751 = vld [vmem:[%s1 + $0x1678] sm:$0xff]
  %v752 = vld [vmem:[%s1 + $0x1680] sm:$0xff]
  %v753 = vld [vmem:[%s1 + $0x1688] sm:$0xff]
  %v754 = vld [vmem:[%s1 + $0x1690] sm:$0xff]
  %v755 = vld [vmem:[%s1 + $0x1698] sm:$0xff]
  %v756 = vld [vmem:[%s1 + $0x16a0] sm:$0xff]
  %v757 = vld [vmem:[%s1 + $0x16a8] sm:$0xff]
  %v758 = vld [vmem:[%s1 + $0x16b0] sm:$0xff]
  %v759 = vld [vmem:[%s1 + $0x16b8] sm:$0xff]
  %v760 = vld [vmem:[%s1 + $0x16c0] sm:$0xff]
  %v761 = vld [vmem:[%s1 + $0x16c8] sm:$0xff]
  %v762 = vld [vmem:[%s1 + $0x16d0] sm:$0xff]
  %v763 = vld [vmem:[%s1 + $0x16d8] sm:$0xff]
  %v764 = vld [vmem:[%s1 + $0x16e0] sm:$0xff]
  %v765 = vld [vmem:[%s1 + $0x16e8] sm:$0xff]
  %v766 = vld [vmem:[%s1 + $0x16f0] sm:$0xff]
  %v767 = vld [vmem:[%s1 + $0x16f8] sm:$0xff]
  %v768 = vld [vmem:[%s1 + $0x1700] sm:$0xff]
  %v769 = vld [vmem:[%s1 + $0x1708] sm:$0xff]
  %v770 = vld [vmem:[%s1 + $0x1710] sm:$0xff]
  %v771 = vld [vmem:[%s1 + $0x1718] sm:$0xff]
  %v772 = vld [vmem:[%s1 + $0x1720] sm:$0xff]
  %v773 = vld [vmem:[%s1 + $0x1728] sm:$0xff]
  %v774 = vld [vmem:[%s1 + $0x1730] sm:$0xff]
  %v775 = vld [vmem:[%s1 + $0x1738] sm:$0xff]
  %v776 = vld [vmem:[%s1 + $0x1740] sm:$0xff]
  %v777 = vld [vmem:[%s1 + $0x1748] sm:$0xff]
  %v778 = vld [vmem:[%s1 + $0x1750] sm:$0xff]
  %v779 = vld [vmem:[%s1 + $0x1758] sm:$0xff]
  %v780 = vld [vmem:[%s1 + $0x1760] sm:$0xff]
  %v781 = vld [vmem:[%s1 + $0x1768] sm:$0xff]
  %v782 = vld [vmem:[%s1 + $0x1770] sm:$0xff]
  %v783 = vld [vmem:[%s1 + $0x1778] sm:$0xff]
  %v784 = vld [vmem:[%s1 + $0x1780] sm:$0xff]
  %v785 = vld [vmem:[%s1 + $0x1788] sm:$0xff]
  %v786 = vld [vmem:[%s1 + $0x1790] sm:$0xff]
  %v787 = vld [vmem:[%s1 + $0x1798] sm:$0xff]
  %v788 = vld [vmem:[%s1 + $0x17a0] sm:$0xff]
  %v789 = vld [vmem:[%s1 + $0x17a8] sm:$0xff]
  %v790 = vld [vmem:[%s1 + $0x17b0] sm:$0xff]
  %v791 = vld [vmem:[%s1 + $0x17b8] sm:$0xff]
  %v792 = vld [vmem:[%s1 + $0x17c0] sm:$0xff]
  %v793 = vld [vmem:[%s1 + $0x17c8] sm:$0xff]
  %v794 = vld [vmem:[%s1 + $0x17d0] sm:$0xff]
  %v795 = vld [vmem:[%s1 + $0x17d8] sm:$0xff]
  %v796 = vld [vmem:[%s1 + $0x17e0] sm:$0xff]
  %v797 = vld [vmem:[%s1 + $0x17e8] sm:$0xff]
  %v798 = vld [vmem:[%s1 + $0x17f0] sm:$0xff]
  %v799 = vld [vmem:[%s1 + $0x17f8] sm:$0xff]
  %v800 = vld [vmem:[%s1 + $0x1800] sm:$0xff]
  %v801 = vld [vmem:[%s1 + $0x1808] sm:$0xff]
  %v802 = vld [vmem:[%s1 + $0x1810] sm:$0xff]
  %v803 = vld [vmem:[%s1 + $0x1818] sm:$0xff]
  %v804 = vld [vmem:[%s1 + $0x1820] sm:$0xff]
  %v805 = vld [vmem:[%s1 + $0x1828] sm:$0xff]
  %v806 = vld [vmem:[%s1 + $0x1830] sm:$0xff]
  %v807 = vld [vmem:[%s1 + $0x1838] sm:$0xff]
  %v808 = vld [vmem:[%s1 + $0x1840] sm:$0xff]
  %v809 = vld [vmem:[%s1 + $0x1848] sm:$0xff]
  %v810 = vld [vmem:[%s1 + $0x1850] sm:$0xff]
  %v811 = vld [vmem:[%s1 + $0x1858] sm:$0xff]
  %v812 = vld [vmem:[%s1 + $0x1860] sm:$0xff]
  %v813 = vld [vmem:[%s1 + $0x1868] sm:$0xff]
  %v814 = vld [vmem:[%s1 + $0x1870] sm:$0xff]
  %v815 = vld [vmem:[%s1 + $0x1878] sm:$0xff]
  %v816 = vld [vmem:[%s1 + $0x1880] sm:$0xff]
  %v817 = vld [vmem:[%s1 + $0x1888] sm:$0xff]
  %v818 = vld [vmem:[%s1 + $0x1890] sm:$0xff]
  %v819 = vld [vmem:[%s1 + $0x1898] sm:$0xff]
  %v820 = vld [vmem:[%s1 + $0x18a0] sm:$0xff]
  %v821 = vld [vmem:[%s1 + $0x18a8] sm:$0xff]
  %v822 = vld [vmem:[%s1 + $0x18b0] sm:$0xff]
  %v823 = vld [vmem:[%s1 + $0x18b8] sm:$0xff]
  %v824 = vld [vmem:[%s1 + $0x18c0] sm:$0xff]
  %v825 = vld [vmem:[%s1 + $0x18c8] sm:$0xff]
  %v826 = vld [vmem:[%s1 + $0x18d0] sm:$0xff]
  %v827 = vld [vmem:[%s1 + $0x18d8] sm:$0xff]
  %v828 = vld [vmem:[%s1 + $0x18e0] sm:$0xff]
  %v829 = vld [vmem:[%s1 + $0x18e8] sm:$0xff]
  %v830 = vld [vmem:[%s1 + $0x18f0] sm:$0xff]
  %v831 = vld [vmem:[%s1 + $0x18f8] sm:$0xff]
  %v832 = vld [vmem:[%s1 + $0x1900] sm:$0xff]
  %v833 = vld [vmem:[%s1 + $0x1908] sm:$0xff]
  %v834 = vld [vmem:[%s1 + $0x1910] sm:$0xff]
  %v835 = vld [vmem:[%s1 + $0x1918] sm:$0xff]
  %v836 = vld [vmem:[%s1 + $0x1920] sm:$0xff]
  %v837 = vld [vmem:[%s1 + $0x1928] sm:$0xff]
  %v838 = vld [vmem:[%s1 + $0x1930] sm:$0xff]
  %v839 = vld [vmem:[%s1 + $0x1938] sm:$0xff]
  %v840 = vld [vmem:[%s1 + $0x1940] sm:$0xff]
  %v841 = vld [vmem:[%s1 + $0x1948] sm:$0xff]
  %v842 = vld [vmem:[%s1 + $0x1950] sm:$0xff]
  %v843 = vld [vmem:[%s1 + $0x1958] sm:$0xff]
  %v844 = vld [vmem:[%s1 + $0x1960] sm:$0xff]
  %v845 = vld [vmem:[%s1 + $0x1968] sm:$0xff]
  %v846 = vld [vmem:[%s1 + $0x1970] sm:$0xff]
  %v847 = vld [vmem:[%s1 + $0x1978] sm:$0xff]
  %v848 = vld [vmem:[%s1 + $0x1980] sm:$0xff]
  %v849 = vld [vmem:[%s1 + $0x1988] sm:$0xff]
  %v850 = vld [vmem:[%s1 + $0x1990] sm:$0xff]
  %v851 = vld [vmem:[%s1 + $0x1998] sm:$0xff]
  %v852 = vld [vmem:[%s1 + $0x19a0] sm:$0xff]
  %v853 = vld [vmem:[%s1 + $0x19a8] sm:$0xff]
  %v854 = vld [vmem:[%s1 + $0x19b0] sm:$0xff]
  %v855 = vld [vmem:[%s1 + $0x19b8] sm:$0xff]
  %v856 = vld [vmem:[%s1 + $0x19c0] sm:$0xff]
  %v857 = vld [vmem:[%s1 + $0x19c8] sm:$0xff]
  %v858 = vld [vmem:[%s1 + $0x19d0] sm:$0xff]
  %v859 = vld [vmem:[%s1 + $0x19d8] sm:$0xff]
  %v860 = vld [vmem:[%s1 + $0x19e0] sm:$0xff]
  %v861 = vld [vmem:[%s1 + $0x19e8] sm:$0xff]
  %v862 = vld [vmem:[%s1 + $0x19f0] sm:$0xff]
  %v863 = vld [vmem:[%s1 + $0x19f8] sm:$0xff]
  %v864 = vld [vmem:[%s1 + $0x1a00] sm:$0xff]
  %v865 = vld [vmem:[%s1 + $0x1a08] sm:$0xff]
  %v866 = vld [vmem:[%s1 + $0x1a10] sm:$0xff]
  %v867 = vld [vmem:[%s1 + $0x1a18] sm:$0xff]
  %v868 = vld [vmem:[%s1 + $0x1a20] sm:$0xff]
  %v869 = vld [vmem:[%s1 + $0x1a28] sm:$0xff]
  %v870 = vld [vmem:[%s1 + $0x1a30] sm:$0xff]
  %v871 = vld [vmem:[%s1 + $0x1a38] sm:$0xff]
  %v872 = vld [vmem:[%s1 + $0x1a40] sm:$0xff]
  %v873 = vld [vmem:[%s1 + $0x1a48] sm:$0xff]
  %v874 = vld [vmem:[%s1 + $0x1a50] sm:$0xff]
  %v875 = vld [vmem:[%s1 + $0x1a58] sm:$0xff]
  %v876 = vld [vmem:[%s1 + $0x1a60] sm:$0xff]
  %v877 = vld [vmem:[%s1 + $0x1a68] sm:$0xff]
  %v878 = vld [vmem:[%s1 + $0x1a70] sm:$0xff]
  %v879 = vld [vmem:[%s1 + $0x1a78] sm:$0xff]
  %v880 = vld [vmem:[%s1 + $0x1a80] sm:$0xff]
  %v881 = vld [vmem:[%s1 + $0x1a88] sm:$0xff]
  %v882 = vld [vmem:[%s1 + $0x1a90] sm:$0xff]
  %v883 = vld [vmem:[%s1 + $0x1a98] sm:$0xff]
  %v884 = vld [vmem:[%s1 + $0x1aa0] sm:$0xff]
  %v885 = vld [vmem:[%s1 + $0x1aa8] sm:$0xff]
  %v886 = vld [vmem:[%s1 + $0x1ab0] sm:$0xff]
  %v887 = vld [vmem:[%s1 + $0x1ab8] sm:$0xff]
  %v888 = vld [vmem:[%s1 + $0x1ac0] sm:$0xff]
  %v889 = vld [vmem:[%s1 + $0x1ac8] sm:$0xff]
  %v890 = vld [vmem:[%s1 + $0x1ad0] sm:$0xff]
  %v891 = vld [vmem:[%s1 + $0x1ad8] sm:$0xff]
  %v892 = vld [vmem:[%s1 + $0x1ae0] sm:$0xff]
  %v893 = vld [vmem:[%s1 + $0x1ae8] sm:$0xff]
  %v894 = vld [vmem:[%s1 + $0x1af0] sm:$0xff]
  %v895 = vld [vmem:[%s1 + $0x1af8] sm:$0xff]
  %v896 = vld [vmem:[%s1 + $0x1b00] sm:$0xff]
  %v897 = vld [vmem:[%s1 + $0x1b08] sm:$0xff]
  %v898 = vld [vmem:[%s1 + $0x1b10] sm:$0xff]
  %v899 = vld [vmem:[%s1 + $0x1b18] sm:$0xff]
  %v900 = vld [vmem:[%s1 + $0x1b20] sm:$0xff]
  %v901 = vld [vmem:[%s1 + $0x1b28] sm:$0xff]
  %v902 = vld [vmem:[%s1 + $0x1b30] sm:$0xff]
  %v903 = vld [vmem:[%s1 + $0x1b38] sm:$0xff]
  %v904 = vld [vmem:[%s1 + $0x1b40] sm:$0xff]
  %v905 = vld [vmem:[%s1 + $0x1b48] sm:$0xff]
  %v906 = vld [vmem:[%s1 + $0x1b50] sm:$0xff]
  %v907 = vld [vmem:[%s1 + $0x1b58] sm:$0xff]
  %v908 = vld [vmem:[%s1 + $0x1b60] sm:$0xff]
  %v909 = vld [vmem:[%s1 + $0x1b68] sm:$0xff]
  %v910 = vld [vmem:[%s1 + $0x1b70] sm:$0xff]
  %v911 = vld [vmem:[%s1 + $0x1b78] sm:$0xff]
  %v912 = vld [vmem:[%s1 + $0x1b80] sm:$0xff]
  %v913 = vld [vmem:[%s1 + $0x1b88] sm:$0xff]
  %v914 = vld [vmem:[%s1 + $0x1b90] sm:$0xff]
  %v915 = vld [vmem:[%s1 + $0x1b98] sm:$0xff]
  %v916 = vld [vmem:[%s1 + $0x1ba0] sm:$0xff]
  %v917 = vld [vmem:[%s1 + $0x1ba8] sm:$0xff]
  %v918 = vld [vmem:[%s1 + $0x1bb0] sm:$0xff]
  %v919 = vld [vmem:[%s1 + $0x1bb8] sm:$0xff]
  %v920 = vld [vmem:[%s1 + $0x1bc0] sm:$0xff]
  %v921 = vld [vmem:[%s1 + $0x1bc8] sm:$0xff]
  %v922 = vld [vmem:[%s1 + $0x1bd0] sm:$0xff]
  %v923 = vld [vmem:[%s1 + $0x1bd8] sm:$0xff]
  %v924 = vld [vmem:[%s1 + $0x1be0] sm:$0xff]
  %v925 = vld [vmem:[%s1 + $0x1be8] sm:$0xff]
  %v926 = vld [vmem:[%s1 + $0x1bf0] sm:$0xff]
  %v927 = vld [vmem:[%s1 + $0x1bf8] sm:$0xff]
  %v928 = vld [vmem:[%s1 + $0x1c00] sm:$0xff]
  %v929 = vld [vmem:[%s1 + $0x1c08] sm:$0xff]
  %v930 = vld [vmem:[%s1 + $0x1c10] sm:$0xff]
  %v931 = vld [vmem:[%s1 + $0x1c18] sm:$0xff]
  %v932 = vld [vmem:[%s1 + $0x1c20] sm:$0xff]
  %v933 = vld [vmem:[%s1 + $0x1c28] sm:$0xff]
  %v934 = vld [vmem:[%s1 + $0x1c30] sm:$0xff]
  %v935 = vld [vmem:[%s1 + $0x1c38] sm:$0xff]
  %v936 = vld [vmem:[%s1 + $0x1c40] sm:$0xff]
  %v937 = vld [vmem:[%s1 + $0x1c48] sm:$0xff]
  %v938 = vld [vmem:[%s1 + $0x1c50] sm:$0xff]
  %v939 = vld [vmem:[%s1 + $0x1c58] sm:$0xff]
  %v940 = vld [vmem:[%s1 + $0x1c60] sm:$0xff]
  %v941 = vld [vmem:[%s1 + $0x1c68] sm:$0xff]
  %v942 = vld [vmem:[%s1 + $0x1c70] sm:$0xff]
  %v943 = vld [vmem:[%s1 + $0x1c78] sm:$0xff]
  %v944 = vld [vmem:[%s1 + $0x1c80] sm:$0xff]
  %v945 = vld [vmem:[%s1 + $0x1c88] sm:$0xff]
  %v946 = vld [vmem:[%s1 + $0x1c90] sm:$0xff]
  %v947 = vld [vmem:[%s1 + $0x1c98] sm:$0xff]
  %v948 = vld [vmem:[%s1 + $0x1ca0] sm:$0xff]
  %v949 = vld [vmem:[%s1 + $0x1ca8] sm:$0xff]
  %v950 = vld [vmem:[%s1 + $0x1cb0] sm:$0xff]
  %v951 = vld [vmem:[%s1 + $0x1cb8] sm:$0xff]
  %v952 = vld [vmem:[%s1 + $0x1cc0] sm:$0xff]
  %v953 = vld [vmem:[%s1 + $0x1cc8] sm:$0xff]
  %v954 = vld [vmem:[%s1 + $0x1cd0] sm:$0xff]
  %v955 = vld [vmem:[%s1 + $0x1cd8] sm:$0xff]
  %v956 = vld [vmem:[%s1 + $0x1ce0] sm:$0xff]
  %v957 = vld [vmem:[%s1 + $0x1ce8] sm:$0xff]
  %v958 = vld [vmem:[%s1 + $0x1cf0] sm:$0xff]
  %v959 = vld [vmem:[%s1 + $0x1cf8] sm:$0xff]
  %v960 = vld [vmem:[%s1 + $0x1d00] sm:$0xff]
  %v961 = vld [vmem:[%s1 + $0x1d08] sm:$0xff]
  %v962 = vld [vmem:[%s1 + $0x1d10] sm:$0xff]
  %v963 = vld [vmem:[%s1 + $0x1d18] sm:$0xff]
  %v964 = vld [vmem:[%s1 + $0x1d20] sm:$0xff]
  %v965 = vld [vmem:[%s1 + $0x1d28] sm:$0xff]
  %v966 = vld [vmem:[%s1 + $0x1d30] sm:$0xff]
  %v967 = vld [vmem:[%s1 + $0x1d38] sm:$0xff]
  %v968 = vld [vmem:[%s1 + $0x1d40] sm:$0xff]
  %v969 = vld [vmem:[%s1 + $0x1d48] sm:$0xff]
  %v970 = vld [vmem:[%s1 + $0x1d50] sm:$0xff]
  %v971 = vld [vmem:[%s1 + $0x1d58] sm:$0xff]
  %v972 = vld [vmem:[%s1 + $0x1d60] sm:$0xff]
  %v973 = vld [vmem:[%s1 + $0x1d68] sm:$0xff]
  %v974 = vld [vmem:[%s1 + $0x1d70] sm:$0xff]
  %v975 = vld [vmem:[%s1 + $0x1d78] sm:$0xff]
  %v976 = vld [vmem:[%s1 + $0x1d80] sm:$0xff]
  %v977 = vld [vmem:[%s1 + $0x1d88] sm:$0xff]
  %v978 = vld [vmem:[%s1 + $0x1d90] sm:$0xff]
  %v979 = vld [vmem:[%s1 + $0x1d98] sm:$0xff]
  %v980 = vld [vmem:[%s1 + $0x1da0] sm:$0xff]
  %v981 = vld [vmem:[%s1 + $0x1da8] sm:$0xff]
  %v982 = vld [vmem:[%s1 + $0x1db0] sm:$0xff]
  %v983 = vld [vmem:[%s1 + $0x1db8] sm:$0xff]
  %v984 = vld [vmem:[%s1 + $0x1dc0] sm:$0xff]
  %v985 = vld [vmem:[%s1 + $0x1dc8] sm:$0xff]
  %v986 = vld [vmem:[%s1 + $0x1dd0] sm:$0xff]
  %v987 = vld [vmem:[%s1 + $0x1dd8] sm:$0xff]
  %v988 = vld [vmem:[%s1 + $0x1de0] sm:$0xff]
  %v989 = vld [vmem:[%s1 + $0x1de8] sm:$0xff]
  %v990 = vld [vmem:[%s1 + $0x1df0] sm:$0xff]
  %v991 = vld [vmem:[%s1 + $0x1df8] sm:$0xff]
  %v992 = vld [vmem:[%s1 + $0x1e00] sm:$0xff]
  %v993 = vld [vmem:[%s1 + $0x1e08] sm:$0xff]
  %v994 = vld [vmem:[%s1 + $0x1e10] sm:$0xff]
  %v995 = vld [vmem:[%s1 + $0x1e18] sm:$0xff]
  %v996 = vld [vmem:[%s1 + $0x1e20] sm:$0xff]
  %v997 = vld [vmem:[%s1 + $0x1e28] sm:$0xff]
  %v998 = vld [vmem:[%s1 + $0x1e30] sm:$0xff]
  %v999 = vld [vmem:[%s1 + $0x1e38] sm:$0xff]
  %v1000 = vld [vmem:[%s1 + $0x1e40] sm:$0xff]
  %v1001 = vld [vmem:[%s1 + $0x1e48] sm:$0xff]
  %v1002 = vld [vmem:[%s1 + $0x1e50] sm:$0xff]
  %v1003 = vld [vmem:[%s1 + $0x1e58] sm:$0xff]
  %v1004 = vld [vmem:[%s1 + $0x1e60] sm:$0xff]
  %v1005 = vld [vmem:[%s1 + $0x1e68] sm:$0xff]
  %v1006 = vld [vmem:[%s1 + $0x1e70] sm:$0xff]
  %v1007 = vld [vmem:[%s1 + $0x1e78] sm:$0xff]
  %v1008 = vld [vmem:[%s1 + $0x1e80] sm:$0xff]
  %v1009 = vld [vmem:[%s1 + $0x1e88] sm:$0xff]
  %v1010 = vld [vmem:[%s1 + $0x1e90] sm:$0xff]
  %v1011 = vld [vmem:[%s1 + $0x1e98] sm:$0xff]
  %v1012 = vld [vmem:[%s1 + $0x1ea0] sm:$0xff]
  %v1013 = vld [vmem:[%s1 + $0x1ea8] sm:$0xff]
  %v1014 = vld [vmem:[%s1 + $0x1eb0] sm:$0xff]
  %v1015 = vld [vmem:[%s1 + $0x1eb8] sm:$0xff]
  %v1016 = vld [vmem:[%s1 + $0x1ec0] sm:$0xff]
  %v1017 = vld [vmem:[%s1 + $0x1ec8] sm:$0xff]
  %v1018 = vld [vmem:[%s1 + $0x1ed0] sm:$0xff]
  %v1019 = vld [vmem:[%s1 + $0x1ed8] sm:$0xff]
  %v1020 = vld [vmem:[%s1 + $0x1ee0] sm:$0xff]
  %v1021 = vld [vmem:[%s1 + $0x1ee8] sm:$0xff]
  %v1022 = vld [vmem:[%s1 + $0x1ef0] sm:$0xff]
  %v1023 = vld [vmem:[%s1 + $0x1ef8] sm:$0xff]
  %v1024 = vld [vmem:[%s1 + $0x1f00] sm:$0xff]
  %v1025 = vld [vmem:[%s1 + $0x1f08] sm:$0xff]
  %v1026 = vld [vmem:[%s1 + $0x1f10] sm:$0xff]
  %v1027 = vld [vmem:[%s1 + $0x1f18] sm:$0xff]
  %v1028 = vld [vmem:[%s1 + $0x1f20] sm:$0xff]
  %v1029 = vld [vmem:[%s1 + $0x1f28] sm:$0xff]
  %v1030 = vld [vmem:[%s1 + $0x1f30] sm:$0xff]
  %v1031 = vld [vmem:[%s1 + $0x1f38] sm:$0xff]
  %v1032 = vld [vmem:[%s1 + $0x1f40] sm:$0xff]
  %v1033 = vld [vmem:[%s1 + $0x1f48] sm:$0xff]
  %v1034 = vld [vmem:[%s1 + $0x1f50] sm:$0xff]
  %v1035 = vld [vmem:[%s1 + $0x1f58] sm:$0xff]
  %v1036 = vld [vmem:[%s1 + $0x1f60] sm:$0xff]
  %v1037 = vld [vmem:[%s1 + $0x1f68] sm:$0xff]
  %v1038 = vld [vmem:[%s1 + $0x1f70] sm:$0xff]
  %v1039 = vld [vmem:[%s1 + $0x1f78] sm:$0xff]
  %v1040 = vld [vmem:[%s1 + $0x1f80] sm:$0xff]
  %v1041 = vld [vmem:[%s1 + $0x1f88] sm:$0xff]
  %v1042 = vld [vmem:[%s1 + $0x1f90] sm:$0xff]
  %v1043 = vld [vmem:[%s1 + $0x1f98] sm:$0xff]
  %v1044 = vld [vmem:[%s1 + $0x1fa0] sm:$0xff]
  %v1045 = vld [vmem:[%s1 + $0x1fa8] sm:$0xff]
  %v1046 = vld [vmem:[%s1 + $0x1fb0] sm:$0xff]
  %v1047 = vld [vmem:[%s1 + $0x1fb8] sm:$0xff]
  %v1048 = vld [vmem:[%s1 + $0x1fc0] sm:$0xff]
  %v1049 = vld [vmem:[%s1 + $0x1fc8] sm:$0xff]
  %v1050 = vld [vmem:[%s1 + $0x1fd0] sm:$0xff]
  %v1051 = vld [vmem:[%s1 + $0x1fd8] sm:$0xff]
  %v1052 = vld [vmem:[%s1 + $0x1fe0] sm:$0xff]
  %v1053 = vld [vmem:[%s1 + $0x1fe8] sm:$0xff]
  %v1054 = vld [vmem:[%s1 + $0x1ff0] sm:$0xff]
  %v1055 = vld [vmem:[%s1 + $0x1ff8] sm:$0xff]
  %v1056 = vld [vmem:[#allocation2] sm:$0x1]
  %v1058 = vlaneseq
  %v1059 = vshrl.u32 %v1058, 7
  %v1060 = vsub.s32 0, %v1059
  %v1061 = vrot.slane %v1056, %v1060
  %v1079 = vcombine.high %v16, %v16
  %v1081 = vunpack.c.l.s4 1983009808
  %v1082 = vunpack.c.0.s8 %v1081
  %v1083 = vlaneseq
  %v1084 = vshrl.u32 %v1083, 7
  %v1085 = vsub.s32 %v1082, %v1084
  %v1086 = vrot.slane %v16, %v1085
  %v1088 = vunpack.c.l.s4 1983009808
  %v1089 = vunpack.c.0.s8 %v1088
  %v1090 = vlaneseq
  %v1091 = vshrl.u32 %v1090, 7
  %v1092 = vsub.s32 %v1089, %v1091
  %v1093 = vrot.slane %v1079, %v1092
  %v1094 = vcombine.high %v1086, %v1086
  %v1095 = vcombine.high %v1093, %v1093
  %v1096 = vcombine.high %v17, %v17
  %v1098 = vunpack.c.l.s4 1983009808
  %v1099 = vunpack.c.0.s8 %v1098
  %v1100 = vlaneseq
  %v1101 = vshrl.u32 %v1100, 7
  %v1102 = vsub.s32 %v1099, %v1101
  %v1103 = vrot.slane %v17, %v1102
  %v1105 = vunpack.c.l.s4 1983009808
  %v1106 = vunpack.c.0.s8 %v1105
  %v1107 = vlaneseq
  %v1108 = vshrl.u32 %v1107, 7
  %v1109 = vsub.s32 %v1106, %v1108
  %v1110 = vrot.slane %v1096, %v1109
  %v1111 = vcombine.high %v1103, %v1103
  %v1112 = vcombine.high %v1110, %v1110
  %v1113 = vcombine.high %v18, %v18
  %v1115 = vunpack.c.l.s4 1983009808
  %v1116 = vunpack.c.0.s8 %v1115
  %v1117 = vlaneseq
  %v1118 = vshrl.u32 %v1117, 7
  %v1119 = vsub.s32 %v1116, %v1118
  %v1120 = vrot.slane %v18, %v1119
  %v1122 = vunpack.c.l.s4 1983009808
  %v1123 = vunpack.c.0.s8 %v1122
  %v1124 = vlaneseq
  %v1125 = vshrl.u32 %v1124, 7
  %v1126 = vsub.s32 %v1123, %v1125
  %v1127 = vrot.slane %v1113, %v1126
  %v1128 = vcombine.high %v1120, %v1120
  %v1129 = vcombine.high %v1127, %v1127
  %v1130 = vcombine.high %v19, %v19
  %v1132 = vunpack.c.l.s4 1983009808
  %v1133 = vunpack.c.0.s8 %v1132
  %v1134 = vlaneseq
  %v1135 = vshrl.u32 %v1134, 7
  %v1136 = vsub.s32 %v1133, %v1135
  %v1137 = vrot.slane %v19, %v1136
  %v1139 = vunpack.c.l.s4 1983009808
  %v1140 = vunpack.c.0.s8 %v1139
  %v1141 = vlaneseq
  %v1142 = vshrl.u32 %v1141, 7
  %v1143 = vsub.s32 %v1140, %v1142
  %v1144 = vrot.slane %v1130, %v1143
  %v1145 = vcombine.high %v1137, %v1137
  %v1146 = vcombine.high %v1144, %v1144
  %v1147 = vcombine.high %v20, %v20
  %v1149 = vunpack.c.l.s4 1983009808
  %v1150 = vunpack.c.0.s8 %v1149
  %v1151 = vlaneseq
  %v1152 = vshrl.u32 %v1151, 7
  %v1153 = vsub.s32 %v1150, %v1152
  %v1154 = vrot.slane %v20, %v1153
  %v1156 = vunpack.c.l.s4 1983009808
  %v1157 = vunpack.c.0.s8 %v1156
  %v1158 = vlaneseq
  %v1159 = vshrl.u32 %v1158, 7
  %v1160 = vsub.s32 %v1157, %v1159
  %v1161 = vrot.slane %v1147, %v1160
  %v1162 = vcombine.high %v1154, %v1154
  %v1163 = vcombine.high %v1161, %v1161
  %v1164 = vcombine.high %v21, %v21
  %v1166 = vunpack.c.l.s4 1983009808
  %v1167 = vunpack.c.0.s8 %v1166
  %v1168 = vlaneseq
  %v1169 = vshrl.u32 %v1168, 7
  %v1170 = vsub.s32 %v1167, %v1169
  %v1171 = vrot.slane %v21, %v1170
  %v1173 = vunpack.c.l.s4 1983009808
  %v1174 = vunpack.c.0.s8 %v1173
  %v1175 = vlaneseq
  %v1176 = vshrl.u32 %v1175, 7
  %v1177 = vsub.s32 %v1174, %v1176
  %v1178 = vrot.slane %v1164, %v1177
  %v1179 = vcombine.high %v1171, %v1171
  %v1180 = vcombine.high %v1178, %v1178
  %v1181 = vcombine.high %v22, %v22
  %v1183 = vunpack.c.l.s4 1983009808
  %v1184 = vunpack.c.0.s8 %v1183
  %v1185 = vlaneseq
  %v1186 = vshrl.u32 %v1185, 7
  %v1187 = vsub.s32 %v1184, %v1186
  %v1188 = vrot.slane %v22, %v1187
  %v1190 = vunpack.c.l.s4 1983009808
  %v1191 = vunpack.c.0.s8 %v1190
  %v1192 = vlaneseq
  %v1193 = vshrl.u32 %v1192, 7
  %v1194 = vsub.s32 %v1191, %v1193
  %v1195 = vrot.slane %v1181, %v1194
  %v1196 = vcombine.high %v1188, %v1188
  %v1197 = vcombine.high %v1195, %v1195
  %v1198 = vcombine.high %v23, %v23
  %v1200 = vunpack.c.l.s4 1983009808
  %v1201 = vunpack.c.0.s8 %v1200
  %v1202 = vlaneseq
  %v1203 = vshrl.u32 %v1202, 7
  %v1204 = vsub.s32 %v1201, %v1203
  %v1205 = vrot.slane %v23, %v1204
  %v1207 = vunpack.c.l.s4 1983009808
  %v1208 = vunpack.c.0.s8 %v1207
  %v1209 = vlaneseq
  %v1210 = vshrl.u32 %v1209, 7
  %v1211 = vsub.s32 %v1208, %v1210
  %v1212 = vrot.slane %v1198, %v1211
  %v1213 = vcombine.high %v1205, %v1205
  %v1214 = vcombine.high %v1212, %v1212
  %v1215 = vcombine.high %v24, %v24
  %v1217 = vunpack.c.l.s4 1983009808
  %v1218 = vunpack.c.0.s8 %v1217
  %v1219 = vlaneseq
  %v1220 = vshrl.u32 %v1219, 7
  %v1221 = vsub.s32 %v1218, %v1220
  %v1222 = vrot.slane %v24, %v1221
  %v1224 = vunpack.c.l.s4 1983009808
  %v1225 = vunpack.c.0.s8 %v1224
  %v1226 = vlaneseq
  %v1227 = vshrl.u32 %v1226, 7
  %v1228 = vsub.s32 %v1225, %v1227
  %v1229 = vrot.slane %v1215, %v1228
  %v1230 = vcombine.high %v1222, %v1222
  %v1231 = vcombine.high %v1229, %v1229
  %v1232 = vcombine.high %v25, %v25
  %v1234 = vunpack.c.l.s4 1983009808
  %v1235 = vunpack.c.0.s8 %v1234
  %v1236 = vlaneseq
  %v1237 = vshrl.u32 %v1236, 7
  %v1238 = vsub.s32 %v1235, %v1237
  %v1239 = vrot.slane %v25, %v1238
  %v1241 = vunpack.c.l.s4 1983009808
  %v1242 = vunpack.c.0.s8 %v1241
  %v1243 = vlaneseq
  %v1244 = vshrl.u32 %v1243, 7
  %v1245 = vsub.s32 %v1242, %v1244
  %v1246 = vrot.slane %v1232, %v1245
  %v1247 = vcombine.high %v1239, %v1239
  %v1248 = vcombine.high %v1246, %v1246
  %v1249 = vcombine.high %v26, %v26
  %v1251 = vunpack.c.l.s4 1983009808
  %v1252 = vunpack.c.0.s8 %v1251
  %v1253 = vlaneseq
  %v1254 = vshrl.u32 %v1253, 7
  %v1255 = vsub.s32 %v1252, %v1254
  %v1256 = vrot.slane %v26, %v1255
  %v1258 = vunpack.c.l.s4 1983009808
  %v1259 = vunpack.c.0.s8 %v1258
  %v1260 = vlaneseq
  %v1261 = vshrl.u32 %v1260, 7
  %v1262 = vsub.s32 %v1259, %v1261
  %v1263 = vrot.slane %v1249, %v1262
  %v1264 = vcombine.high %v1256, %v1256
  %v1265 = vcombine.high %v1263, %v1263
  %v1266 = vcombine.high %v27, %v27
  %v1268 = vunpack.c.l.s4 1983009808
  %v1269 = vunpack.c.0.s8 %v1268
  %v1270 = vlaneseq
  %v1271 = vshrl.u32 %v1270, 7
  %v1272 = vsub.s32 %v1269, %v1271
  %v1273 = vrot.slane %v27, %v1272
  %v1275 = vunpack.c.l.s4 1983009808
  %v1276 = vunpack.c.0.s8 %v1275
  %v1277 = vlaneseq
  %v1278 = vshrl.u32 %v1277, 7
  %v1279 = vsub.s32 %v1276, %v1278
  %v1280 = vrot.slane %v1266, %v1279
  %v1281 = vcombine.high %v1273, %v1273
  %v1282 = vcombine.high %v1280, %v1280
  %v1283 = vcombine.high %v28, %v28
  %v1285 = vunpack.c.l.s4 1983009808
  %v1286 = vunpack.c.0.s8 %v1285
  %v1287 = vlaneseq
  %v1288 = vshrl.u32 %v1287, 7
  %v1289 = vsub.s32 %v1286, %v1288
  %v1290 = vrot.slane %v28, %v1289
  %v1292 = vunpack.c.l.s4 1983009808
  %v1293 = vunpack.c.0.s8 %v1292
  %v1294 = vlaneseq
  %v1295 = vshrl.u32 %v1294, 7
  %v1296 = vsub.s32 %v1293, %v1295
  %v1297 = vrot.slane %v1283, %v1296
  %v1298 = vcombine.high %v1290, %v1290
  %v1299 = vcombine.high %v1297, %v1297
  %v1300 = vcombine.high %v29, %v29
  %v1302 = vunpack.c.l.s4 1983009808
  %v1303 = vunpack.c.0.s8 %v1302
  %v1304 = vlaneseq
  %v1305 = vshrl.u32 %v1304, 7
  %v1306 = vsub.s32 %v1303, %v1305
  %v1307 = vrot.slane %v29, %v1306
  %v1309 = vunpack.c.l.s4 1983009808
  %v1310 = vunpack.c.0.s8 %v1309
  %v1311 = vlaneseq
  %v1312 = vshrl.u32 %v1311, 7
  %v1313 = vsub.s32 %v1310, %v1312
  %v1314 = vrot.slane %v1300, %v1313
  %v1315 = vcombine.high %v1307, %v1307
  %v1316 = vcombine.high %v1314, %v1314
  %v1317 = vcombine.high %v30, %v30
  %v1319 = vunpack.c.l.s4 1983009808
  %v1320 = vunpack.c.0.s8 %v1319
  %v1321 = vlaneseq
  %v1322 = vshrl.u32 %v1321, 7
  %v1323 = vsub.s32 %v1320, %v1322
  %v1324 = vrot.slane %v30, %v1323
  %v1326 = vunpack.c.l.s4 1983009808
  %v1327 = vunpack.c.0.s8 %v1326
  %v1328 = vlaneseq
  %v1329 = vshrl.u32 %v1328, 7
  %v1330 = vsub.s32 %v1327, %v1329
  %v1331 = vrot.slane %v1317, %v1330
  %v1332 = vcombine.high %v1324, %v1324
  %v1333 = vcombine.high %v1331, %v1331
  %v1334 = vcombine.high %v31, %v31
  %v1336 = vunpack.c.l.s4 1983009808
  %v1337 = vunpack.c.0.s8 %v1336
  %v1338 = vlaneseq
  %v1339 = vshrl.u32 %v1338, 7
  %v1340 = vsub.s32 %v1337, %v1339
  %v1341 = vrot.slane %v31, %v1340
  %v1343 = vunpack.c.l.s4 1983009808
  %v1344 = vunpack.c.0.s8 %v1343
  %v1345 = vlaneseq
  %v1346 = vshrl.u32 %v1345, 7
  %v1347 = vsub.s32 %v1344, %v1346
  %v1348 = vrot.slane %v1334, %v1347
  %v1349 = vcombine.high %v1341, %v1341
  %v1350 = vcombine.high %v1348, %v1348
  %1415 = vmatprep.subr.mxu0 0.0
  %1416 = vmatpush1.msra.mxu0 %v32
  %1417 = vmatprep.subr.mxu0 0.0
  %1418 = vmatpush1.msra.mxu0 %v33
  %1419 = vmatprep.subr.mxu0 0.0
  %1420 = vmatpush1.msra.mxu0 %v34
  %1421 = vmatprep.subr.mxu0 0.0
  %1422 = vmatpush1.msra.mxu0 %v35
  %1423 = vmatprep.subr.mxu0 0.0
  %1424 = vmatpush1.msra.mxu0 %v36
  %1425 = vmatprep.subr.mxu0 0.0
  %1426 = vmatpush1.msra.mxu0 %v37
  %1427 = vmatprep.subr.mxu0 0.0
  %1428 = vmatpush1.msra.mxu0 %v38
  %1429 = vmatprep.subr.mxu0 0.0
  %1430 = vmatpush1.msra.mxu0 %v39
  %1431 = vmatprep.subr.mxu0 0.0
  %1432 = vmatpush1.msra.mxu0 %v40
  %1433 = vmatprep.subr.mxu0 0.0
  %1434 = vmatpush1.msra.mxu0 %v41
  %1435 = vmatprep.subr.mxu0 0.0
  %1436 = vmatpush1.msra.mxu0 %v42
  %1437 = vmatprep.subr.mxu0 0.0
  %1438 = vmatpush1.msra.mxu0 %v43
  %1439 = vmatprep.subr.mxu0 0.0
  %1440 = vmatpush1.msra.mxu0 %v44
  %1441 = vmatprep.subr.mxu0 0.0
  %1442 = vmatpush1.msra.mxu0 %v45
  %1443 = vmatprep.subr.mxu0 0.0
  %1444 = vmatpush1.msra.mxu0 %v46
  %1445 = vmatprep.subr.mxu0 0.0
  %1446 = vmatpush1.msra.mxu0 %v47
  %1447 = vmatprep.subr.mxu0 0.0
  %1448 = vmatpush1.msra.mxu0 %v48
  %1449 = vmatprep.subr.mxu0 0.0
  %1450 = vmatpush1.msra.mxu0 %v49
  %1451 = vmatprep.subr.mxu0 0.0
  %1452 = vmatpush1.msra.mxu0 %v50
  %1453 = vmatprep.subr.mxu0 0.0
  %1454 = vmatpush1.msra.mxu0 %v51
  %1455 = vmatprep.subr.mxu0 0.0
  %1456 = vmatpush1.msra.mxu0 %v52
  %1457 = vmatprep.subr.mxu0 0.0
  %1458 = vmatpush1.msra.mxu0 %v53
  %1459 = vmatprep.subr.mxu0 0.0
  %1460 = vmatpush1.msra.mxu0 %v54
  %1461 = vmatprep.subr.mxu0 0.0
  %1462 = vmatpush1.msra.mxu0 %v55
  %1463 = vmatprep.subr.mxu0 0.0
  %1464 = vmatpush1.msra.mxu0 %v56
  %1465 = vmatprep.subr.mxu0 0.0
  %1466 = vmatpush1.msra.mxu0 %v57
  %1467 = vmatprep.subr.mxu0 0.0
  %1468 = vmatpush1.msra.mxu0 %v58
  %1469 = vmatprep.subr.mxu0 0.0
  %1470 = vmatpush1.msra.mxu0 %v59
  %1471 = vmatprep.subr.mxu0 0.0
  %1472 = vmatpush1.msra.mxu0 %v60
  %1473 = vmatprep.subr.mxu0 0.0
  %1474 = vmatpush1.msra.mxu0 %v61
  %1475 = vmatprep.subr.mxu0 0.0
  %1476 = vmatpush1.msra.mxu0 %v62
  %1477 = vmatprep.subr.mxu0 0.0
  %1478 = vmatpush1.msra.mxu0 %v63
  %1479 = vmatprep.mubr.f32.mxu0 %v1094
  %1480 = vmatmul.mubr.f32.gmra.mrb[0].mxu0 %v1086
  %v1481 = vpop.f32.mrb[0].mxu0
  %v1482 = vadd.f32 %v1061, %v1481
  %v1483 = vpop.f32.mrb[0].mxu0
  %1484 = vdwg.mxu0
  %1485 = vmatprep.subr.mxu0 0.0
  %1486 = vmatpush1.msra.mxu0 %v64
  %1487 = vmatprep.subr.mxu0 0.0
  %1488 = vmatpush1.msra.mxu0 %v65
  %1489 = vmatprep.subr.mxu0 0.0
  %1490 = vmatpush1.msra.mxu0 %v66
  %1491 = vmatprep.subr.mxu0 0.0
  %1492 = vmatpush1.msra.mxu0 %v67
  %1493 = vmatprep.subr.mxu0 0.0
  %1494 = vmatpush1.msra.mxu0 %v68
  %1495 = vmatprep.subr.mxu0 0.0
  %1496 = vmatpush1.msra.mxu0 %v69
  %1497 = vmatprep.subr.mxu0 0.0
  %1498 = vmatpush1.msra.mxu0 %v70
  %1499 = vmatprep.subr.mxu0 0.0
  %1500 = vmatpush1.msra.mxu0 %v71
  %1501 = vmatprep.subr.mxu0 0.0
  %1502 = vmatpush1.msra.mxu0 %v72
  %1503 = vmatprep.subr.mxu0 0.0
  %1504 = vmatpush1.msra.mxu0 %v73
  %1505 = vmatprep.subr.mxu0 0.0
  %1506 = vmatpush1.msra.mxu0 %v74
  %1507 = vmatprep.subr.mxu0 0.0
  %1508 = vmatpush1.msra.mxu0 %v75
  %1509 = vmatprep.subr.mxu0 0.0
  %1510 = vmatpush1.msra.mxu0 %v76
  %1511 = vmatprep.subr.mxu0 0.0
  %1512 = vmatpush1.msra.mxu0 %v77
  %1513 = vmatprep.subr.mxu0 0.0
  %1514 = vmatpush1.msra.mxu0 %v78
  %1515 = vmatprep.subr.mxu0 0.0
  %1516 = vmatpush1.msra.mxu0 %v79
  %1517 = vmatprep.subr.mxu0 0.0
  %1518 = vmatpush1.msra.mxu0 %v80
  %1519 = vmatprep.subr.mxu0 0.0
  %1520 = vmatpush1.msra.mxu0 %v81
  %1521 = vmatprep.subr.mxu0 0.0
  %1522 = vmatpush1.msra.mxu0 %v82
  %1523 = vmatprep.subr.mxu0 0.0
  %1524 = vmatpush1.msra.mxu0 %v83
  %1525 = vmatprep.subr.mxu0 0.0
  %1526 = vmatpush1.msra.mxu0 %v84
  %1527 = vmatprep.subr.mxu0 0.0
  %1528 = vmatpush1.msra.mxu0 %v85
  %1529 = vmatprep.subr.mxu0 0.0
  %1530 = vmatpush1.msra.mxu0 %v86
  %1531 = vmatprep.subr.mxu0 0.0
  %1532 = vmatpush1.msra.mxu0 %v87
  %1533 = vmatprep.subr.mxu0 0.0
  %1534 = vmatpush1.msra.mxu0 %v88
  %1535 = vmatprep.subr.mxu0 0.0
  %1536 = vmatpush1.msra.mxu0 %v89
  %1537 = vmatprep.subr.mxu0 0.0
  %1538 = vmatpush1.msra.mxu0 %v90
  %1539 = vmatprep.subr.mxu0 0.0
  %1540 = vmatpush1.msra.mxu0 %v91
  %1541 = vmatprep.subr.mxu0 0.0
  %1542 = vmatpush1.msra.mxu0 %v92
  %1543 = vmatprep.subr.mxu0 0.0
  %1544 = vmatpush1.msra.mxu0 %v93
  %1545 = vmatprep.subr.mxu0 0.0
  %1546 = vmatpush1.msra.mxu0 %v94
  %1547 = vmatprep.subr.mxu0 0.0
  %1548 = vmatpush1.msra.mxu0 %v95
  %1549 = vmatprep.mubr.f32.mxu0 %v1095
  %1550 = vmatmul.mubr.f32.gmra.mrb[0].mxu0 %v1093
  %v1551 = vpop.f32.mrb[0].mxu0
  %v1552 = vadd.f32 %v1482, %v1551
  %v1553 = vpop.f32.mrb[0].mxu0
  %1554 = vdwg.mxu0
  %1555 = vmatprep.subr.mxu0 0.0
  %1556 = vmatpush1.msra.mxu0 %v96
  %1557 = vmatprep.subr.mxu0 0.0
  %1558 = vmatpush1.msra.mxu0 %v97
  %1559 = vmatprep.subr.mxu0 0.0
  %1560 = vmatpush1.msra.mxu0 %v98
  %1561 = vmatprep.subr.mxu0 0.0
  %1562 = vmatpush1.msra.mxu0 %v99
  %1563 = vmatprep.subr.mxu0 0.0
  %1564 = vmatpush1.msra.mxu0 %v100
  %1565 = vmatprep.subr.mxu0 0.0
  %1566 = vmatpush1.msra.mxu0 %v101
  %1567 = vmatprep.subr.mxu0 0.0
  %1568 = vmatpush1.msra.mxu0 %v102
  %1569 = vmatprep.subr.mxu0 0.0
  %1570 = vmatpush1.msra.mxu0 %v103
  %1571 = vmatprep.subr.mxu0 0.0
  %1572 = vmatpush1.msra.mxu0 %v104
  %1573 = vmatprep.subr.mxu0 0.0
  %1574 = vmatpush1.msra.mxu0 %v105
  %1575 = vmatprep.subr.mxu0 0.0
  %1576 = vmatpush1.msra.mxu0 %v106
  %1577 = vmatprep.subr.mxu0 0.0
  %1578 = vmatpush1.msra.mxu0 %v107
  %1579 = vmatprep.subr.mxu0 0.0
  %1580 = vmatpush1.msra.mxu0 %v108
  %1581 = vmatprep.subr.mxu0 0.0
  %1582 = vmatpush1.msra.mxu0 %v109
  %1583 = vmatprep.subr.mxu0 0.0
  %1584 = vmatpush1.msra.mxu0 %v110
  %1585 = vmatprep.subr.mxu0 0.0
  %1586 = vmatpush1.msra.mxu0 %v111
  %1587 = vmatprep.subr.mxu0 0.0
  %1588 = vmatpush1.msra.mxu0 %v112
  %1589 = vmatprep.subr.mxu0 0.0
  %1590 = vmatpush1.msra.mxu0 %v113
  %1591 = vmatprep.subr.mxu0 0.0
  %1592 = vmatpush1.msra.mxu0 %v114
  %1593 = vmatprep.subr.mxu0 0.0
  %1594 = vmatpush1.msra.mxu0 %v115
  %1595 = vmatprep.subr.mxu0 0.0
  %1596 = vmatpush1.msra.mxu0 %v116
  %1597 = vmatprep.subr.mxu0 0.0
  %1598 = vmatpush1.msra.mxu0 %v117
  %1599 = vmatprep.subr.mxu0 0.0
  %1600 = vmatpush1.msra.mxu0 %v118
  %1601 = vmatprep.subr.mxu0 0.0
  %1602 = vmatpush1.msra.mxu0 %v119
  %1603 = vmatprep.subr.mxu0 0.0
  %1604 = vmatpush1.msra.mxu0 %v120
  %1605 = vmatprep.subr.mxu0 0.0
  %1606 = vmatpush1.msra.mxu0 %v121
  %1607 = vmatprep.subr.mxu0 0.0
  %1608 = vmatpush1.msra.mxu0 %v122
  %1609 = vmatprep.subr.mxu0 0.0
  %1610 = vmatpush1.msra.mxu0 %v123
  %1611 = vmatprep.subr.mxu0 0.0
  %1612 = vmatpush1.msra.mxu0 %v124
  %1613 = vmatprep.subr.mxu0 0.0
  %1614 = vmatpush1.msra.mxu0 %v125
  %1615 = vmatprep.subr.mxu0 0.0
  %1616 = vmatpush1.msra.mxu0 %v126
  %1617 = vmatprep.subr.mxu0 0.0
  %1618 = vmatpush1.msra.mxu0 %v127
  %1619 = vmatprep.mubr.f32.mxu0 %v1111
  %1620 = vmatmul.mubr.f32.gmra.mrb[0].mxu0 %v1103
  %v1621 = vpop.f32.mrb[0].mxu0
  %v1622 = vadd.f32 %v1552, %v1621
  %v1623 = vpop.f32.mrb[0].mxu0
  %1624 = vdwg.mxu0
  %1625 = vmatprep.subr.mxu0 0.0
  %1626 = vmatpush1.msra.mxu0 %v128
  %1627 = vmatprep.subr.mxu0 0.0
  %1628 = vmatpush1.msra.mxu0 %v129
  %1629 = vmatprep.subr.mxu0 0.0
  %1630 = vmatpush1.msra.mxu0 %v130
  %1631 = vmatprep.subr.mxu0 0.0
  %1632 = vmatpush1.msra.mxu0 %v131
  %1633 = vmatprep.subr.mxu0 0.0
  %1634 = vmatpush1.msra.mxu0 %v132
  %1635 = vmatprep.subr.mxu0 0.0
  %1636 = vmatpush1.msra.mxu0 %v133
  %1637 = vmatprep.subr.mxu0 0.0
  %1638 = vmatpush1.msra.mxu0 %v134
  %1639 = vmatprep.subr.mxu0 0.0
  %1640 = vmatpush1.msra.mxu0 %v135
  %1641 = vmatprep.subr.mxu0 0.0
  %1642 = vmatpush1.msra.mxu0 %v136
  %1643 = vmatprep.subr.mxu0 0.0
  %1644 = vmatpush1.msra.mxu0 %v137
  %1645 = vmatprep.subr.mxu0 0.0
  %1646 = vmatpush1.msra.mxu0 %v138
  %1647 = vmatprep.subr.mxu0 0.0
  %1648 = vmatpush1.msra.mxu0 %v139
  %1649 = vmatprep.subr.mxu0 0.0
  %1650 = vmatpush1.msra.mxu0 %v140
  %1651 = vmatprep.subr.mxu0 0.0
  %1652 = vmatpush1.msra.mxu0 %v141
  %1653 = vmatprep.subr.mxu0 0.0
  %1654 = vmatpush1.msra.mxu0 %v142
  %1655 = vmatprep.subr.mxu0 0.0
  %1656 = vmatpush1.msra.mxu0 %v143
  %1657 = vmatprep.subr.mxu0 0.0
  %1658 = vmatpush1.msra.mxu0 %v144
  %1659 = vmatprep.subr.mxu0 0.0
  %1660 = vmatpush1.msra.mxu0 %v145
  %1661 = vmatprep.subr.mxu0 0.0
  %1662 = vmatpush1.msra.mxu0 %v146
  %1663 = vmatprep.subr.mxu0 0.0
  %1664 = vmatpush1.msra.mxu0 %v147
  %1665 = vmatprep.subr.mxu0 0.0
  %1666 = vmatpush1.msra.mxu0 %v148
  %1667 = vmatprep.subr.mxu0 0.0
  %1668 = vmatpush1.msra.mxu0 %v149
  %1669 = vmatprep.subr.mxu0 0.0
  %1670 = vmatpush1.msra.mxu0 %v150
  %1671 = vmatprep.subr.mxu0 0.0
  %1672 = vmatpush1.msra.mxu0 %v151
  %1673 = vmatprep.subr.mxu0 0.0
  %1674 = vmatpush1.msra.mxu0 %v152
  %1675 = vmatprep.subr.mxu0 0.0
  %1676 = vmatpush1.msra.mxu0 %v153
  %1677 = vmatprep.subr.mxu0 0.0
  %1678 = vmatpush1.msra.mxu0 %v154
  %1679 = vmatprep.subr.mxu0 0.0
  %1680 = vmatpush1.msra.mxu0 %v155
  %1681 = vmatprep.subr.mxu0 0.0
  %1682 = vmatpush1.msra.mxu0 %v156
  %1683 = vmatprep.subr.mxu0 0.0
  %1684 = vmatpush1.msra.mxu0 %v157
  %1685 = vmatprep.subr.mxu0 0.0
  %1686 = vmatpush1.msra.mxu0 %v158
  %1687 = vmatprep.subr.mxu0 0.0
  %1688 = vmatpush1.msra.mxu0 %v159
  %1689 = vmatprep.mubr.f32.mxu0 %v1112
  %1690 = vmatmul.mubr.f32.gmra.mrb[0].mxu0 %v1110
  %v1691 = vpop.f32.mrb[0].mxu0
  %v1692 = vadd.f32 %v1622, %v1691
  %v1693 = vpop.f32.mrb[0].mxu0
  %1694 = vdwg.mxu0
  %1695 = vmatprep.subr.mxu0 0.0
  %1696 = vmatpush1.msra.mxu0 %v160
  %1697 = vmatprep.subr.mxu0 0.0
  %1698 = vmatpush1.msra.mxu0 %v161
  %1699 = vmatprep.subr.mxu0 0.0
  %1700 = vmatpush1.msra.mxu0 %v162
  %1701 = vmatprep.subr.mxu0 0.0
  %1702 = vmatpush1.msra.mxu0 %v163
  %1703 = vmatprep.subr.mxu0 0.0
  %1704 = vmatpush1.msra.mxu0 %v164
  %1705 = vmatprep.subr.mxu0 0.0
  %1706 = vmatpush1.msra.mxu0 %v165
  %1707 = vmatprep.subr.mxu0 0.0
  %1708 = vmatpush1.msra.mxu0 %v166
  %1709 = vmatprep.subr.mxu0 0.0
  %1710 = vmatpush1.msra.mxu0 %v167
  %1711 = vmatprep.subr.mxu0 0.0
  %1712 = vmatpush1.msra.mxu0 %v168
  %1713 = vmatprep.subr.mxu0 0.0
  %1714 = vmatpush1.msra.mxu0 %v169
  %1715 = vmatprep.subr.mxu0 0.0
  %1716 = vmatpush1.msra.mxu0 %v170
  %1717 = vmatprep.subr.mxu0 0.0
  %1718 = vmatpush1.msra.mxu0 %v171
  %1719 = vmatprep.subr.mxu0 0.0
  %1720 = vmatpush1.msra.mxu0 %v172
  %1721 = vmatprep.subr.mxu0 0.0
  %1722 = vmatpush1.msra.mxu0 %v173
  %1723 = vmatprep.subr.mxu0 0.0
  %1724 = vmatpush1.msra.mxu0 %v174
  %1725 = vmatprep.subr.mxu0 0.0
  %1726 = vmatpush1.msra.mxu0 %v175
  %1727 = vmatprep.subr.mxu0 0.0
  %1728 = vmatpush1.msra.mxu0 %v176
  %1729 = vmatprep.subr.mxu0 0.0
  %1730 = vmatpush1.msra.mxu0 %v177
  %1731 = vmatprep.subr.mxu0 0.0
  %1732 = vmatpush1.msra.mxu0 %v178
  %1733 = vmatprep.subr.mxu0 0.0
  %1734 = vmatpush1.msra.mxu0 %v179
  %1735 = vmatprep.subr.mxu0 0.0
  %1736 = vmatpush1.msra.mxu0 %v180
  %1737 = vmatprep.subr.mxu0 0.0
  %1738 = vmatpush1.msra.mxu0 %v181
  %1739 = vmatprep.subr.mxu0 0.0
  %1740 = vmatpush1.msra.mxu0 %v182
  %1741 = vmatprep.subr.mxu0 0.0
  %1742 = vmatpush1.msra.mxu0 %v183
  %1743 = vmatprep.subr.mxu0 0.0
  %1744 = vmatpush1.msra.mxu0 %v184
  %1745 = vmatprep.subr.mxu0 0.0
  %1746 = vmatpush1.msra.mxu0 %v185
  %1747 = vmatprep.subr.mxu0 0.0
  %1748 = vmatpush1.msra.mxu0 %v186
  %1749 = vmatprep.subr.mxu0 0.0
  %1750 = vmatpush1.msra.mxu0 %v187
  %1751 = vmatprep.subr.mxu0 0.0
  %1752 = vmatpush1.msra.mxu0 %v188
  %1753 = vmatprep.subr.mxu0 0.0
  %1754 = vmatpush1.msra.mxu0 %v189
  %1755 = vmatprep.subr.mxu0 0.0
  %1756 = vmatpush1.msra.mxu0 %v190
  %1757 = vmatprep.subr.mxu0 0.0
  %1758 = vmatpush1.msra.mxu0 %v191
  %1759 = vmatprep.mubr.f32.mxu0 %v1128
  %1760 = vmatmul.mubr.f32.gmra.mrb[0].mxu0 %v1120
  %v1761 = vpop.f32.mrb[0].mxu0
  %v1762 = vadd.f32 %v1692, %v1761
  %v1763 = vpop.f32.mrb[0].mxu0
  %1764 = vdwg.mxu0
  %1765 = vmatprep.subr.mxu0 0.0
  %1766 = vmatpush1.msra.mxu0 %v192
  %1767 = vmatprep.subr.mxu0 0.0
  %1768 = vmatpush1.msra.mxu0 %v193
  %1769 = vmatprep.subr.mxu0 0.0
  %1770 = vmatpush1.msra.mxu0 %v194
  %1771 = vmatprep.subr.mxu0 0.0
  %1772 = vmatpush1.msra.mxu0 %v195
  %1773 = vmatprep.subr.mxu0 0.0
  %1774 = vmatpush1.msra.mxu0 %v196
  %1775 = vmatprep.subr.mxu0 0.0
  %1776 = vmatpush1.msra.mxu0 %v197
  %1777 = vmatprep.subr.mxu0 0.0
  %1778 = vmatpush1.msra.mxu0 %v198
  %1779 = vmatprep.subr.mxu0 0.0
  %1780 = vmatpush1.msra.mxu0 %v199
  %1781 = vmatprep.subr.mxu0 0.0
  %1782 = vmatpush1.msra.mxu0 %v200
  %1783 = vmatprep.subr.mxu0 0.0
  %1784 = vmatpush1.msra.mxu0 %v201
  %1785 = vmatprep.subr.mxu0 0.0
  %1786 = vmatpush1.msra.mxu0 %v202
  %1787 = vmatprep.subr.mxu0 0.0
  %1788 = vmatpush1.msra.mxu0 %v203
  %1789 = vmatprep.subr.mxu0 0.0
  %1790 = vmatpush1.msra.mxu0 %v204
  %1791 = vmatprep.subr.mxu0 0.0
  %1792 = vmatpush1.msra.mxu0 %v205
  %1793 = vmatprep.subr.mxu0 0.0
  %1794 = vmatpush1.msra.mxu0 %v206
  %1795 = vmatprep.subr.mxu0 0.0
  %1796 = vmatpush1.msra.mxu0 %v207
  %1797 = vmatprep.subr.mxu0 0.0
  %1798 = vmatpush1.msra.mxu0 %v208
  %1799 = vmatprep.subr.mxu0 0.0
  %1800 = vmatpush1.msra.mxu0 %v209
  %1801 = vmatprep.subr.mxu0 0.0
  %1802 = vmatpush1.msra.mxu0 %v210
  %1803 = vmatprep.subr.mxu0 0.0
  %1804 = vmatpush1.msra.mxu0 %v211
  %1805 = vmatprep.subr.mxu0 0.0
  %1806 = vmatpush1.msra.mxu0 %v212
  %1807 = vmatprep.subr.mxu0 0.0
  %1808 = vmatpush1.msra.mxu0 %v213
  %1809 = vmatprep.subr.mxu0 0.0
  %1810 = vmatpush1.msra.mxu0 %v214
  %1811 = vmatprep.subr.mxu0 0.0
  %1812 = vmatpush1.msra.mxu0 %v215
  %1813 = vmatprep.subr.mxu0 0.0
  %1814 = vmatpush1.msra.mxu0 %v216
  %1815 = vmatprep.subr.mxu0 0.0
  %1816 = vmatpush1.msra.mxu0 %v217
  %1817 = vmatprep.subr.mxu0 0.0
  %1818 = vmatpush1.msra.mxu0 %v218
  %1819 = vmatprep.subr.mxu0 0.0
  %1820 = vmatpush1.msra.mxu0 %v219
  %1821 = vmatprep.subr.mxu0 0.0
  %1822 = vmatpush1.msra.mxu0 %v220
  %1823 = vmatprep.subr.mxu0 0.0
  %1824 = vmatpush1.msra.mxu0 %v221
  %1825 = vmatprep.subr.mxu0 0.0
  %1826 = vmatpush1.msra.mxu0 %v222
  %1827 = vmatprep.subr.mxu0 0.0
  %1828 = vmatpush1.msra.mxu0 %v223
  %1829 = vmatprep.mubr.f32.mxu0 %v1129
  %1830 = vmatmul.mubr.f32.gmra.mrb[0].mxu0 %v1127
  %v1831 = vpop.f32.mrb[0].mxu0
  %v1832 = vadd.f32 %v1762, %v1831
  %v1833 = vpop.f32.mrb[0].mxu0
  %1834 = vdwg.mxu0
  %1835 = vmatprep.subr.mxu0 0.0
  %1836 = vmatpush1.msra.mxu0 %v224
  %1837 = vmatprep.subr.mxu0 0.0
  %1838 = vmatpush1.msra.mxu0 %v225
  %1839 = vmatprep.subr.mxu0 0.0
  %1840 = vmatpush1.msra.mxu0 %v226
  %1841 = vmatprep.subr.mxu0 0.0
  %1842 = vmatpush1.msra.mxu0 %v227
  %1843 = vmatprep.subr.mxu0 0.0
  %1844 = vmatpush1.msra.mxu0 %v228
  %1845 = vmatprep.subr.mxu0 0.0
  %1846 = vmatpush1.msra.mxu0 %v229
  %1847 = vmatprep.subr.mxu0 0.0
  %1848 = vmatpush1.msra.mxu0 %v230
  %1849 = vmatprep.subr.mxu0 0.0
  %1850 = vmatpush1.msra.mxu0 %v231
  %1851 = vmatprep.subr.mxu0 0.0
  %1852 = vmatpush1.msra.mxu0 %v232
  %1853 = vmatprep.subr.mxu0 0.0
  %1854 = vmatpush1.msra.mxu0 %v233
  %1855 = vmatprep.subr.mxu0 0.0
  %1856 = vmatpush1.msra.mxu0 %v234
  %1857 = vmatprep.subr.mxu0 0.0
  %1858 = vmatpush1.msra.mxu0 %v235
  %1859 = vmatprep.subr.mxu0 0.0
  %1860 = vmatpush1.msra.mxu0 %v236
  %1861 = vmatprep.subr.mxu0 0.0
  %1862 = vmatpush1.msra.mxu0 %v237
  %1863 = vmatprep.subr.mxu0 0.0
  %1864 = vmatpush1.msra.mxu0 %v238
  %1865 = vmatprep.subr.mxu0 0.0
  %1866 = vmatpush1.msra.mxu0 %v239
  %1867 = vmatprep.subr.mxu0 0.0
  %1868 = vmatpush1.msra.mxu0 %v240
  %1869 = vmatprep.subr.mxu0 0.0
  %1870 = vmatpush1.msra.mxu0 %v241
  %1871 = vmatprep.subr.mxu0 0.0
  %1872 = vmatpush1.msra.mxu0 %v242
  %1873 = vmatprep.subr.mxu0 0.0
  %1874 = vmatpush1.msra.mxu0 %v243
  %1875 = vmatprep.subr.mxu0 0.0
  %1876 = vmatpush1.msra.mxu0 %v244
  %1877 = vmatprep.subr.mxu0 0.0
  %1878 = vmatpush1.msra.mxu0 %v245
  %1879 = vmatprep.subr.mxu0 0.0
  %1880 = vmatpush1.msra.mxu0 %v246
  %1881 = vmatprep.subr.mxu0 0.0
  %1882 = vmatpush1.msra.mxu0 %v247
  %1883 = vmatprep.subr.mxu0 0.0
  %1884 = vmatpush1.msra.mxu0 %v248
  %1885 = vmatprep.subr.mxu0 0.0
  %1886 = vmatpush1.msra.mxu0 %v249
  %1887 = vmatprep.subr.mxu0 0.0
  %1888 = vmatpush1.msra.mxu0 %v250
  %1889 = vmatprep.subr.mxu0 0.0
  %1890 = vmatpush1.msra.mxu0 %v251
  %1891 = vmatprep.subr.mxu0 0.0
  %1892 = vmatpush1.msra.mxu0 %v252
  %1893 = vmatprep.subr.mxu0 0.0
  %1894 = vmatpush1.msra.mxu0 %v253
  %1895 = vmatprep.subr.mxu0 0.0
  %1896 = vmatpush1.msra.mxu0 %v254
  %1897 = vmatprep.subr.mxu0 0.0
  %1898 = vmatpush1.msra.mxu0 %v255
  %1899 = vmatprep.mubr.f32.mxu0 %v1145
  %1900 = vmatmul.mubr.f32.gmra.mrb[0].mxu0 %v1137
  %v1901 = vpop.f32.mrb[0].mxu0
  %v1902 = vadd.f32 %v1832, %v1901
  %v1903 = vpop.f32.mrb[0].mxu0
  %1904 = vdwg.mxu0
  %1905 = vmatprep.subr.mxu0 0.0
  %1906 = vmatpush1.msra.mxu0 %v256
  %1907 = vmatprep.subr.mxu0 0.0
  %1908 = vmatpush1.msra.mxu0 %v257
  %1909 = vmatprep.subr.mxu0 0.0
  %1910 = vmatpush1.msra.mxu0 %v258
  %1911 = vmatprep.subr.mxu0 0.0
  %1912 = vmatpush1.msra.mxu0 %v259
  %1913 = vmatprep.subr.mxu0 0.0
  %1914 = vmatpush1.msra.mxu0 %v260
  %1915 = vmatprep.subr.mxu0 0.0
  %1916 = vmatpush1.msra.mxu0 %v261
  %1917 = vmatprep.subr.mxu0 0.0
  %1918 = vmatpush1.msra.mxu0 %v262
  %1919 = vmatprep.subr.mxu0 0.0
  %1920 = vmatpush1.msra.mxu0 %v263
  %1921 = vmatprep.subr.mxu0 0.0
  %1922 = vmatpush1.msra.mxu0 %v264
  %1923 = vmatprep.subr.mxu0 0.0
  %1924 = vmatpush1.msra.mxu0 %v265
  %1925 = vmatprep.subr.mxu0 0.0
  %1926 = vmatpush1.msra.mxu0 %v266
  %1927 = vmatprep.subr.mxu0 0.0
  %1928 = vmatpush1.msra.mxu0 %v267
  %1929 = vmatprep.subr.mxu0 0.0
  %1930 = vmatpush1.msra.mxu0 %v268
  %1931 = vmatprep.subr.mxu0 0.0
  %1932 = vmatpush1.msra.mxu0 %v269
  %1933 = vmatprep.subr.mxu0 0.0
  %1934 = vmatpush1.msra.mxu0 %v270
  %1935 = vmatprep.subr.mxu0 0.0
  %1936 = vmatpush1.msra.mxu0 %v271
  %1937 = vmatprep.subr.mxu0 0.0
  %1938 = vmatpush1.msra.mxu0 %v272
  %1939 = vmatprep.subr.mxu0 0.0
  %1940 = vmatpush1.msra.mxu0 %v273
  %1941 = vmatprep.subr.mxu0 0.0
  %1942 = vmatpush1.msra.mxu0 %v274
  %1943 = vmatprep.subr.mxu0 0.0
  %1944 = vmatpush1.msra.mxu0 %v275
  %1945 = vmatprep.subr.mxu0 0.0
  %1946 = vmatpush1.msra.mxu0 %v276
  %1947 = vmatprep.subr.mxu0 0.0
  %1948 = vmatpush1.msra.mxu0 %v277
  %1949 = vmatprep.subr.mxu0 0.0
  %1950 = vmatpush1.msra.mxu0 %v278
  %1951 = vmatprep.subr.mxu0 0.0
  %1952 = vmatpush1.msra.mxu0 %v279
  %1953 = vmatprep.subr.mxu0 0.0
  %1954 = vmatpush1.msra.mxu0 %v280
  %1955 = vmatprep.subr.mxu0 0.0
  %1956 = vmatpush1.msra.mxu0 %v281
  %1957 = vmatprep.subr.mxu0 0.0
  %1958 = vmatpush1.msra.mxu0 %v282
  %1959 = vmatprep.subr.mxu0 0.0
  %1960 = vmatpush1.msra.mxu0 %v283
  %1961 = vmatprep.subr.mxu0 0.0
  %1962 = vmatpush1.msra.mxu0 %v284
  %1963 = vmatprep.subr.mxu0 0.0
  %1964 = vmatpush1.msra.mxu0 %v285
  %1965 = vmatprep.subr.mxu0 0.0
  %1966 = vmatpush1.msra.mxu0 %v286
  %1967 = vmatprep.subr.mxu0 0.0
  %1968 = vmatpush1.msra.mxu0 %v287
  %1969 = vmatprep.mubr.f32.mxu0 %v1146
  %1970 = vmatmul.mubr.f32.gmra.mrb[0].mxu0 %v1144
  %v1971 = vpop.f32.mrb[0].mxu0
  %v1972 = vadd.f32 %v1902, %v1971
  %v1973 = vpop.f32.mrb[0].mxu0
  %1974 = vdwg.mxu0
  %1975 = vmatprep.subr.mxu0 0.0
  %1976 = vmatpush1.msra.mxu0 %v288
  %1977 = vmatprep.subr.mxu0 0.0
  %1978 = vmatpush1.msra.mxu0 %v289
  %1979 = vmatprep.subr.mxu0 0.0
  %1980 = vmatpush1.msra.mxu0 %v290
  %1981 = vmatprep.subr.mxu0 0.0
  %1982 = vmatpush1.msra.mxu0 %v291
  %1983 = vmatprep.subr.mxu0 0.0
  %1984 = vmatpush1.msra.mxu0 %v292
  %1985 = vmatprep.subr.mxu0 0.0
  %1986 = vmatpush1.msra.mxu0 %v293
  %1987 = vmatprep.subr.mxu0 0.0
  %1988 = vmatpush1.msra.mxu0 %v294
  %1989 = vmatprep.subr.mxu0 0.0
  %1990 = vmatpush1.msra.mxu0 %v295
  %1991 = vmatprep.subr.mxu0 0.0
  %1992 = vmatpush1.msra.mxu0 %v296
  %1993 = vmatprep.subr.mxu0 0.0
  %1994 = vmatpush1.msra.mxu0 %v297
  %1995 = vmatprep.subr.mxu0 0.0
  %1996 = vmatpush1.msra.mxu0 %v298
  %1997 = vmatprep.subr.mxu0 0.0
  %1998 = vmatpush1.msra.mxu0 %v299
  %1999 = vmatprep.subr.mxu0 0.0
  %2000 = vmatpush1.msra.mxu0 %v300
  %2001 = vmatprep.subr.mxu0 0.0
  %2002 = vmatpush1.msra.mxu0 %v301
  %2003 = vmatprep.subr.mxu0 0.0
  %2004 = vmatpush1.msra.mxu0 %v302
  %2005 = vmatprep.subr.mxu0 0.0
  %2006 = vmatpush1.msra.mxu0 %v303
  %2007 = vmatprep.subr.mxu0 0.0
  %2008 = vmatpush1.msra.mxu0 %v304
  %2009 = vmatprep.subr.mxu0 0.0
  %2010 = vmatpush1.msra.mxu0 %v305
  %2011 = vmatprep.subr.mxu0 0.0
  %2012 = vmatpush1.msra.mxu0 %v306
  %2013 = vmatprep.subr.mxu0 0.0
  %2014 = vmatpush1.msra.mxu0 %v307
  %2015 = vmatprep.subr.mxu0 0.0
  %2016 = vmatpush1.msra.mxu0 %v308
  %2017 = vmatprep.subr.mxu0 0.0
  %2018 = vmatpush1.msra.mxu0 %v309
  %2019 = vmatprep.subr.mxu0 0.0
  %2020 = vmatpush1.msra.mxu0 %v310
  %2021 = vmatprep.subr.mxu0 0.0
  %2022 = vmatpush1.msra.mxu0 %v311
  %2023 = vmatprep.subr.mxu0 0.0
  %2024 = vmatpush1.msra.mxu0 %v312
  %2025 = vmatprep.subr.mxu0 0.0
  %2026 = vmatpush1.msra.mxu0 %v313
  %2027 = vmatprep.subr.mxu0 0.0
  %2028 = vmatpush1.msra.mxu0 %v314
  %2029 = vmatprep.subr.mxu0 0.0
  %2030 = vmatpush1.msra.mxu0 %v315
  %2031 = vmatprep.subr.mxu0 0.0
  %2032 = vmatpush1.msra.mxu0 %v316
  %2033 = vmatprep.subr.mxu0 0.0
  %2034 = vmatpush1.msra.mxu0 %v317
  %2035 = vmatprep.subr.mxu0 0.0
  %2036 = vmatpush1.msra.mxu0 %v318
  %2037 = vmatprep.subr.mxu0 0.0
  %2038 = vmatpush1.msra.mxu0 %v319
  %2039 = vmatprep.mubr.f32.mxu0 %v1162
  %2040 = vmatmul.mubr.f32.gmra.mrb[0].mxu0 %v1154
  %v2041 = vpop.f32.mrb[0].mxu0
  %v2042 = vadd.f32 %v1972, %v2041
  %v2043 = vpop.f32.mrb[0].mxu0
  %2044 = vdwg.mxu0
  %2045 = vmatprep.subr.mxu0 0.0
  %2046 = vmatpush1.msra.mxu0 %v320
  %2047 = vmatprep.subr.mxu0 0.0
  %2048 = vmatpush1.msra.mxu0 %v321
  %2049 = vmatprep.subr.mxu0 0.0
  %2050 = vmatpush1.msra.mxu0 %v322
  %2051 = vmatprep.subr.mxu0 0.0
  %2052 = vmatpush1.msra.mxu0 %v323
  %2053 = vmatprep.subr.mxu0 0.0
  %2054 = vmatpush1.msra.mxu0 %v324
  %2055 = vmatprep.subr.mxu0 0.0
  %2056 = vmatpush1.msra.mxu0 %v325
  %2057 = vmatprep.subr.mxu0 0.0
  %2058 = vmatpush1.msra.mxu0 %v326
  %2059 = vmatprep.subr.mxu0 0.0
  %2060 = vmatpush1.msra.mxu0 %v327
  %2061 = vmatprep.subr.mxu0 0.0
  %2062 = vmatpush1.msra.mxu0 %v328
  %2063 = vmatprep.subr.mxu0 0.0
  %2064 = vmatpush1.msra.mxu0 %v329
  %2065 = vmatprep.subr.mxu0 0.0
  %2066 = vmatpush1.msra.mxu0 %v330
  %2067 = vmatprep.subr.mxu0 0.0
  %2068 = vmatpush1.msra.mxu0 %v331
  %2069 = vmatprep.subr.mxu0 0.0
  %2070 = vmatpush1.msra.mxu0 %v332
  %2071 = vmatprep.subr.mxu0 0.0
  %2072 = vmatpush1.msra.mxu0 %v333
  %2073 = vmatprep.subr.mxu0 0.0
  %2074 = vmatpush1.msra.mxu0 %v334
  %2075 = vmatprep.subr.mxu0 0.0
  %2076 = vmatpush1.msra.mxu0 %v335
  %2077 = vmatprep.subr.mxu0 0.0
  %2078 = vmatpush1.msra.mxu0 %v336
  %2079 = vmatprep.subr.mxu0 0.0
  %2080 = vmatpush1.msra.mxu0 %v337
  %2081 = vmatprep.subr.mxu0 0.0
  %2082 = vmatpush1.msra.mxu0 %v338
  %2083 = vmatprep.subr.mxu0 0.0
  %2084 = vmatpush1.msra.mxu0 %v339
  %2085 = vmatprep.subr.mxu0 0.0
  %2086 = vmatpush1.msra.mxu0 %v340
  %2087 = vmatprep.subr.mxu0 0.0
  %2088 = vmatpush1.msra.mxu0 %v341
  %2089 = vmatprep.subr.mxu0 0.0
  %2090 = vmatpush1.msra.mxu0 %v342
  %2091 = vmatprep.subr.mxu0 0.0
  %2092 = vmatpush1.msra.mxu0 %v343
  %2093 = vmatprep.subr.mxu0 0.0
  %2094 = vmatpush1.msra.mxu0 %v344
  %2095 = vmatprep.subr.mxu0 0.0
  %2096 = vmatpush1.msra.mxu0 %v345
  %2097 = vmatprep.subr.mxu0 0.0
  %2098 = vmatpush1.msra.mxu0 %v346
  %2099 = vmatprep.subr.mxu0 0.0
  %2100 = vmatpush1.msra.mxu0 %v347
  %2101 = vmatprep.subr.mxu0 0.0
  %2102 = vmatpush1.msra.mxu0 %v348
  %2103 = vmatprep.subr.mxu0 0.0
  %2104 = vmatpush1.msra.mxu0 %v349
  %2105 = vmatprep.subr.mxu0 0.0
  %2106 = vmatpush1.msra.mxu0 %v350
  %2107 = vmatprep.subr.mxu0 0.0
  %2108 = vmatpush1.msra.mxu0 %v351
  %2109 = vmatprep.mubr.f32.mxu0 %v1163
  %2110 = vmatmul.mubr.f32.gmra.mrb[0].mxu0 %v1161
  %v2111 = vpop.f32.mrb[0].mxu0
  %v2112 = vadd.f32 %v2042, %v2111
  %v2113 = vpop.f32.mrb[0].mxu0
  %2114 = vdwg.mxu0
  %2115 = vmatprep.subr.mxu0 0.0
  %2116 = vmatpush1.msra.mxu0 %v352
  %2117 = vmatprep.subr.mxu0 0.0
  %2118 = vmatpush1.msra.mxu0 %v353
  %2119 = vmatprep.subr.mxu0 0.0
  %2120 = vmatpush1.msra.mxu0 %v354
  %2121 = vmatprep.subr.mxu0 0.0
  %2122 = vmatpush1.msra.mxu0 %v355
  %2123 = vmatprep.subr.mxu0 0.0
  %2124 = vmatpush1.msra.mxu0 %v356
  %2125 = vmatprep.subr.mxu0 0.0
  %2126 = vmatpush1.msra.mxu0 %v357
  %2127 = vmatprep.subr.mxu0 0.0
  %2128 = vmatpush1.msra.mxu0 %v358
  %2129 = vmatprep.subr.mxu0 0.0
  %2130 = vmatpush1.msra.mxu0 %v359
  %2131 = vmatprep.subr.mxu0 0.0
  %2132 = vmatpush1.msra.mxu0 %v360
  %2133 = vmatprep.subr.mxu0 0.0
  %2134 = vmatpush1.msra.mxu0 %v361
  %2135 = vmatprep.subr.mxu0 0.0
  %2136 = vmatpush1.msra.mxu0 %v362
  %2137 = vmatprep.subr.mxu0 0.0
  %2138 = vmatpush1.msra.mxu0 %v363
  %2139 = vmatprep.subr.mxu0 0.0
  %2140 = vmatpush1.msra.mxu0 %v364
  %2141 = vmatprep.subr.mxu0 0.0
  %2142 = vmatpush1.msra.mxu0 %v365
  %2143 = vmatprep.subr.mxu0 0.0
  %2144 = vmatpush1.msra.mxu0 %v366
  %2145 = vmatprep.subr.mxu0 0.0
  %2146 = vmatpush1.msra.mxu0 %v367
  %2147 = vmatprep.subr.mxu0 0.0
  %2148 = vmatpush1.msra.mxu0 %v368
  %2149 = vmatprep.subr.mxu0 0.0
  %2150 = vmatpush1.msra.mxu0 %v369
  %2151 = vmatprep.subr.mxu0 0.0
  %2152 = vmatpush1.msra.mxu0 %v370
  %2153 = vmatprep.subr.mxu0 0.0
  %2154 = vmatpush1.msra.mxu0 %v371
  %2155 = vmatprep.subr.mxu0 0.0
  %2156 = vmatpush1.msra.mxu0 %v372
  %2157 = vmatprep.subr.mxu0 0.0
  %2158 = vmatpush1.msra.mxu0 %v373
  %2159 = vmatprep.subr.mxu0 0.0
  %2160 = vmatpush1.msra.mxu0 %v374
  %2161 = vmatprep.subr.mxu0 0.0
  %2162 = vmatpush1.msra.mxu0 %v375
  %2163 = vmatprep.subr.mxu0 0.0
  %2164 = vmatpush1.msra.mxu0 %v376
  %2165 = vmatprep.subr.mxu0 0.0
  %2166 = vmatpush1.msra.mxu0 %v377
  %2167 = vmatprep.subr.mxu0 0.0
  %2168 = vmatpush1.msra.mxu0 %v378
  %2169 = vmatprep.subr.mxu0 0.0
  %2170 = vmatpush1.msra.mxu0 %v379
  %2171 = vmatprep.subr.mxu0 0.0
  %2172 = vmatpush1.msra.mxu0 %v380
  %2173 = vmatprep.subr.mxu0 0.0
  %2174 = vmatpush1.msra.mxu0 %v381
  %2175 = vmatprep.subr.mxu0 0.0
  %2176 = vmatpush1.msra.mxu0 %v382
  %2177 = vmatprep.subr.mxu0 0.0
  %2178 = vmatpush1.msra.mxu0 %v383
  %2179 = vmatprep.mubr.f32.mxu0 %v1179
  %2180 = vmatmul.mubr.f32.gmra.mrb[0].mxu0 %v1171
  %v2181 = vpop.f32.mrb[0].mxu0
  %v2182 = vadd.f32 %v2112, %v2181
  %v2183 = vpop.f32.mrb[0].mxu0
  %2184 = vdwg.mxu0
  %2185 = vmatprep.subr.mxu0 0.0
  %2186 = vmatpush1.msra.mxu0 %v384
  %2187 = vmatprep.subr.mxu0 0.0
  %2188 = vmatpush1.msra.mxu0 %v385
  %2189 = vmatprep.subr.mxu0 0.0
  %2190 = vmatpush1.msra.mxu0 %v386
  %2191 = vmatprep.subr.mxu0 0.0
  %2192 = vmatpush1.msra.mxu0 %v387
  %2193 = vmatprep.subr.mxu0 0.0
  %2194 = vmatpush1.msra.mxu0 %v388
  %2195 = vmatprep.subr.mxu0 0.0
  %2196 = vmatpush1.msra.mxu0 %v389
  %2197 = vmatprep.subr.mxu0 0.0
  %2198 = vmatpush1.msra.mxu0 %v390
  %2199 = vmatprep.subr.mxu0 0.0
  %2200 = vmatpush1.msra.mxu0 %v391
  %2201 = vmatprep.subr.mxu0 0.0
  %2202 = vmatpush1.msra.mxu0 %v392
  %2203 = vmatprep.subr.mxu0 0.0
  %2204 = vmatpush1.msra.mxu0 %v393
  %2205 = vmatprep.subr.mxu0 0.0
  %2206 = vmatpush1.msra.mxu0 %v394
  %2207 = vmatprep.subr.mxu0 0.0
  %2208 = vmatpush1.msra.mxu0 %v395
  %2209 = vmatprep.subr.mxu0 0.0
  %2210 = vmatpush1.msra.mxu0 %v396
  %2211 = vmatprep.subr.mxu0 0.0
  %2212 = vmatpush1.msra.mxu0 %v397
  %2213 = vmatprep.subr.mxu0 0.0
  %2214 = vmatpush1.msra.mxu0 %v398
  %2215 = vmatprep.subr.mxu0 0.0
  %2216 = vmatpush1.msra.mxu0 %v399
  %2217 = vmatprep.subr.mxu0 0.0
  %2218 = vmatpush1.msra.mxu0 %v400
  %2219 = vmatprep.subr.mxu0 0.0
  %2220 = vmatpush1.msra.mxu0 %v401
  %2221 = vmatprep.subr.mxu0 0.0
  %2222 = vmatpush1.msra.mxu0 %v402
  %2223 = vmatprep.subr.mxu0 0.0
  %2224 = vmatpush1.msra.mxu0 %v403
  %2225 = vmatprep.subr.mxu0 0.0
  %2226 = vmatpush1.msra.mxu0 %v404
  %2227 = vmatprep.subr.mxu0 0.0
  %2228 = vmatpush1.msra.mxu0 %v405
  %2229 = vmatprep.subr.mxu0 0.0
  %2230 = vmatpush1.msra.mxu0 %v406
  %2231 = vmatprep.subr.mxu0 0.0
  %2232 = vmatpush1.msra.mxu0 %v407
  %2233 = vmatprep.subr.mxu0 0.0
  %2234 = vmatpush1.msra.mxu0 %v408
  %2235 = vmatprep.subr.mxu0 0.0
  %2236 = vmatpush1.msra.mxu0 %v409
  %2237 = vmatprep.subr.mxu0 0.0
  %2238 = vmatpush1.msra.mxu0 %v410
  %2239 = vmatprep.subr.mxu0 0.0
  %2240 = vmatpush1.msra.mxu0 %v411
  %2241 = vmatprep.subr.mxu0 0.0
  %2242 = vmatpush1.msra.mxu0 %v412
  %2243 = vmatprep.subr.mxu0 0.0
  %2244 = vmatpush1.msra.mxu0 %v413
  %2245 = vmatprep.subr.mxu0 0.0
  %2246 = vmatpush1.msra.mxu0 %v414
  %2247 = vmatprep.subr.mxu0 0.0
  %2248 = vmatpush1.msra.mxu0 %v415
  %2249 = vmatprep.mubr.f32.mxu0 %v1180
  %2250 = vmatmul.mubr.f32.gmra.mrb[0].mxu0 %v1178
  %v2251 = vpop.f32.mrb[0].mxu0
  %v2252 = vadd.f32 %v2182, %v2251
  %v2253 = vpop.f32.mrb[0].mxu0
  %2254 = vdwg.mxu0
  %2255 = vmatprep.subr.mxu0 0.0
  %2256 = vmatpush1.msra.mxu0 %v416
  %2257 = vmatprep.subr.mxu0 0.0
  %2258 = vmatpush1.msra.mxu0 %v417
  %2259 = vmatprep.subr.mxu0 0.0
  %2260 = vmatpush1.msra.mxu0 %v418
  %2261 = vmatprep.subr.mxu0 0.0
  %2262 = vmatpush1.msra.mxu0 %v419
  %2263 = vmatprep.subr.mxu0 0.0
  %2264 = vmatpush1.msra.mxu0 %v420
  %2265 = vmatprep.subr.mxu0 0.0
  %2266 = vmatpush1.msra.mxu0 %v421
  %2267 = vmatprep.subr.mxu0 0.0
  %2268 = vmatpush1.msra.mxu0 %v422
  %2269 = vmatprep.subr.mxu0 0.0
  %2270 = vmatpush1.msra.mxu0 %v423
  %2271 = vmatprep.subr.mxu0 0.0
  %2272 = vmatpush1.msra.mxu0 %v424
  %2273 = vmatprep.subr.mxu0 0.0
  %2274 = vmatpush1.msra.mxu0 %v425
  %2275 = vmatprep.subr.mxu0 0.0
  %2276 = vmatpush1.msra.mxu0 %v426
  %2277 = vmatprep.subr.mxu0 0.0
  %2278 = vmatpush1.msra.mxu0 %v427
  %2279 = vmatprep.subr.mxu0 0.0
  %2280 = vmatpush1.msra.mxu0 %v428
  %2281 = vmatprep.subr.mxu0 0.0
  %2282 = vmatpush1.msra.mxu0 %v429
  %2283 = vmatprep.subr.mxu0 0.0
  %2284 = vmatpush1.msra.mxu0 %v430
  %2285 = vmatprep.subr.mxu0 0.0
  %2286 = vmatpush1.msra.mxu0 %v431
  %2287 = vmatprep.subr.mxu0 0.0
  %2288 = vmatpush1.msra.mxu0 %v432
  %2289 = vmatprep.subr.mxu0 0.0
  %2290 = vmatpush1.msra.mxu0 %v433
  %2291 = vmatprep.subr.mxu0 0.0
  %2292 = vmatpush1.msra.mxu0 %v434
  %2293 = vmatprep.subr.mxu0 0.0
  %2294 = vmatpush1.msra.mxu0 %v435
  %2295 = vmatprep.subr.mxu0 0.0
  %2296 = vmatpush1.msra.mxu0 %v436
  %2297 = vmatprep.subr.mxu0 0.0
  %2298 = vmatpush1.msra.mxu0 %v437
  %2299 = vmatprep.subr.mxu0 0.0
  %2300 = vmatpush1.msra.mxu0 %v438
  %2301 = vmatprep.subr.mxu0 0.0
  %2302 = vmatpush1.msra.mxu0 %v439
  %2303 = vmatprep.subr.mxu0 0.0
  %2304 = vmatpush1.msra.mxu0 %v440
  %2305 = vmatprep.subr.mxu0 0.0
  %2306 = vmatpush1.msra.mxu0 %v441
  %2307 = vmatprep.subr.mxu0 0.0
  %2308 = vmatpush1.msra.mxu0 %v442
  %2309 = vmatprep.subr.mxu0 0.0
  %2310 = vmatpush1.msra.mxu0 %v443
  %2311 = vmatprep.subr.mxu0 0.0
  %2312 = vmatpush1.msra.mxu0 %v444
  %2313 = vmatprep.subr.mxu0 0.0
  %2314 = vmatpush1.msra.mxu0 %v445
  %2315 = vmatprep.subr.mxu0 0.0
  %2316 = vmatpush1.msra.mxu0 %v446
  %2317 = vmatprep.subr.mxu0 0.0
  %2318 = vmatpush1.msra.mxu0 %v447
  %2319 = vmatprep.mubr.f32.mxu0 %v1196
  %2320 = vmatmul.mubr.f32.gmra.mrb[0].mxu0 %v1188
  %v2321 = vpop.f32.mrb[0].mxu0
  %v2322 = vadd.f32 %v2252, %v2321
  %v2323 = vpop.f32.mrb[0].mxu0
  %2324 = vdwg.mxu0
  %2325 = vmatprep.subr.mxu0 0.0
  %2326 = vmatpush1.msra.mxu0 %v448
  %2327 = vmatprep.subr.mxu0 0.0
  %2328 = vmatpush1.msra.mxu0 %v449
  %2329 = vmatprep.subr.mxu0 0.0
  %2330 = vmatpush1.msra.mxu0 %v450
  %2331 = vmatprep.subr.mxu0 0.0
  %2332 = vmatpush1.msra.mxu0 %v451
  %2333 = vmatprep.subr.mxu0 0.0
  %2334 = vmatpush1.msra.mxu0 %v452
  %2335 = vmatprep.subr.mxu0 0.0
  %2336 = vmatpush1.msra.mxu0 %v453
  %2337 = vmatprep.subr.mxu0 0.0
  %2338 = vmatpush1.msra.mxu0 %v454
  %2339 = vmatprep.subr.mxu0 0.0
  %2340 = vmatpush1.msra.mxu0 %v455
  %2341 = vmatprep.subr.mxu0 0.0
  %2342 = vmatpush1.msra.mxu0 %v456
  %2343 = vmatprep.subr.mxu0 0.0
  %2344 = vmatpush1.msra.mxu0 %v457
  %2345 = vmatprep.subr.mxu0 0.0
  %2346 = vmatpush1.msra.mxu0 %v458
  %2347 = vmatprep.subr.mxu0 0.0
  %2348 = vmatpush1.msra.mxu0 %v459
  %2349 = vmatprep.subr.mxu0 0.0
  %2350 = vmatpush1.msra.mxu0 %v460
  %2351 = vmatprep.subr.mxu0 0.0
  %2352 = vmatpush1.msra.mxu0 %v461
  %2353 = vmatprep.subr.mxu0 0.0
  %2354 = vmatpush1.msra.mxu0 %v462
  %2355 = vmatprep.subr.mxu0 0.0
  %2356 = vmatpush1.msra.mxu0 %v463
  %2357 = vmatprep.subr.mxu0 0.0
  %2358 = vmatpush1.msra.mxu0 %v464
  %2359 = vmatprep.subr.mxu0 0.0
  %2360 = vmatpush1.msra.mxu0 %v465
  %2361 = vmatprep.subr.mxu0 0.0
  %2362 = vmatpush1.msra.mxu0 %v466
  %2363 = vmatprep.subr.mxu0 0.0
  %2364 = vmatpush1.msra.mxu0 %v467
  %2365 = vmatprep.subr.mxu0 0.0
  %2366 = vmatpush1.msra.mxu0 %v468
  %2367 = vmatprep.subr.mxu0 0.0
  %2368 = vmatpush1.msra.mxu0 %v469
  %2369 = vmatprep.subr.mxu0 0.0
  %2370 = vmatpush1.msra.mxu0 %v470
  %2371 = vmatprep.subr.mxu0 0.0
  %2372 = vmatpush1.msra.mxu0 %v471
  %2373 = vmatprep.subr.mxu0 0.0
  %2374 = vmatpush1.msra.mxu0 %v472
  %2375 = vmatprep.subr.mxu0 0.0
  %2376 = vmatpush1.msra.mxu0 %v473
  %2377 = vmatprep.subr.mxu0 0.0
  %2378 = vmatpush1.msra.mxu0 %v474
  %2379 = vmatprep.subr.mxu0 0.0
  %2380 = vmatpush1.msra.mxu0 %v475
  %2381 = vmatprep.subr.mxu0 0.0
  %2382 = vmatpush1.msra.mxu0 %v476
  %2383 = vmatprep.subr.mxu0 0.0
  %2384 = vmatpush1.msra.mxu0 %v477
  %2385 = vmatprep.subr.mxu0 0.0
  %2386 = vmatpush1.msra.mxu0 %v478
  %2387 = vmatprep.subr.mxu0 0.0
  %2388 = vmatpush1.msra.mxu0 %v479
  %2389 = vmatprep.mubr.f32.mxu0 %v1197
  %2390 = vmatmul.mubr.f32.gmra.mrb[0].mxu0 %v1195
  %v2391 = vpop.f32.mrb[0].mxu0
  %v2392 = vadd.f32 %v2322, %v2391
  %v2393 = vpop.f32.mrb[0].mxu0
  %2394 = vdwg.mxu0
  %2395 = vmatprep.subr.mxu0 0.0
  %2396 = vmatpush1.msra.mxu0 %v480
  %2397 = vmatprep.subr.mxu0 0.0
  %2398 = vmatpush1.msra.mxu0 %v481
  %2399 = vmatprep.subr.mxu0 0.0
  %2400 = vmatpush1.msra.mxu0 %v482
  %2401 = vmatprep.subr.mxu0 0.0
  %2402 = vmatpush1.msra.mxu0 %v483
  %2403 = vmatprep.subr.mxu0 0.0
  %2404 = vmatpush1.msra.mxu0 %v484
  %2405 = vmatprep.subr.mxu0 0.0
  %2406 = vmatpush1.msra.mxu0 %v485
  %2407 = vmatprep.subr.mxu0 0.0
  %2408 = vmatpush1.msra.mxu0 %v486
  %2409 = vmatprep.subr.mxu0 0.0
  %2410 = vmatpush1.msra.mxu0 %v487
  %2411 = vmatprep.subr.mxu0 0.0
  %2412 = vmatpush1.msra.mxu0 %v488
  %2413 = vmatprep.subr.mxu0 0.0
  %2414 = vmatpush1.msra.mxu0 %v489
  %2415 = vmatprep.subr.mxu0 0.0
  %2416 = vmatpush1.msra.mxu0 %v490
  %2417 = vmatprep.subr.mxu0 0.0
  %2418 = vmatpush1.msra.mxu0 %v491
  %2419 = vmatprep.subr.mxu0 0.0
  %2420 = vmatpush1.msra.mxu0 %v492
  %2421 = vmatprep.subr.mxu0 0.0
  %2422 = vmatpush1.msra.mxu0 %v493
  %2423 = vmatprep.subr.mxu0 0.0
  %2424 = vmatpush1.msra.mxu0 %v494
  %2425 = vmatprep.subr.mxu0 0.0
  %2426 = vmatpush1.msra.mxu0 %v495
  %2427 = vmatprep.subr.mxu0 0.0
  %2428 = vmatpush1.msra.mxu0 %v496
  %2429 = vmatprep.subr.mxu0 0.0
  %2430 = vmatpush1.msra.mxu0 %v497
  %2431 = vmatprep.subr.mxu0 0.0
  %2432 = vmatpush1.msra.mxu0 %v498
  %2433 = vmatprep.subr.mxu0 0.0
  %2434 = vmatpush1.msra.mxu0 %v499
  %2435 = vmatprep.subr.mxu0 0.0
  %2436 = vmatpush1.msra.mxu0 %v500
  %2437 = vmatprep.subr.mxu0 0.0
  %2438 = vmatpush1.msra.mxu0 %v501
  %2439 = vmatprep.subr.mxu0 0.0
  %2440 = vmatpush1.msra.mxu0 %v502
  %2441 = vmatprep.subr.mxu0 0.0
  %2442 = vmatpush1.msra.mxu0 %v503
  %2443 = vmatprep.subr.mxu0 0.0
  %2444 = vmatpush1.msra.mxu0 %v504
  %2445 = vmatprep.subr.mxu0 0.0
  %2446 = vmatpush1.msra.mxu0 %v505
  %2447 = vmatprep.subr.mxu0 0.0
  %2448 = vmatpush1.msra.mxu0 %v506
  %2449 = vmatprep.subr.mxu0 0.0
  %2450 = vmatpush1.msra.mxu0 %v507
  %2451 = vmatprep.subr.mxu0 0.0
  %2452 = vmatpush1.msra.mxu0 %v508
  %2453 = vmatprep.subr.mxu0 0.0
  %2454 = vmatpush1.msra.mxu0 %v509
  %2455 = vmatprep.subr.mxu0 0.0
  %2456 = vmatpush1.msra.mxu0 %v510
  %2457 = vmatprep.subr.mxu0 0.0
  %2458 = vmatpush1.msra.mxu0 %v511
  %2459 = vmatprep.mubr.f32.mxu0 %v1213
  %2460 = vmatmul.mubr.f32.gmra.mrb[0].mxu0 %v1205
  %v2461 = vpop.f32.mrb[0].mxu0
  %v2462 = vadd.f32 %v2392, %v2461
  %v2463 = vpop.f32.mrb[0].mxu0
  %2464 = vdwg.mxu0
  %2465 = vmatprep.subr.mxu0 0.0
  %2466 = vmatpush1.msra.mxu0 %v512
  %2467 = vmatprep.subr.mxu0 0.0
  %2468 = vmatpush1.msra.mxu0 %v513
  %2469 = vmatprep.subr.mxu0 0.0
  %2470 = vmatpush1.msra.mxu0 %v514
  %2471 = vmatprep.subr.mxu0 0.0
  %2472 = vmatpush1.msra.mxu0 %v515
  %2473 = vmatprep.subr.mxu0 0.0
  %2474 = vmatpush1.msra.mxu0 %v516
  %2475 = vmatprep.subr.mxu0 0.0
  %2476 = vmatpush1.msra.mxu0 %v517
  %2477 = vmatprep.subr.mxu0 0.0
  %2478 = vmatpush1.msra.mxu0 %v518
  %2479 = vmatprep.subr.mxu0 0.0
  %2480 = vmatpush1.msra.mxu0 %v519
  %2481 = vmatprep.subr.mxu0 0.0
  %2482 = vmatpush1.msra.mxu0 %v520
  %2483 = vmatprep.subr.mxu0 0.0
  %2484 = vmatpush1.msra.mxu0 %v521
  %2485 = vmatprep.subr.mxu0 0.0
  %2486 = vmatpush1.msra.mxu0 %v522
  %2487 = vmatprep.subr.mxu0 0.0
  %2488 = vmatpush1.msra.mxu0 %v523
  %2489 = vmatprep.subr.mxu0 0.0
  %2490 = vmatpush1.msra.mxu0 %v524
  %2491 = vmatprep.subr.mxu0 0.0
  %2492 = vmatpush1.msra.mxu0 %v525
  %2493 = vmatprep.subr.mxu0 0.0
  %2494 = vmatpush1.msra.mxu0 %v526
  %2495 = vmatprep.subr.mxu0 0.0
  %2496 = vmatpush1.msra.mxu0 %v527
  %2497 = vmatprep.subr.mxu0 0.0
  %2498 = vmatpush1.msra.mxu0 %v528
  %2499 = vmatprep.subr.mxu0 0.0
  %2500 = vmatpush1.msra.mxu0 %v529
  %2501 = vmatprep.subr.mxu0 0.0
  %2502 = vmatpush1.msra.mxu0 %v530
  %2503 = vmatprep.subr.mxu0 0.0
  %2504 = vmatpush1.msra.mxu0 %v531
  %2505 = vmatprep.subr.mxu0 0.0
  %2506 = vmatpush1.msra.mxu0 %v532
  %2507 = vmatprep.subr.mxu0 0.0
  %2508 = vmatpush1.msra.mxu0 %v533
  %2509 = vmatprep.subr.mxu0 0.0
  %2510 = vmatpush1.msra.mxu0 %v534
  %2511 = vmatprep.subr.mxu0 0.0
  %2512 = vmatpush1.msra.mxu0 %v535
  %2513 = vmatprep.subr.mxu0 0.0
  %2514 = vmatpush1.msra.mxu0 %v536
  %2515 = vmatprep.subr.mxu0 0.0
  %2516 = vmatpush1.msra.mxu0 %v537
  %2517 = vmatprep.subr.mxu0 0.0
  %2518 = vmatpush1.msra.mxu0 %v538
  %2519 = vmatprep.subr.mxu0 0.0
  %2520 = vmatpush1.msra.mxu0 %v539
  %2521 = vmatprep.subr.mxu0 0.0
  %2522 = vmatpush1.msra.mxu0 %v540
  %2523 = vmatprep.subr.mxu0 0.0
  %2524 = vmatpush1.msra.mxu0 %v541
  %2525 = vmatprep.subr.mxu0 0.0
  %2526 = vmatpush1.msra.mxu0 %v542
  %2527 = vmatprep.subr.mxu0 0.0
  %2528 = vmatpush1.msra.mxu0 %v543
  %2529 = vmatprep.mubr.f32.mxu0 %v1214
  %2530 = vmatmul.mubr.f32.gmra.mrb[0].mxu0 %v1212
  %v2531 = vpop.f32.mrb[0].mxu0
  %v2532 = vadd.f32 %v2462, %v2531
  %v2533 = vpop.f32.mrb[0].mxu0
  %2534 = vdwg.mxu0
  %2535 = vmatprep.subr.mxu0 0.0
  %2536 = vmatpush1.msra.mxu0 %v544
  %2537 = vmatprep.subr.mxu0 0.0
  %2538 = vmatpush1.msra.mxu0 %v545
  %2539 = vmatprep.subr.mxu0 0.0
  %2540 = vmatpush1.msra.mxu0 %v546
  %2541 = vmatprep.subr.mxu0 0.0
  %2542 = vmatpush1.msra.mxu0 %v547
  %2543 = vmatprep.subr.mxu0 0.0
  %2544 = vmatpush1.msra.mxu0 %v548
  %2545 = vmatprep.subr.mxu0 0.0
  %2546 = vmatpush1.msra.mxu0 %v549
  %2547 = vmatprep.subr.mxu0 0.0
  %2548 = vmatpush1.msra.mxu0 %v550
  %2549 = vmatprep.subr.mxu0 0.0
  %2550 = vmatpush1.msra.mxu0 %v551
  %2551 = vmatprep.subr.mxu0 0.0
  %2552 = vmatpush1.msra.mxu0 %v552
  %2553 = vmatprep.subr.mxu0 0.0
  %2554 = vmatpush1.msra.mxu0 %v553
  %2555 = vmatprep.subr.mxu0 0.0
  %2556 = vmatpush1.msra.mxu0 %v554
  %2557 = vmatprep.subr.mxu0 0.0
  %2558 = vmatpush1.msra.mxu0 %v555
  %2559 = vmatprep.subr.mxu0 0.0
  %2560 = vmatpush1.msra.mxu0 %v556
  %2561 = vmatprep.subr.mxu0 0.0
  %2562 = vmatpush1.msra.mxu0 %v557
  %2563 = vmatprep.subr.mxu0 0.0
  %2564 = vmatpush1.msra.mxu0 %v558
  %2565 = vmatprep.subr.mxu0 0.0
  %2566 = vmatpush1.msra.mxu0 %v559
  %2567 = vmatprep.subr.mxu0 0.0
  %2568 = vmatpush1.msra.mxu0 %v560
  %2569 = vmatprep.subr.mxu0 0.0
  %2570 = vmatpush1.msra.mxu0 %v561
  %2571 = vmatprep.subr.mxu0 0.0
  %2572 = vmatpush1.msra.mxu0 %v562
  %2573 = vmatprep.subr.mxu0 0.0
  %2574 = vmatpush1.msra.mxu0 %v563
  %2575 = vmatprep.subr.mxu0 0.0
  %2576 = vmatpush1.msra.mxu0 %v564
  %2577 = vmatprep.subr.mxu0 0.0
  %2578 = vmatpush1.msra.mxu0 %v565
  %2579 = vmatprep.subr.mxu0 0.0
  %2580 = vmatpush1.msra.mxu0 %v566
  %2581 = vmatprep.subr.mxu0 0.0
  %2582 = vmatpush1.msra.mxu0 %v567
  %2583 = vmatprep.subr.mxu0 0.0
  %2584 = vmatpush1.msra.mxu0 %v568
  %2585 = vmatprep.subr.mxu0 0.0
  %2586 = vmatpush1.msra.mxu0 %v569
  %2587 = vmatprep.subr.mxu0 0.0
  %2588 = vmatpush1.msra.mxu0 %v570
  %2589 = vmatprep.subr.mxu0 0.0
  %2590 = vmatpush1.msra.mxu0 %v571
  %2591 = vmatprep.subr.mxu0 0.0
  %2592 = vmatpush1.msra.mxu0 %v572
  %2593 = vmatprep.subr.mxu0 0.0
  %2594 = vmatpush1.msra.mxu0 %v573
  %2595 = vmatprep.subr.mxu0 0.0
  %2596 = vmatpush1.msra.mxu0 %v574
  %2597 = vmatprep.subr.mxu0 0.0
  %2598 = vmatpush1.msra.mxu0 %v575
  %2599 = vmatprep.mubr.f32.mxu0 %v1230
  %2600 = vmatmul.mubr.f32.gmra.mrb[0].mxu0 %v1222
  %v2601 = vpop.f32.mrb[0].mxu0
  %v2602 = vadd.f32 %v2532, %v2601
  %v2603 = vpop.f32.mrb[0].mxu0
  %2604 = vdwg.mxu0
  %2605 = vmatprep.subr.mxu0 0.0
  %2606 = vmatpush1.msra.mxu0 %v576
  %2607 = vmatprep.subr.mxu0 0.0
  %2608 = vmatpush1.msra.mxu0 %v577
  %2609 = vmatprep.subr.mxu0 0.0
  %2610 = vmatpush1.msra.mxu0 %v578
  %2611 = vmatprep.subr.mxu0 0.0
  %2612 = vmatpush1.msra.mxu0 %v579
  %2613 = vmatprep.subr.mxu0 0.0
  %2614 = vmatpush1.msra.mxu0 %v580
  %2615 = vmatprep.subr.mxu0 0.0
  %2616 = vmatpush1.msra.mxu0 %v581
  %2617 = vmatprep.subr.mxu0 0.0
  %2618 = vmatpush1.msra.mxu0 %v582
  %2619 = vmatprep.subr.mxu0 0.0
  %2620 = vmatpush1.msra.mxu0 %v583
  %2621 = vmatprep.subr.mxu0 0.0
  %2622 = vmatpush1.msra.mxu0 %v584
  %2623 = vmatprep.subr.mxu0 0.0
  %2624 = vmatpush1.msra.mxu0 %v585
  %2625 = vmatprep.subr.mxu0 0.0
  %2626 = vmatpush1.msra.mxu0 %v586
  %2627 = vmatprep.subr.mxu0 0.0
  %2628 = vmatpush1.msra.mxu0 %v587
  %2629 = vmatprep.subr.mxu0 0.0
  %2630 = vmatpush1.msra.mxu0 %v588
  %2631 = vmatprep.subr.mxu0 0.0
  %2632 = vmatpush1.msra.mxu0 %v589
  %2633 = vmatprep.subr.mxu0 0.0
  %2634 = vmatpush1.msra.mxu0 %v590
  %2635 = vmatprep.subr.mxu0 0.0
  %2636 = vmatpush1.msra.mxu0 %v591
  %2637 = vmatprep.subr.mxu0 0.0
  %2638 = vmatpush1.msra.mxu0 %v592
  %2639 = vmatprep.subr.mxu0 0.0
  %2640 = vmatpush1.msra.mxu0 %v593
  %2641 = vmatprep.subr.mxu0 0.0
  %2642 = vmatpush1.msra.mxu0 %v594
  %2643 = vmatprep.subr.mxu0 0.0
  %2644 = vmatpush1.msra.mxu0 %v595
  %2645 = vmatprep.subr.mxu0 0.0
  %2646 = vmatpush1.msra.mxu0 %v596
  %2647 = vmatprep.subr.mxu0 0.0
  %2648 = vmatpush1.msra.mxu0 %v597
  %2649 = vmatprep.subr.mxu0 0.0
  %2650 = vmatpush1.msra.mxu0 %v598
  %2651 = vmatprep.subr.mxu0 0.0
  %2652 = vmatpush1.msra.mxu0 %v599
  %2653 = vmatprep.subr.mxu0 0.0
  %2654 = vmatpush1.msra.mxu0 %v600
  %2655 = vmatprep.subr.mxu0 0.0
  %2656 = vmatpush1.msra.mxu0 %v601
  %2657 = vmatprep.subr.mxu0 0.0
  %2658 = vmatpush1.msra.mxu0 %v602
  %2659 = vmatprep.subr.mxu0 0.0
  %2660 = vmatpush1.msra.mxu0 %v603
  %2661 = vmatprep.subr.mxu0 0.0
  %2662 = vmatpush1.msra.mxu0 %v604
  %2663 = vmatprep.subr.mxu0 0.0
  %2664 = vmatpush1.msra.mxu0 %v605
  %2665 = vmatprep.subr.mxu0 0.0
  %2666 = vmatpush1.msra.mxu0 %v606
  %2667 = vmatprep.subr.mxu0 0.0
  %2668 = vmatpush1.msra.mxu0 %v607
  %2669 = vmatprep.mubr.f32.mxu0 %v1231
  %2670 = vmatmul.mubr.f32.gmra.mrb[0].mxu0 %v1229
  %v2671 = vpop.f32.mrb[0].mxu0
  %v2672 = vadd.f32 %v2602, %v2671
  %v2673 = vpop.f32.mrb[0].mxu0
  %2674 = vdwg.mxu0
  %2675 = vmatprep.subr.mxu0 0.0
  %2676 = vmatpush1.msra.mxu0 %v608
  %2677 = vmatprep.subr.mxu0 0.0
  %2678 = vmatpush1.msra.mxu0 %v609
  %2679 = vmatprep.subr.mxu0 0.0
  %2680 = vmatpush1.msra.mxu0 %v610
  %2681 = vmatprep.subr.mxu0 0.0
  %2682 = vmatpush1.msra.mxu0 %v611
  %2683 = vmatprep.subr.mxu0 0.0
  %2684 = vmatpush1.msra.mxu0 %v612
  %2685 = vmatprep.subr.mxu0 0.0
  %2686 = vmatpush1.msra.mxu0 %v613
  %2687 = vmatprep.subr.mxu0 0.0
  %2688 = vmatpush1.msra.mxu0 %v614
  %2689 = vmatprep.subr.mxu0 0.0
  %2690 = vmatpush1.msra.mxu0 %v615
  %2691 = vmatprep.subr.mxu0 0.0
  %2692 = vmatpush1.msra.mxu0 %v616
  %2693 = vmatprep.subr.mxu0 0.0
  %2694 = vmatpush1.msra.mxu0 %v617
  %2695 = vmatprep.subr.mxu0 0.0
  %2696 = vmatpush1.msra.mxu0 %v618
  %2697 = vmatprep.subr.mxu0 0.0
  %2698 = vmatpush1.msra.mxu0 %v619
  %2699 = vmatprep.subr.mxu0 0.0
  %2700 = vmatpush1.msra.mxu0 %v620
  %2701 = vmatprep.subr.mxu0 0.0
  %2702 = vmatpush1.msra.mxu0 %v621
  %2703 = vmatprep.subr.mxu0 0.0
  %2704 = vmatpush1.msra.mxu0 %v622
  %2705 = vmatprep.subr.mxu0 0.0
  %2706 = vmatpush1.msra.mxu0 %v623
  %2707 = vmatprep.subr.mxu0 0.0
  %2708 = vmatpush1.msra.mxu0 %v624
  %2709 = vmatprep.subr.mxu0 0.0
  %2710 = vmatpush1.msra.mxu0 %v625
  %2711 = vmatprep.subr.mxu0 0.0
  %2712 = vmatpush1.msra.mxu0 %v626
  %2713 = vmatprep.subr.mxu0 0.0
  %2714 = vmatpush1.msra.mxu0 %v627
  %2715 = vmatprep.subr.mxu0 0.0
  %2716 = vmatpush1.msra.mxu0 %v628
  %2717 = vmatprep.subr.mxu0 0.0
  %2718 = vmatpush1.msra.mxu0 %v629
  %2719 = vmatprep.subr.mxu0 0.0
  %2720 = vmatpush1.msra.mxu0 %v630
  %2721 = vmatprep.subr.mxu0 0.0
  %2722 = vmatpush1.msra.mxu0 %v631
  %2723 = vmatprep.subr.mxu0 0.0
  %2724 = vmatpush1.msra.mxu0 %v632
  %2725 = vmatprep.subr.mxu0 0.0
  %2726 = vmatpush1.msra.mxu0 %v633
  %2727 = vmatprep.subr.mxu0 0.0
  %2728 = vmatpush1.msra.mxu0 %v634
  %2729 = vmatprep.subr.mxu0 0.0
  %2730 = vmatpush1.msra.mxu0 %v635
  %2731 = vmatprep.subr.mxu0 0.0
  %2732 = vmatpush1.msra.mxu0 %v636
  %2733 = vmatprep.subr.mxu0 0.0
  %2734 = vmatpush1.msra.mxu0 %v637
  %2735 = vmatprep.subr.mxu0 0.0
  %2736 = vmatpush1.msra.mxu0 %v638
  %2737 = vmatprep.subr.mxu0 0.0
  %2738 = vmatpush1.msra.mxu0 %v639
  %2739 = vmatprep.mubr.f32.mxu0 %v1247
  %2740 = vmatmul.mubr.f32.gmra.mrb[0].mxu0 %v1239
  %v2741 = vpop.f32.mrb[0].mxu0
  %v2742 = vadd.f32 %v2672, %v2741
  %v2743 = vpop.f32.mrb[0].mxu0
  %2744 = vdwg.mxu0
  %2745 = vmatprep.subr.mxu0 0.0
  %2746 = vmatpush1.msra.mxu0 %v640
  %2747 = vmatprep.subr.mxu0 0.0
  %2748 = vmatpush1.msra.mxu0 %v641
  %2749 = vmatprep.subr.mxu0 0.0
  %2750 = vmatpush1.msra.mxu0 %v642
  %2751 = vmatprep.subr.mxu0 0.0
  %2752 = vmatpush1.msra.mxu0 %v643
  %2753 = vmatprep.subr.mxu0 0.0
  %2754 = vmatpush1.msra.mxu0 %v644
  %2755 = vmatprep.subr.mxu0 0.0
  %2756 = vmatpush1.msra.mxu0 %v645
  %2757 = vmatprep.subr.mxu0 0.0
  %2758 = vmatpush1.msra.mxu0 %v646
  %2759 = vmatprep.subr.mxu0 0.0
  %2760 = vmatpush1.msra.mxu0 %v647
  %2761 = vmatprep.subr.mxu0 0.0
  %2762 = vmatpush1.msra.mxu0 %v648
  %2763 = vmatprep.subr.mxu0 0.0
  %2764 = vmatpush1.msra.mxu0 %v649
  %2765 = vmatprep.subr.mxu0 0.0
  %2766 = vmatpush1.msra.mxu0 %v650
  %2767 = vmatprep.subr.mxu0 0.0
  %2768 = vmatpush1.msra.mxu0 %v651
  %2769 = vmatprep.subr.mxu0 0.0
  %2770 = vmatpush1.msra.mxu0 %v652
  %2771 = vmatprep.subr.mxu0 0.0
  %2772 = vmatpush1.msra.mxu0 %v653
  %2773 = vmatprep.subr.mxu0 0.0
  %2774 = vmatpush1.msra.mxu0 %v654
  %2775 = vmatprep.subr.mxu0 0.0
  %2776 = vmatpush1.msra.mxu0 %v655
  %2777 = vmatprep.subr.mxu0 0.0
  %2778 = vmatpush1.msra.mxu0 %v656
  %2779 = vmatprep.subr.mxu0 0.0
  %2780 = vmatpush1.msra.mxu0 %v657
  %2781 = vmatprep.subr.mxu0 0.0
  %2782 = vmatpush1.msra.mxu0 %v658
  %2783 = vmatprep.subr.mxu0 0.0
  %2784 = vmatpush1.msra.mxu0 %v659
  %2785 = vmatprep.subr.mxu0 0.0
  %2786 = vmatpush1.msra.mxu0 %v660
  %2787 = vmatprep.subr.mxu0 0.0
  %2788 = vmatpush1.msra.mxu0 %v661
  %2789 = vmatprep.subr.mxu0 0.0
  %2790 = vmatpush1.msra.mxu0 %v662
  %2791 = vmatprep.subr.mxu0 0.0
  %2792 = vmatpush1.msra.mxu0 %v663
  %2793 = vmatprep.subr.mxu0 0.0
  %2794 = vmatpush1.msra.mxu0 %v664
  %2795 = vmatprep.subr.mxu0 0.0
  %2796 = vmatpush1.msra.mxu0 %v665
  %2797 = vmatprep.subr.mxu0 0.0
  %2798 = vmatpush1.msra.mxu0 %v666
  %2799 = vmatprep.subr.mxu0 0.0
  %2800 = vmatpush1.msra.mxu0 %v667
  %2801 = vmatprep.subr.mxu0 0.0
  %2802 = vmatpush1.msra.mxu0 %v668
  %2803 = vmatprep.subr.mxu0 0.0
  %2804 = vmatpush1.msra.mxu0 %v669
  %2805 = vmatprep.subr.mxu0 0.0
  %2806 = vmatpush1.msra.mxu0 %v670
  %2807 = vmatprep.subr.mxu0 0.0
  %2808 = vmatpush1.msra.mxu0 %v671
  %2809 = vmatprep.mubr.f32.mxu0 %v1248
  %2810 = vmatmul.mubr.f32.gmra.mrb[0].mxu0 %v1246
  %v2811 = vpop.f32.mrb[0].mxu0
  %v2812 = vadd.f32 %v2742, %v2811
  %v2813 = vpop.f32.mrb[0].mxu0
  %2814 = vdwg.mxu0
  %2815 = vmatprep.subr.mxu0 0.0
  %2816 = vmatpush1.msra.mxu0 %v672
  %2817 = vmatprep.subr.mxu0 0.0
  %2818 = vmatpush1.msra.mxu0 %v673
  %2819 = vmatprep.subr.mxu0 0.0
  %2820 = vmatpush1.msra.mxu0 %v674
  %2821 = vmatprep.subr.mxu0 0.0
  %2822 = vmatpush1.msra.mxu0 %v675
  %2823 = vmatprep.subr.mxu0 0.0
  %2824 = vmatpush1.msra.mxu0 %v676
  %2825 = vmatprep.subr.mxu0 0.0
  %2826 = vmatpush1.msra.mxu0 %v677
  %2827 = vmatprep.subr.mxu0 0.0
  %2828 = vmatpush1.msra.mxu0 %v678
  %2829 = vmatprep.subr.mxu0 0.0
  %2830 = vmatpush1.msra.mxu0 %v679
  %2831 = vmatprep.subr.mxu0 0.0
  %2832 = vmatpush1.msra.mxu0 %v680
  %2833 = vmatprep.subr.mxu0 0.0
  %2834 = vmatpush1.msra.mxu0 %v681
  %2835 = vmatprep.subr.mxu0 0.0
  %2836 = vmatpush1.msra.mxu0 %v682
  %2837 = vmatprep.subr.mxu0 0.0
  %2838 = vmatpush1.msra.mxu0 %v683
  %2839 = vmatprep.subr.mxu0 0.0
  %2840 = vmatpush1.msra.mxu0 %v684
  %2841 = vmatprep.subr.mxu0 0.0
  %2842 = vmatpush1.msra.mxu0 %v685
  %2843 = vmatprep.subr.mxu0 0.0
  %2844 = vmatpush1.msra.mxu0 %v686
  %2845 = vmatprep.subr.mxu0 0.0
  %2846 = vmatpush1.msra.mxu0 %v687
  %2847 = vmatprep.subr.mxu0 0.0
  %2848 = vmatpush1.msra.mxu0 %v688
  %2849 = vmatprep.subr.mxu0 0.0
  %2850 = vmatpush1.msra.mxu0 %v689
  %2851 = vmatprep.subr.mxu0 0.0
  %2852 = vmatpush1.msra.mxu0 %v690
  %2853 = vmatprep.subr.mxu0 0.0
  %2854 = vmatpush1.msra.mxu0 %v691
  %2855 = vmatprep.subr.mxu0 0.0
  %2856 = vmatpush1.msra.mxu0 %v692
  %2857 = vmatprep.subr.mxu0 0.0
  %2858 = vmatpush1.msra.mxu0 %v693
  %2859 = vmatprep.subr.mxu0 0.0
  %2860 = vmatpush1.msra.mxu0 %v694
  %2861 = vmatprep.subr.mxu0 0.0
  %2862 = vmatpush1.msra.mxu0 %v695
  %2863 = vmatprep.subr.mxu0 0.0
  %2864 = vmatpush1.msra.mxu0 %v696
  %2865 = vmatprep.subr.mxu0 0.0
  %2866 = vmatpush1.msra.mxu0 %v697
  %2867 = vmatprep.subr.mxu0 0.0
  %2868 = vmatpush1.msra.mxu0 %v698
  %2869 = vmatprep.subr.mxu0 0.0
  %2870 = vmatpush1.msra.mxu0 %v699
  %2871 = vmatprep.subr.mxu0 0.0
  %2872 = vmatpush1.msra.mxu0 %v700
  %2873 = vmatprep.subr.mxu0 0.0
  %2874 = vmatpush1.msra.mxu0 %v701
  %2875 = vmatprep.subr.mxu0 0.0
  %2876 = vmatpush1.msra.mxu0 %v702
  %2877 = vmatprep.subr.mxu0 0.0
  %2878 = vmatpush1.msra.mxu0 %v703
  %2879 = vmatprep.mubr.f32.mxu0 %v1264
  %2880 = vmatmul.mubr.f32.gmra.mrb[0].mxu0 %v1256
  %v2881 = vpop.f32.mrb[0].mxu0
  %v2882 = vadd.f32 %v2812, %v2881
  %v2883 = vpop.f32.mrb[0].mxu0
  %2884 = vdwg.mxu0
  %2885 = vmatprep.subr.mxu0 0.0
  %2886 = vmatpush1.msra.mxu0 %v704
  %2887 = vmatprep.subr.mxu0 0.0
  %2888 = vmatpush1.msra.mxu0 %v705
  %2889 = vmatprep.subr.mxu0 0.0
  %2890 = vmatpush1.msra.mxu0 %v706
  %2891 = vmatprep.subr.mxu0 0.0
  %2892 = vmatpush1.msra.mxu0 %v707
  %2893 = vmatprep.subr.mxu0 0.0
  %2894 = vmatpush1.msra.mxu0 %v708
  %2895 = vmatprep.subr.mxu0 0.0
  %2896 = vmatpush1.msra.mxu0 %v709
  %2897 = vmatprep.subr.mxu0 0.0
  %2898 = vmatpush1.msra.mxu0 %v710
  %2899 = vmatprep.subr.mxu0 0.0
  %2900 = vmatpush1.msra.mxu0 %v711
  %2901 = vmatprep.subr.mxu0 0.0
  %2902 = vmatpush1.msra.mxu0 %v712
  %2903 = vmatprep.subr.mxu0 0.0
  %2904 = vmatpush1.msra.mxu0 %v713
  %2905 = vmatprep.subr.mxu0 0.0
  %2906 = vmatpush1.msra.mxu0 %v714
  %2907 = vmatprep.subr.mxu0 0.0
  %2908 = vmatpush1.msra.mxu0 %v715
  %2909 = vmatprep.subr.mxu0 0.0
  %2910 = vmatpush1.msra.mxu0 %v716
  %2911 = vmatprep.subr.mxu0 0.0
  %2912 = vmatpush1.msra.mxu0 %v717
  %2913 = vmatprep.subr.mxu0 0.0
  %2914 = vmatpush1.msra.mxu0 %v718
  %2915 = vmatprep.subr.mxu0 0.0
  %2916 = vmatpush1.msra.mxu0 %v719
  %2917 = vmatprep.subr.mxu0 0.0
  %2918 = vmatpush1.msra.mxu0 %v720
  %2919 = vmatprep.subr.mxu0 0.0
  %2920 = vmatpush1.msra.mxu0 %v721
  %2921 = vmatprep.subr.mxu0 0.0
  %2922 = vmatpush1.msra.mxu0 %v722
  %2923 = vmatprep.subr.mxu0 0.0
  %2924 = vmatpush1.msra.mxu0 %v723
  %2925 = vmatprep.subr.mxu0 0.0
  %2926 = vmatpush1.msra.mxu0 %v724
  %2927 = vmatprep.subr.mxu0 0.0
  %2928 = vmatpush1.msra.mxu0 %v725
  %2929 = vmatprep.subr.mxu0 0.0
  %2930 = vmatpush1.msra.mxu0 %v726
  %2931 = vmatprep.subr.mxu0 0.0
  %2932 = vmatpush1.msra.mxu0 %v727
  %2933 = vmatprep.subr.mxu0 0.0
  %2934 = vmatpush1.msra.mxu0 %v728
  %2935 = vmatprep.subr.mxu0 0.0
  %2936 = vmatpush1.msra.mxu0 %v729
  %2937 = vmatprep.subr.mxu0 0.0
  %2938 = vmatpush1.msra.mxu0 %v730
  %2939 = vmatprep.subr.mxu0 0.0
  %2940 = vmatpush1.msra.mxu0 %v731
  %2941 = vmatprep.subr.mxu0 0.0
  %2942 = vmatpush1.msra.mxu0 %v732
  %2943 = vmatprep.subr.mxu0 0.0
  %2944 = vmatpush1.msra.mxu0 %v733
  %2945 = vmatprep.subr.mxu0 0.0
  %2946 = vmatpush1.msra.mxu0 %v734
  %2947 = vmatprep.subr.mxu0 0.0
  %2948 = vmatpush1.msra.mxu0 %v735
  %2949 = vmatprep.mubr.f32.mxu0 %v1265
  %2950 = vmatmul.mubr.f32.gmra.mrb[0].mxu0 %v1263
  %v2951 = vpop.f32.mrb[0].mxu0
  %v2952 = vadd.f32 %v2882, %v2951
  %v2953 = vpop.f32.mrb[0].mxu0
  %2954 = vdwg.mxu0
  %2955 = vmatprep.subr.mxu0 0.0
  %2956 = vmatpush1.msra.mxu0 %v736
  %2957 = vmatprep.subr.mxu0 0.0
  %2958 = vmatpush1.msra.mxu0 %v737
  %2959 = vmatprep.subr.mxu0 0.0
  %2960 = vmatpush1.msra.mxu0 %v738
  %2961 = vmatprep.subr.mxu0 0.0
  %2962 = vmatpush1.msra.mxu0 %v739
  %2963 = vmatprep.subr.mxu0 0.0
  %2964 = vmatpush1.msra.mxu0 %v740
  %2965 = vmatprep.subr.mxu0 0.0
  %2966 = vmatpush1.msra.mxu0 %v741
  %2967 = vmatprep.subr.mxu0 0.0
  %2968 = vmatpush1.msra.mxu0 %v742
  %2969 = vmatprep.subr.mxu0 0.0
  %2970 = vmatpush1.msra.mxu0 %v743
  %2971 = vmatprep.subr.mxu0 0.0
  %2972 = vmatpush1.msra.mxu0 %v744
  %2973 = vmatprep.subr.mxu0 0.0
  %2974 = vmatpush1.msra.mxu0 %v745
  %2975 = vmatprep.subr.mxu0 0.0
  %2976 = vmatpush1.msra.mxu0 %v746
  %2977 = vmatprep.subr.mxu0 0.0
  %2978 = vmatpush1.msra.mxu0 %v747
  %2979 = vmatprep.subr.mxu0 0.0
  %2980 = vmatpush1.msra.mxu0 %v748
  %2981 = vmatprep.subr.mxu0 0.0
  %2982 = vmatpush1.msra.mxu0 %v749
  %2983 = vmatprep.subr.mxu0 0.0
  %2984 = vmatpush1.msra.mxu0 %v750
  %2985 = vmatprep.subr.mxu0 0.0
  %2986 = vmatpush1.msra.mxu0 %v751
  %2987 = vmatprep.subr.mxu0 0.0
  %2988 = vmatpush1.msra.mxu0 %v752
  %2989 = vmatprep.subr.mxu0 0.0
  %2990 = vmatpush1.msra.mxu0 %v753
  %2991 = vmatprep.subr.mxu0 0.0
  %2992 = vmatpush1.msra.mxu0 %v754
  %2993 = vmatprep.subr.mxu0 0.0
  %2994 = vmatpush1.msra.mxu0 %v755
  %2995 = vmatprep.subr.mxu0 0.0
  %2996 = vmatpush1.msra.mxu0 %v756
  %2997 = vmatprep.subr.mxu0 0.0
  %2998 = vmatpush1.msra.mxu0 %v757
  %2999 = vmatprep.subr.mxu0 0.0
  %3000 = vmatpush1.msra.mxu0 %v758
  %3001 = vmatprep.subr.mxu0 0.0
  %3002 = vmatpush1.msra.mxu0 %v759
  %3003 = vmatprep.subr.mxu0 0.0
  %3004 = vmatpush1.msra.mxu0 %v760
  %3005 = vmatprep.subr.mxu0 0.0
  %3006 = vmatpush1.msra.mxu0 %v761
  %3007 = vmatprep.subr.mxu0 0.0
  %3008 = vmatpush1.msra.mxu0 %v762
  %3009 = vmatprep.subr.mxu0 0.0
  %3010 = vmatpush1.msra.mxu0 %v763
  %3011 = vmatprep.subr.mxu0 0.0
  %3012 = vmatpush1.msra.mxu0 %v764
  %3013 = vmatprep.subr.mxu0 0.0
  %3014 = vmatpush1.msra.mxu0 %v765
  %3015 = vmatprep.subr.mxu0 0.0
  %3016 = vmatpush1.msra.mxu0 %v766
  %3017 = vmatprep.subr.mxu0 0.0
  %3018 = vmatpush1.msra.mxu0 %v767
  %3019 = vmatprep.mubr.f32.mxu0 %v1281
  %3020 = vmatmul.mubr.f32.gmra.mrb[0].mxu0 %v1273
  %v3021 = vpop.f32.mrb[0].mxu0
  %v3022 = vadd.f32 %v2952, %v3021
  %v3023 = vpop.f32.mrb[0].mxu0
  %3024 = vdwg.mxu0
  %3025 = vmatprep.subr.mxu0 0.0
  %3026 = vmatpush1.msra.mxu0 %v768
  %3027 = vmatprep.subr.mxu0 0.0
  %3028 = vmatpush1.msra.mxu0 %v769
  %3029 = vmatprep.subr.mxu0 0.0
  %3030 = vmatpush1.msra.mxu0 %v770
  %3031 = vmatprep.subr.mxu0 0.0
  %3032 = vmatpush1.msra.mxu0 %v771
  %3033 = vmatprep.subr.mxu0 0.0
  %3034 = vmatpush1.msra.mxu0 %v772
  %3035 = vmatprep.subr.mxu0 0.0
  %3036 = vmatpush1.msra.mxu0 %v773
  %3037 = vmatprep.subr.mxu0 0.0
  %3038 = vmatpush1.msra.mxu0 %v774
  %3039 = vmatprep.subr.mxu0 0.0
  %3040 = vmatpush1.msra.mxu0 %v775
  %3041 = vmatprep.subr.mxu0 0.0
  %3042 = vmatpush1.msra.mxu0 %v776
  %3043 = vmatprep.subr.mxu0 0.0
  %3044 = vmatpush1.msra.mxu0 %v777
  %3045 = vmatprep.subr.mxu0 0.0
  %3046 = vmatpush1.msra.mxu0 %v778
  %3047 = vmatprep.subr.mxu0 0.0
  %3048 = vmatpush1.msra.mxu0 %v779
  %3049 = vmatprep.subr.mxu0 0.0
  %3050 = vmatpush1.msra.mxu0 %v780
  %3051 = vmatprep.subr.mxu0 0.0
  %3052 = vmatpush1.msra.mxu0 %v781
  %3053 = vmatprep.subr.mxu0 0.0
  %3054 = vmatpush1.msra.mxu0 %v782
  %3055 = vmatprep.subr.mxu0 0.0
  %3056 = vmatpush1.msra.mxu0 %v783
  %3057 = vmatprep.subr.mxu0 0.0
  %3058 = vmatpush1.msra.mxu0 %v784
  %3059 = vmatprep.subr.mxu0 0.0
  %3060 = vmatpush1.msra.mxu0 %v785
  %3061 = vmatprep.subr.mxu0 0.0
  %3062 = vmatpush1.msra.mxu0 %v786
  %3063 = vmatprep.subr.mxu0 0.0
  %3064 = vmatpush1.msra.mxu0 %v787
  %3065 = vmatprep.subr.mxu0 0.0
  %3066 = vmatpush1.msra.mxu0 %v788
  %3067 = vmatprep.subr.mxu0 0.0
  %3068 = vmatpush1.msra.mxu0 %v789
  %3069 = vmatprep.subr.mxu0 0.0
  %3070 = vmatpush1.msra.mxu0 %v790
  %3071 = vmatprep.subr.mxu0 0.0
  %3072 = vmatpush1.msra.mxu0 %v791
  %3073 = vmatprep.subr.mxu0 0.0
  %3074 = vmatpush1.msra.mxu0 %v792
  %3075 = vmatprep.subr.mxu0 0.0
  %3076 = vmatpush1.msra.mxu0 %v793
  %3077 = vmatprep.subr.mxu0 0.0
  %3078 = vmatpush1.msra.mxu0 %v794
  %3079 = vmatprep.subr.mxu0 0.0
  %3080 = vmatpush1.msra.mxu0 %v795
  %3081 = vmatprep.subr.mxu0 0.0
  %3082 = vmatpush1.msra.mxu0 %v796
  %3083 = vmatprep.subr.mxu0 0.0
  %3084 = vmatpush1.msra.mxu0 %v797
  %3085 = vmatprep.subr.mxu0 0.0
  %3086 = vmatpush1.msra.mxu0 %v798
  %3087 = vmatprep.subr.mxu0 0.0
  %3088 = vmatpush1.msra.mxu0 %v799
  %3089 = vmatprep.mubr.f32.mxu0 %v1282
  %3090 = vmatmul.mubr.f32.gmra.mrb[0].mxu0 %v1280
  %v3091 = vpop.f32.mrb[0].mxu0
  %v3092 = vadd.f32 %v3022, %v3091
  %v3093 = vpop.f32.mrb[0].mxu0
  %3094 = vdwg.mxu0
  %3095 = vmatprep.subr.mxu0 0.0
  %3096 = vmatpush1.msra.mxu0 %v800
  %3097 = vmatprep.subr.mxu0 0.0
  %3098 = vmatpush1.msra.mxu0 %v801
  %3099 = vmatprep.subr.mxu0 0.0
  %3100 = vmatpush1.msra.mxu0 %v802
  %3101 = vmatprep.subr.mxu0 0.0
  %3102 = vmatpush1.msra.mxu0 %v803
  %3103 = vmatprep.subr.mxu0 0.0
  %3104 = vmatpush1.msra.mxu0 %v804
  %3105 = vmatprep.subr.mxu0 0.0
  %3106 = vmatpush1.msra.mxu0 %v805
  %3107 = vmatprep.subr.mxu0 0.0
  %3108 = vmatpush1.msra.mxu0 %v806
  %3109 = vmatprep.subr.mxu0 0.0
  %3110 = vmatpush1.msra.mxu0 %v807
  %3111 = vmatprep.subr.mxu0 0.0
  %3112 = vmatpush1.msra.mxu0 %v808
  %3113 = vmatprep.subr.mxu0 0.0
  %3114 = vmatpush1.msra.mxu0 %v809
  %3115 = vmatprep.subr.mxu0 0.0
  %3116 = vmatpush1.msra.mxu0 %v810
  %3117 = vmatprep.subr.mxu0 0.0
  %3118 = vmatpush1.msra.mxu0 %v811
  %3119 = vmatprep.subr.mxu0 0.0
  %3120 = vmatpush1.msra.mxu0 %v812
  %3121 = vmatprep.subr.mxu0 0.0
  %3122 = vmatpush1.msra.mxu0 %v813
  %3123 = vmatprep.subr.mxu0 0.0
  %3124 = vmatpush1.msra.mxu0 %v814
  %3125 = vmatprep.subr.mxu0 0.0
  %3126 = vmatpush1.msra.mxu0 %v815
  %3127 = vmatprep.subr.mxu0 0.0
  %3128 = vmatpush1.msra.mxu0 %v816
  %3129 = vmatprep.subr.mxu0 0.0
  %3130 = vmatpush1.msra.mxu0 %v817
  %3131 = vmatprep.subr.mxu0 0.0
  %3132 = vmatpush1.msra.mxu0 %v818
  %3133 = vmatprep.subr.mxu0 0.0
  %3134 = vmatpush1.msra.mxu0 %v819
  %3135 = vmatprep.subr.mxu0 0.0
  %3136 = vmatpush1.msra.mxu0 %v820
  %3137 = vmatprep.subr.mxu0 0.0
  %3138 = vmatpush1.msra.mxu0 %v821
  %3139 = vmatprep.subr.mxu0 0.0
  %3140 = vmatpush1.msra.mxu0 %v822
  %3141 = vmatprep.subr.mxu0 0.0
  %3142 = vmatpush1.msra.mxu0 %v823
  %3143 = vmatprep.subr.mxu0 0.0
  %3144 = vmatpush1.msra.mxu0 %v824
  %3145 = vmatprep.subr.mxu0 0.0
  %3146 = vmatpush1.msra.mxu0 %v825
  %3147 = vmatprep.subr.mxu0 0.0
  %3148 = vmatpush1.msra.mxu0 %v826
  %3149 = vmatprep.subr.mxu0 0.0
  %3150 = vmatpush1.msra.mxu0 %v827
  %3151 = vmatprep.subr.mxu0 0.0
  %3152 = vmatpush1.msra.mxu0 %v828
  %3153 = vmatprep.subr.mxu0 0.0
  %3154 = vmatpush1.msra.mxu0 %v829
  %3155 = vmatprep.subr.mxu0 0.0
  %3156 = vmatpush1.msra.mxu0 %v830
  %3157 = vmatprep.subr.mxu0 0.0
  %3158 = vmatpush1.msra.mxu0 %v831
  %3159 = vmatprep.mubr.f32.mxu0 %v1298
  %3160 = vmatmul.mubr.f32.gmra.mrb[0].mxu0 %v1290
  %v3161 = vpop.f32.mrb[0].mxu0
  %v3162 = vadd.f32 %v3092, %v3161
  %v3163 = vpop.f32.mrb[0].mxu0
  %3164 = vdwg.mxu0
  %3165 = vmatprep.subr.mxu0 0.0
  %3166 = vmatpush1.msra.mxu0 %v832
  %3167 = vmatprep.subr.mxu0 0.0
  %3168 = vmatpush1.msra.mxu0 %v833
  %3169 = vmatprep.subr.mxu0 0.0
  %3170 = vmatpush1.msra.mxu0 %v834
  %3171 = vmatprep.subr.mxu0 0.0
  %3172 = vmatpush1.msra.mxu0 %v835
  %3173 = vmatprep.subr.mxu0 0.0
  %3174 = vmatpush1.msra.mxu0 %v836
  %3175 = vmatprep.subr.mxu0 0.0
  %3176 = vmatpush1.msra.mxu0 %v837
  %3177 = vmatprep.subr.mxu0 0.0
  %3178 = vmatpush1.msra.mxu0 %v838
  %3179 = vmatprep.subr.mxu0 0.0
  %3180 = vmatpush1.msra.mxu0 %v839
  %3181 = vmatprep.subr.mxu0 0.0
  %3182 = vmatpush1.msra.mxu0 %v840
  %3183 = vmatprep.subr.mxu0 0.0
  %3184 = vmatpush1.msra.mxu0 %v841
  %3185 = vmatprep.subr.mxu0 0.0
  %3186 = vmatpush1.msra.mxu0 %v842
  %3187 = vmatprep.subr.mxu0 0.0
  %3188 = vmatpush1.msra.mxu0 %v843
  %3189 = vmatprep.subr.mxu0 0.0
  %3190 = vmatpush1.msra.mxu0 %v844
  %3191 = vmatprep.subr.mxu0 0.0
  %3192 = vmatpush1.msra.mxu0 %v845
  %3193 = vmatprep.subr.mxu0 0.0
  %3194 = vmatpush1.msra.mxu0 %v846
  %3195 = vmatprep.subr.mxu0 0.0
  %3196 = vmatpush1.msra.mxu0 %v847
  %3197 = vmatprep.subr.mxu0 0.0
  %3198 = vmatpush1.msra.mxu0 %v848
  %3199 = vmatprep.subr.mxu0 0.0
  %3200 = vmatpush1.msra.mxu0 %v849
  %3201 = vmatprep.subr.mxu0 0.0
  %3202 = vmatpush1.msra.mxu0 %v850
  %3203 = vmatprep.subr.mxu0 0.0
  %3204 = vmatpush1.msra.mxu0 %v851
  %3205 = vmatprep.subr.mxu0 0.0
  %3206 = vmatpush1.msra.mxu0 %v852
  %3207 = vmatprep.subr.mxu0 0.0
  %3208 = vmatpush1.msra.mxu0 %v853
  %3209 = vmatprep.subr.mxu0 0.0
  %3210 = vmatpush1.msra.mxu0 %v854
  %3211 = vmatprep.subr.mxu0 0.0
  %3212 = vmatpush1.msra.mxu0 %v855
  %3213 = vmatprep.subr.mxu0 0.0
  %3214 = vmatpush1.msra.mxu0 %v856
  %3215 = vmatprep.subr.mxu0 0.0
  %3216 = vmatpush1.msra.mxu0 %v857
  %3217 = vmatprep.subr.mxu0 0.0
  %3218 = vmatpush1.msra.mxu0 %v858
  %3219 = vmatprep.subr.mxu0 0.0
  %3220 = vmatpush1.msra.mxu0 %v859
  %3221 = vmatprep.subr.mxu0 0.0
  %3222 = vmatpush1.msra.mxu0 %v860
  %3223 = vmatprep.subr.mxu0 0.0
  %3224 = vmatpush1.msra.mxu0 %v861
  %3225 = vmatprep.subr.mxu0 0.0
  %3226 = vmatpush1.msra.mxu0 %v862
  %3227 = vmatprep.subr.mxu0 0.0
  %3228 = vmatpush1.msra.mxu0 %v863
  %3229 = vmatprep.mubr.f32.mxu0 %v1299
  %3230 = vmatmul.mubr.f32.gmra.mrb[0].mxu0 %v1297
  %v3231 = vpop.f32.mrb[0].mxu0
  %v3232 = vadd.f32 %v3162, %v3231
  %v3233 = vpop.f32.mrb[0].mxu0
  %3234 = vdwg.mxu0
  %3235 = vmatprep.subr.mxu0 0.0
  %3236 = vmatpush1.msra.mxu0 %v864
  %3237 = vmatprep.subr.mxu0 0.0
  %3238 = vmatpush1.msra.mxu0 %v865
  %3239 = vmatprep.subr.mxu0 0.0
  %3240 = vmatpush1.msra.mxu0 %v866
  %3241 = vmatprep.subr.mxu0 0.0
  %3242 = vmatpush1.msra.mxu0 %v867
  %3243 = vmatprep.subr.mxu0 0.0
  %3244 = vmatpush1.msra.mxu0 %v868
  %3245 = vmatprep.subr.mxu0 0.0
  %3246 = vmatpush1.msra.mxu0 %v869
  %3247 = vmatprep.subr.mxu0 0.0
  %3248 = vmatpush1.msra.mxu0 %v870
  %3249 = vmatprep.subr.mxu0 0.0
  %3250 = vmatpush1.msra.mxu0 %v871
  %3251 = vmatprep.subr.mxu0 0.0
  %3252 = vmatpush1.msra.mxu0 %v872
  %3253 = vmatprep.subr.mxu0 0.0
  %3254 = vmatpush1.msra.mxu0 %v873
  %3255 = vmatprep.subr.mxu0 0.0
  %3256 = vmatpush1.msra.mxu0 %v874
  %3257 = vmatprep.subr.mxu0 0.0
  %3258 = vmatpush1.msra.mxu0 %v875
  %3259 = vmatprep.subr.mxu0 0.0
  %3260 = vmatpush1.msra.mxu0 %v876
  %3261 = vmatprep.subr.mxu0 0.0
  %3262 = vmatpush1.msra.mxu0 %v877
  %3263 = vmatprep.subr.mxu0 0.0
  %3264 = vmatpush1.msra.mxu0 %v878
  %3265 = vmatprep.subr.mxu0 0.0
  %3266 = vmatpush1.msra.mxu0 %v879
  %3267 = vmatprep.subr.mxu0 0.0
  %3268 = vmatpush1.msra.mxu0 %v880
  %3269 = vmatprep.subr.mxu0 0.0
  %3270 = vmatpush1.msra.mxu0 %v881
  %3271 = vmatprep.subr.mxu0 0.0
  %3272 = vmatpush1.msra.mxu0 %v882
  %3273 = vmatprep.subr.mxu0 0.0
  %3274 = vmatpush1.msra.mxu0 %v883
  %3275 = vmatprep.subr.mxu0 0.0
  %3276 = vmatpush1.msra.mxu0 %v884
  %3277 = vmatprep.subr.mxu0 0.0
  %3278 = vmatpush1.msra.mxu0 %v885
  %3279 = vmatprep.subr.mxu0 0.0
  %3280 = vmatpush1.msra.mxu0 %v886
  %3281 = vmatprep.subr.mxu0 0.0
  %3282 = vmatpush1.msra.mxu0 %v887
  %3283 = vmatprep.subr.mxu0 0.0
  %3284 = vmatpush1.msra.mxu0 %v888
  %3285 = vmatprep.subr.mxu0 0.0
  %3286 = vmatpush1.msra.mxu0 %v889
  %3287 = vmatprep.subr.mxu0 0.0
  %3288 = vmatpush1.msra.mxu0 %v890
  %3289 = vmatprep.subr.mxu0 0.0
  %3290 = vmatpush1.msra.mxu0 %v891
  %3291 = vmatprep.subr.mxu0 0.0
  %3292 = vmatpush1.msra.mxu0 %v892
  %3293 = vmatprep.subr.mxu0 0.0
  %3294 = vmatpush1.msra.mxu0 %v893
  %3295 = vmatprep.subr.mxu0 0.0
  %3296 = vmatpush1.msra.mxu0 %v894
  %3297 = vmatprep.subr.mxu0 0.0
  %3298 = vmatpush1.msra.mxu0 %v895
  %3299 = vmatprep.mubr.f32.mxu0 %v1315
  %3300 = vmatmul.mubr.f32.gmra.mrb[0].mxu0 %v1307
  %v3301 = vpop.f32.mrb[0].mxu0
  %v3302 = vadd.f32 %v3232, %v3301
  %v3303 = vpop.f32.mrb[0].mxu0
  %3304 = vdwg.mxu0
  %3305 = vmatprep.subr.mxu0 0.0
  %3306 = vmatpush1.msra.mxu0 %v896
  %3307 = vmatprep.subr.mxu0 0.0
  %3308 = vmatpush1.msra.mxu0 %v897
  %3309 = vmatprep.subr.mxu0 0.0
  %3310 = vmatpush1.msra.mxu0 %v898
  %3311 = vmatprep.subr.mxu0 0.0
  %3312 = vmatpush1.msra.mxu0 %v899
  %3313 = vmatprep.subr.mxu0 0.0
  %3314 = vmatpush1.msra.mxu0 %v900
  %3315 = vmatprep.subr.mxu0 0.0
  %3316 = vmatpush1.msra.mxu0 %v901
  %3317 = vmatprep.subr.mxu0 0.0
  %3318 = vmatpush1.msra.mxu0 %v902
  %3319 = vmatprep.subr.mxu0 0.0
  %3320 = vmatpush1.msra.mxu0 %v903
  %3321 = vmatprep.subr.mxu0 0.0
  %3322 = vmatpush1.msra.mxu0 %v904
  %3323 = vmatprep.subr.mxu0 0.0
  %3324 = vmatpush1.msra.mxu0 %v905
  %3325 = vmatprep.subr.mxu0 0.0
  %3326 = vmatpush1.msra.mxu0 %v906
  %3327 = vmatprep.subr.mxu0 0.0
  %3328 = vmatpush1.msra.mxu0 %v907
  %3329 = vmatprep.subr.mxu0 0.0
  %3330 = vmatpush1.msra.mxu0 %v908
  %3331 = vmatprep.subr.mxu0 0.0
  %3332 = vmatpush1.msra.mxu0 %v909
  %3333 = vmatprep.subr.mxu0 0.0
  %3334 = vmatpush1.msra.mxu0 %v910
  %3335 = vmatprep.subr.mxu0 0.0
  %3336 = vmatpush1.msra.mxu0 %v911
  %3337 = vmatprep.subr.mxu0 0.0
  %3338 = vmatpush1.msra.mxu0 %v912
  %3339 = vmatprep.subr.mxu0 0.0
  %3340 = vmatpush1.msra.mxu0 %v913
  %3341 = vmatprep.subr.mxu0 0.0
  %3342 = vmatpush1.msra.mxu0 %v914
  %3343 = vmatprep.subr.mxu0 0.0
  %3344 = vmatpush1.msra.mxu0 %v915
  %3345 = vmatprep.subr.mxu0 0.0
  %3346 = vmatpush1.msra.mxu0 %v916
  %3347 = vmatprep.subr.mxu0 0.0
  %3348 = vmatpush1.msra.mxu0 %v917
  %3349 = vmatprep.subr.mxu0 0.0
  %3350 = vmatpush1.msra.mxu0 %v918
  %3351 = vmatprep.subr.mxu0 0.0
  %3352 = vmatpush1.msra.mxu0 %v919
  %3353 = vmatprep.subr.mxu0 0.0
  %3354 = vmatpush1.msra.mxu0 %v920
  %3355 = vmatprep.subr.mxu0 0.0
  %3356 = vmatpush1.msra.mxu0 %v921
  %3357 = vmatprep.subr.mxu0 0.0
  %3358 = vmatpush1.msra.mxu0 %v922
  %3359 = vmatprep.subr.mxu0 0.0
  %3360 = vmatpush1.msra.mxu0 %v923
  %3361 = vmatprep.subr.mxu0 0.0
  %3362 = vmatpush1.msra.mxu0 %v924
  %3363 = vmatprep.subr.mxu0 0.0
  %3364 = vmatpush1.msra.mxu0 %v925
  %3365 = vmatprep.subr.mxu0 0.0
  %3366 = vmatpush1.msra.mxu0 %v926
  %3367 = vmatprep.subr.mxu0 0.0
  %3368 = vmatpush1.msra.mxu0 %v927
  %3369 = vmatprep.mubr.f32.mxu0 %v1316
  %3370 = vmatmul.mubr.f32.gmra.mrb[0].mxu0 %v1314
  %v3371 = vpop.f32.mrb[0].mxu0
  %v3372 = vadd.f32 %v3302, %v3371
  %v3373 = vpop.f32.mrb[0].mxu0
  %3374 = vdwg.mxu0
  %3375 = vmatprep.subr.mxu0 0.0
  %3376 = vmatpush1.msra.mxu0 %v928
  %3377 = vmatprep.subr.mxu0 0.0
  %3378 = vmatpush1.msra.mxu0 %v929
  %3379 = vmatprep.subr.mxu0 0.0
  %3380 = vmatpush1.msra.mxu0 %v930
  %3381 = vmatprep.subr.mxu0 0.0
  %3382 = vmatpush1.msra.mxu0 %v931
  %3383 = vmatprep.subr.mxu0 0.0
  %3384 = vmatpush1.msra.mxu0 %v932
  %3385 = vmatprep.subr.mxu0 0.0
  %3386 = vmatpush1.msra.mxu0 %v933
  %3387 = vmatprep.subr.mxu0 0.0
  %3388 = vmatpush1.msra.mxu0 %v934
  %3389 = vmatprep.subr.mxu0 0.0
  %3390 = vmatpush1.msra.mxu0 %v935
  %3391 = vmatprep.subr.mxu0 0.0
  %3392 = vmatpush1.msra.mxu0 %v936
  %3393 = vmatprep.subr.mxu0 0.0
  %3394 = vmatpush1.msra.mxu0 %v937
  %3395 = vmatprep.subr.mxu0 0.0
  %3396 = vmatpush1.msra.mxu0 %v938
  %3397 = vmatprep.subr.mxu0 0.0
  %3398 = vmatpush1.msra.mxu0 %v939
  %3399 = vmatprep.subr.mxu0 0.0
  %3400 = vmatpush1.msra.mxu0 %v940
  %3401 = vmatprep.subr.mxu0 0.0
  %3402 = vmatpush1.msra.mxu0 %v941
  %3403 = vmatprep.subr.mxu0 0.0
  %3404 = vmatpush1.msra.mxu0 %v942
  %3405 = vmatprep.subr.mxu0 0.0
  %3406 = vmatpush1.msra.mxu0 %v943
  %3407 = vmatprep.subr.mxu0 0.0
  %3408 = vmatpush1.msra.mxu0 %v944
  %3409 = vmatprep.subr.mxu0 0.0
  %3410 = vmatpush1.msra.mxu0 %v945
  %3411 = vmatprep.subr.mxu0 0.0
  %3412 = vmatpush1.msra.mxu0 %v946
  %3413 = vmatprep.subr.mxu0 0.0
  %3414 = vmatpush1.msra.mxu0 %v947
  %3415 = vmatprep.subr.mxu0 0.0
  %3416 = vmatpush1.msra.mxu0 %v948
  %3417 = vmatprep.subr.mxu0 0.0
  %3418 = vmatpush1.msra.mxu0 %v949
  %3419 = vmatprep.subr.mxu0 0.0
  %3420 = vmatpush1.msra.mxu0 %v950
  %3421 = vmatprep.subr.mxu0 0.0
  %3422 = vmatpush1.msra.mxu0 %v951
  %3423 = vmatprep.subr.mxu0 0.0
  %3424 = vmatpush1.msra.mxu0 %v952
  %3425 = vmatprep.subr.mxu0 0.0
  %3426 = vmatpush1.msra.mxu0 %v953
  %3427 = vmatprep.subr.mxu0 0.0
  %3428 = vmatpush1.msra.mxu0 %v954
  %3429 = vmatprep.subr.mxu0 0.0
  %3430 = vmatpush1.msra.mxu0 %v955
  %3431 = vmatprep.subr.mxu0 0.0
  %3432 = vmatpush1.msra.mxu0 %v956
  %3433 = vmatprep.subr.mxu0 0.0
  %3434 = vmatpush1.msra.mxu0 %v957
  %3435 = vmatprep.subr.mxu0 0.0
  %3436 = vmatpush1.msra.mxu0 %v958
  %3437 = vmatprep.subr.mxu0 0.0
  %3438 = vmatpush1.msra.mxu0 %v959
  %3439 = vmatprep.mubr.f32.mxu0 %v1332
  %3440 = vmatmul.mubr.f32.gmra.mrb[0].mxu0 %v1324
  %v3441 = vpop.f32.mrb[0].mxu0
  %v3442 = vadd.f32 %v3372, %v3441
  %v3443 = vpop.f32.mrb[0].mxu0
  %3444 = vdwg.mxu0
  %3445 = vmatprep.subr.mxu0 0.0
  %3446 = vmatpush1.msra.mxu0 %v960
  %3447 = vmatprep.subr.mxu0 0.0
  %3448 = vmatpush1.msra.mxu0 %v961
  %3449 = vmatprep.subr.mxu0 0.0
  %3450 = vmatpush1.msra.mxu0 %v962
  %3451 = vmatprep.subr.mxu0 0.0
  %3452 = vmatpush1.msra.mxu0 %v963
  %3453 = vmatprep.subr.mxu0 0.0
  %3454 = vmatpush1.msra.mxu0 %v964
  %3455 = vmatprep.subr.mxu0 0.0
  %3456 = vmatpush1.msra.mxu0 %v965
  %3457 = vmatprep.subr.mxu0 0.0
  %3458 = vmatpush1.msra.mxu0 %v966
  %3459 = vmatprep.subr.mxu0 0.0
  %3460 = vmatpush1.msra.mxu0 %v967
  %3461 = vmatprep.subr.mxu0 0.0
  %3462 = vmatpush1.msra.mxu0 %v968
  %3463 = vmatprep.subr.mxu0 0.0
  %3464 = vmatpush1.msra.mxu0 %v969
  %3465 = vmatprep.subr.mxu0 0.0
  %3466 = vmatpush1.msra.mxu0 %v970
  %3467 = vmatprep.subr.mxu0 0.0
  %3468 = vmatpush1.msra.mxu0 %v971
  %3469 = vmatprep.subr.mxu0 0.0
  %3470 = vmatpush1.msra.mxu0 %v972
  %3471 = vmatprep.subr.mxu0 0.0
  %3472 = vmatpush1.msra.mxu0 %v973
  %3473 = vmatprep.subr.mxu0 0.0
  %3474 = vmatpush1.msra.mxu0 %v974
  %3475 = vmatprep.subr.mxu0 0.0
  %3476 = vmatpush1.msra.mxu0 %v975
  %3477 = vmatprep.subr.mxu0 0.0
  %3478 = vmatpush1.msra.mxu0 %v976
  %3479 = vmatprep.subr.mxu0 0.0
  %3480 = vmatpush1.msra.mxu0 %v977
  %3481 = vmatprep.subr.mxu0 0.0
  %3482 = vmatpush1.msra.mxu0 %v978
  %3483 = vmatprep.subr.mxu0 0.0
  %3484 = vmatpush1.msra.mxu0 %v979
  %3485 = vmatprep.subr.mxu0 0.0
  %3486 = vmatpush1.msra.mxu0 %v980
  %3487 = vmatprep.subr.mxu0 0.0
  %3488 = vmatpush1.msra.mxu0 %v981
  %3489 = vmatprep.subr.mxu0 0.0
  %3490 = vmatpush1.msra.mxu0 %v982
  %3491 = vmatprep.subr.mxu0 0.0
  %3492 = vmatpush1.msra.mxu0 %v983
  %3493 = vmatprep.subr.mxu0 0.0
  %3494 = vmatpush1.msra.mxu0 %v984
  %3495 = vmatprep.subr.mxu0 0.0
  %3496 = vmatpush1.msra.mxu0 %v985
  %3497 = vmatprep.subr.mxu0 0.0
  %3498 = vmatpush1.msra.mxu0 %v986
  %3499 = vmatprep.subr.mxu0 0.0
  %3500 = vmatpush1.msra.mxu0 %v987
  %3501 = vmatprep.subr.mxu0 0.0
  %3502 = vmatpush1.msra.mxu0 %v988
  %3503 = vmatprep.subr.mxu0 0.0
  %3504 = vmatpush1.msra.mxu0 %v989
  %3505 = vmatprep.subr.mxu0 0.0
  %3506 = vmatpush1.msra.mxu0 %v990
  %3507 = vmatprep.subr.mxu0 0.0
  %3508 = vmatpush1.msra.mxu0 %v991
  %3509 = vmatprep.mubr.f32.mxu0 %v1333
  %3510 = vmatmul.mubr.f32.gmra.mrb[0].mxu0 %v1331
  %v3511 = vpop.f32.mrb[0].mxu0
  %v3512 = vadd.f32 %v3442, %v3511
  %v3513 = vpop.f32.mrb[0].mxu0
  %3514 = vdwg.mxu0
  %3515 = vmatprep.subr.mxu0 0.0
  %3516 = vmatpush1.msra.mxu0 %v992
  %3517 = vmatprep.subr.mxu0 0.0
  %3518 = vmatpush1.msra.mxu0 %v993
  %3519 = vmatprep.subr.mxu0 0.0
  %3520 = vmatpush1.msra.mxu0 %v994
  %3521 = vmatprep.subr.mxu0 0.0
  %3522 = vmatpush1.msra.mxu0 %v995
  %3523 = vmatprep.subr.mxu0 0.0
  %3524 = vmatpush1.msra.mxu0 %v996
  %3525 = vmatprep.subr.mxu0 0.0
  %3526 = vmatpush1.msra.mxu0 %v997
  %3527 = vmatprep.subr.mxu0 0.0
  %3528 = vmatpush1.msra.mxu0 %v998
  %3529 = vmatprep.subr.mxu0 0.0
  %3530 = vmatpush1.msra.mxu0 %v999
  %3531 = vmatprep.subr.mxu0 0.0
  %3532 = vmatpush1.msra.mxu0 %v1000
  %3533 = vmatprep.subr.mxu0 0.0
  %3534 = vmatpush1.msra.mxu0 %v1001
  %3535 = vmatprep.subr.mxu0 0.0
  %3536 = vmatpush1.msra.mxu0 %v1002
  %3537 = vmatprep.subr.mxu0 0.0
  %3538 = vmatpush1.msra.mxu0 %v1003
  %3539 = vmatprep.subr.mxu0 0.0
  %3540 = vmatpush1.msra.mxu0 %v1004
  %3541 = vmatprep.subr.mxu0 0.0
  %3542 = vmatpush1.msra.mxu0 %v1005
  %3543 = vmatprep.subr.mxu0 0.0
  %3544 = vmatpush1.msra.mxu0 %v1006
  %3545 = vmatprep.subr.mxu0 0.0
  %3546 = vmatpush1.msra.mxu0 %v1007
  %3547 = vmatprep.subr.mxu0 0.0
  %3548 = vmatpush1.msra.mxu0 %v1008
  %3549 = vmatprep.subr.mxu0 0.0
  %3550 = vmatpush1.msra.mxu0 %v1009
  %3551 = vmatprep.subr.mxu0 0.0
  %3552 = vmatpush1.msra.mxu0 %v1010
  %3553 = vmatprep.subr.mxu0 0.0
  %3554 = vmatpush1.msra.mxu0 %v1011
  %3555 = vmatprep.subr.mxu0 0.0
  %3556 = vmatpush1.msra.mxu0 %v1012
  %3557 = vmatprep.subr.mxu0 0.0
  %3558 = vmatpush1.msra.mxu0 %v1013
  %3559 = vmatprep.subr.mxu0 0.0
  %3560 = vmatpush1.msra.mxu0 %v1014
  %3561 = vmatprep.subr.mxu0 0.0
  %3562 = vmatpush1.msra.mxu0 %v1015
  %3563 = vmatprep.subr.mxu0 0.0
  %3564 = vmatpush1.msra.mxu0 %v1016
  %3565 = vmatprep.subr.mxu0 0.0
  %3566 = vmatpush1.msra.mxu0 %v1017
  %3567 = vmatprep.subr.mxu0 0.0
  %3568 = vmatpush1.msra.mxu0 %v1018
  %3569 = vmatprep.subr.mxu0 0.0
  %3570 = vmatpush1.msra.mxu0 %v1019
  %3571 = vmatprep.subr.mxu0 0.0
  %3572 = vmatpush1.msra.mxu0 %v1020
  %3573 = vmatprep.subr.mxu0 0.0
  %3574 = vmatpush1.msra.mxu0 %v1021
  %3575 = vmatprep.subr.mxu0 0.0
  %3576 = vmatpush1.msra.mxu0 %v1022
  %3577 = vmatprep.subr.mxu0 0.0
  %3578 = vmatpush1.msra.mxu0 %v1023
  %3579 = vmatprep.mubr.f32.mxu0 %v1349
  %3580 = vmatmul.mubr.f32.gmra.mrb[0].mxu0 %v1341
  %v3581 = vpop.f32.mrb[0].mxu0
  %v3582 = vadd.f32 %v3512, %v3581
  %v3583 = vpop.f32.mrb[0].mxu0
  %3584 = vdwg.mxu0
  %3585 = vmatprep.subr.mxu0 0.0
  %3586 = vmatpush1.msra.mxu0 %v1024
  %3587 = vmatprep.subr.mxu0 0.0
  %3588 = vmatpush1.msra.mxu0 %v1025
  %3589 = vmatprep.subr.mxu0 0.0
  %3590 = vmatpush1.msra.mxu0 %v1026
  %3591 = vmatprep.subr.mxu0 0.0
  %3592 = vmatpush1.msra.mxu0 %v1027
  %3593 = vmatprep.subr.mxu0 0.0
  %3594 = vmatpush1.msra.mxu0 %v1028
  %3595 = vmatprep.subr.mxu0 0.0
  %3596 = vmatpush1.msra.mxu0 %v1029
  %3597 = vmatprep.subr.mxu0 0.0
  %3598 = vmatpush1.msra.mxu0 %v1030
  %3599 = vmatprep.subr.mxu0 0.0
  %3600 = vmatpush1.msra.mxu0 %v1031
  %3601 = vmatprep.subr.mxu0 0.0
  %3602 = vmatpush1.msra.mxu0 %v1032
  %3603 = vmatprep.subr.mxu0 0.0
  %3604 = vmatpush1.msra.mxu0 %v1033
  %3605 = vmatprep.subr.mxu0 0.0
  %3606 = vmatpush1.msra.mxu0 %v1034
  %3607 = vmatprep.subr.mxu0 0.0
  %3608 = vmatpush1.msra.mxu0 %v1035
  %3609 = vmatprep.subr.mxu0 0.0
  %3610 = vmatpush1.msra.mxu0 %v1036
  %3611 = vmatprep.subr.mxu0 0.0
  %3612 = vmatpush1.msra.mxu0 %v1037
  %3613 = vmatprep.subr.mxu0 0.0
  %3614 = vmatpush1.msra.mxu0 %v1038
  %3615 = vmatprep.subr.mxu0 0.0
  %3616 = vmatpush1.msra.mxu0 %v1039
  %3617 = vmatprep.subr.mxu0 0.0
  %3618 = vmatpush1.msra.mxu0 %v1040
  %3619 = vmatprep.subr.mxu0 0.0
  %3620 = vmatpush1.msra.mxu0 %v1041
  %3621 = vmatprep.subr.mxu0 0.0
  %3622 = vmatpush1.msra.mxu0 %v1042
  %3623 = vmatprep.subr.mxu0 0.0
  %3624 = vmatpush1.msra.mxu0 %v1043
  %3625 = vmatprep.subr.mxu0 0.0
  %3626 = vmatpush1.msra.mxu0 %v1044
  %3627 = vmatprep.subr.mxu0 0.0
  %3628 = vmatpush1.msra.mxu0 %v1045
  %3629 = vmatprep.subr.mxu0 0.0
  %3630 = vmatpush1.msra.mxu0 %v1046
  %3631 = vmatprep.subr.mxu0 0.0
  %3632 = vmatpush1.msra.mxu0 %v1047
  %3633 = vmatprep.subr.mxu0 0.0
  %3634 = vmatpush1.msra.mxu0 %v1048
  %3635 = vmatprep.subr.mxu0 0.0
  %3636 = vmatpush1.msra.mxu0 %v1049
  %3637 = vmatprep.subr.mxu0 0.0
  %3638 = vmatpush1.msra.mxu0 %v1050
  %3639 = vmatprep.subr.mxu0 0.0
  %3640 = vmatpush1.msra.mxu0 %v1051
  %3641 = vmatprep.subr.mxu0 0.0
  %3642 = vmatpush1.msra.mxu0 %v1052
  %3643 = vmatprep.subr.mxu0 0.0
  %3644 = vmatpush1.msra.mxu0 %v1053
  %3645 = vmatprep.subr.mxu0 0.0
  %3646 = vmatpush1.msra.mxu0 %v1054
  %3647 = vmatprep.subr.mxu0 0.0
  %3648 = vmatpush1.msra.mxu0 %v1055
  %3649 = vmatprep.mubr.f32.mxu0 %v1350
  %3650 = vmatmul.mubr.f32.gmra.mrb[0].mxu0 %v1348
  %v3651 = vpop.f32.mrb[0].mxu0
  %v3652 = vadd.f32 %v3582, %v3651
  %v3653 = vpop.f32.mrb[0].mxu0
  %3654 = vdwg.mxu0
  %vm3655 = vcmask 1024
  %3656 = vst.msk [vmem:[%s3] sm:$0x3] %vm3655, %v3652
  // Predicated region
  $region14: #{discriminator_forward.9} parent=0 // pred_check
    _
  $region15: #{discriminator_forward.9} parent=0 // pred_check_branch
    %3658 = sbr.rel (0) target = $region17
  $region16: #{discriminator_forward.9} parent=0 // pred_region
    _
  $region17: #{discriminator_forward.9} parent=0 // pred_fallthru
    _
  // Predicated region
  $region18: #{discriminator_forward.9} parent=0 // pred_check
    _
  $region19: #{discriminator_forward.9} parent=0 // pred_check_branch
    %3660 = sbr.rel (0) target = $region21
  $region20: #{discriminator_forward.9} parent=0 // pred_region
    _
  $region21: #{discriminator_forward.9} parent=0 // pred_fallthru
    _

</llo_original>
